<compile_context>
chip_gen: v7x
topology: tpu7x:2x2x1
jax: 0.10.0
libtpu: 0.0.40
codegen_flags: <defaults>
</compile_context>

<pallas_src>
import functools

import numpy as np
import jax
import jax.numpy as jnp
from jax.experimental import pallas as pl
from jax.experimental.pallas import tpu as pltpu


# (Cin, Cout, stride) for the 10 conv_dw blocks.
_CFG = [(24, 48, 1), (48, 96, 2), (96, 192, 1), (192, 192, 1), (192, 192, 1),
        (192, 192, 1), (192, 192, 1), (192, 192, 1), (192, 384, 2), (384, 768, 1)]

# Activation ping-pong scratch dtype.  float32 is exact and v5e-safe (no bf16 VALU there);
# on v6e/v7x switching to jnp.bfloat16 halves activation vld/vst traffic.
_ACT_DTYPE = jnp.float32


def _layer_dims(h0, w0):
    """Static per-layer geometry: (H, W, Cin, Cout, stride, Ho, Wo)."""
    dims = []
    h, w = h0, w0
    for (cin, cout, s) in _CFG:
        ho = (h - 1) // s + 1
        wo = (w - 1) // s + 1
        dims.append((h, w, cin, cout, s, ho, wo))
        h, w = ho, wo
    return tuple(dims)


def _make_sel(b, h, w, ho, wo):
    """(B*Ho*Wo, B*H*W) 0/1 bf16 matrix: row (b,i,j) selects flat row (b, 2i, 2j)."""
    m = np.zeros((b * ho * wo, b * h * w), np.float32)
    for bb in range(b):
        for i in range(ho):
            for j in range(wo):
                m[bb * ho * wo + i * wo + j, bb * h * w + 2 * i * w + 2 * j] = 1.0
    return jnp.asarray(m, dtype=jnp.bfloat16)


def _mobilenet_kernel(*refs, dims, nsel, B):
    # ref order: x, [sel for stride-2 layers], 10 x (dw_w, dw_b, pw_w, pw_b),
    #            fc_w, fc_b, out, buf_a, buf_b
    idx = 0
    x_ref = refs[idx]; idx += 1
    sel_refs = refs[idx:idx + nsel]; idx += nsel
    layer_refs = []
    for _ in dims:
        layer_refs.append(refs[idx:idx + 4]); idx += 4
    fcw_ref = refs[idx]; fcb_ref = refs[idx + 1]; idx += 2
    o_ref = refs[idx]; idx += 1
    bufs = (refs[idx], refs[idx + 1])

    f32 = jnp.float32
    mask_cache = {}

    def tap_conds(rows, H, W):
        """Border-validity masks (shape (rows,1) bool) for the 8 non-center taps."""
        key = (rows, H, W)
        if key in mask_cache:
            return mask_cache[key]
        HW = H * W
        r = jax.lax.broadcasted_iota(jnp.int32, (rows, 1), 0)
        if rows == HW:
            p = r
        elif (HW & (HW - 1)) == 0:
            p = jnp.bitwise_and(r, HW - 1)            # position within the image
        else:
            p = jax.lax.rem(r, HW)
        if (W & (W - 1)) == 0:
            w = jnp.bitwise_and(p, W - 1)             # column within the row
        else:
            w = jax.lax.rem(p, W)
        conds = {}
        for dh in (-1, 0, 1):
            for dw in (-1, 0, 1):
                c = None
                if dh == -1:
                    c = p >= W                        # h >= 1
                elif dh == 1:
                    c = p < (H - 1) * W               # h <= H-2
                if dw == -1:
                    cw = w >= 1
                    c = cw if c is None else jnp.logical_and(c, cw)
                elif dw == 1:
                    cw = w <= W - 2
                    c = cw if c is None else jnp.logical_and(c, cw)
                conds[(dh, dw)] = c                   # None for the center tap
        mask_cache[key] = conds
        return conds

    sel_i = 0
    for li, (H, W, Cin, Cout, stride, Ho, Wo) in enumerate(dims):
        rows = B * H * W
        rows_out = B * Ho * Wo
        dww_ref, dwb_ref, pww_ref, pwb_ref = layer_refs[li]

        if li == 0:
            xin = x_ref[...]                                   # (rows, Cin) f32
        else:
            xin = bufs[(li - 1) % 2][0:rows, 0:Cin].astype(f32)

        # ---- depthwise 3x3 (pad=1) via flat-axis rolls + border masks ----
        conds = tap_conds(rows, H, W)
        acc = xin * dww_ref[4:5, :]                            # center tap
        for dh in (-1, 0, 1):
            for dw in (-1, 0, 1):
                if dh == 0 and dw == 0:
                    continue
                s = dh * W + dw
                shifted = pltpu.roll(xin, shift=(-s) % rows, axis=0)
                tap = jnp.where(conds[(dh, dw)], shifted, 0.0)
                t = (dh + 1) * 3 + (dw + 1)
                acc = acc + tap * dww_ref[t:t + 1, :]
        y = jnp.maximum(acc + dwb_ref[...], 0.0).astype(jnp.bfloat16)   # (rows, Cin)

        # ---- stride 2: one 0/1 bf16 selection matmul gathers the kept rows (exact) ----
        if stride == 2:
            sel = sel_refs[sel_i][...]                         # (rows_out, rows) bf16
            sel_i += 1
            y = jnp.dot(sel, y, preferred_element_type=f32).astype(jnp.bfloat16)

        # ---- pointwise 1x1 + folded-BN bias + ReLU: ONE MXU matmul per layer ----
        o = jnp.dot(y, pww_ref[...], preferred_element_type=f32) + pwb_ref[...]
        o = jnp.maximum(o, 0.0)
        bufs[li % 2][0:rows_out, 0:Cout] = o.astype(_ACT_DTYPE)  # aligned slab store

    # ---- AdaptiveAvgPool2d((1,1)) + Linear (1/(Hf*Wf) folded into fc_w on host) ----
    Hf, Wf, Cf = dims[-1][5], dims[-1][6], dims[-1][3]
    HfWf = Hf * Wf
    fin_buf = bufs[(len(dims) - 1) % 2]
    pooled_rows = []
    for b in range(B):
        blk = fin_buf[b * HfWf:(b + 1) * HfWf, 0:Cf].astype(f32)   # (HfWf, Cf)
        pooled_rows.append(jnp.sum(blk, axis=0, keepdims=True))    # (1, Cf)
    pooled = pooled_rows[0] if B == 1 else jnp.concatenate(pooled_rows, axis=0)
    z = jnp.dot(pooled.astype(jnp.bfloat16), fcw_ref[...],
                preferred_element_type=f32) + fcb_ref[...]
    o_ref[0] = z.astype(o_ref.dtype)


def _full_spec(shape):
    nd = len(shape)
    return pl.BlockSpec(tuple(shape), lambda g, _nd=nd: (0,) * _nd)


def _forward_impl(x_nchw, params, batch_block=2):
    x_nchw = x_nchw.astype(jnp.float32)
    N, C0, H0, W0 = x_nchw.shape
    B = batch_block if (N % batch_block == 0) else 1
    dims = _layer_dims(H0, W0)
    y_len = params["fc_w"].shape[1]

    # Host-side layout prep only: NCHW -> NHWC -> flat (N*H0*W0, C0).
    x = jnp.transpose(x_nchw, (0, 2, 3, 1)).reshape(N * H0 * W0, C0)

    inputs = [x]
    in_specs = [pl.BlockSpec((B * H0 * W0, C0), lambda g: (g, 0))]

    nsel = 0
    for (H, W, Cin, Cout, stride, Ho, Wo) in dims:
        if stride == 2:
            sel = _make_sel(B, H, W, Ho, Wo)
            inputs.append(sel)
            in_specs.append(_full_spec(sel.shape))
            nsel += 1

    for layer in params["layers"]:
        for name in ("dw_w", "dw_b", "pw_w", "pw_b"):
            arr = layer[name]
            inputs.append(arr)
            in_specs.append(_full_spec(arr.shape))

    Hf, Wf = dims[-1][5], dims[-1][6]
    fc_w = params["fc_w"] * (1.0 / float(Hf * Wf))     # fold avg-pool scale into fc_w
    inputs += [fc_w, params["fc_b"]]
    in_specs += [_full_spec(fc_w.shape), _full_spec(params["fc_b"].shape)]

    max_rows = B * max(d[0] * d[1] for d in dims)
    max_c = max(max(d[2], d[3]) for d in dims)

    kern = functools.partial(_mobilenet_kernel, dims=dims, nsel=nsel, B=B)
    out = pl.pallas_call(
        kern,
        grid=(N // B,),
        in_specs=in_specs,
        out_specs=pl.BlockSpec((1, B, y_len), lambda g: (g, 0, 0)),
        out_shape=jax.ShapeDtypeStruct((N // B, B, y_len), jnp.float32),
        scratch_shapes=[
            pltpu.VMEM((max_rows, max_c), _ACT_DTYPE),   # activation ping
            pltpu.VMEM((max_rows, max_c), _ACT_DTYPE),   # activation pong
        ],
        compiler_params=pltpu.CompilerParams(dimension_semantics=("parallel",)),
    )(*inputs)
    return out.reshape(N, y_len)


mobilenet_forward = jax.jit(functools.partial(_forward_impl, batch_block=2))


# ---------------------------------------------------------------------------
# Parameters (deterministic synthetic init), BN folded into conv weights
# ---------------------------------------------------------------------------
def _fold_bn(gamma, beta, mean, var, eps=1e-5):
    scale = gamma / jnp.sqrt(var + eps)
    return scale, beta - mean * scale


def init_params(key, y_len):
    layers = []
    for (cin, cout, stride) in _CFG:
        key, k1, k2, k3, k4, k5, k6 = jax.random.split(key, 7)
        dw_w = 0.1 * jax.random.normal(k1, (3, 3, cin), jnp.float32)
        dw_gamma = 1.0 + 0.1 * jax.random.normal(k2, (cin,), jnp.float32)
        dw_beta = 0.1 * jax.random.normal(k3, (cin,), jnp.float32)
        pw_w = 0.1 * jax.random.normal(k4, (cin, cout), jnp.float32)
        pw_gamma = 1.0 + 0.1 * jax.random.normal(k5, (cout,), jnp.float32)
        pw_beta = 0.1 * jax.random.normal(k6, (cout,), jnp.float32)
        # eval-mode BN (running mean=0, var=1) -> per-channel scale/bias; scale folded
        # straight into the conv weights, bias kept as the epilogue add.
        dw_scale, dw_bias = _fold_bn(dw_gamma, dw_beta,
                                     jnp.zeros((cin,)), jnp.ones((cin,)))
        pw_scale, pw_bias = _fold_bn(pw_gamma, pw_beta,
                                     jnp.zeros((cout,)), jnp.ones((cout,)))
        layers.append(dict(
            # depthwise weight rows indexed as kh*3 + kw  ->  (9, Cin)
            dw_w=(dw_w * dw_scale[None, None, :]).reshape(9, cin).astype(jnp.float32),
            dw_b=dw_bias.reshape(1, cin).astype(jnp.float32),
            pw_w=(pw_w * pw_scale[None, :]).astype(jnp.bfloat16),
            pw_b=pw_bias.reshape(1, cout).astype(jnp.float32),
        ))
    key, kw, kb = jax.random.split(key, 3)
    fc_w = (0.05 * jax.random.normal(kw, (768, y_len), jnp.float32)).astype(jnp.bfloat16)
    fc_b = (0.05 * jax.random.normal(kb, (y_len,), jnp.float32)).reshape(1, y_len)
    return dict(layers=layers, fc_w=fc_w, fc_b=fc_b)


if __name__ == "__main__":
    key = jax.random.PRNGKey(0)
    kx, kp = jax.random.split(key)
    y_len = 6
    # stem output: batch=2, channels=24, spatial=8x8 (NCHW, PyTorch convention)
    x = jax.random.normal(kx, (2, 24, 8, 8), jnp.float32)
    params = init_params(kp, y_len)
    out = mobilenet_forward(x, params)
    out = jax.block_until_ready(out)
    assert out.shape == (2, y_len) and out.dtype == jnp.float32
    print("KERNEL_OK")
</pallas_src>

<mosaic_0001>
module attributes {stable_mosaic.version = 11 : i64} {
  func.func @_mobilenet_kernel(%arg0: i32, %arg1: memref<128x24xf32, #tpu.memory_space<vmem>>, %arg2: memref<32x128xbf16, #tpu.memory_space<vmem>>, %arg3: memref<8x32xbf16, #tpu.memory_space<vmem>>, %arg4: memref<9x24xf32, #tpu.memory_space<vmem>>, %arg5: memref<1x24xf32, #tpu.memory_space<vmem>>, %arg6: memref<24x48xbf16, #tpu.memory_space<vmem>>, %arg7: memref<1x48xf32, #tpu.memory_space<vmem>>, %arg8: memref<9x48xf32, #tpu.memory_space<vmem>>, %arg9: memref<1x48xf32, #tpu.memory_space<vmem>>, %arg10: memref<48x96xbf16, #tpu.memory_space<vmem>>, %arg11: memref<1x96xf32, #tpu.memory_space<vmem>>, %arg12: memref<9x96xf32, #tpu.memory_space<vmem>>, %arg13: memref<1x96xf32, #tpu.memory_space<vmem>>, %arg14: memref<96x192xbf16, #tpu.memory_space<vmem>>, %arg15: memref<1x192xf32, #tpu.memory_space<vmem>>, %arg16: memref<9x192xf32, #tpu.memory_space<vmem>>, %arg17: memref<1x192xf32, #tpu.memory_space<vmem>>, %arg18: memref<192x192xbf16, #tpu.memory_space<vmem>>, %arg19: memref<1x192xf32, #tpu.memory_space<vmem>>, %arg20: memref<9x192xf32, #tpu.memory_space<vmem>>, %arg21: memref<1x192xf32, #tpu.memory_space<vmem>>, %arg22: memref<192x192xbf16, #tpu.memory_space<vmem>>, %arg23: memref<1x192xf32, #tpu.memory_space<vmem>>, %arg24: memref<9x192xf32, #tpu.memory_space<vmem>>, %arg25: memref<1x192xf32, #tpu.memory_space<vmem>>, %arg26: memref<192x192xbf16, #tpu.memory_space<vmem>>, %arg27: memref<1x192xf32, #tpu.memory_space<vmem>>, %arg28: memref<9x192xf32, #tpu.memory_space<vmem>>, %arg29: memref<1x192xf32, #tpu.memory_space<vmem>>, %arg30: memref<192x192xbf16, #tpu.memory_space<vmem>>, %arg31: memref<1x192xf32, #tpu.memory_space<vmem>>, %arg32: memref<9x192xf32, #tpu.memory_space<vmem>>, %arg33: memref<1x192xf32, #tpu.memory_space<vmem>>, %arg34: memref<192x192xbf16, #tpu.memory_space<vmem>>, %arg35: memref<1x192xf32, #tpu.memory_space<vmem>>, %arg36: memref<9x192xf32, #tpu.memory_space<vmem>>, %arg37: memref<1x192xf32, #tpu.memory_space<vmem>>, %arg38: memref<192x384xbf16, #tpu.memory_space<vmem>>, %arg39: memref<1x384xf32, #tpu.memory_space<vmem>>, %arg40: memref<9x384xf32, #tpu.memory_space<vmem>>, %arg41: memref<1x384xf32, #tpu.memory_space<vmem>>, %arg42: memref<384x768xbf16, #tpu.memory_space<vmem>>, %arg43: memref<1x768xf32, #tpu.memory_space<vmem>>, %arg44: memref<768x6xbf16, #tpu.memory_space<vmem>>, %arg45: memref<1x6xf32, #tpu.memory_space<vmem>>, %arg46: memref<1x2x6xf32, #tpu.memory_space<vmem>>, %arg47: memref<128x768xf32, #tpu.memory_space<vmem>>, %arg48: memref<128x768xf32, #tpu.memory_space<vmem>>) attributes {dimension_semantics = [#tpu.dimension_semantics<parallel>], iteration_bounds = array<i64: 1>, scalar_prefetch = 0 : i64, scratch_operands = 2 : i64, tpu.core_type = #tpu.core_type<tc>, window_params = [{transform_indices = @transform_0, window_bounds = array<i64: 128, 24>}, {pipeline_mode = #tpu.pipeline_mode<synchronous>, transform_indices = @transform_1, window_bounds = array<i64: 32, 128>}, {pipeline_mode = #tpu.pipeline_mode<synchronous>, transform_indices = @transform_2, window_bounds = array<i64: 8, 32>}, {pipeline_mode = #tpu.pipeline_mode<synchronous>, transform_indices = @transform_3, window_bounds = array<i64: 9, 24>}, {pipeline_mode = #tpu.pipeline_mode<synchronous>, transform_indices = @transform_4, window_bounds = array<i64: 1, 24>}, {pipeline_mode = #tpu.pipeline_mode<synchronous>, transform_indices = @transform_5, window_bounds = array<i64: 24, 48>}, {pipeline_mode = #tpu.pipeline_mode<synchronous>, transform_indices = @transform_6, window_bounds = array<i64: 1, 48>}, {pipeline_mode = #tpu.pipeline_mode<synchronous>, transform_indices = @transform_7, window_bounds = array<i64: 9, 48>}, {pipeline_mode = #tpu.pipeline_mode<synchronous>, transform_indices = @transform_8, window_bounds = array<i64: 1, 48>}, {pipeline_mode = #tpu.pipeline_mode<synchronous>, transform_indices = @transform_9, window_bounds = array<i64: 48, 96>}, {pipeline_mode = #tpu.pipeline_mode<synchronous>, transform_indices = @transform_10, window_bounds = array<i64: 1, 96>}, {pipeline_mode = #tpu.pipeline_mode<synchronous>, transform_indices = @transform_11, window_bounds = array<i64: 9, 96>}, {pipeline_mode = #tpu.pipeline_mode<synchronous>, transform_indices = @transform_12, window_bounds = array<i64: 1, 96>}, {pipeline_mode = #tpu.pipeline_mode<synchronous>, transform_indices = @transform_13, window_bounds = array<i64: 96, 192>}, {pipeline_mode = #tpu.pipeline_mode<synchronous>, transform_indices = @transform_14, window_bounds = array<i64: 1, 192>}, {pipeline_mode = #tpu.pipeline_mode<synchronous>, transform_indices = @transform_15, window_bounds = array<i64: 9, 192>}, {pipeline_mode = #tpu.pipeline_mode<synchronous>, transform_indices = @transform_16, window_bounds = array<i64: 1, 192>}, {pipeline_mode = #tpu.pipeline_mode<synchronous>, transform_indices = @transform_17, window_bounds = array<i64: 192, 192>}, {pipeline_mode = #tpu.pipeline_mode<synchronous>, transform_indices = @transform_18, window_bounds = array<i64: 1, 192>}, {pipeline_mode = #tpu.pipeline_mode<synchronous>, transform_indices = @transform_19, window_bounds = array<i64: 9, 192>}, {pipeline_mode = #tpu.pipeline_mode<synchronous>, transform_indices = @transform_20, window_bounds = array<i64: 1, 192>}, {pipeline_mode = #tpu.pipeline_mode<synchronous>, transform_indices = @transform_21, window_bounds = array<i64: 192, 192>}, {pipeline_mode = #tpu.pipeline_mode<synchronous>, transform_indices = @transform_22, window_bounds = array<i64: 1, 192>}, {pipeline_mode = #tpu.pipeline_mode<synchronous>, transform_indices = @transform_23, window_bounds = array<i64: 9, 192>}, {pipeline_mode = #tpu.pipeline_mode<synchronous>, transform_indices = @transform_24, window_bounds = array<i64: 1, 192>}, {pipeline_mode = #tpu.pipeline_mode<synchronous>, transform_indices = @transform_25, window_bounds = array<i64: 192, 192>}, {pipeline_mode = #tpu.pipeline_mode<synchronous>, transform_indices = @transform_26, window_bounds = array<i64: 1, 192>}, {pipeline_mode = #tpu.pipeline_mode<synchronous>, transform_indices = @transform_27, window_bounds = array<i64: 9, 192>}, {pipeline_mode = #tpu.pipeline_mode<synchronous>, transform_indices = @transform_28, window_bounds = array<i64: 1, 192>}, {pipeline_mode = #tpu.pipeline_mode<synchronous>, transform_indices = @transform_29, window_bounds = array<i64: 192, 192>}, {pipeline_mode = #tpu.pipeline_mode<synchronous>, transform_indices = @transform_30, window_bounds = array<i64: 1, 192>}, {pipeline_mode = #tpu.pipeline_mode<synchronous>, transform_indices = @transform_31, window_bounds = array<i64: 9, 192>}, {pipeline_mode = #tpu.pipeline_mode<synchronous>, transform_indices = @transform_32, window_bounds = array<i64: 1, 192>}, {pipeline_mode = #tpu.pipeline_mode<synchronous>, transform_indices = @transform_33, window_bounds = array<i64: 192, 192>}, {pipeline_mode = #tpu.pipeline_mode<synchronous>, transform_indices = @transform_34, window_bounds = array<i64: 1, 192>}, {pipeline_mode = #tpu.pipeline_mode<synchronous>, transform_indices = @transform_35, window_bounds = array<i64: 9, 192>}, {pipeline_mode = #tpu.pipeline_mode<synchronous>, transform_indices = @transform_36, window_bounds = array<i64: 1, 192>}, {pipeline_mode = #tpu.pipeline_mode<synchronous>, transform_indices = @transform_37, window_bounds = array<i64: 192, 384>}, {pipeline_mode = #tpu.pipeline_mode<synchronous>, transform_indices = @transform_38, window_bounds = array<i64: 1, 384>}, {pipeline_mode = #tpu.pipeline_mode<synchronous>, transform_indices = @transform_39, window_bounds = array<i64: 9, 384>}, {pipeline_mode = #tpu.pipeline_mode<synchronous>, transform_indices = @transform_40, window_bounds = array<i64: 1, 384>}, {pipeline_mode = #tpu.pipeline_mode<synchronous>, transform_indices = @transform_41, window_bounds = array<i64: 384, 768>}, {pipeline_mode = #tpu.pipeline_mode<synchronous>, transform_indices = @transform_42, window_bounds = array<i64: 1, 768>}, {pipeline_mode = #tpu.pipeline_mode<synchronous>, transform_indices = @transform_43, window_bounds = array<i64: 768, 6>}, {pipeline_mode = #tpu.pipeline_mode<synchronous>, transform_indices = @transform_44, window_bounds = array<i64: 1, 6>}, {transform_indices = @transform_45, window_bounds = array<i64: 1, 2, 6>}]} {
    %c0 = arith.constant 0 : index
    %c0_0 = arith.constant 0 : index
    %0 = vector.load %arg1[%c0, %c0_0] : memref<128x24xf32, #tpu.memory_space<vmem>>, vector<128x24xf32>
    %1 = tpu.iota {dimensions = array<i32: 0>} : vector<128x1xi32>
    %c63_i32 = arith.constant 63 : i32
    %2 = vector.broadcast %c63_i32 : i32 to vector<128x1xi32>
    %3 = arith.andi %1, %2 : vector<128x1xi32>
    %c7_i32 = arith.constant 7 : i32
    %4 = vector.broadcast %c7_i32 : i32 to vector<128x1xi32>
    %5 = arith.andi %3, %4 : vector<128x1xi32>
    %c8_i32 = arith.constant 8 : i32
    %6 = vector.broadcast %c8_i32 : i32 to vector<128x1xi32>
    %7 = arith.cmpi sge, %3, %6 : vector<128x1xi32>
    %c1_i32 = arith.constant 1 : i32
    %8 = vector.broadcast %c1_i32 : i32 to vector<128x1xi32>
    %9 = arith.cmpi sge, %5, %8 : vector<128x1xi32>
    %10 = arith.andi %7, %9 : vector<128x1xi1>
    %c8_i32_1 = arith.constant 8 : i32
    %11 = vector.broadcast %c8_i32_1 : i32 to vector<128x1xi32>
    %12 = arith.cmpi sge, %3, %11 : vector<128x1xi32>
    %c8_i32_2 = arith.constant 8 : i32
    %13 = vector.broadcast %c8_i32_2 : i32 to vector<128x1xi32>
    %14 = arith.cmpi sge, %3, %13 : vector<128x1xi32>
    %c6_i32 = arith.constant 6 : i32
    %15 = vector.broadcast %c6_i32 : i32 to vector<128x1xi32>
    %16 = arith.cmpi sle, %5, %15 : vector<128x1xi32>
    %17 = arith.andi %14, %16 : vector<128x1xi1>
    %c1_i32_3 = arith.constant 1 : i32
    %18 = vector.broadcast %c1_i32_3 : i32 to vector<128x1xi32>
    %19 = arith.cmpi sge, %5, %18 : vector<128x1xi32>
    %c6_i32_4 = arith.constant 6 : i32
    %20 = vector.broadcast %c6_i32_4 : i32 to vector<128x1xi32>
    %21 = arith.cmpi sle, %5, %20 : vector<128x1xi32>
    %c56_i32 = arith.constant 56 : i32
    %22 = vector.broadcast %c56_i32 : i32 to vector<128x1xi32>
    %23 = arith.cmpi slt, %3, %22 : vector<128x1xi32>
    %c1_i32_5 = arith.constant 1 : i32
    %24 = vector.broadcast %c1_i32_5 : i32 to vector<128x1xi32>
    %25 = arith.cmpi sge, %5, %24 : vector<128x1xi32>
    %26 = arith.andi %23, %25 : vector<128x1xi1>
    %c56_i32_6 = arith.constant 56 : i32
    %27 = vector.broadcast %c56_i32_6 : i32 to vector<128x1xi32>
    %28 = arith.cmpi slt, %3, %27 : vector<128x1xi32>
    %c56_i32_7 = arith.constant 56 : i32
    %29 = vector.broadcast %c56_i32_7 : i32 to vector<128x1xi32>
    %30 = arith.cmpi slt, %3, %29 : vector<128x1xi32>
    %c6_i32_8 = arith.constant 6 : i32
    %31 = vector.broadcast %c6_i32_8 : i32 to vector<128x1xi32>
    %32 = arith.cmpi sle, %5, %31 : vector<128x1xi32>
    %33 = arith.andi %30, %32 : vector<128x1xi1>
    %c4 = arith.constant 4 : index
    %c0_9 = arith.constant 0 : index
    %34 = vector.load %arg4[%c4, %c0_9] : memref<9x24xf32, #tpu.memory_space<vmem>>, vector<1x24xf32>
    %35 = vector.broadcast %34 : vector<1x24xf32> to vector<128x24xf32>
    %36 = arith.mulf %0, %35 : vector<128x24xf32>
    %c9_i32 = arith.constant 9 : i32
    %37 = tpu.dynamic_rotate %0 by %c9_i32 dim 0 : vector<128x24xf32>, i32 -> vector<128x24xf32>
    %cst = arith.constant 0.000000e+00 : f32
    %38 = vector.shape_cast %10 : vector<128x1xi1> to vector<128x1xi1>
    %39 = vector.broadcast %38 : vector<128x1xi1> to vector<128x24xi1>
    %40 = vector.broadcast %cst : f32 to vector<128x24xf32>
    %41 = arith.select %39, %37, %40 : vector<128x24xi1>, vector<128x24xf32>
    %c0_10 = arith.constant 0 : index
    %c0_11 = arith.constant 0 : index
    %42 = vector.load %arg4[%c0_10, %c0_11] : memref<9x24xf32, #tpu.memory_space<vmem>>, vector<1x24xf32>
    %43 = vector.broadcast %42 : vector<1x24xf32> to vector<128x24xf32>
    %44 = arith.mulf %41, %43 : vector<128x24xf32>
    %45 = arith.addf %36, %44 : vector<128x24xf32>
    %c8_i32_12 = arith.constant 8 : i32
    %46 = tpu.dynamic_rotate %0 by %c8_i32_12 dim 0 : vector<128x24xf32>, i32 -> vector<128x24xf32>
    %cst_13 = arith.constant 0.000000e+00 : f32
    %47 = vector.shape_cast %12 : vector<128x1xi1> to vector<128x1xi1>
    %48 = vector.broadcast %47 : vector<128x1xi1> to vector<128x24xi1>
    %49 = vector.broadcast %cst_13 : f32 to vector<128x24xf32>
    %50 = arith.select %48, %46, %49 : vector<128x24xi1>, vector<128x24xf32>
    %c1 = arith.constant 1 : index
    %c0_14 = arith.constant 0 : index
    %51 = vector.load %arg4[%c1, %c0_14] : memref<9x24xf32, #tpu.memory_space<vmem>>, vector<1x24xf32>
    %52 = vector.broadcast %51 : vector<1x24xf32> to vector<128x24xf32>
    %53 = arith.mulf %50, %52 : vector<128x24xf32>
    %54 = arith.addf %45, %53 : vector<128x24xf32>
    %c7_i32_15 = arith.constant 7 : i32
    %55 = tpu.dynamic_rotate %0 by %c7_i32_15 dim 0 : vector<128x24xf32>, i32 -> vector<128x24xf32>
    %cst_16 = arith.constant 0.000000e+00 : f32
    %56 = vector.shape_cast %17 : vector<128x1xi1> to vector<128x1xi1>
    %57 = vector.broadcast %56 : vector<128x1xi1> to vector<128x24xi1>
    %58 = vector.broadcast %cst_16 : f32 to vector<128x24xf32>
    %59 = arith.select %57, %55, %58 : vector<128x24xi1>, vector<128x24xf32>
    %c2 = arith.constant 2 : index
    %c0_17 = arith.constant 0 : index
    %60 = vector.load %arg4[%c2, %c0_17] : memref<9x24xf32, #tpu.memory_space<vmem>>, vector<1x24xf32>
    %61 = vector.broadcast %60 : vector<1x24xf32> to vector<128x24xf32>
    %62 = arith.mulf %59, %61 : vector<128x24xf32>
    %63 = arith.addf %54, %62 : vector<128x24xf32>
    %c1_i32_18 = arith.constant 1 : i32
    %64 = tpu.dynamic_rotate %0 by %c1_i32_18 dim 0 : vector<128x24xf32>, i32 -> vector<128x24xf32>
    %cst_19 = arith.constant 0.000000e+00 : f32
    %65 = vector.shape_cast %19 : vector<128x1xi1> to vector<128x1xi1>
    %66 = vector.broadcast %65 : vector<128x1xi1> to vector<128x24xi1>
    %67 = vector.broadcast %cst_19 : f32 to vector<128x24xf32>
    %68 = arith.select %66, %64, %67 : vector<128x24xi1>, vector<128x24xf32>
    %c3 = arith.constant 3 : index
    %c0_20 = arith.constant 0 : index
    %69 = vector.load %arg4[%c3, %c0_20] : memref<9x24xf32, #tpu.memory_space<vmem>>, vector<1x24xf32>
    %70 = vector.broadcast %69 : vector<1x24xf32> to vector<128x24xf32>
    %71 = arith.mulf %68, %70 : vector<128x24xf32>
    %72 = arith.addf %63, %71 : vector<128x24xf32>
    %c127_i32 = arith.constant 127 : i32
    %73 = tpu.dynamic_rotate %0 by %c127_i32 dim 0 : vector<128x24xf32>, i32 -> vector<128x24xf32>
    %cst_21 = arith.constant 0.000000e+00 : f32
    %74 = vector.shape_cast %21 : vector<128x1xi1> to vector<128x1xi1>
    %75 = vector.broadcast %74 : vector<128x1xi1> to vector<128x24xi1>
    %76 = vector.broadcast %cst_21 : f32 to vector<128x24xf32>
    %77 = arith.select %75, %73, %76 : vector<128x24xi1>, vector<128x24xf32>
    %c5 = arith.constant 5 : index
    %c0_22 = arith.constant 0 : index
    %78 = vector.load %arg4[%c5, %c0_22] : memref<9x24xf32, #tpu.memory_space<vmem>>, vector<1x24xf32>
    %79 = vector.broadcast %78 : vector<1x24xf32> to vector<128x24xf32>
    %80 = arith.mulf %77, %79 : vector<128x24xf32>
    %81 = arith.addf %72, %80 : vector<128x24xf32>
    %c121_i32 = arith.constant 121 : i32
    %82 = tpu.dynamic_rotate %0 by %c121_i32 dim 0 : vector<128x24xf32>, i32 -> vector<128x24xf32>
    %cst_23 = arith.constant 0.000000e+00 : f32
    %83 = vector.shape_cast %26 : vector<128x1xi1> to vector<128x1xi1>
    %84 = vector.broadcast %83 : vector<128x1xi1> to vector<128x24xi1>
    %85 = vector.broadcast %cst_23 : f32 to vector<128x24xf32>
    %86 = arith.select %84, %82, %85 : vector<128x24xi1>, vector<128x24xf32>
    %c6 = arith.constant 6 : index
    %c0_24 = arith.constant 0 : index
    %87 = vector.load %arg4[%c6, %c0_24] : memref<9x24xf32, #tpu.memory_space<vmem>>, vector<1x24xf32>
    %88 = vector.broadcast %87 : vector<1x24xf32> to vector<128x24xf32>
    %89 = arith.mulf %86, %88 : vector<128x24xf32>
    %90 = arith.addf %81, %89 : vector<128x24xf32>
    %c120_i32 = arith.constant 120 : i32
    %91 = tpu.dynamic_rotate %0 by %c120_i32 dim 0 : vector<128x24xf32>, i32 -> vector<128x24xf32>
    %cst_25 = arith.constant 0.000000e+00 : f32
    %92 = vector.shape_cast %28 : vector<128x1xi1> to vector<128x1xi1>
    %93 = vector.broadcast %92 : vector<128x1xi1> to vector<128x24xi1>
    %94 = vector.broadcast %cst_25 : f32 to vector<128x24xf32>
    %95 = arith.select %93, %91, %94 : vector<128x24xi1>, vector<128x24xf32>
    %c7 = arith.constant 7 : index
    %c0_26 = arith.constant 0 : index
    %96 = vector.load %arg4[%c7, %c0_26] : memref<9x24xf32, #tpu.memory_space<vmem>>, vector<1x24xf32>
    %97 = vector.broadcast %96 : vector<1x24xf32> to vector<128x24xf32>
    %98 = arith.mulf %95, %97 : vector<128x24xf32>
    %99 = arith.addf %90, %98 : vector<128x24xf32>
    %c119_i32 = arith.constant 119 : i32
    %100 = tpu.dynamic_rotate %0 by %c119_i32 dim 0 : vector<128x24xf32>, i32 -> vector<128x24xf32>
    %cst_27 = arith.constant 0.000000e+00 : f32
    %101 = vector.shape_cast %33 : vector<128x1xi1> to vector<128x1xi1>
    %102 = vector.broadcast %101 : vector<128x1xi1> to vector<128x24xi1>
    %103 = vector.broadcast %cst_27 : f32 to vector<128x24xf32>
    %104 = arith.select %102, %100, %103 : vector<128x24xi1>, vector<128x24xf32>
    %c8 = arith.constant 8 : index
    %c0_28 = arith.constant 0 : index
    %105 = vector.load %arg4[%c8, %c0_28] : memref<9x24xf32, #tpu.memory_space<vmem>>, vector<1x24xf32>
    %106 = vector.broadcast %105 : vector<1x24xf32> to vector<128x24xf32>
    %107 = arith.mulf %104, %106 : vector<128x24xf32>
    %108 = arith.addf %99, %107 : vector<128x24xf32>
    %c0_29 = arith.constant 0 : index
    %c0_30 = arith.constant 0 : index
    %109 = vector.load %arg5[%c0_29, %c0_30] : memref<1x24xf32, #tpu.memory_space<vmem>>, vector<1x24xf32>
    %110 = vector.broadcast %109 : vector<1x24xf32> to vector<128x24xf32>
    %111 = arith.addf %108, %110 : vector<128x24xf32>
    %cst_31 = arith.constant 0.000000e+00 : f32
    %112 = vector.broadcast %cst_31 : f32 to vector<128x24xf32>
    %113 = arith.maximumf %111, %112 : vector<128x24xf32>
    %114 = arith.truncf %113 : vector<128x24xf32> to vector<128x24xbf16>
    %c0_32 = arith.constant 0 : index
    %c0_33 = arith.constant 0 : index
    %115 = vector.load %arg6[%c0_32, %c0_33] : memref<24x48xbf16, #tpu.memory_space<vmem>>, vector<24x48xbf16>
    %cst_34 = arith.constant dense<0.000000e+00> : vector<128x48xf32>
    %116 = tpu.matmul %114, %115, %cst_34 {dimension_numbers = #tpu.dot_dimension_numbers<[1], [0], [0], [1], [0, 0, 1, 1], [], []>} : vector<128x24xbf16>, vector<24x48xbf16>, vector<128x48xf32> -> vector<128x48xf32>
    %c0_35 = arith.constant 0 : index
    %c0_36 = arith.constant 0 : index
    %117 = vector.load %arg7[%c0_35, %c0_36] : memref<1x48xf32, #tpu.memory_space<vmem>>, vector<1x48xf32>
    %118 = vector.broadcast %117 : vector<1x48xf32> to vector<128x48xf32>
    %119 = arith.addf %116, %118 : vector<128x48xf32>
    %cst_37 = arith.constant 0.000000e+00 : f32
    %120 = vector.broadcast %cst_37 : f32 to vector<128x48xf32>
    %121 = arith.maximumf %119, %120 : vector<128x48xf32>
    %c0_38 = arith.constant 0 : index
    %c0_39 = arith.constant 0 : index
    %122 = vector.load %arg47[%c0_38, %c0_39] : memref<128x768xf32, #tpu.memory_space<vmem>>, vector<128x48xf32>
    tpu.vector_store %arg47[%c0_38, %c0_39], %121 {strides = array<i32>} : memref<128x768xf32, #tpu.memory_space<vmem>>, vector<128x48xf32>,
    %c0_40 = arith.constant 0 : index
    %c0_41 = arith.constant 0 : index
    %123 = vector.load %arg47[%c0_40, %c0_41] : memref<128x768xf32, #tpu.memory_space<vmem>>, vector<128x48xf32>
    %c4_42 = arith.constant 4 : index
    %c0_43 = arith.constant 0 : index
    %124 = vector.load %arg8[%c4_42, %c0_43] : memref<9x48xf32, #tpu.memory_space<vmem>>, vector<1x48xf32>
    %125 = vector.broadcast %124 : vector<1x48xf32> to vector<128x48xf32>
    %126 = arith.mulf %123, %125 : vector<128x48xf32>
    %c9_i32_44 = arith.constant 9 : i32
    %127 = tpu.dynamic_rotate %123 by %c9_i32_44 dim 0 : vector<128x48xf32>, i32 -> vector<128x48xf32>
    %cst_45 = arith.constant 0.000000e+00 : f32
    %128 = vector.shape_cast %10 : vector<128x1xi1> to vector<128x1xi1>
    %129 = vector.broadcast %128 : vector<128x1xi1> to vector<128x48xi1>
    %130 = vector.broadcast %cst_45 : f32 to vector<128x48xf32>
    %131 = arith.select %129, %127, %130 : vector<128x48xi1>, vector<128x48xf32>
    %c0_46 = arith.constant 0 : index
    %c0_47 = arith.constant 0 : index
    %132 = vector.load %arg8[%c0_46, %c0_47] : memref<9x48xf32, #tpu.memory_space<vmem>>, vector<1x48xf32>
    %133 = vector.broadcast %132 : vector<1x48xf32> to vector<128x48xf32>
    %134 = arith.mulf %131, %133 : vector<128x48xf32>
    %135 = arith.addf %126, %134 : vector<128x48xf32>
    %c8_i32_48 = arith.constant 8 : i32
    %136 = tpu.dynamic_rotate %123 by %c8_i32_48 dim 0 : vector<128x48xf32>, i32 -> vector<128x48xf32>
    %cst_49 = arith.constant 0.000000e+00 : f32
    %137 = vector.shape_cast %12 : vector<128x1xi1> to vector<128x1xi1>
    %138 = vector.broadcast %137 : vector<128x1xi1> to vector<128x48xi1>
    %139 = vector.broadcast %cst_49 : f32 to vector<128x48xf32>
    %140 = arith.select %138, %136, %139 : vector<128x48xi1>, vector<128x48xf32>
    %c1_50 = arith.constant 1 : index
    %c0_51 = arith.constant 0 : index
    %141 = vector.load %arg8[%c1_50, %c0_51] : memref<9x48xf32, #tpu.memory_space<vmem>>, vector<1x48xf32>
    %142 = vector.broadcast %141 : vector<1x48xf32> to vector<128x48xf32>
    %143 = arith.mulf %140, %142 : vector<128x48xf32>
    %144 = arith.addf %135, %143 : vector<128x48xf32>
    %c7_i32_52 = arith.constant 7 : i32
    %145 = tpu.dynamic_rotate %123 by %c7_i32_52 dim 0 : vector<128x48xf32>, i32 -> vector<128x48xf32>
    %cst_53 = arith.constant 0.000000e+00 : f32
    %146 = vector.shape_cast %17 : vector<128x1xi1> to vector<128x1xi1>
    %147 = vector.broadcast %146 : vector<128x1xi1> to vector<128x48xi1>
    %148 = vector.broadcast %cst_53 : f32 to vector<128x48xf32>
    %149 = arith.select %147, %145, %148 : vector<128x48xi1>, vector<128x48xf32>
    %c2_54 = arith.constant 2 : index
    %c0_55 = arith.constant 0 : index
    %150 = vector.load %arg8[%c2_54, %c0_55] : memref<9x48xf32, #tpu.memory_space<vmem>>, vector<1x48xf32>
    %151 = vector.broadcast %150 : vector<1x48xf32> to vector<128x48xf32>
    %152 = arith.mulf %149, %151 : vector<128x48xf32>
    %153 = arith.addf %144, %152 : vector<128x48xf32>
    %c1_i32_56 = arith.constant 1 : i32
    %154 = tpu.dynamic_rotate %123 by %c1_i32_56 dim 0 : vector<128x48xf32>, i32 -> vector<128x48xf32>
    %cst_57 = arith.constant 0.000000e+00 : f32
    %155 = vector.shape_cast %19 : vector<128x1xi1> to vector<128x1xi1>
    %156 = vector.broadcast %155 : vector<128x1xi1> to vector<128x48xi1>
    %157 = vector.broadcast %cst_57 : f32 to vector<128x48xf32>
    %158 = arith.select %156, %154, %157 : vector<128x48xi1>, vector<128x48xf32>
    %c3_58 = arith.constant 3 : index
    %c0_59 = arith.constant 0 : index
    %159 = vector.load %arg8[%c3_58, %c0_59] : memref<9x48xf32, #tpu.memory_space<vmem>>, vector<1x48xf32>
    %160 = vector.broadcast %159 : vector<1x48xf32> to vector<128x48xf32>
    %161 = arith.mulf %158, %160 : vector<128x48xf32>
    %162 = arith.addf %153, %161 : vector<128x48xf32>
    %c127_i32_60 = arith.constant 127 : i32
    %163 = tpu.dynamic_rotate %123 by %c127_i32_60 dim 0 : vector<128x48xf32>, i32 -> vector<128x48xf32>
    %cst_61 = arith.constant 0.000000e+00 : f32
    %164 = vector.shape_cast %21 : vector<128x1xi1> to vector<128x1xi1>
    %165 = vector.broadcast %164 : vector<128x1xi1> to vector<128x48xi1>
    %166 = vector.broadcast %cst_61 : f32 to vector<128x48xf32>
    %167 = arith.select %165, %163, %166 : vector<128x48xi1>, vector<128x48xf32>
    %c5_62 = arith.constant 5 : index
    %c0_63 = arith.constant 0 : index
    %168 = vector.load %arg8[%c5_62, %c0_63] : memref<9x48xf32, #tpu.memory_space<vmem>>, vector<1x48xf32>
    %169 = vector.broadcast %168 : vector<1x48xf32> to vector<128x48xf32>
    %170 = arith.mulf %167, %169 : vector<128x48xf32>
    %171 = arith.addf %162, %170 : vector<128x48xf32>
    %c121_i32_64 = arith.constant 121 : i32
    %172 = tpu.dynamic_rotate %123 by %c121_i32_64 dim 0 : vector<128x48xf32>, i32 -> vector<128x48xf32>
    %cst_65 = arith.constant 0.000000e+00 : f32
    %173 = vector.shape_cast %26 : vector<128x1xi1> to vector<128x1xi1>
    %174 = vector.broadcast %173 : vector<128x1xi1> to vector<128x48xi1>
    %175 = vector.broadcast %cst_65 : f32 to vector<128x48xf32>
    %176 = arith.select %174, %172, %175 : vector<128x48xi1>, vector<128x48xf32>
    %c6_66 = arith.constant 6 : index
    %c0_67 = arith.constant 0 : index
    %177 = vector.load %arg8[%c6_66, %c0_67] : memref<9x48xf32, #tpu.memory_space<vmem>>, vector<1x48xf32>
    %178 = vector.broadcast %177 : vector<1x48xf32> to vector<128x48xf32>
    %179 = arith.mulf %176, %178 : vector<128x48xf32>
    %180 = arith.addf %171, %179 : vector<128x48xf32>
    %c120_i32_68 = arith.constant 120 : i32
    %181 = tpu.dynamic_rotate %123 by %c120_i32_68 dim 0 : vector<128x48xf32>, i32 -> vector<128x48xf32>
    %cst_69 = arith.constant 0.000000e+00 : f32
    %182 = vector.shape_cast %28 : vector<128x1xi1> to vector<128x1xi1>
    %183 = vector.broadcast %182 : vector<128x1xi1> to vector<128x48xi1>
    %184 = vector.broadcast %cst_69 : f32 to vector<128x48xf32>
    %185 = arith.select %183, %181, %184 : vector<128x48xi1>, vector<128x48xf32>
    %c7_70 = arith.constant 7 : index
    %c0_71 = arith.constant 0 : index
    %186 = vector.load %arg8[%c7_70, %c0_71] : memref<9x48xf32, #tpu.memory_space<vmem>>, vector<1x48xf32>
    %187 = vector.broadcast %186 : vector<1x48xf32> to vector<128x48xf32>
    %188 = arith.mulf %185, %187 : vector<128x48xf32>
    %189 = arith.addf %180, %188 : vector<128x48xf32>
    %c119_i32_72 = arith.constant 119 : i32
    %190 = tpu.dynamic_rotate %123 by %c119_i32_72 dim 0 : vector<128x48xf32>, i32 -> vector<128x48xf32>
    %cst_73 = arith.constant 0.000000e+00 : f32
    %191 = vector.shape_cast %33 : vector<128x1xi1> to vector<128x1xi1>
    %192 = vector.broadcast %191 : vector<128x1xi1> to vector<128x48xi1>
    %193 = vector.broadcast %cst_73 : f32 to vector<128x48xf32>
    %194 = arith.select %192, %190, %193 : vector<128x48xi1>, vector<128x48xf32>
    %c8_74 = arith.constant 8 : index
    %c0_75 = arith.constant 0 : index
    %195 = vector.load %arg8[%c8_74, %c0_75] : memref<9x48xf32, #tpu.memory_space<vmem>>, vector<1x48xf32>
    %196 = vector.broadcast %195 : vector<1x48xf32> to vector<128x48xf32>
    %197 = arith.mulf %194, %196 : vector<128x48xf32>
    %198 = arith.addf %189, %197 : vector<128x48xf32>
    %c0_76 = arith.constant 0 : index
    %c0_77 = arith.constant 0 : index
    %199 = vector.load %arg9[%c0_76, %c0_77] : memref<1x48xf32, #tpu.memory_space<vmem>>, vector<1x48xf32>
    %200 = vector.broadcast %199 : vector<1x48xf32> to vector<128x48xf32>
    %201 = arith.addf %198, %200 : vector<128x48xf32>
    %cst_78 = arith.constant 0.000000e+00 : f32
    %202 = vector.broadcast %cst_78 : f32 to vector<128x48xf32>
    %203 = arith.maximumf %201, %202 : vector<128x48xf32>
    %204 = arith.truncf %203 : vector<128x48xf32> to vector<128x48xbf16>
    %c0_79 = arith.constant 0 : index
    %c0_80 = arith.constant 0 : index
    %205 = vector.load %arg2[%c0_79, %c0_80] : memref<32x128xbf16, #tpu.memory_space<vmem>>, vector<32x128xbf16>
    %cst_81 = arith.constant dense<0.000000e+00> : vector<32x48xf32>
    %206 = tpu.matmul %205, %204, %cst_81 {dimension_numbers = #tpu.dot_dimension_numbers<[1], [0], [0], [1], [0, 0, 1, 1], [], []>} : vector<32x128xbf16>, vector<128x48xbf16>, vector<32x48xf32> -> vector<32x48xf32>
    %207 = arith.truncf %206 : vector<32x48xf32> to vector<32x48xbf16>
    %c0_82 = arith.constant 0 : index
    %c0_83 = arith.constant 0 : index
    %208 = vector.load %arg10[%c0_82, %c0_83] : memref<48x96xbf16, #tpu.memory_space<vmem>>, vector<48x96xbf16>
    %cst_84 = arith.constant dense<0.000000e+00> : vector<32x96xf32>
    %209 = tpu.matmul %207, %208, %cst_84 {dimension_numbers = #tpu.dot_dimension_numbers<[1], [0], [0], [1], [0, 0, 1, 1], [], []>} : vector<32x48xbf16>, vector<48x96xbf16>, vector<32x96xf32> -> vector<32x96xf32>
    %c0_85 = arith.constant 0 : index
    %c0_86 = arith.constant 0 : index
    %210 = vector.load %arg11[%c0_85, %c0_86] : memref<1x96xf32, #tpu.memory_space<vmem>>, vector<1x96xf32>
    %211 = vector.broadcast %210 : vector<1x96xf32> to vector<32x96xf32>
    %212 = arith.addf %209, %211 : vector<32x96xf32>
    %cst_87 = arith.constant 0.000000e+00 : f32
    %213 = vector.broadcast %cst_87 : f32 to vector<32x96xf32>
    %214 = arith.maximumf %212, %213 : vector<32x96xf32>
    %c0_88 = arith.constant 0 : index
    %c0_89 = arith.constant 0 : index
    %215 = vector.load %arg48[%c0_88, %c0_89] : memref<128x768xf32, #tpu.memory_space<vmem>>, vector<32x96xf32>
    tpu.vector_store %arg48[%c0_88, %c0_89], %214 {strides = array<i32>} : memref<128x768xf32, #tpu.memory_space<vmem>>, vector<32x96xf32>,
    %c0_90 = arith.constant 0 : index
    %c0_91 = arith.constant 0 : index
    %216 = vector.load %arg48[%c0_90, %c0_91] : memref<128x768xf32, #tpu.memory_space<vmem>>, vector<32x96xf32>
    %217 = tpu.iota {dimensions = array<i32: 0>} : vector<32x1xi32>
    %c15_i32 = arith.constant 15 : i32
    %218 = vector.broadcast %c15_i32 : i32 to vector<32x1xi32>
    %219 = arith.andi %217, %218 : vector<32x1xi32>
    %c3_i32 = arith.constant 3 : i32
    %220 = vector.broadcast %c3_i32 : i32 to vector<32x1xi32>
    %221 = arith.andi %219, %220 : vector<32x1xi32>
    %c4_i32 = arith.constant 4 : i32
    %222 = vector.broadcast %c4_i32 : i32 to vector<32x1xi32>
    %223 = arith.cmpi sge, %219, %222 : vector<32x1xi32>
    %c1_i32_92 = arith.constant 1 : i32
    %224 = vector.broadcast %c1_i32_92 : i32 to vector<32x1xi32>
    %225 = arith.cmpi sge, %221, %224 : vector<32x1xi32>
    %226 = arith.andi %223, %225 : vector<32x1xi1>
    %c4_i32_93 = arith.constant 4 : i32
    %227 = vector.broadcast %c4_i32_93 : i32 to vector<32x1xi32>
    %228 = arith.cmpi sge, %219, %227 : vector<32x1xi32>
    %c4_i32_94 = arith.constant 4 : i32
    %229 = vector.broadcast %c4_i32_94 : i32 to vector<32x1xi32>
    %230 = arith.cmpi sge, %219, %229 : vector<32x1xi32>
    %c2_i32 = arith.constant 2 : i32
    %231 = vector.broadcast %c2_i32 : i32 to vector<32x1xi32>
    %232 = arith.cmpi sle, %221, %231 : vector<32x1xi32>
    %233 = arith.andi %230, %232 : vector<32x1xi1>
    %c1_i32_95 = arith.constant 1 : i32
    %234 = vector.broadcast %c1_i32_95 : i32 to vector<32x1xi32>
    %235 = arith.cmpi sge, %221, %234 : vector<32x1xi32>
    %c2_i32_96 = arith.constant 2 : i32
    %236 = vector.broadcast %c2_i32_96 : i32 to vector<32x1xi32>
    %237 = arith.cmpi sle, %221, %236 : vector<32x1xi32>
    %c12_i32 = arith.constant 12 : i32
    %238 = vector.broadcast %c12_i32 : i32 to vector<32x1xi32>
    %239 = arith.cmpi slt, %219, %238 : vector<32x1xi32>
    %c1_i32_97 = arith.constant 1 : i32
    %240 = vector.broadcast %c1_i32_97 : i32 to vector<32x1xi32>
    %241 = arith.cmpi sge, %221, %240 : vector<32x1xi32>
    %242 = arith.andi %239, %241 : vector<32x1xi1>
    %c12_i32_98 = arith.constant 12 : i32
    %243 = vector.broadcast %c12_i32_98 : i32 to vector<32x1xi32>
    %244 = arith.cmpi slt, %219, %243 : vector<32x1xi32>
    %c12_i32_99 = arith.constant 12 : i32
    %245 = vector.broadcast %c12_i32_99 : i32 to vector<32x1xi32>
    %246 = arith.cmpi slt, %219, %245 : vector<32x1xi32>
    %c2_i32_100 = arith.constant 2 : i32
    %247 = vector.broadcast %c2_i32_100 : i32 to vector<32x1xi32>
    %248 = arith.cmpi sle, %221, %247 : vector<32x1xi32>
    %249 = arith.andi %246, %248 : vector<32x1xi1>
    %c4_101 = arith.constant 4 : index
    %c0_102 = arith.constant 0 : index
    %250 = vector.load %arg12[%c4_101, %c0_102] : memref<9x96xf32, #tpu.memory_space<vmem>>, vector<1x96xf32>
    %251 = vector.broadcast %250 : vector<1x96xf32> to vector<32x96xf32>
    %252 = arith.mulf %216, %251 : vector<32x96xf32>
    %c5_i32 = arith.constant 5 : i32
    %253 = tpu.dynamic_rotate %216 by %c5_i32 dim 0 : vector<32x96xf32>, i32 -> vector<32x96xf32>
    %cst_103 = arith.constant 0.000000e+00 : f32
    %254 = vector.shape_cast %226 : vector<32x1xi1> to vector<32x1xi1>
    %255 = vector.broadcast %254 : vector<32x1xi1> to vector<32x96xi1>
    %256 = vector.broadcast %cst_103 : f32 to vector<32x96xf32>
    %257 = arith.select %255, %253, %256 : vector<32x96xi1>, vector<32x96xf32>
    %c0_104 = arith.constant 0 : index
    %c0_105 = arith.constant 0 : index
    %258 = vector.load %arg12[%c0_104, %c0_105] : memref<9x96xf32, #tpu.memory_space<vmem>>, vector<1x96xf32>
    %259 = vector.broadcast %258 : vector<1x96xf32> to vector<32x96xf32>
    %260 = arith.mulf %257, %259 : vector<32x96xf32>
    %261 = arith.addf %252, %260 : vector<32x96xf32>
    %c4_i32_106 = arith.constant 4 : i32
    %262 = tpu.dynamic_rotate %216 by %c4_i32_106 dim 0 : vector<32x96xf32>, i32 -> vector<32x96xf32>
    %cst_107 = arith.constant 0.000000e+00 : f32
    %263 = vector.shape_cast %228 : vector<32x1xi1> to vector<32x1xi1>
    %264 = vector.broadcast %263 : vector<32x1xi1> to vector<32x96xi1>
    %265 = vector.broadcast %cst_107 : f32 to vector<32x96xf32>
    %266 = arith.select %264, %262, %265 : vector<32x96xi1>, vector<32x96xf32>
    %c1_108 = arith.constant 1 : index
    %c0_109 = arith.constant 0 : index
    %267 = vector.load %arg12[%c1_108, %c0_109] : memref<9x96xf32, #tpu.memory_space<vmem>>, vector<1x96xf32>
    %268 = vector.broadcast %267 : vector<1x96xf32> to vector<32x96xf32>
    %269 = arith.mulf %266, %268 : vector<32x96xf32>
    %270 = arith.addf %261, %269 : vector<32x96xf32>
    %c3_i32_110 = arith.constant 3 : i32
    %271 = tpu.dynamic_rotate %216 by %c3_i32_110 dim 0 : vector<32x96xf32>, i32 -> vector<32x96xf32>
    %cst_111 = arith.constant 0.000000e+00 : f32
    %272 = vector.shape_cast %233 : vector<32x1xi1> to vector<32x1xi1>
    %273 = vector.broadcast %272 : vector<32x1xi1> to vector<32x96xi1>
    %274 = vector.broadcast %cst_111 : f32 to vector<32x96xf32>
    %275 = arith.select %273, %271, %274 : vector<32x96xi1>, vector<32x96xf32>
    %c2_112 = arith.constant 2 : index
    %c0_113 = arith.constant 0 : index
    %276 = vector.load %arg12[%c2_112, %c0_113] : memref<9x96xf32, #tpu.memory_space<vmem>>, vector<1x96xf32>
    %277 = vector.broadcast %276 : vector<1x96xf32> to vector<32x96xf32>
    %278 = arith.mulf %275, %277 : vector<32x96xf32>
    %279 = arith.addf %270, %278 : vector<32x96xf32>
    %c1_i32_114 = arith.constant 1 : i32
    %280 = tpu.dynamic_rotate %216 by %c1_i32_114 dim 0 : vector<32x96xf32>, i32 -> vector<32x96xf32>
    %cst_115 = arith.constant 0.000000e+00 : f32
    %281 = vector.shape_cast %235 : vector<32x1xi1> to vector<32x1xi1>
    %282 = vector.broadcast %281 : vector<32x1xi1> to vector<32x96xi1>
    %283 = vector.broadcast %cst_115 : f32 to vector<32x96xf32>
    %284 = arith.select %282, %280, %283 : vector<32x96xi1>, vector<32x96xf32>
    %c3_116 = arith.constant 3 : index
    %c0_117 = arith.constant 0 : index
    %285 = vector.load %arg12[%c3_116, %c0_117] : memref<9x96xf32, #tpu.memory_space<vmem>>, vector<1x96xf32>
    %286 = vector.broadcast %285 : vector<1x96xf32> to vector<32x96xf32>
    %287 = arith.mulf %284, %286 : vector<32x96xf32>
    %288 = arith.addf %279, %287 : vector<32x96xf32>
    %c31_i32 = arith.constant 31 : i32
    %289 = tpu.dynamic_rotate %216 by %c31_i32 dim 0 : vector<32x96xf32>, i32 -> vector<32x96xf32>
    %cst_118 = arith.constant 0.000000e+00 : f32
    %290 = vector.shape_cast %237 : vector<32x1xi1> to vector<32x1xi1>
    %291 = vector.broadcast %290 : vector<32x1xi1> to vector<32x96xi1>
    %292 = vector.broadcast %cst_118 : f32 to vector<32x96xf32>
    %293 = arith.select %291, %289, %292 : vector<32x96xi1>, vector<32x96xf32>
    %c5_119 = arith.constant 5 : index
    %c0_120 = arith.constant 0 : index
    %294 = vector.load %arg12[%c5_119, %c0_120] : memref<9x96xf32, #tpu.memory_space<vmem>>, vector<1x96xf32>
    %295 = vector.broadcast %294 : vector<1x96xf32> to vector<32x96xf32>
    %296 = arith.mulf %293, %295 : vector<32x96xf32>
    %297 = arith.addf %288, %296 : vector<32x96xf32>
    %c29_i32 = arith.constant 29 : i32
    %298 = tpu.dynamic_rotate %216 by %c29_i32 dim 0 : vector<32x96xf32>, i32 -> vector<32x96xf32>
    %cst_121 = arith.constant 0.000000e+00 : f32
    %299 = vector.shape_cast %242 : vector<32x1xi1> to vector<32x1xi1>
    %300 = vector.broadcast %299 : vector<32x1xi1> to vector<32x96xi1>
    %301 = vector.broadcast %cst_121 : f32 to vector<32x96xf32>
    %302 = arith.select %300, %298, %301 : vector<32x96xi1>, vector<32x96xf32>
    %c6_122 = arith.constant 6 : index
    %c0_123 = arith.constant 0 : index
    %303 = vector.load %arg12[%c6_122, %c0_123] : memref<9x96xf32, #tpu.memory_space<vmem>>, vector<1x96xf32>
    %304 = vector.broadcast %303 : vector<1x96xf32> to vector<32x96xf32>
    %305 = arith.mulf %302, %304 : vector<32x96xf32>
    %306 = arith.addf %297, %305 : vector<32x96xf32>
    %c28_i32 = arith.constant 28 : i32
    %307 = tpu.dynamic_rotate %216 by %c28_i32 dim 0 : vector<32x96xf32>, i32 -> vector<32x96xf32>
    %cst_124 = arith.constant 0.000000e+00 : f32
    %308 = vector.shape_cast %244 : vector<32x1xi1> to vector<32x1xi1>
    %309 = vector.broadcast %308 : vector<32x1xi1> to vector<32x96xi1>
    %310 = vector.broadcast %cst_124 : f32 to vector<32x96xf32>
    %311 = arith.select %309, %307, %310 : vector<32x96xi1>, vector<32x96xf32>
    %c7_125 = arith.constant 7 : index
    %c0_126 = arith.constant 0 : index
    %312 = vector.load %arg12[%c7_125, %c0_126] : memref<9x96xf32, #tpu.memory_space<vmem>>, vector<1x96xf32>
    %313 = vector.broadcast %312 : vector<1x96xf32> to vector<32x96xf32>
    %314 = arith.mulf %311, %313 : vector<32x96xf32>
    %315 = arith.addf %306, %314 : vector<32x96xf32>
    %c27_i32 = arith.constant 27 : i32
    %316 = tpu.dynamic_rotate %216 by %c27_i32 dim 0 : vector<32x96xf32>, i32 -> vector<32x96xf32>
    %cst_127 = arith.constant 0.000000e+00 : f32
    %317 = vector.shape_cast %249 : vector<32x1xi1> to vector<32x1xi1>
    %318 = vector.broadcast %317 : vector<32x1xi1> to vector<32x96xi1>
    %319 = vector.broadcast %cst_127 : f32 to vector<32x96xf32>
    %320 = arith.select %318, %316, %319 : vector<32x96xi1>, vector<32x96xf32>
    %c8_128 = arith.constant 8 : index
    %c0_129 = arith.constant 0 : index
    %321 = vector.load %arg12[%c8_128, %c0_129] : memref<9x96xf32, #tpu.memory_space<vmem>>, vector<1x96xf32>
    %322 = vector.broadcast %321 : vector<1x96xf32> to vector<32x96xf32>
    %323 = arith.mulf %320, %322 : vector<32x96xf32>
    %324 = arith.addf %315, %323 : vector<32x96xf32>
    %c0_130 = arith.constant 0 : index
    %c0_131 = arith.constant 0 : index
    %325 = vector.load %arg13[%c0_130, %c0_131] : memref<1x96xf32, #tpu.memory_space<vmem>>, vector<1x96xf32>
    %326 = vector.broadcast %325 : vector<1x96xf32> to vector<32x96xf32>
    %327 = arith.addf %324, %326 : vector<32x96xf32>
    %cst_132 = arith.constant 0.000000e+00 : f32
    %328 = vector.broadcast %cst_132 : f32 to vector<32x96xf32>
    %329 = arith.maximumf %327, %328 : vector<32x96xf32>
    %330 = arith.truncf %329 : vector<32x96xf32> to vector<32x96xbf16>
    %c0_133 = arith.constant 0 : index
    %c0_134 = arith.constant 0 : index
    %331 = vector.load %arg14[%c0_133, %c0_134] : memref<96x192xbf16, #tpu.memory_space<vmem>>, vector<96x192xbf16>
    %cst_135 = arith.constant dense<0.000000e+00> : vector<32x192xf32>
    %332 = tpu.matmul %330, %331, %cst_135 {dimension_numbers = #tpu.dot_dimension_numbers<[1], [0], [0], [1], [0, 0, 1, 1], [], []>} : vector<32x96xbf16>, vector<96x192xbf16>, vector<32x192xf32> -> vector<32x192xf32>
    %c0_136 = arith.constant 0 : index
    %c0_137 = arith.constant 0 : index
    %333 = vector.load %arg15[%c0_136, %c0_137] : memref<1x192xf32, #tpu.memory_space<vmem>>, vector<1x192xf32>
    %334 = vector.broadcast %333 : vector<1x192xf32> to vector<32x192xf32>
    %335 = arith.addf %332, %334 : vector<32x192xf32>
    %cst_138 = arith.constant 0.000000e+00 : f32
    %336 = vector.broadcast %cst_138 : f32 to vector<32x192xf32>
    %337 = arith.maximumf %335, %336 : vector<32x192xf32>
    %c0_139 = arith.constant 0 : index
    %c0_140 = arith.constant 0 : index
    %338 = vector.load %arg47[%c0_139, %c0_140] : memref<128x768xf32, #tpu.memory_space<vmem>>, vector<32x192xf32>
    tpu.vector_store %arg47[%c0_139, %c0_140], %337 {strides = array<i32>} : memref<128x768xf32, #tpu.memory_space<vmem>>, vector<32x192xf32>,
    %c0_141 = arith.constant 0 : index
    %c0_142 = arith.constant 0 : index
    %339 = vector.load %arg47[%c0_141, %c0_142] : memref<128x768xf32, #tpu.memory_space<vmem>>, vector<32x192xf32>
    %c4_143 = arith.constant 4 : index
    %c0_144 = arith.constant 0 : index
    %340 = vector.load %arg16[%c4_143, %c0_144] : memref<9x192xf32, #tpu.memory_space<vmem>>, vector<1x192xf32>
    %341 = vector.broadcast %340 : vector<1x192xf32> to vector<32x192xf32>
    %342 = arith.mulf %339, %341 : vector<32x192xf32>
    %c5_i32_145 = arith.constant 5 : i32
    %343 = tpu.dynamic_rotate %339 by %c5_i32_145 dim 0 : vector<32x192xf32>, i32 -> vector<32x192xf32>
    %cst_146 = arith.constant 0.000000e+00 : f32
    %344 = vector.shape_cast %226 : vector<32x1xi1> to vector<32x1xi1>
    %345 = vector.broadcast %344 : vector<32x1xi1> to vector<32x192xi1>
    %346 = vector.broadcast %cst_146 : f32 to vector<32x192xf32>
    %347 = arith.select %345, %343, %346 : vector<32x192xi1>, vector<32x192xf32>
    %c0_147 = arith.constant 0 : index
    %c0_148 = arith.constant 0 : index
    %348 = vector.load %arg16[%c0_147, %c0_148] : memref<9x192xf32, #tpu.memory_space<vmem>>, vector<1x192xf32>
    %349 = vector.broadcast %348 : vector<1x192xf32> to vector<32x192xf32>
    %350 = arith.mulf %347, %349 : vector<32x192xf32>
    %351 = arith.addf %342, %350 : vector<32x192xf32>
    %c4_i32_149 = arith.constant 4 : i32
    %352 = tpu.dynamic_rotate %339 by %c4_i32_149 dim 0 : vector<32x192xf32>, i32 -> vector<32x192xf32>
    %cst_150 = arith.constant 0.000000e+00 : f32
    %353 = vector.shape_cast %228 : vector<32x1xi1> to vector<32x1xi1>
    %354 = vector.broadcast %353 : vector<32x1xi1> to vector<32x192xi1>
    %355 = vector.broadcast %cst_150 : f32 to vector<32x192xf32>
    %356 = arith.select %354, %352, %355 : vector<32x192xi1>, vector<32x192xf32>
    %c1_151 = arith.constant 1 : index
    %c0_152 = arith.constant 0 : index
    %357 = vector.load %arg16[%c1_151, %c0_152] : memref<9x192xf32, #tpu.memory_space<vmem>>, vector<1x192xf32>
    %358 = vector.broadcast %357 : vector<1x192xf32> to vector<32x192xf32>
    %359 = arith.mulf %356, %358 : vector<32x192xf32>
    %360 = arith.addf %351, %359 : vector<32x192xf32>
    %c3_i32_153 = arith.constant 3 : i32
    %361 = tpu.dynamic_rotate %339 by %c3_i32_153 dim 0 : vector<32x192xf32>, i32 -> vector<32x192xf32>
    %cst_154 = arith.constant 0.000000e+00 : f32
    %362 = vector.shape_cast %233 : vector<32x1xi1> to vector<32x1xi1>
    %363 = vector.broadcast %362 : vector<32x1xi1> to vector<32x192xi1>
    %364 = vector.broadcast %cst_154 : f32 to vector<32x192xf32>
    %365 = arith.select %363, %361, %364 : vector<32x192xi1>, vector<32x192xf32>
    %c2_155 = arith.constant 2 : index
    %c0_156 = arith.constant 0 : index
    %366 = vector.load %arg16[%c2_155, %c0_156] : memref<9x192xf32, #tpu.memory_space<vmem>>, vector<1x192xf32>
    %367 = vector.broadcast %366 : vector<1x192xf32> to vector<32x192xf32>
    %368 = arith.mulf %365, %367 : vector<32x192xf32>
    %369 = arith.addf %360, %368 : vector<32x192xf32>
    %c1_i32_157 = arith.constant 1 : i32
    %370 = tpu.dynamic_rotate %339 by %c1_i32_157 dim 0 : vector<32x192xf32>, i32 -> vector<32x192xf32>
    %cst_158 = arith.constant 0.000000e+00 : f32
    %371 = vector.shape_cast %235 : vector<32x1xi1> to vector<32x1xi1>
    %372 = vector.broadcast %371 : vector<32x1xi1> to vector<32x192xi1>
    %373 = vector.broadcast %cst_158 : f32 to vector<32x192xf32>
    %374 = arith.select %372, %370, %373 : vector<32x192xi1>, vector<32x192xf32>
    %c3_159 = arith.constant 3 : index
    %c0_160 = arith.constant 0 : index
    %375 = vector.load %arg16[%c3_159, %c0_160] : memref<9x192xf32, #tpu.memory_space<vmem>>, vector<1x192xf32>
    %376 = vector.broadcast %375 : vector<1x192xf32> to vector<32x192xf32>
    %377 = arith.mulf %374, %376 : vector<32x192xf32>
    %378 = arith.addf %369, %377 : vector<32x192xf32>
    %c31_i32_161 = arith.constant 31 : i32
    %379 = tpu.dynamic_rotate %339 by %c31_i32_161 dim 0 : vector<32x192xf32>, i32 -> vector<32x192xf32>
    %cst_162 = arith.constant 0.000000e+00 : f32
    %380 = vector.shape_cast %237 : vector<32x1xi1> to vector<32x1xi1>
    %381 = vector.broadcast %380 : vector<32x1xi1> to vector<32x192xi1>
    %382 = vector.broadcast %cst_162 : f32 to vector<32x192xf32>
    %383 = arith.select %381, %379, %382 : vector<32x192xi1>, vector<32x192xf32>
    %c5_163 = arith.constant 5 : index
    %c0_164 = arith.constant 0 : index
    %384 = vector.load %arg16[%c5_163, %c0_164] : memref<9x192xf32, #tpu.memory_space<vmem>>, vector<1x192xf32>
    %385 = vector.broadcast %384 : vector<1x192xf32> to vector<32x192xf32>
    %386 = arith.mulf %383, %385 : vector<32x192xf32>
    %387 = arith.addf %378, %386 : vector<32x192xf32>
    %c29_i32_165 = arith.constant 29 : i32
    %388 = tpu.dynamic_rotate %339 by %c29_i32_165 dim 0 : vector<32x192xf32>, i32 -> vector<32x192xf32>
    %cst_166 = arith.constant 0.000000e+00 : f32
    %389 = vector.shape_cast %242 : vector<32x1xi1> to vector<32x1xi1>
    %390 = vector.broadcast %389 : vector<32x1xi1> to vector<32x192xi1>
    %391 = vector.broadcast %cst_166 : f32 to vector<32x192xf32>
    %392 = arith.select %390, %388, %391 : vector<32x192xi1>, vector<32x192xf32>
    %c6_167 = arith.constant 6 : index
    %c0_168 = arith.constant 0 : index
    %393 = vector.load %arg16[%c6_167, %c0_168] : memref<9x192xf32, #tpu.memory_space<vmem>>, vector<1x192xf32>
    %394 = vector.broadcast %393 : vector<1x192xf32> to vector<32x192xf32>
    %395 = arith.mulf %392, %394 : vector<32x192xf32>
    %396 = arith.addf %387, %395 : vector<32x192xf32>
    %c28_i32_169 = arith.constant 28 : i32
    %397 = tpu.dynamic_rotate %339 by %c28_i32_169 dim 0 : vector<32x192xf32>, i32 -> vector<32x192xf32>
    %cst_170 = arith.constant 0.000000e+00 : f32
    %398 = vector.shape_cast %244 : vector<32x1xi1> to vector<32x1xi1>
    %399 = vector.broadcast %398 : vector<32x1xi1> to vector<32x192xi1>
    %400 = vector.broadcast %cst_170 : f32 to vector<32x192xf32>
    %401 = arith.select %399, %397, %400 : vector<32x192xi1>, vector<32x192xf32>
    %c7_171 = arith.constant 7 : index
    %c0_172 = arith.constant 0 : index
    %402 = vector.load %arg16[%c7_171, %c0_172] : memref<9x192xf32, #tpu.memory_space<vmem>>, vector<1x192xf32>
    %403 = vector.broadcast %402 : vector<1x192xf32> to vector<32x192xf32>
    %404 = arith.mulf %401, %403 : vector<32x192xf32>
    %405 = arith.addf %396, %404 : vector<32x192xf32>
    %c27_i32_173 = arith.constant 27 : i32
    %406 = tpu.dynamic_rotate %339 by %c27_i32_173 dim 0 : vector<32x192xf32>, i32 -> vector<32x192xf32>
    %cst_174 = arith.constant 0.000000e+00 : f32
    %407 = vector.shape_cast %249 : vector<32x1xi1> to vector<32x1xi1>
    %408 = vector.broadcast %407 : vector<32x1xi1> to vector<32x192xi1>
    %409 = vector.broadcast %cst_174 : f32 to vector<32x192xf32>
    %410 = arith.select %408, %406, %409 : vector<32x192xi1>, vector<32x192xf32>
    %c8_175 = arith.constant 8 : index
    %c0_176 = arith.constant 0 : index
    %411 = vector.load %arg16[%c8_175, %c0_176] : memref<9x192xf32, #tpu.memory_space<vmem>>, vector<1x192xf32>
    %412 = vector.broadcast %411 : vector<1x192xf32> to vector<32x192xf32>
    %413 = arith.mulf %410, %412 : vector<32x192xf32>
    %414 = arith.addf %405, %413 : vector<32x192xf32>
    %c0_177 = arith.constant 0 : index
    %c0_178 = arith.constant 0 : index
    %415 = vector.load %arg17[%c0_177, %c0_178] : memref<1x192xf32, #tpu.memory_space<vmem>>, vector<1x192xf32>
    %416 = vector.broadcast %415 : vector<1x192xf32> to vector<32x192xf32>
    %417 = arith.addf %414, %416 : vector<32x192xf32>
    %cst_179 = arith.constant 0.000000e+00 : f32
    %418 = vector.broadcast %cst_179 : f32 to vector<32x192xf32>
    %419 = arith.maximumf %417, %418 : vector<32x192xf32>
    %420 = arith.truncf %419 : vector<32x192xf32> to vector<32x192xbf16>
    %c0_180 = arith.constant 0 : index
    %c0_181 = arith.constant 0 : index
    %421 = vector.load %arg18[%c0_180, %c0_181] : memref<192x192xbf16, #tpu.memory_space<vmem>>, vector<192x192xbf16>
    %cst_182 = arith.constant dense<0.000000e+00> : vector<32x192xf32>
    %422 = tpu.matmul %420, %421, %cst_182 {dimension_numbers = #tpu.dot_dimension_numbers<[1], [0], [0], [1], [0, 0, 1, 1], [], []>} : vector<32x192xbf16>, vector<192x192xbf16>, vector<32x192xf32> -> vector<32x192xf32>
    %c0_183 = arith.constant 0 : index
    %c0_184 = arith.constant 0 : index
    %423 = vector.load %arg19[%c0_183, %c0_184] : memref<1x192xf32, #tpu.memory_space<vmem>>, vector<1x192xf32>
    %424 = vector.broadcast %423 : vector<1x192xf32> to vector<32x192xf32>
    %425 = arith.addf %422, %424 : vector<32x192xf32>
    %cst_185 = arith.constant 0.000000e+00 : f32
    %426 = vector.broadcast %cst_185 : f32 to vector<32x192xf32>
    %427 = arith.maximumf %425, %426 : vector<32x192xf32>
    %c0_186 = arith.constant 0 : index
    %c0_187 = arith.constant 0 : index
    %428 = vector.load %arg48[%c0_186, %c0_187] : memref<128x768xf32, #tpu.memory_space<vmem>>, vector<32x192xf32>
    tpu.vector_store %arg48[%c0_186, %c0_187], %427 {strides = array<i32>} : memref<128x768xf32, #tpu.memory_space<vmem>>, vector<32x192xf32>,
    %c0_188 = arith.constant 0 : index
    %c0_189 = arith.constant 0 : index
    %429 = vector.load %arg48[%c0_188, %c0_189] : memref<128x768xf32, #tpu.memory_space<vmem>>, vector<32x192xf32>
    %c4_190 = arith.constant 4 : index
    %c0_191 = arith.constant 0 : index
    %430 = vector.load %arg20[%c4_190, %c0_191] : memref<9x192xf32, #tpu.memory_space<vmem>>, vector<1x192xf32>
    %431 = vector.broadcast %430 : vector<1x192xf32> to vector<32x192xf32>
    %432 = arith.mulf %429, %431 : vector<32x192xf32>
    %c5_i32_192 = arith.constant 5 : i32
    %433 = tpu.dynamic_rotate %429 by %c5_i32_192 dim 0 : vector<32x192xf32>, i32 -> vector<32x192xf32>
    %cst_193 = arith.constant 0.000000e+00 : f32
    %434 = vector.shape_cast %226 : vector<32x1xi1> to vector<32x1xi1>
    %435 = vector.broadcast %434 : vector<32x1xi1> to vector<32x192xi1>
    %436 = vector.broadcast %cst_193 : f32 to vector<32x192xf32>
    %437 = arith.select %435, %433, %436 : vector<32x192xi1>, vector<32x192xf32>
    %c0_194 = arith.constant 0 : index
    %c0_195 = arith.constant 0 : index
    %438 = vector.load %arg20[%c0_194, %c0_195] : memref<9x192xf32, #tpu.memory_space<vmem>>, vector<1x192xf32>
    %439 = vector.broadcast %438 : vector<1x192xf32> to vector<32x192xf32>
    %440 = arith.mulf %437, %439 : vector<32x192xf32>
    %441 = arith.addf %432, %440 : vector<32x192xf32>
    %c4_i32_196 = arith.constant 4 : i32
    %442 = tpu.dynamic_rotate %429 by %c4_i32_196 dim 0 : vector<32x192xf32>, i32 -> vector<32x192xf32>
    %cst_197 = arith.constant 0.000000e+00 : f32
    %443 = vector.shape_cast %228 : vector<32x1xi1> to vector<32x1xi1>
    %444 = vector.broadcast %443 : vector<32x1xi1> to vector<32x192xi1>
    %445 = vector.broadcast %cst_197 : f32 to vector<32x192xf32>
    %446 = arith.select %444, %442, %445 : vector<32x192xi1>, vector<32x192xf32>
    %c1_198 = arith.constant 1 : index
    %c0_199 = arith.constant 0 : index
    %447 = vector.load %arg20[%c1_198, %c0_199] : memref<9x192xf32, #tpu.memory_space<vmem>>, vector<1x192xf32>
    %448 = vector.broadcast %447 : vector<1x192xf32> to vector<32x192xf32>
    %449 = arith.mulf %446, %448 : vector<32x192xf32>
    %450 = arith.addf %441, %449 : vector<32x192xf32>
    %c3_i32_200 = arith.constant 3 : i32
    %451 = tpu.dynamic_rotate %429 by %c3_i32_200 dim 0 : vector<32x192xf32>, i32 -> vector<32x192xf32>
    %cst_201 = arith.constant 0.000000e+00 : f32
    %452 = vector.shape_cast %233 : vector<32x1xi1> to vector<32x1xi1>
    %453 = vector.broadcast %452 : vector<32x1xi1> to vector<32x192xi1>
    %454 = vector.broadcast %cst_201 : f32 to vector<32x192xf32>
    %455 = arith.select %453, %451, %454 : vector<32x192xi1>, vector<32x192xf32>
    %c2_202 = arith.constant 2 : index
    %c0_203 = arith.constant 0 : index
    %456 = vector.load %arg20[%c2_202, %c0_203] : memref<9x192xf32, #tpu.memory_space<vmem>>, vector<1x192xf32>
    %457 = vector.broadcast %456 : vector<1x192xf32> to vector<32x192xf32>
    %458 = arith.mulf %455, %457 : vector<32x192xf32>
    %459 = arith.addf %450, %458 : vector<32x192xf32>
    %c1_i32_204 = arith.constant 1 : i32
    %460 = tpu.dynamic_rotate %429 by %c1_i32_204 dim 0 : vector<32x192xf32>, i32 -> vector<32x192xf32>
    %cst_205 = arith.constant 0.000000e+00 : f32
    %461 = vector.shape_cast %235 : vector<32x1xi1> to vector<32x1xi1>
    %462 = vector.broadcast %461 : vector<32x1xi1> to vector<32x192xi1>
    %463 = vector.broadcast %cst_205 : f32 to vector<32x192xf32>
    %464 = arith.select %462, %460, %463 : vector<32x192xi1>, vector<32x192xf32>
    %c3_206 = arith.constant 3 : index
    %c0_207 = arith.constant 0 : index
    %465 = vector.load %arg20[%c3_206, %c0_207] : memref<9x192xf32, #tpu.memory_space<vmem>>, vector<1x192xf32>
    %466 = vector.broadcast %465 : vector<1x192xf32> to vector<32x192xf32>
    %467 = arith.mulf %464, %466 : vector<32x192xf32>
    %468 = arith.addf %459, %467 : vector<32x192xf32>
    %c31_i32_208 = arith.constant 31 : i32
    %469 = tpu.dynamic_rotate %429 by %c31_i32_208 dim 0 : vector<32x192xf32>, i32 -> vector<32x192xf32>
    %cst_209 = arith.constant 0.000000e+00 : f32
    %470 = vector.shape_cast %237 : vector<32x1xi1> to vector<32x1xi1>
    %471 = vector.broadcast %470 : vector<32x1xi1> to vector<32x192xi1>
    %472 = vector.broadcast %cst_209 : f32 to vector<32x192xf32>
    %473 = arith.select %471, %469, %472 : vector<32x192xi1>, vector<32x192xf32>
    %c5_210 = arith.constant 5 : index
    %c0_211 = arith.constant 0 : index
    %474 = vector.load %arg20[%c5_210, %c0_211] : memref<9x192xf32, #tpu.memory_space<vmem>>, vector<1x192xf32>
    %475 = vector.broadcast %474 : vector<1x192xf32> to vector<32x192xf32>
    %476 = arith.mulf %473, %475 : vector<32x192xf32>
    %477 = arith.addf %468, %476 : vector<32x192xf32>
    %c29_i32_212 = arith.constant 29 : i32
    %478 = tpu.dynamic_rotate %429 by %c29_i32_212 dim 0 : vector<32x192xf32>, i32 -> vector<32x192xf32>
    %cst_213 = arith.constant 0.000000e+00 : f32
    %479 = vector.shape_cast %242 : vector<32x1xi1> to vector<32x1xi1>
    %480 = vector.broadcast %479 : vector<32x1xi1> to vector<32x192xi1>
    %481 = vector.broadcast %cst_213 : f32 to vector<32x192xf32>
    %482 = arith.select %480, %478, %481 : vector<32x192xi1>, vector<32x192xf32>
    %c6_214 = arith.constant 6 : index
    %c0_215 = arith.constant 0 : index
    %483 = vector.load %arg20[%c6_214, %c0_215] : memref<9x192xf32, #tpu.memory_space<vmem>>, vector<1x192xf32>
    %484 = vector.broadcast %483 : vector<1x192xf32> to vector<32x192xf32>
    %485 = arith.mulf %482, %484 : vector<32x192xf32>
    %486 = arith.addf %477, %485 : vector<32x192xf32>
    %c28_i32_216 = arith.constant 28 : i32
    %487 = tpu.dynamic_rotate %429 by %c28_i32_216 dim 0 : vector<32x192xf32>, i32 -> vector<32x192xf32>
    %cst_217 = arith.constant 0.000000e+00 : f32
    %488 = vector.shape_cast %244 : vector<32x1xi1> to vector<32x1xi1>
    %489 = vector.broadcast %488 : vector<32x1xi1> to vector<32x192xi1>
    %490 = vector.broadcast %cst_217 : f32 to vector<32x192xf32>
    %491 = arith.select %489, %487, %490 : vector<32x192xi1>, vector<32x192xf32>
    %c7_218 = arith.constant 7 : index
    %c0_219 = arith.constant 0 : index
    %492 = vector.load %arg20[%c7_218, %c0_219] : memref<9x192xf32, #tpu.memory_space<vmem>>, vector<1x192xf32>
    %493 = vector.broadcast %492 : vector<1x192xf32> to vector<32x192xf32>
    %494 = arith.mulf %491, %493 : vector<32x192xf32>
    %495 = arith.addf %486, %494 : vector<32x192xf32>
    %c27_i32_220 = arith.constant 27 : i32
    %496 = tpu.dynamic_rotate %429 by %c27_i32_220 dim 0 : vector<32x192xf32>, i32 -> vector<32x192xf32>
    %cst_221 = arith.constant 0.000000e+00 : f32
    %497 = vector.shape_cast %249 : vector<32x1xi1> to vector<32x1xi1>
    %498 = vector.broadcast %497 : vector<32x1xi1> to vector<32x192xi1>
    %499 = vector.broadcast %cst_221 : f32 to vector<32x192xf32>
    %500 = arith.select %498, %496, %499 : vector<32x192xi1>, vector<32x192xf32>
    %c8_222 = arith.constant 8 : index
    %c0_223 = arith.constant 0 : index
    %501 = vector.load %arg20[%c8_222, %c0_223] : memref<9x192xf32, #tpu.memory_space<vmem>>, vector<1x192xf32>
    %502 = vector.broadcast %501 : vector<1x192xf32> to vector<32x192xf32>
    %503 = arith.mulf %500, %502 : vector<32x192xf32>
    %504 = arith.addf %495, %503 : vector<32x192xf32>
    %c0_224 = arith.constant 0 : index
    %c0_225 = arith.constant 0 : index
    %505 = vector.load %arg21[%c0_224, %c0_225] : memref<1x192xf32, #tpu.memory_space<vmem>>, vector<1x192xf32>
    %506 = vector.broadcast %505 : vector<1x192xf32> to vector<32x192xf32>
    %507 = arith.addf %504, %506 : vector<32x192xf32>
    %cst_226 = arith.constant 0.000000e+00 : f32
    %508 = vector.broadcast %cst_226 : f32 to vector<32x192xf32>
    %509 = arith.maximumf %507, %508 : vector<32x192xf32>
    %510 = arith.truncf %509 : vector<32x192xf32> to vector<32x192xbf16>
    %c0_227 = arith.constant 0 : index
    %c0_228 = arith.constant 0 : index
    %511 = vector.load %arg22[%c0_227, %c0_228] : memref<192x192xbf16, #tpu.memory_space<vmem>>, vector<192x192xbf16>
    %cst_229 = arith.constant dense<0.000000e+00> : vector<32x192xf32>
    %512 = tpu.matmul %510, %511, %cst_229 {dimension_numbers = #tpu.dot_dimension_numbers<[1], [0], [0], [1], [0, 0, 1, 1], [], []>} : vector<32x192xbf16>, vector<192x192xbf16>, vector<32x192xf32> -> vector<32x192xf32>
    %c0_230 = arith.constant 0 : index
    %c0_231 = arith.constant 0 : index
    %513 = vector.load %arg23[%c0_230, %c0_231] : memref<1x192xf32, #tpu.memory_space<vmem>>, vector<1x192xf32>
    %514 = vector.broadcast %513 : vector<1x192xf32> to vector<32x192xf32>
    %515 = arith.addf %512, %514 : vector<32x192xf32>
    %cst_232 = arith.constant 0.000000e+00 : f32
    %516 = vector.broadcast %cst_232 : f32 to vector<32x192xf32>
    %517 = arith.maximumf %515, %516 : vector<32x192xf32>
    %c0_233 = arith.constant 0 : index
    %c0_234 = arith.constant 0 : index
    %518 = vector.load %arg47[%c0_233, %c0_234] : memref<128x768xf32, #tpu.memory_space<vmem>>, vector<32x192xf32>
    tpu.vector_store %arg47[%c0_233, %c0_234], %517 {strides = array<i32>} : memref<128x768xf32, #tpu.memory_space<vmem>>, vector<32x192xf32>,
    %c0_235 = arith.constant 0 : index
    %c0_236 = arith.constant 0 : index
    %519 = vector.load %arg47[%c0_235, %c0_236] : memref<128x768xf32, #tpu.memory_space<vmem>>, vector<32x192xf32>
    %c4_237 = arith.constant 4 : index
    %c0_238 = arith.constant 0 : index
    %520 = vector.load %arg24[%c4_237, %c0_238] : memref<9x192xf32, #tpu.memory_space<vmem>>, vector<1x192xf32>
    %521 = vector.broadcast %520 : vector<1x192xf32> to vector<32x192xf32>
    %522 = arith.mulf %519, %521 : vector<32x192xf32>
    %c5_i32_239 = arith.constant 5 : i32
    %523 = tpu.dynamic_rotate %519 by %c5_i32_239 dim 0 : vector<32x192xf32>, i32 -> vector<32x192xf32>
    %cst_240 = arith.constant 0.000000e+00 : f32
    %524 = vector.shape_cast %226 : vector<32x1xi1> to vector<32x1xi1>
    %525 = vector.broadcast %524 : vector<32x1xi1> to vector<32x192xi1>
    %526 = vector.broadcast %cst_240 : f32 to vector<32x192xf32>
    %527 = arith.select %525, %523, %526 : vector<32x192xi1>, vector<32x192xf32>
    %c0_241 = arith.constant 0 : index
    %c0_242 = arith.constant 0 : index
    %528 = vector.load %arg24[%c0_241, %c0_242] : memref<9x192xf32, #tpu.memory_space<vmem>>, vector<1x192xf32>
    %529 = vector.broadcast %528 : vector<1x192xf32> to vector<32x192xf32>
    %530 = arith.mulf %527, %529 : vector<32x192xf32>
    %531 = arith.addf %522, %530 : vector<32x192xf32>
    %c4_i32_243 = arith.constant 4 : i32
    %532 = tpu.dynamic_rotate %519 by %c4_i32_243 dim 0 : vector<32x192xf32>, i32 -> vector<32x192xf32>
    %cst_244 = arith.constant 0.000000e+00 : f32
    %533 = vector.shape_cast %228 : vector<32x1xi1> to vector<32x1xi1>
    %534 = vector.broadcast %533 : vector<32x1xi1> to vector<32x192xi1>
    %535 = vector.broadcast %cst_244 : f32 to vector<32x192xf32>
    %536 = arith.select %534, %532, %535 : vector<32x192xi1>, vector<32x192xf32>
    %c1_245 = arith.constant 1 : index
    %c0_246 = arith.constant 0 : index
    %537 = vector.load %arg24[%c1_245, %c0_246] : memref<9x192xf32, #tpu.memory_space<vmem>>, vector<1x192xf32>
    %538 = vector.broadcast %537 : vector<1x192xf32> to vector<32x192xf32>
    %539 = arith.mulf %536, %538 : vector<32x192xf32>
    %540 = arith.addf %531, %539 : vector<32x192xf32>
    %c3_i32_247 = arith.constant 3 : i32
    %541 = tpu.dynamic_rotate %519 by %c3_i32_247 dim 0 : vector<32x192xf32>, i32 -> vector<32x192xf32>
    %cst_248 = arith.constant 0.000000e+00 : f32
    %542 = vector.shape_cast %233 : vector<32x1xi1> to vector<32x1xi1>
    %543 = vector.broadcast %542 : vector<32x1xi1> to vector<32x192xi1>
    %544 = vector.broadcast %cst_248 : f32 to vector<32x192xf32>
    %545 = arith.select %543, %541, %544 : vector<32x192xi1>, vector<32x192xf32>
    %c2_249 = arith.constant 2 : index
    %c0_250 = arith.constant 0 : index
    %546 = vector.load %arg24[%c2_249, %c0_250] : memref<9x192xf32, #tpu.memory_space<vmem>>, vector<1x192xf32>
    %547 = vector.broadcast %546 : vector<1x192xf32> to vector<32x192xf32>
    %548 = arith.mulf %545, %547 : vector<32x192xf32>
    %549 = arith.addf %540, %548 : vector<32x192xf32>
    %c1_i32_251 = arith.constant 1 : i32
    %550 = tpu.dynamic_rotate %519 by %c1_i32_251 dim 0 : vector<32x192xf32>, i32 -> vector<32x192xf32>
    %cst_252 = arith.constant 0.000000e+00 : f32
    %551 = vector.shape_cast %235 : vector<32x1xi1> to vector<32x1xi1>
    %552 = vector.broadcast %551 : vector<32x1xi1> to vector<32x192xi1>
    %553 = vector.broadcast %cst_252 : f32 to vector<32x192xf32>
    %554 = arith.select %552, %550, %553 : vector<32x192xi1>, vector<32x192xf32>
    %c3_253 = arith.constant 3 : index
    %c0_254 = arith.constant 0 : index
    %555 = vector.load %arg24[%c3_253, %c0_254] : memref<9x192xf32, #tpu.memory_space<vmem>>, vector<1x192xf32>
    %556 = vector.broadcast %555 : vector<1x192xf32> to vector<32x192xf32>
    %557 = arith.mulf %554, %556 : vector<32x192xf32>
    %558 = arith.addf %549, %557 : vector<32x192xf32>
    %c31_i32_255 = arith.constant 31 : i32
    %559 = tpu.dynamic_rotate %519 by %c31_i32_255 dim 0 : vector<32x192xf32>, i32 -> vector<32x192xf32>
    %cst_256 = arith.constant 0.000000e+00 : f32
    %560 = vector.shape_cast %237 : vector<32x1xi1> to vector<32x1xi1>
    %561 = vector.broadcast %560 : vector<32x1xi1> to vector<32x192xi1>
    %562 = vector.broadcast %cst_256 : f32 to vector<32x192xf32>
    %563 = arith.select %561, %559, %562 : vector<32x192xi1>, vector<32x192xf32>
    %c5_257 = arith.constant 5 : index
    %c0_258 = arith.constant 0 : index
    %564 = vector.load %arg24[%c5_257, %c0_258] : memref<9x192xf32, #tpu.memory_space<vmem>>, vector<1x192xf32>
    %565 = vector.broadcast %564 : vector<1x192xf32> to vector<32x192xf32>
    %566 = arith.mulf %563, %565 : vector<32x192xf32>
    %567 = arith.addf %558, %566 : vector<32x192xf32>
    %c29_i32_259 = arith.constant 29 : i32
    %568 = tpu.dynamic_rotate %519 by %c29_i32_259 dim 0 : vector<32x192xf32>, i32 -> vector<32x192xf32>
    %cst_260 = arith.constant 0.000000e+00 : f32
    %569 = vector.shape_cast %242 : vector<32x1xi1> to vector<32x1xi1>
    %570 = vector.broadcast %569 : vector<32x1xi1> to vector<32x192xi1>
    %571 = vector.broadcast %cst_260 : f32 to vector<32x192xf32>
    %572 = arith.select %570, %568, %571 : vector<32x192xi1>, vector<32x192xf32>
    %c6_261 = arith.constant 6 : index
    %c0_262 = arith.constant 0 : index
    %573 = vector.load %arg24[%c6_261, %c0_262] : memref<9x192xf32, #tpu.memory_space<vmem>>, vector<1x192xf32>
    %574 = vector.broadcast %573 : vector<1x192xf32> to vector<32x192xf32>
    %575 = arith.mulf %572, %574 : vector<32x192xf32>
    %576 = arith.addf %567, %575 : vector<32x192xf32>
    %c28_i32_263 = arith.constant 28 : i32
    %577 = tpu.dynamic_rotate %519 by %c28_i32_263 dim 0 : vector<32x192xf32>, i32 -> vector<32x192xf32>
    %cst_264 = arith.constant 0.000000e+00 : f32
    %578 = vector.shape_cast %244 : vector<32x1xi1> to vector<32x1xi1>
    %579 = vector.broadcast %578 : vector<32x1xi1> to vector<32x192xi1>
    %580 = vector.broadcast %cst_264 : f32 to vector<32x192xf32>
    %581 = arith.select %579, %577, %580 : vector<32x192xi1>, vector<32x192xf32>
    %c7_265 = arith.constant 7 : index
    %c0_266 = arith.constant 0 : index
    %582 = vector.load %arg24[%c7_265, %c0_266] : memref<9x192xf32, #tpu.memory_space<vmem>>, vector<1x192xf32>
    %583 = vector.broadcast %582 : vector<1x192xf32> to vector<32x192xf32>
    %584 = arith.mulf %581, %583 : vector<32x192xf32>
    %585 = arith.addf %576, %584 : vector<32x192xf32>
    %c27_i32_267 = arith.constant 27 : i32
    %586 = tpu.dynamic_rotate %519 by %c27_i32_267 dim 0 : vector<32x192xf32>, i32 -> vector<32x192xf32>
    %cst_268 = arith.constant 0.000000e+00 : f32
    %587 = vector.shape_cast %249 : vector<32x1xi1> to vector<32x1xi1>
    %588 = vector.broadcast %587 : vector<32x1xi1> to vector<32x192xi1>
    %589 = vector.broadcast %cst_268 : f32 to vector<32x192xf32>
    %590 = arith.select %588, %586, %589 : vector<32x192xi1>, vector<32x192xf32>
    %c8_269 = arith.constant 8 : index
    %c0_270 = arith.constant 0 : index
    %591 = vector.load %arg24[%c8_269, %c0_270] : memref<9x192xf32, #tpu.memory_space<vmem>>, vector<1x192xf32>
    %592 = vector.broadcast %591 : vector<1x192xf32> to vector<32x192xf32>
    %593 = arith.mulf %590, %592 : vector<32x192xf32>
    %594 = arith.addf %585, %593 : vector<32x192xf32>
    %c0_271 = arith.constant 0 : index
    %c0_272 = arith.constant 0 : index
    %595 = vector.load %arg25[%c0_271, %c0_272] : memref<1x192xf32, #tpu.memory_space<vmem>>, vector<1x192xf32>
    %596 = vector.broadcast %595 : vector<1x192xf32> to vector<32x192xf32>
    %597 = arith.addf %594, %596 : vector<32x192xf32>
    %cst_273 = arith.constant 0.000000e+00 : f32
    %598 = vector.broadcast %cst_273 : f32 to vector<32x192xf32>
    %599 = arith.maximumf %597, %598 : vector<32x192xf32>
    %600 = arith.truncf %599 : vector<32x192xf32> to vector<32x192xbf16>
    %c0_274 = arith.constant 0 : index
    %c0_275 = arith.constant 0 : index
    %601 = vector.load %arg26[%c0_274, %c0_275] : memref<192x192xbf16, #tpu.memory_space<vmem>>, vector<192x192xbf16>
    %cst_276 = arith.constant dense<0.000000e+00> : vector<32x192xf32>
    %602 = tpu.matmul %600, %601, %cst_276 {dimension_numbers = #tpu.dot_dimension_numbers<[1], [0], [0], [1], [0, 0, 1, 1], [], []>} : vector<32x192xbf16>, vector<192x192xbf16>, vector<32x192xf32> -> vector<32x192xf32>
    %c0_277 = arith.constant 0 : index
    %c0_278 = arith.constant 0 : index
    %603 = vector.load %arg27[%c0_277, %c0_278] : memref<1x192xf32, #tpu.memory_space<vmem>>, vector<1x192xf32>
    %604 = vector.broadcast %603 : vector<1x192xf32> to vector<32x192xf32>
    %605 = arith.addf %602, %604 : vector<32x192xf32>
    %cst_279 = arith.constant 0.000000e+00 : f32
    %606 = vector.broadcast %cst_279 : f32 to vector<32x192xf32>
    %607 = arith.maximumf %605, %606 : vector<32x192xf32>
    %c0_280 = arith.constant 0 : index
    %c0_281 = arith.constant 0 : index
    %608 = vector.load %arg48[%c0_280, %c0_281] : memref<128x768xf32, #tpu.memory_space<vmem>>, vector<32x192xf32>
    tpu.vector_store %arg48[%c0_280, %c0_281], %607 {strides = array<i32>} : memref<128x768xf32, #tpu.memory_space<vmem>>, vector<32x192xf32>,
    %c0_282 = arith.constant 0 : index
    %c0_283 = arith.constant 0 : index
    %609 = vector.load %arg48[%c0_282, %c0_283] : memref<128x768xf32, #tpu.memory_space<vmem>>, vector<32x192xf32>
    %c4_284 = arith.constant 4 : index
    %c0_285 = arith.constant 0 : index
    %610 = vector.load %arg28[%c4_284, %c0_285] : memref<9x192xf32, #tpu.memory_space<vmem>>, vector<1x192xf32>
    %611 = vector.broadcast %610 : vector<1x192xf32> to vector<32x192xf32>
    %612 = arith.mulf %609, %611 : vector<32x192xf32>
    %c5_i32_286 = arith.constant 5 : i32
    %613 = tpu.dynamic_rotate %609 by %c5_i32_286 dim 0 : vector<32x192xf32>, i32 -> vector<32x192xf32>
    %cst_287 = arith.constant 0.000000e+00 : f32
    %614 = vector.shape_cast %226 : vector<32x1xi1> to vector<32x1xi1>
    %615 = vector.broadcast %614 : vector<32x1xi1> to vector<32x192xi1>
    %616 = vector.broadcast %cst_287 : f32 to vector<32x192xf32>
    %617 = arith.select %615, %613, %616 : vector<32x192xi1>, vector<32x192xf32>
    %c0_288 = arith.constant 0 : index
    %c0_289 = arith.constant 0 : index
    %618 = vector.load %arg28[%c0_288, %c0_289] : memref<9x192xf32, #tpu.memory_space<vmem>>, vector<1x192xf32>
    %619 = vector.broadcast %618 : vector<1x192xf32> to vector<32x192xf32>
    %620 = arith.mulf %617, %619 : vector<32x192xf32>
    %621 = arith.addf %612, %620 : vector<32x192xf32>
    %c4_i32_290 = arith.constant 4 : i32
    %622 = tpu.dynamic_rotate %609 by %c4_i32_290 dim 0 : vector<32x192xf32>, i32 -> vector<32x192xf32>
    %cst_291 = arith.constant 0.000000e+00 : f32
    %623 = vector.shape_cast %228 : vector<32x1xi1> to vector<32x1xi1>
    %624 = vector.broadcast %623 : vector<32x1xi1> to vector<32x192xi1>
    %625 = vector.broadcast %cst_291 : f32 to vector<32x192xf32>
    %626 = arith.select %624, %622, %625 : vector<32x192xi1>, vector<32x192xf32>
    %c1_292 = arith.constant 1 : index
    %c0_293 = arith.constant 0 : index
    %627 = vector.load %arg28[%c1_292, %c0_293] : memref<9x192xf32, #tpu.memory_space<vmem>>, vector<1x192xf32>
    %628 = vector.broadcast %627 : vector<1x192xf32> to vector<32x192xf32>
    %629 = arith.mulf %626, %628 : vector<32x192xf32>
    %630 = arith.addf %621, %629 : vector<32x192xf32>
    %c3_i32_294 = arith.constant 3 : i32
    %631 = tpu.dynamic_rotate %609 by %c3_i32_294 dim 0 : vector<32x192xf32>, i32 -> vector<32x192xf32>
    %cst_295 = arith.constant 0.000000e+00 : f32
    %632 = vector.shape_cast %233 : vector<32x1xi1> to vector<32x1xi1>
    %633 = vector.broadcast %632 : vector<32x1xi1> to vector<32x192xi1>
    %634 = vector.broadcast %cst_295 : f32 to vector<32x192xf32>
    %635 = arith.select %633, %631, %634 : vector<32x192xi1>, vector<32x192xf32>
    %c2_296 = arith.constant 2 : index
    %c0_297 = arith.constant 0 : index
    %636 = vector.load %arg28[%c2_296, %c0_297] : memref<9x192xf32, #tpu.memory_space<vmem>>, vector<1x192xf32>
    %637 = vector.broadcast %636 : vector<1x192xf32> to vector<32x192xf32>
    %638 = arith.mulf %635, %637 : vector<32x192xf32>
    %639 = arith.addf %630, %638 : vector<32x192xf32>
    %c1_i32_298 = arith.constant 1 : i32
    %640 = tpu.dynamic_rotate %609 by %c1_i32_298 dim 0 : vector<32x192xf32>, i32 -> vector<32x192xf32>
    %cst_299 = arith.constant 0.000000e+00 : f32
    %641 = vector.shape_cast %235 : vector<32x1xi1> to vector<32x1xi1>
    %642 = vector.broadcast %641 : vector<32x1xi1> to vector<32x192xi1>
    %643 = vector.broadcast %cst_299 : f32 to vector<32x192xf32>
    %644 = arith.select %642, %640, %643 : vector<32x192xi1>, vector<32x192xf32>
    %c3_300 = arith.constant 3 : index
    %c0_301 = arith.constant 0 : index
    %645 = vector.load %arg28[%c3_300, %c0_301] : memref<9x192xf32, #tpu.memory_space<vmem>>, vector<1x192xf32>
    %646 = vector.broadcast %645 : vector<1x192xf32> to vector<32x192xf32>
    %647 = arith.mulf %644, %646 : vector<32x192xf32>
    %648 = arith.addf %639, %647 : vector<32x192xf32>
    %c31_i32_302 = arith.constant 31 : i32
    %649 = tpu.dynamic_rotate %609 by %c31_i32_302 dim 0 : vector<32x192xf32>, i32 -> vector<32x192xf32>
    %cst_303 = arith.constant 0.000000e+00 : f32
    %650 = vector.shape_cast %237 : vector<32x1xi1> to vector<32x1xi1>
    %651 = vector.broadcast %650 : vector<32x1xi1> to vector<32x192xi1>
    %652 = vector.broadcast %cst_303 : f32 to vector<32x192xf32>
    %653 = arith.select %651, %649, %652 : vector<32x192xi1>, vector<32x192xf32>
    %c5_304 = arith.constant 5 : index
    %c0_305 = arith.constant 0 : index
    %654 = vector.load %arg28[%c5_304, %c0_305] : memref<9x192xf32, #tpu.memory_space<vmem>>, vector<1x192xf32>
    %655 = vector.broadcast %654 : vector<1x192xf32> to vector<32x192xf32>
    %656 = arith.mulf %653, %655 : vector<32x192xf32>
    %657 = arith.addf %648, %656 : vector<32x192xf32>
    %c29_i32_306 = arith.constant 29 : i32
    %658 = tpu.dynamic_rotate %609 by %c29_i32_306 dim 0 : vector<32x192xf32>, i32 -> vector<32x192xf32>
    %cst_307 = arith.constant 0.000000e+00 : f32
    %659 = vector.shape_cast %242 : vector<32x1xi1> to vector<32x1xi1>
    %660 = vector.broadcast %659 : vector<32x1xi1> to vector<32x192xi1>
    %661 = vector.broadcast %cst_307 : f32 to vector<32x192xf32>
    %662 = arith.select %660, %658, %661 : vector<32x192xi1>, vector<32x192xf32>
    %c6_308 = arith.constant 6 : index
    %c0_309 = arith.constant 0 : index
    %663 = vector.load %arg28[%c6_308, %c0_309] : memref<9x192xf32, #tpu.memory_space<vmem>>, vector<1x192xf32>
    %664 = vector.broadcast %663 : vector<1x192xf32> to vector<32x192xf32>
    %665 = arith.mulf %662, %664 : vector<32x192xf32>
    %666 = arith.addf %657, %665 : vector<32x192xf32>
    %c28_i32_310 = arith.constant 28 : i32
    %667 = tpu.dynamic_rotate %609 by %c28_i32_310 dim 0 : vector<32x192xf32>, i32 -> vector<32x192xf32>
    %cst_311 = arith.constant 0.000000e+00 : f32
    %668 = vector.shape_cast %244 : vector<32x1xi1> to vector<32x1xi1>
    %669 = vector.broadcast %668 : vector<32x1xi1> to vector<32x192xi1>
    %670 = vector.broadcast %cst_311 : f32 to vector<32x192xf32>
    %671 = arith.select %669, %667, %670 : vector<32x192xi1>, vector<32x192xf32>
    %c7_312 = arith.constant 7 : index
    %c0_313 = arith.constant 0 : index
    %672 = vector.load %arg28[%c7_312, %c0_313] : memref<9x192xf32, #tpu.memory_space<vmem>>, vector<1x192xf32>
    %673 = vector.broadcast %672 : vector<1x192xf32> to vector<32x192xf32>
    %674 = arith.mulf %671, %673 : vector<32x192xf32>
    %675 = arith.addf %666, %674 : vector<32x192xf32>
    %c27_i32_314 = arith.constant 27 : i32
    %676 = tpu.dynamic_rotate %609 by %c27_i32_314 dim 0 : vector<32x192xf32>, i32 -> vector<32x192xf32>
    %cst_315 = arith.constant 0.000000e+00 : f32
    %677 = vector.shape_cast %249 : vector<32x1xi1> to vector<32x1xi1>
    %678 = vector.broadcast %677 : vector<32x1xi1> to vector<32x192xi1>
    %679 = vector.broadcast %cst_315 : f32 to vector<32x192xf32>
    %680 = arith.select %678, %676, %679 : vector<32x192xi1>, vector<32x192xf32>
    %c8_316 = arith.constant 8 : index
    %c0_317 = arith.constant 0 : index
    %681 = vector.load %arg28[%c8_316, %c0_317] : memref<9x192xf32, #tpu.memory_space<vmem>>, vector<1x192xf32>
    %682 = vector.broadcast %681 : vector<1x192xf32> to vector<32x192xf32>
    %683 = arith.mulf %680, %682 : vector<32x192xf32>
    %684 = arith.addf %675, %683 : vector<32x192xf32>
    %c0_318 = arith.constant 0 : index
    %c0_319 = arith.constant 0 : index
    %685 = vector.load %arg29[%c0_318, %c0_319] : memref<1x192xf32, #tpu.memory_space<vmem>>, vector<1x192xf32>
    %686 = vector.broadcast %685 : vector<1x192xf32> to vector<32x192xf32>
    %687 = arith.addf %684, %686 : vector<32x192xf32>
    %cst_320 = arith.constant 0.000000e+00 : f32
    %688 = vector.broadcast %cst_320 : f32 to vector<32x192xf32>
    %689 = arith.maximumf %687, %688 : vector<32x192xf32>
    %690 = arith.truncf %689 : vector<32x192xf32> to vector<32x192xbf16>
    %c0_321 = arith.constant 0 : index
    %c0_322 = arith.constant 0 : index
    %691 = vector.load %arg30[%c0_321, %c0_322] : memref<192x192xbf16, #tpu.memory_space<vmem>>, vector<192x192xbf16>
    %cst_323 = arith.constant dense<0.000000e+00> : vector<32x192xf32>
    %692 = tpu.matmul %690, %691, %cst_323 {dimension_numbers = #tpu.dot_dimension_numbers<[1], [0], [0], [1], [0, 0, 1, 1], [], []>} : vector<32x192xbf16>, vector<192x192xbf16>, vector<32x192xf32> -> vector<32x192xf32>
    %c0_324 = arith.constant 0 : index
    %c0_325 = arith.constant 0 : index
    %693 = vector.load %arg31[%c0_324, %c0_325] : memref<1x192xf32, #tpu.memory_space<vmem>>, vector<1x192xf32>
    %694 = vector.broadcast %693 : vector<1x192xf32> to vector<32x192xf32>
    %695 = arith.addf %692, %694 : vector<32x192xf32>
    %cst_326 = arith.constant 0.000000e+00 : f32
    %696 = vector.broadcast %cst_326 : f32 to vector<32x192xf32>
    %697 = arith.maximumf %695, %696 : vector<32x192xf32>
    %c0_327 = arith.constant 0 : index
    %c0_328 = arith.constant 0 : index
    %698 = vector.load %arg47[%c0_327, %c0_328] : memref<128x768xf32, #tpu.memory_space<vmem>>, vector<32x192xf32>
    tpu.vector_store %arg47[%c0_327, %c0_328], %697 {strides = array<i32>} : memref<128x768xf32, #tpu.memory_space<vmem>>, vector<32x192xf32>,
    %c0_329 = arith.constant 0 : index
    %c0_330 = arith.constant 0 : index
    %699 = vector.load %arg47[%c0_329, %c0_330] : memref<128x768xf32, #tpu.memory_space<vmem>>, vector<32x192xf32>
    %c4_331 = arith.constant 4 : index
    %c0_332 = arith.constant 0 : index
    %700 = vector.load %arg32[%c4_331, %c0_332] : memref<9x192xf32, #tpu.memory_space<vmem>>, vector<1x192xf32>
    %701 = vector.broadcast %700 : vector<1x192xf32> to vector<32x192xf32>
    %702 = arith.mulf %699, %701 : vector<32x192xf32>
    %c5_i32_333 = arith.constant 5 : i32
    %703 = tpu.dynamic_rotate %699 by %c5_i32_333 dim 0 : vector<32x192xf32>, i32 -> vector<32x192xf32>
    %cst_334 = arith.constant 0.000000e+00 : f32
    %704 = vector.shape_cast %226 : vector<32x1xi1> to vector<32x1xi1>
    %705 = vector.broadcast %704 : vector<32x1xi1> to vector<32x192xi1>
    %706 = vector.broadcast %cst_334 : f32 to vector<32x192xf32>
    %707 = arith.select %705, %703, %706 : vector<32x192xi1>, vector<32x192xf32>
    %c0_335 = arith.constant 0 : index
    %c0_336 = arith.constant 0 : index
    %708 = vector.load %arg32[%c0_335, %c0_336] : memref<9x192xf32, #tpu.memory_space<vmem>>, vector<1x192xf32>
    %709 = vector.broadcast %708 : vector<1x192xf32> to vector<32x192xf32>
    %710 = arith.mulf %707, %709 : vector<32x192xf32>
    %711 = arith.addf %702, %710 : vector<32x192xf32>
    %c4_i32_337 = arith.constant 4 : i32
    %712 = tpu.dynamic_rotate %699 by %c4_i32_337 dim 0 : vector<32x192xf32>, i32 -> vector<32x192xf32>
    %cst_338 = arith.constant 0.000000e+00 : f32
    %713 = vector.shape_cast %228 : vector<32x1xi1> to vector<32x1xi1>
    %714 = vector.broadcast %713 : vector<32x1xi1> to vector<32x192xi1>
    %715 = vector.broadcast %cst_338 : f32 to vector<32x192xf32>
    %716 = arith.select %714, %712, %715 : vector<32x192xi1>, vector<32x192xf32>
    %c1_339 = arith.constant 1 : index
    %c0_340 = arith.constant 0 : index
    %717 = vector.load %arg32[%c1_339, %c0_340] : memref<9x192xf32, #tpu.memory_space<vmem>>, vector<1x192xf32>
    %718 = vector.broadcast %717 : vector<1x192xf32> to vector<32x192xf32>
    %719 = arith.mulf %716, %718 : vector<32x192xf32>
    %720 = arith.addf %711, %719 : vector<32x192xf32>
    %c3_i32_341 = arith.constant 3 : i32
    %721 = tpu.dynamic_rotate %699 by %c3_i32_341 dim 0 : vector<32x192xf32>, i32 -> vector<32x192xf32>
    %cst_342 = arith.constant 0.000000e+00 : f32
    %722 = vector.shape_cast %233 : vector<32x1xi1> to vector<32x1xi1>
    %723 = vector.broadcast %722 : vector<32x1xi1> to vector<32x192xi1>
    %724 = vector.broadcast %cst_342 : f32 to vector<32x192xf32>
    %725 = arith.select %723, %721, %724 : vector<32x192xi1>, vector<32x192xf32>
    %c2_343 = arith.constant 2 : index
    %c0_344 = arith.constant 0 : index
    %726 = vector.load %arg32[%c2_343, %c0_344] : memref<9x192xf32, #tpu.memory_space<vmem>>, vector<1x192xf32>
    %727 = vector.broadcast %726 : vector<1x192xf32> to vector<32x192xf32>
    %728 = arith.mulf %725, %727 : vector<32x192xf32>
    %729 = arith.addf %720, %728 : vector<32x192xf32>
    %c1_i32_345 = arith.constant 1 : i32
    %730 = tpu.dynamic_rotate %699 by %c1_i32_345 dim 0 : vector<32x192xf32>, i32 -> vector<32x192xf32>
    %cst_346 = arith.constant 0.000000e+00 : f32
    %731 = vector.shape_cast %235 : vector<32x1xi1> to vector<32x1xi1>
    %732 = vector.broadcast %731 : vector<32x1xi1> to vector<32x192xi1>
    %733 = vector.broadcast %cst_346 : f32 to vector<32x192xf32>
    %734 = arith.select %732, %730, %733 : vector<32x192xi1>, vector<32x192xf32>
    %c3_347 = arith.constant 3 : index
    %c0_348 = arith.constant 0 : index
    %735 = vector.load %arg32[%c3_347, %c0_348] : memref<9x192xf32, #tpu.memory_space<vmem>>, vector<1x192xf32>
    %736 = vector.broadcast %735 : vector<1x192xf32> to vector<32x192xf32>
    %737 = arith.mulf %734, %736 : vector<32x192xf32>
    %738 = arith.addf %729, %737 : vector<32x192xf32>
    %c31_i32_349 = arith.constant 31 : i32
    %739 = tpu.dynamic_rotate %699 by %c31_i32_349 dim 0 : vector<32x192xf32>, i32 -> vector<32x192xf32>
    %cst_350 = arith.constant 0.000000e+00 : f32
    %740 = vector.shape_cast %237 : vector<32x1xi1> to vector<32x1xi1>
    %741 = vector.broadcast %740 : vector<32x1xi1> to vector<32x192xi1>
    %742 = vector.broadcast %cst_350 : f32 to vector<32x192xf32>
    %743 = arith.select %741, %739, %742 : vector<32x192xi1>, vector<32x192xf32>
    %c5_351 = arith.constant 5 : index
    %c0_352 = arith.constant 0 : index
    %744 = vector.load %arg32[%c5_351, %c0_352] : memref<9x192xf32, #tpu.memory_space<vmem>>, vector<1x192xf32>
    %745 = vector.broadcast %744 : vector<1x192xf32> to vector<32x192xf32>
    %746 = arith.mulf %743, %745 : vector<32x192xf32>
    %747 = arith.addf %738, %746 : vector<32x192xf32>
    %c29_i32_353 = arith.constant 29 : i32
    %748 = tpu.dynamic_rotate %699 by %c29_i32_353 dim 0 : vector<32x192xf32>, i32 -> vector<32x192xf32>
    %cst_354 = arith.constant 0.000000e+00 : f32
    %749 = vector.shape_cast %242 : vector<32x1xi1> to vector<32x1xi1>
    %750 = vector.broadcast %749 : vector<32x1xi1> to vector<32x192xi1>
    %751 = vector.broadcast %cst_354 : f32 to vector<32x192xf32>
    %752 = arith.select %750, %748, %751 : vector<32x192xi1>, vector<32x192xf32>
    %c6_355 = arith.constant 6 : index
    %c0_356 = arith.constant 0 : index
    %753 = vector.load %arg32[%c6_355, %c0_356] : memref<9x192xf32, #tpu.memory_space<vmem>>, vector<1x192xf32>
    %754 = vector.broadcast %753 : vector<1x192xf32> to vector<32x192xf32>
    %755 = arith.mulf %752, %754 : vector<32x192xf32>
    %756 = arith.addf %747, %755 : vector<32x192xf32>
    %c28_i32_357 = arith.constant 28 : i32
    %757 = tpu.dynamic_rotate %699 by %c28_i32_357 dim 0 : vector<32x192xf32>, i32 -> vector<32x192xf32>
    %cst_358 = arith.constant 0.000000e+00 : f32
    %758 = vector.shape_cast %244 : vector<32x1xi1> to vector<32x1xi1>
    %759 = vector.broadcast %758 : vector<32x1xi1> to vector<32x192xi1>
    %760 = vector.broadcast %cst_358 : f32 to vector<32x192xf32>
    %761 = arith.select %759, %757, %760 : vector<32x192xi1>, vector<32x192xf32>
    %c7_359 = arith.constant 7 : index
    %c0_360 = arith.constant 0 : index
    %762 = vector.load %arg32[%c7_359, %c0_360] : memref<9x192xf32, #tpu.memory_space<vmem>>, vector<1x192xf32>
    %763 = vector.broadcast %762 : vector<1x192xf32> to vector<32x192xf32>
    %764 = arith.mulf %761, %763 : vector<32x192xf32>
    %765 = arith.addf %756, %764 : vector<32x192xf32>
    %c27_i32_361 = arith.constant 27 : i32
    %766 = tpu.dynamic_rotate %699 by %c27_i32_361 dim 0 : vector<32x192xf32>, i32 -> vector<32x192xf32>
    %cst_362 = arith.constant 0.000000e+00 : f32
    %767 = vector.shape_cast %249 : vector<32x1xi1> to vector<32x1xi1>
    %768 = vector.broadcast %767 : vector<32x1xi1> to vector<32x192xi1>
    %769 = vector.broadcast %cst_362 : f32 to vector<32x192xf32>
    %770 = arith.select %768, %766, %769 : vector<32x192xi1>, vector<32x192xf32>
    %c8_363 = arith.constant 8 : index
    %c0_364 = arith.constant 0 : index
    %771 = vector.load %arg32[%c8_363, %c0_364] : memref<9x192xf32, #tpu.memory_space<vmem>>, vector<1x192xf32>
    %772 = vector.broadcast %771 : vector<1x192xf32> to vector<32x192xf32>
    %773 = arith.mulf %770, %772 : vector<32x192xf32>
    %774 = arith.addf %765, %773 : vector<32x192xf32>
    %c0_365 = arith.constant 0 : index
    %c0_366 = arith.constant 0 : index
    %775 = vector.load %arg33[%c0_365, %c0_366] : memref<1x192xf32, #tpu.memory_space<vmem>>, vector<1x192xf32>
    %776 = vector.broadcast %775 : vector<1x192xf32> to vector<32x192xf32>
    %777 = arith.addf %774, %776 : vector<32x192xf32>
    %cst_367 = arith.constant 0.000000e+00 : f32
    %778 = vector.broadcast %cst_367 : f32 to vector<32x192xf32>
    %779 = arith.maximumf %777, %778 : vector<32x192xf32>
    %780 = arith.truncf %779 : vector<32x192xf32> to vector<32x192xbf16>
    %c0_368 = arith.constant 0 : index
    %c0_369 = arith.constant 0 : index
    %781 = vector.load %arg34[%c0_368, %c0_369] : memref<192x192xbf16, #tpu.memory_space<vmem>>, vector<192x192xbf16>
    %cst_370 = arith.constant dense<0.000000e+00> : vector<32x192xf32>
    %782 = tpu.matmul %780, %781, %cst_370 {dimension_numbers = #tpu.dot_dimension_numbers<[1], [0], [0], [1], [0, 0, 1, 1], [], []>} : vector<32x192xbf16>, vector<192x192xbf16>, vector<32x192xf32> -> vector<32x192xf32>
    %c0_371 = arith.constant 0 : index
    %c0_372 = arith.constant 0 : index
    %783 = vector.load %arg35[%c0_371, %c0_372] : memref<1x192xf32, #tpu.memory_space<vmem>>, vector<1x192xf32>
    %784 = vector.broadcast %783 : vector<1x192xf32> to vector<32x192xf32>
    %785 = arith.addf %782, %784 : vector<32x192xf32>
    %cst_373 = arith.constant 0.000000e+00 : f32
    %786 = vector.broadcast %cst_373 : f32 to vector<32x192xf32>
    %787 = arith.maximumf %785, %786 : vector<32x192xf32>
    %c0_374 = arith.constant 0 : index
    %c0_375 = arith.constant 0 : index
    %788 = vector.load %arg48[%c0_374, %c0_375] : memref<128x768xf32, #tpu.memory_space<vmem>>, vector<32x192xf32>
    tpu.vector_store %arg48[%c0_374, %c0_375], %787 {strides = array<i32>} : memref<128x768xf32, #tpu.memory_space<vmem>>, vector<32x192xf32>,
    %c0_376 = arith.constant 0 : index
    %c0_377 = arith.constant 0 : index
    %789 = vector.load %arg48[%c0_376, %c0_377] : memref<128x768xf32, #tpu.memory_space<vmem>>, vector<32x192xf32>
    %c4_378 = arith.constant 4 : index
    %c0_379 = arith.constant 0 : index
    %790 = vector.load %arg36[%c4_378, %c0_379] : memref<9x192xf32, #tpu.memory_space<vmem>>, vector<1x192xf32>
    %791 = vector.broadcast %790 : vector<1x192xf32> to vector<32x192xf32>
    %792 = arith.mulf %789, %791 : vector<32x192xf32>
    %c5_i32_380 = arith.constant 5 : i32
    %793 = tpu.dynamic_rotate %789 by %c5_i32_380 dim 0 : vector<32x192xf32>, i32 -> vector<32x192xf32>
    %cst_381 = arith.constant 0.000000e+00 : f32
    %794 = vector.shape_cast %226 : vector<32x1xi1> to vector<32x1xi1>
    %795 = vector.broadcast %794 : vector<32x1xi1> to vector<32x192xi1>
    %796 = vector.broadcast %cst_381 : f32 to vector<32x192xf32>
    %797 = arith.select %795, %793, %796 : vector<32x192xi1>, vector<32x192xf32>
    %c0_382 = arith.constant 0 : index
    %c0_383 = arith.constant 0 : index
    %798 = vector.load %arg36[%c0_382, %c0_383] : memref<9x192xf32, #tpu.memory_space<vmem>>, vector<1x192xf32>
    %799 = vector.broadcast %798 : vector<1x192xf32> to vector<32x192xf32>
    %800 = arith.mulf %797, %799 : vector<32x192xf32>
    %801 = arith.addf %792, %800 : vector<32x192xf32>
    %c4_i32_384 = arith.constant 4 : i32
    %802 = tpu.dynamic_rotate %789 by %c4_i32_384 dim 0 : vector<32x192xf32>, i32 -> vector<32x192xf32>
    %cst_385 = arith.constant 0.000000e+00 : f32
    %803 = vector.shape_cast %228 : vector<32x1xi1> to vector<32x1xi1>
    %804 = vector.broadcast %803 : vector<32x1xi1> to vector<32x192xi1>
    %805 = vector.broadcast %cst_385 : f32 to vector<32x192xf32>
    %806 = arith.select %804, %802, %805 : vector<32x192xi1>, vector<32x192xf32>
    %c1_386 = arith.constant 1 : index
    %c0_387 = arith.constant 0 : index
    %807 = vector.load %arg36[%c1_386, %c0_387] : memref<9x192xf32, #tpu.memory_space<vmem>>, vector<1x192xf32>
    %808 = vector.broadcast %807 : vector<1x192xf32> to vector<32x192xf32>
    %809 = arith.mulf %806, %808 : vector<32x192xf32>
    %810 = arith.addf %801, %809 : vector<32x192xf32>
    %c3_i32_388 = arith.constant 3 : i32
    %811 = tpu.dynamic_rotate %789 by %c3_i32_388 dim 0 : vector<32x192xf32>, i32 -> vector<32x192xf32>
    %cst_389 = arith.constant 0.000000e+00 : f32
    %812 = vector.shape_cast %233 : vector<32x1xi1> to vector<32x1xi1>
    %813 = vector.broadcast %812 : vector<32x1xi1> to vector<32x192xi1>
    %814 = vector.broadcast %cst_389 : f32 to vector<32x192xf32>
    %815 = arith.select %813, %811, %814 : vector<32x192xi1>, vector<32x192xf32>
    %c2_390 = arith.constant 2 : index
    %c0_391 = arith.constant 0 : index
    %816 = vector.load %arg36[%c2_390, %c0_391] : memref<9x192xf32, #tpu.memory_space<vmem>>, vector<1x192xf32>
    %817 = vector.broadcast %816 : vector<1x192xf32> to vector<32x192xf32>
    %818 = arith.mulf %815, %817 : vector<32x192xf32>
    %819 = arith.addf %810, %818 : vector<32x192xf32>
    %c1_i32_392 = arith.constant 1 : i32
    %820 = tpu.dynamic_rotate %789 by %c1_i32_392 dim 0 : vector<32x192xf32>, i32 -> vector<32x192xf32>
    %cst_393 = arith.constant 0.000000e+00 : f32
    %821 = vector.shape_cast %235 : vector<32x1xi1> to vector<32x1xi1>
    %822 = vector.broadcast %821 : vector<32x1xi1> to vector<32x192xi1>
    %823 = vector.broadcast %cst_393 : f32 to vector<32x192xf32>
    %824 = arith.select %822, %820, %823 : vector<32x192xi1>, vector<32x192xf32>
    %c3_394 = arith.constant 3 : index
    %c0_395 = arith.constant 0 : index
    %825 = vector.load %arg36[%c3_394, %c0_395] : memref<9x192xf32, #tpu.memory_space<vmem>>, vector<1x192xf32>
    %826 = vector.broadcast %825 : vector<1x192xf32> to vector<32x192xf32>
    %827 = arith.mulf %824, %826 : vector<32x192xf32>
    %828 = arith.addf %819, %827 : vector<32x192xf32>
    %c31_i32_396 = arith.constant 31 : i32
    %829 = tpu.dynamic_rotate %789 by %c31_i32_396 dim 0 : vector<32x192xf32>, i32 -> vector<32x192xf32>
    %cst_397 = arith.constant 0.000000e+00 : f32
    %830 = vector.shape_cast %237 : vector<32x1xi1> to vector<32x1xi1>
    %831 = vector.broadcast %830 : vector<32x1xi1> to vector<32x192xi1>
    %832 = vector.broadcast %cst_397 : f32 to vector<32x192xf32>
    %833 = arith.select %831, %829, %832 : vector<32x192xi1>, vector<32x192xf32>
    %c5_398 = arith.constant 5 : index
    %c0_399 = arith.constant 0 : index
    %834 = vector.load %arg36[%c5_398, %c0_399] : memref<9x192xf32, #tpu.memory_space<vmem>>, vector<1x192xf32>
    %835 = vector.broadcast %834 : vector<1x192xf32> to vector<32x192xf32>
    %836 = arith.mulf %833, %835 : vector<32x192xf32>
    %837 = arith.addf %828, %836 : vector<32x192xf32>
    %c29_i32_400 = arith.constant 29 : i32
    %838 = tpu.dynamic_rotate %789 by %c29_i32_400 dim 0 : vector<32x192xf32>, i32 -> vector<32x192xf32>
    %cst_401 = arith.constant 0.000000e+00 : f32
    %839 = vector.shape_cast %242 : vector<32x1xi1> to vector<32x1xi1>
    %840 = vector.broadcast %839 : vector<32x1xi1> to vector<32x192xi1>
    %841 = vector.broadcast %cst_401 : f32 to vector<32x192xf32>
    %842 = arith.select %840, %838, %841 : vector<32x192xi1>, vector<32x192xf32>
    %c6_402 = arith.constant 6 : index
    %c0_403 = arith.constant 0 : index
    %843 = vector.load %arg36[%c6_402, %c0_403] : memref<9x192xf32, #tpu.memory_space<vmem>>, vector<1x192xf32>
    %844 = vector.broadcast %843 : vector<1x192xf32> to vector<32x192xf32>
    %845 = arith.mulf %842, %844 : vector<32x192xf32>
    %846 = arith.addf %837, %845 : vector<32x192xf32>
    %c28_i32_404 = arith.constant 28 : i32
    %847 = tpu.dynamic_rotate %789 by %c28_i32_404 dim 0 : vector<32x192xf32>, i32 -> vector<32x192xf32>
    %cst_405 = arith.constant 0.000000e+00 : f32
    %848 = vector.shape_cast %244 : vector<32x1xi1> to vector<32x1xi1>
    %849 = vector.broadcast %848 : vector<32x1xi1> to vector<32x192xi1>
    %850 = vector.broadcast %cst_405 : f32 to vector<32x192xf32>
    %851 = arith.select %849, %847, %850 : vector<32x192xi1>, vector<32x192xf32>
    %c7_406 = arith.constant 7 : index
    %c0_407 = arith.constant 0 : index
    %852 = vector.load %arg36[%c7_406, %c0_407] : memref<9x192xf32, #tpu.memory_space<vmem>>, vector<1x192xf32>
    %853 = vector.broadcast %852 : vector<1x192xf32> to vector<32x192xf32>
    %854 = arith.mulf %851, %853 : vector<32x192xf32>
    %855 = arith.addf %846, %854 : vector<32x192xf32>
    %c27_i32_408 = arith.constant 27 : i32
    %856 = tpu.dynamic_rotate %789 by %c27_i32_408 dim 0 : vector<32x192xf32>, i32 -> vector<32x192xf32>
    %cst_409 = arith.constant 0.000000e+00 : f32
    %857 = vector.shape_cast %249 : vector<32x1xi1> to vector<32x1xi1>
    %858 = vector.broadcast %857 : vector<32x1xi1> to vector<32x192xi1>
    %859 = vector.broadcast %cst_409 : f32 to vector<32x192xf32>
    %860 = arith.select %858, %856, %859 : vector<32x192xi1>, vector<32x192xf32>
    %c8_410 = arith.constant 8 : index
    %c0_411 = arith.constant 0 : index
    %861 = vector.load %arg36[%c8_410, %c0_411] : memref<9x192xf32, #tpu.memory_space<vmem>>, vector<1x192xf32>
    %862 = vector.broadcast %861 : vector<1x192xf32> to vector<32x192xf32>
    %863 = arith.mulf %860, %862 : vector<32x192xf32>
    %864 = arith.addf %855, %863 : vector<32x192xf32>
    %c0_412 = arith.constant 0 : index
    %c0_413 = arith.constant 0 : index
    %865 = vector.load %arg37[%c0_412, %c0_413] : memref<1x192xf32, #tpu.memory_space<vmem>>, vector<1x192xf32>
    %866 = vector.broadcast %865 : vector<1x192xf32> to vector<32x192xf32>
    %867 = arith.addf %864, %866 : vector<32x192xf32>
    %cst_414 = arith.constant 0.000000e+00 : f32
    %868 = vector.broadcast %cst_414 : f32 to vector<32x192xf32>
    %869 = arith.maximumf %867, %868 : vector<32x192xf32>
    %870 = arith.truncf %869 : vector<32x192xf32> to vector<32x192xbf16>
    %c0_415 = arith.constant 0 : index
    %c0_416 = arith.constant 0 : index
    %871 = vector.load %arg3[%c0_415, %c0_416] : memref<8x32xbf16, #tpu.memory_space<vmem>>, vector<8x32xbf16>
    %cst_417 = arith.constant dense<0.000000e+00> : vector<8x192xf32>
    %872 = tpu.matmul %871, %870, %cst_417 {dimension_numbers = #tpu.dot_dimension_numbers<[1], [0], [0], [1], [0, 0, 1, 1], [], []>} : vector<8x32xbf16>, vector<32x192xbf16>, vector<8x192xf32> -> vector<8x192xf32>
    %873 = arith.truncf %872 : vector<8x192xf32> to vector<8x192xbf16>
    %c0_418 = arith.constant 0 : index
    %c0_419 = arith.constant 0 : index
    %874 = vector.load %arg38[%c0_418, %c0_419] : memref<192x384xbf16, #tpu.memory_space<vmem>>, vector<192x384xbf16>
    %cst_420 = arith.constant dense<0.000000e+00> : vector<8x384xf32>
    %875 = tpu.matmul %873, %874, %cst_420 {dimension_numbers = #tpu.dot_dimension_numbers<[1], [0], [0], [1], [0, 0, 1, 1], [], []>} : vector<8x192xbf16>, vector<192x384xbf16>, vector<8x384xf32> -> vector<8x384xf32>
    %c0_421 = arith.constant 0 : index
    %c0_422 = arith.constant 0 : index
    %876 = vector.load %arg39[%c0_421, %c0_422] : memref<1x384xf32, #tpu.memory_space<vmem>>, vector<1x384xf32>
    %877 = vector.broadcast %876 : vector<1x384xf32> to vector<8x384xf32>
    %878 = arith.addf %875, %877 : vector<8x384xf32>
    %cst_423 = arith.constant 0.000000e+00 : f32
    %879 = vector.broadcast %cst_423 : f32 to vector<8x384xf32>
    %880 = arith.maximumf %878, %879 : vector<8x384xf32>
    %c0_424 = arith.constant 0 : index
    %c0_425 = arith.constant 0 : index
    %881 = vector.load %arg47[%c0_424, %c0_425] : memref<128x768xf32, #tpu.memory_space<vmem>>, vector<8x384xf32>
    tpu.vector_store %arg47[%c0_424, %c0_425], %880 {strides = array<i32>} : memref<128x768xf32, #tpu.memory_space<vmem>>, vector<8x384xf32>,
    %c0_426 = arith.constant 0 : index
    %c0_427 = arith.constant 0 : index
    %882 = vector.load %arg47[%c0_426, %c0_427] : memref<128x768xf32, #tpu.memory_space<vmem>>, vector<8x384xf32>
    %883 = tpu.iota {dimensions = array<i32: 0>} : vector<8x1xi32>
    %c3_i32_428 = arith.constant 3 : i32
    %884 = vector.broadcast %c3_i32_428 : i32 to vector<8x1xi32>
    %885 = arith.andi %883, %884 : vector<8x1xi32>
    %c1_i32_429 = arith.constant 1 : i32
    %886 = vector.broadcast %c1_i32_429 : i32 to vector<8x1xi32>
    %887 = arith.andi %885, %886 : vector<8x1xi32>
    %c2_i32_430 = arith.constant 2 : i32
    %888 = vector.broadcast %c2_i32_430 : i32 to vector<8x1xi32>
    %889 = arith.cmpi sge, %885, %888 : vector<8x1xi32>
    %c1_i32_431 = arith.constant 1 : i32
    %890 = vector.broadcast %c1_i32_431 : i32 to vector<8x1xi32>
    %891 = arith.cmpi sge, %887, %890 : vector<8x1xi32>
    %892 = arith.andi %889, %891 : vector<8x1xi1>
    %c2_i32_432 = arith.constant 2 : i32
    %893 = vector.broadcast %c2_i32_432 : i32 to vector<8x1xi32>
    %894 = arith.cmpi sge, %885, %893 : vector<8x1xi32>
    %c2_i32_433 = arith.constant 2 : i32
    %895 = vector.broadcast %c2_i32_433 : i32 to vector<8x1xi32>
    %896 = arith.cmpi sge, %885, %895 : vector<8x1xi32>
    %c0_i32 = arith.constant 0 : i32
    %897 = vector.broadcast %c0_i32 : i32 to vector<8x1xi32>
    %898 = arith.cmpi sle, %887, %897 : vector<8x1xi32>
    %899 = arith.andi %896, %898 : vector<8x1xi1>
    %c1_i32_434 = arith.constant 1 : i32
    %900 = vector.broadcast %c1_i32_434 : i32 to vector<8x1xi32>
    %901 = arith.cmpi sge, %887, %900 : vector<8x1xi32>
    %c0_i32_435 = arith.constant 0 : i32
    %902 = vector.broadcast %c0_i32_435 : i32 to vector<8x1xi32>
    %903 = arith.cmpi sle, %887, %902 : vector<8x1xi32>
    %c2_i32_436 = arith.constant 2 : i32
    %904 = vector.broadcast %c2_i32_436 : i32 to vector<8x1xi32>
    %905 = arith.cmpi slt, %885, %904 : vector<8x1xi32>
    %c1_i32_437 = arith.constant 1 : i32
    %906 = vector.broadcast %c1_i32_437 : i32 to vector<8x1xi32>
    %907 = arith.cmpi sge, %887, %906 : vector<8x1xi32>
    %908 = arith.andi %905, %907 : vector<8x1xi1>
    %c2_i32_438 = arith.constant 2 : i32
    %909 = vector.broadcast %c2_i32_438 : i32 to vector<8x1xi32>
    %910 = arith.cmpi slt, %885, %909 : vector<8x1xi32>
    %c2_i32_439 = arith.constant 2 : i32
    %911 = vector.broadcast %c2_i32_439 : i32 to vector<8x1xi32>
    %912 = arith.cmpi slt, %885, %911 : vector<8x1xi32>
    %c0_i32_440 = arith.constant 0 : i32
    %913 = vector.broadcast %c0_i32_440 : i32 to vector<8x1xi32>
    %914 = arith.cmpi sle, %887, %913 : vector<8x1xi32>
    %915 = arith.andi %912, %914 : vector<8x1xi1>
    %c4_441 = arith.constant 4 : index
    %c0_442 = arith.constant 0 : index
    %916 = vector.load %arg40[%c4_441, %c0_442] : memref<9x384xf32, #tpu.memory_space<vmem>>, vector<1x384xf32>
    %917 = vector.broadcast %916 : vector<1x384xf32> to vector<8x384xf32>
    %918 = arith.mulf %882, %917 : vector<8x384xf32>
    %c3_i32_443 = arith.constant 3 : i32
    %919 = tpu.dynamic_rotate %882 by %c3_i32_443 dim 0 : vector<8x384xf32>, i32 -> vector<8x384xf32>
    %cst_444 = arith.constant 0.000000e+00 : f32
    %920 = vector.shape_cast %892 : vector<8x1xi1> to vector<8x1xi1>
    %921 = vector.broadcast %920 : vector<8x1xi1> to vector<8x384xi1>
    %922 = vector.broadcast %cst_444 : f32 to vector<8x384xf32>
    %923 = arith.select %921, %919, %922 : vector<8x384xi1>, vector<8x384xf32>
    %c0_445 = arith.constant 0 : index
    %c0_446 = arith.constant 0 : index
    %924 = vector.load %arg40[%c0_445, %c0_446] : memref<9x384xf32, #tpu.memory_space<vmem>>, vector<1x384xf32>
    %925 = vector.broadcast %924 : vector<1x384xf32> to vector<8x384xf32>
    %926 = arith.mulf %923, %925 : vector<8x384xf32>
    %927 = arith.addf %918, %926 : vector<8x384xf32>
    %c2_i32_447 = arith.constant 2 : i32
    %928 = tpu.dynamic_rotate %882 by %c2_i32_447 dim 0 : vector<8x384xf32>, i32 -> vector<8x384xf32>
    %cst_448 = arith.constant 0.000000e+00 : f32
    %929 = vector.shape_cast %894 : vector<8x1xi1> to vector<8x1xi1>
    %930 = vector.broadcast %929 : vector<8x1xi1> to vector<8x384xi1>
    %931 = vector.broadcast %cst_448 : f32 to vector<8x384xf32>
    %932 = arith.select %930, %928, %931 : vector<8x384xi1>, vector<8x384xf32>
    %c1_449 = arith.constant 1 : index
    %c0_450 = arith.constant 0 : index
    %933 = vector.load %arg40[%c1_449, %c0_450] : memref<9x384xf32, #tpu.memory_space<vmem>>, vector<1x384xf32>
    %934 = vector.broadcast %933 : vector<1x384xf32> to vector<8x384xf32>
    %935 = arith.mulf %932, %934 : vector<8x384xf32>
    %936 = arith.addf %927, %935 : vector<8x384xf32>
    %c1_i32_451 = arith.constant 1 : i32
    %937 = tpu.dynamic_rotate %882 by %c1_i32_451 dim 0 : vector<8x384xf32>, i32 -> vector<8x384xf32>
    %cst_452 = arith.constant 0.000000e+00 : f32
    %938 = vector.shape_cast %899 : vector<8x1xi1> to vector<8x1xi1>
    %939 = vector.broadcast %938 : vector<8x1xi1> to vector<8x384xi1>
    %940 = vector.broadcast %cst_452 : f32 to vector<8x384xf32>
    %941 = arith.select %939, %937, %940 : vector<8x384xi1>, vector<8x384xf32>
    %c2_453 = arith.constant 2 : index
    %c0_454 = arith.constant 0 : index
    %942 = vector.load %arg40[%c2_453, %c0_454] : memref<9x384xf32, #tpu.memory_space<vmem>>, vector<1x384xf32>
    %943 = vector.broadcast %942 : vector<1x384xf32> to vector<8x384xf32>
    %944 = arith.mulf %941, %943 : vector<8x384xf32>
    %945 = arith.addf %936, %944 : vector<8x384xf32>
    %c1_i32_455 = arith.constant 1 : i32
    %946 = tpu.dynamic_rotate %882 by %c1_i32_455 dim 0 : vector<8x384xf32>, i32 -> vector<8x384xf32>
    %cst_456 = arith.constant 0.000000e+00 : f32
    %947 = vector.shape_cast %901 : vector<8x1xi1> to vector<8x1xi1>
    %948 = vector.broadcast %947 : vector<8x1xi1> to vector<8x384xi1>
    %949 = vector.broadcast %cst_456 : f32 to vector<8x384xf32>
    %950 = arith.select %948, %946, %949 : vector<8x384xi1>, vector<8x384xf32>
    %c3_457 = arith.constant 3 : index
    %c0_458 = arith.constant 0 : index
    %951 = vector.load %arg40[%c3_457, %c0_458] : memref<9x384xf32, #tpu.memory_space<vmem>>, vector<1x384xf32>
    %952 = vector.broadcast %951 : vector<1x384xf32> to vector<8x384xf32>
    %953 = arith.mulf %950, %952 : vector<8x384xf32>
    %954 = arith.addf %945, %953 : vector<8x384xf32>
    %c7_i32_459 = arith.constant 7 : i32
    %955 = tpu.dynamic_rotate %882 by %c7_i32_459 dim 0 : vector<8x384xf32>, i32 -> vector<8x384xf32>
    %cst_460 = arith.constant 0.000000e+00 : f32
    %956 = vector.shape_cast %903 : vector<8x1xi1> to vector<8x1xi1>
    %957 = vector.broadcast %956 : vector<8x1xi1> to vector<8x384xi1>
    %958 = vector.broadcast %cst_460 : f32 to vector<8x384xf32>
    %959 = arith.select %957, %955, %958 : vector<8x384xi1>, vector<8x384xf32>
    %c5_461 = arith.constant 5 : index
    %c0_462 = arith.constant 0 : index
    %960 = vector.load %arg40[%c5_461, %c0_462] : memref<9x384xf32, #tpu.memory_space<vmem>>, vector<1x384xf32>
    %961 = vector.broadcast %960 : vector<1x384xf32> to vector<8x384xf32>
    %962 = arith.mulf %959, %961 : vector<8x384xf32>
    %963 = arith.addf %954, %962 : vector<8x384xf32>
    %c7_i32_463 = arith.constant 7 : i32
    %964 = tpu.dynamic_rotate %882 by %c7_i32_463 dim 0 : vector<8x384xf32>, i32 -> vector<8x384xf32>
    %cst_464 = arith.constant 0.000000e+00 : f32
    %965 = vector.shape_cast %908 : vector<8x1xi1> to vector<8x1xi1>
    %966 = vector.broadcast %965 : vector<8x1xi1> to vector<8x384xi1>
    %967 = vector.broadcast %cst_464 : f32 to vector<8x384xf32>
    %968 = arith.select %966, %964, %967 : vector<8x384xi1>, vector<8x384xf32>
    %c6_465 = arith.constant 6 : index
    %c0_466 = arith.constant 0 : index
    %969 = vector.load %arg40[%c6_465, %c0_466] : memref<9x384xf32, #tpu.memory_space<vmem>>, vector<1x384xf32>
    %970 = vector.broadcast %969 : vector<1x384xf32> to vector<8x384xf32>
    %971 = arith.mulf %968, %970 : vector<8x384xf32>
    %972 = arith.addf %963, %971 : vector<8x384xf32>
    %c6_i32_467 = arith.constant 6 : i32
    %973 = tpu.dynamic_rotate %882 by %c6_i32_467 dim 0 : vector<8x384xf32>, i32 -> vector<8x384xf32>
    %cst_468 = arith.constant 0.000000e+00 : f32
    %974 = vector.shape_cast %910 : vector<8x1xi1> to vector<8x1xi1>
    %975 = vector.broadcast %974 : vector<8x1xi1> to vector<8x384xi1>
    %976 = vector.broadcast %cst_468 : f32 to vector<8x384xf32>
    %977 = arith.select %975, %973, %976 : vector<8x384xi1>, vector<8x384xf32>
    %c7_469 = arith.constant 7 : index
    %c0_470 = arith.constant 0 : index
    %978 = vector.load %arg40[%c7_469, %c0_470] : memref<9x384xf32, #tpu.memory_space<vmem>>, vector<1x384xf32>
    %979 = vector.broadcast %978 : vector<1x384xf32> to vector<8x384xf32>
    %980 = arith.mulf %977, %979 : vector<8x384xf32>
    %981 = arith.addf %972, %980 : vector<8x384xf32>
    %c5_i32_471 = arith.constant 5 : i32
    %982 = tpu.dynamic_rotate %882 by %c5_i32_471 dim 0 : vector<8x384xf32>, i32 -> vector<8x384xf32>
    %cst_472 = arith.constant 0.000000e+00 : f32
    %983 = vector.shape_cast %915 : vector<8x1xi1> to vector<8x1xi1>
    %984 = vector.broadcast %983 : vector<8x1xi1> to vector<8x384xi1>
    %985 = vector.broadcast %cst_472 : f32 to vector<8x384xf32>
    %986 = arith.select %984, %982, %985 : vector<8x384xi1>, vector<8x384xf32>
    %c8_473 = arith.constant 8 : index
    %c0_474 = arith.constant 0 : index
    %987 = vector.load %arg40[%c8_473, %c0_474] : memref<9x384xf32, #tpu.memory_space<vmem>>, vector<1x384xf32>
    %988 = vector.broadcast %987 : vector<1x384xf32> to vector<8x384xf32>
    %989 = arith.mulf %986, %988 : vector<8x384xf32>
    %990 = arith.addf %981, %989 : vector<8x384xf32>
    %c0_475 = arith.constant 0 : index
    %c0_476 = arith.constant 0 : index
    %991 = vector.load %arg41[%c0_475, %c0_476] : memref<1x384xf32, #tpu.memory_space<vmem>>, vector<1x384xf32>
    %992 = vector.broadcast %991 : vector<1x384xf32> to vector<8x384xf32>
    %993 = arith.addf %990, %992 : vector<8x384xf32>
    %cst_477 = arith.constant 0.000000e+00 : f32
    %994 = vector.broadcast %cst_477 : f32 to vector<8x384xf32>
    %995 = arith.maximumf %993, %994 : vector<8x384xf32>
    %996 = arith.truncf %995 : vector<8x384xf32> to vector<8x384xbf16>
    %c0_478 = arith.constant 0 : index
    %c0_479 = arith.constant 0 : index
    %997 = vector.load %arg42[%c0_478, %c0_479] : memref<384x768xbf16, #tpu.memory_space<vmem>>, vector<384x768xbf16>
    %cst_480 = arith.constant dense<0.000000e+00> : vector<8x768xf32>
    %998 = tpu.matmul %996, %997, %cst_480 {dimension_numbers = #tpu.dot_dimension_numbers<[1], [0], [0], [1], [0, 0, 1, 1], [], []>} : vector<8x384xbf16>, vector<384x768xbf16>, vector<8x768xf32> -> vector<8x768xf32>
    %c0_481 = arith.constant 0 : index
    %c0_482 = arith.constant 0 : index
    %999 = vector.load %arg43[%c0_481, %c0_482] : memref<1x768xf32, #tpu.memory_space<vmem>>, vector<1x768xf32>
    %1000 = vector.broadcast %999 : vector<1x768xf32> to vector<8x768xf32>
    %1001 = arith.addf %998, %1000 : vector<8x768xf32>
    %cst_483 = arith.constant 0.000000e+00 : f32
    %1002 = vector.broadcast %cst_483 : f32 to vector<8x768xf32>
    %1003 = arith.maximumf %1001, %1002 : vector<8x768xf32>
    %c0_484 = arith.constant 0 : index
    %c0_485 = arith.constant 0 : index
    %1004 = vector.load %arg48[%c0_484, %c0_485] : memref<128x768xf32, #tpu.memory_space<vmem>>, vector<8x768xf32>
    tpu.vector_store %arg48[%c0_484, %c0_485], %1003 {strides = array<i32>} : memref<128x768xf32, #tpu.memory_space<vmem>>, vector<8x768xf32>,
    %c0_486 = arith.constant 0 : index
    %c0_487 = arith.constant 0 : index
    %1005 = vector.load %arg48[%c0_486, %c0_487] : memref<128x768xf32, #tpu.memory_space<vmem>>, vector<4x768xf32>
    %cst_488 = arith.constant dense<0.000000e+00> : vector<768xf32>
    %1006 = vector.multi_reduction <add>, %1005, %cst_488 [0] : vector<4x768xf32> to vector<768xf32>
    %1007 = vector.shape_cast %1006 : vector<768xf32> to vector<1x768xf32>
    %c4_489 = arith.constant 4 : index
    %c0_490 = arith.constant 0 : index
    %1008 = vector.load %arg48[%c4_489, %c0_490] : memref<128x768xf32, #tpu.memory_space<vmem>>, vector<4x768xf32>
    %cst_491 = arith.constant dense<0.000000e+00> : vector<768xf32>
    %1009 = vector.multi_reduction <add>, %1008, %cst_491 [0] : vector<4x768xf32> to vector<768xf32>
    %1010 = vector.shape_cast %1009 : vector<768xf32> to vector<1x768xf32>
    %1011 = tpu.concatenate %1007, %1010 in 0 : vector<1x768xf32>, vector<1x768xf32> -> vector<2x768xf32>
    %1012 = arith.truncf %1011 : vector<2x768xf32> to vector<2x768xbf16>
    %c0_492 = arith.constant 0 : index
    %c0_493 = arith.constant 0 : index
    %1013 = vector.load %arg44[%c0_492, %c0_493] : memref<768x6xbf16, #tpu.memory_space<vmem>>, vector<768x6xbf16>
    %cst_494 = arith.constant dense<0.000000e+00> : vector<2x6xf32>
    %1014 = tpu.matmul %1012, %1013, %cst_494 {dimension_numbers = #tpu.dot_dimension_numbers<[1], [0], [0], [1], [0, 0, 1, 1], [], []>} : vector<2x768xbf16>, vector<768x6xbf16>, vector<2x6xf32> -> vector<2x6xf32>
    %c0_495 = arith.constant 0 : index
    %c0_496 = arith.constant 0 : index
    %1015 = vector.load %arg45[%c0_495, %c0_496] : memref<1x6xf32, #tpu.memory_space<vmem>>, vector<1x6xf32>
    %1016 = vector.broadcast %1015 : vector<1x6xf32> to vector<2x6xf32>
    %1017 = arith.addf %1014, %1016 : vector<2x6xf32>
    %c0_497 = arith.constant 0 : index
    %c0_498 = arith.constant 0 : index
    %c0_499 = arith.constant 0 : index
    %1018 = vector.load %arg46[%c0_497, %c0_498, %c0_499] : memref<1x2x6xf32, #tpu.memory_space<vmem>>, vector<1x2x6xf32>
    %1019 = vector.shape_cast %1018 : vector<1x2x6xf32> to vector<2x6xf32>
    %1020 = vector.shape_cast %1017 : vector<2x6xf32> to vector<1x2x6xf32>
    tpu.vector_store %arg46[%c0_497, %c0_498, %c0_499], %1020 {strides = array<i32>} : memref<1x2x6xf32, #tpu.memory_space<vmem>>, vector<1x2x6xf32>,
    return
  }
  func.func @transform_0(%arg0: i32) -> (i32, i32) {
    %c0_i32 = arith.constant 0 : i32
    %c0_i32_0 = arith.constant 0 : i32
    return %arg0, %c0_i32 : i32, i32
  }
  func.func @transform_1(%arg0: i32) -> (i32, i32) {
    %c0_i32 = arith.constant 0 : i32
    %c0_i32_0 = arith.constant 0 : i32
    %c0_i32_1 = arith.constant 0 : i32
    return %c0_i32, %c0_i32_0 : i32, i32
  }
  func.func @transform_2(%arg0: i32) -> (i32, i32) {
    %c0_i32 = arith.constant 0 : i32
    %c0_i32_0 = arith.constant 0 : i32
    %c0_i32_1 = arith.constant 0 : i32
    return %c0_i32, %c0_i32_0 : i32, i32
  }
  func.func @transform_3(%arg0: i32) -> (i32, i32) {
    %c0_i32 = arith.constant 0 : i32
    %c0_i32_0 = arith.constant 0 : i32
    %c0_i32_1 = arith.constant 0 : i32
    return %c0_i32, %c0_i32_0 : i32, i32
  }
  func.func @transform_4(%arg0: i32) -> (i32, i32) {
    %c0_i32 = arith.constant 0 : i32
    %c0_i32_0 = arith.constant 0 : i32
    %c0_i32_1 = arith.constant 0 : i32
    return %c0_i32, %c0_i32_0 : i32, i32
  }
  func.func @transform_5(%arg0: i32) -> (i32, i32) {
    %c0_i32 = arith.constant 0 : i32
    %c0_i32_0 = arith.constant 0 : i32
    %c0_i32_1 = arith.constant 0 : i32
    return %c0_i32, %c0_i32_0 : i32, i32
  }
  func.func @transform_6(%arg0: i32) -> (i32, i32) {
    %c0_i32 = arith.constant 0 : i32
    %c0_i32_0 = arith.constant 0 : i32
    %c0_i32_1 = arith.constant 0 : i32
    return %c0_i32, %c0_i32_0 : i32, i32
  }
  func.func @transform_7(%arg0: i32) -> (i32, i32) {
    %c0_i32 = arith.constant 0 : i32
    %c0_i32_0 = arith.constant 0 : i32
    %c0_i32_1 = arith.constant 0 : i32
    return %c0_i32, %c0_i32_0 : i32, i32
  }
  func.func @transform_8(%arg0: i32) -> (i32, i32) {
    %c0_i32 = arith.constant 0 : i32
    %c0_i32_0 = arith.constant 0 : i32
    %c0_i32_1 = arith.constant 0 : i32
    return %c0_i32, %c0_i32_0 : i32, i32
  }
  func.func @transform_9(%arg0: i32) -> (i32, i32) {
    %c0_i32 = arith.constant 0 : i32
    %c0_i32_0 = arith.constant 0 : i32
    %c0_i32_1 = arith.constant 0 : i32
    return %c0_i32, %c0_i32_0 : i32, i32
  }
  func.func @transform_10(%arg0: i32) -> (i32, i32) {
    %c0_i32 = arith.constant 0 : i32
    %c0_i32_0 = arith.constant 0 : i32
    %c0_i32_1 = arith.constant 0 : i32
    return %c0_i32, %c0_i32_0 : i32, i32
  }
  func.func @transform_11(%arg0: i32) -> (i32, i32) {
    %c0_i32 = arith.constant 0 : i32
    %c0_i32_0 = arith.constant 0 : i32
    %c0_i32_1 = arith.constant 0 : i32
    return %c0_i32, %c0_i32_0 : i32, i32
  }
  func.func @transform_12(%arg0: i32) -> (i32, i32) {
    %c0_i32 = arith.constant 0 : i32
    %c0_i32_0 = arith.constant 0 : i32
    %c0_i32_1 = arith.constant 0 : i32
    return %c0_i32, %c0_i32_0 : i32, i32
  }
  func.func @transform_13(%arg0: i32) -> (i32, i32) {
    %c0_i32 = arith.constant 0 : i32
    %c0_i32_0 = arith.constant 0 : i32
    %c0_i32_1 = arith.constant 0 : i32
    return %c0_i32, %c0_i32_0 : i32, i32
  }
  func.func @transform_14(%arg0: i32) -> (i32, i32) {
    %c0_i32 = arith.constant 0 : i32
    %c0_i32_0 = arith.constant 0 : i32
    %c0_i32_1 = arith.constant 0 : i32
    return %c0_i32, %c0_i32_0 : i32, i32
  }
  func.func @transform_15(%arg0: i32) -> (i32, i32) {
    %c0_i32 = arith.constant 0 : i32
    %c0_i32_0 = arith.constant 0 : i32
    %c0_i32_1 = arith.constant 0 : i32
    return %c0_i32, %c0_i32_0 : i32, i32
  }
  func.func @transform_16(%arg0: i32) -> (i32, i32) {
    %c0_i32 = arith.constant 0 : i32
    %c0_i32_0 = arith.constant 0 : i32
    %c0_i32_1 = arith.constant 0 : i32
    return %c0_i32, %c0_i32_0 : i32, i32
  }
  func.func @transform_17(%arg0: i32) -> (i32, i32) {
    %c0_i32 = arith.constant 0 : i32
    %c0_i32_0 = arith.constant 0 : i32
    %c0_i32_1 = arith.constant 0 : i32
    return %c0_i32, %c0_i32_0 : i32, i32
  }
  func.func @transform_18(%arg0: i32) -> (i32, i32) {
    %c0_i32 = arith.constant 0 : i32
    %c0_i32_0 = arith.constant 0 : i32
    %c0_i32_1 = arith.constant 0 : i32
    return %c0_i32, %c0_i32_0 : i32, i32
  }
  func.func @transform_19(%arg0: i32) -> (i32, i32) {
    %c0_i32 = arith.constant 0 : i32
    %c0_i32_0 = arith.constant 0 : i32
    %c0_i32_1 = arith.constant 0 : i32
    return %c0_i32, %c0_i32_0 : i32, i32
  }
  func.func @transform_20(%arg0: i32) -> (i32, i32) {
    %c0_i32 = arith.constant 0 : i32
    %c0_i32_0 = arith.constant 0 : i32
    %c0_i32_1 = arith.constant 0 : i32
    return %c0_i32, %c0_i32_0 : i32, i32
  }
  func.func @transform_21(%arg0: i32) -> (i32, i32) {
    %c0_i32 = arith.constant 0 : i32
    %c0_i32_0 = arith.constant 0 : i32
    %c0_i32_1 = arith.constant 0 : i32
    return %c0_i32, %c0_i32_0 : i32, i32
  }
  func.func @transform_22(%arg0: i32) -> (i32, i32) {
    %c0_i32 = arith.constant 0 : i32
    %c0_i32_0 = arith.constant 0 : i32
    %c0_i32_1 = arith.constant 0 : i32
    return %c0_i32, %c0_i32_0 : i32, i32
  }
  func.func @transform_23(%arg0: i32) -> (i32, i32) {
    %c0_i32 = arith.constant 0 : i32
    %c0_i32_0 = arith.constant 0 : i32
    %c0_i32_1 = arith.constant 0 : i32
    return %c0_i32, %c0_i32_0 : i32, i32
  }
  func.func @transform_24(%arg0: i32) -> (i32, i32) {
    %c0_i32 = arith.constant 0 : i32
    %c0_i32_0 = arith.constant 0 : i32
    %c0_i32_1 = arith.constant 0 : i32
    return %c0_i32, %c0_i32_0 : i32, i32
  }
  func.func @transform_25(%arg0: i32) -> (i32, i32) {
    %c0_i32 = arith.constant 0 : i32
    %c0_i32_0 = arith.constant 0 : i32
    %c0_i32_1 = arith.constant 0 : i32
    return %c0_i32, %c0_i32_0 : i32, i32
  }
  func.func @transform_26(%arg0: i32) -> (i32, i32) {
    %c0_i32 = arith.constant 0 : i32
    %c0_i32_0 = arith.constant 0 : i32
    %c0_i32_1 = arith.constant 0 : i32
    return %c0_i32, %c0_i32_0 : i32, i32
  }
  func.func @transform_27(%arg0: i32) -> (i32, i32) {
    %c0_i32 = arith.constant 0 : i32
    %c0_i32_0 = arith.constant 0 : i32
    %c0_i32_1 = arith.constant 0 : i32
    return %c0_i32, %c0_i32_0 : i32, i32
  }
  func.func @transform_28(%arg0: i32) -> (i32, i32) {
    %c0_i32 = arith.constant 0 : i32
    %c0_i32_0 = arith.constant 0 : i32
    %c0_i32_1 = arith.constant 0 : i32
    return %c0_i32, %c0_i32_0 : i32, i32
  }
  func.func @transform_29(%arg0: i32) -> (i32, i32) {
    %c0_i32 = arith.constant 0 : i32
    %c0_i32_0 = arith.constant 0 : i32
    %c0_i32_1 = arith.constant 0 : i32
    return %c0_i32, %c0_i32_0 : i32, i32
  }
  func.func @transform_30(%arg0: i32) -> (i32, i32) {
    %c0_i32 = arith.constant 0 : i32
    %c0_i32_0 = arith.constant 0 : i32
    %c0_i32_1 = arith.constant 0 : i32
    return %c0_i32, %c0_i32_0 : i32, i32
  }
  func.func @transform_31(%arg0: i32) -> (i32, i32) {
    %c0_i32 = arith.constant 0 : i32
    %c0_i32_0 = arith.constant 0 : i32
    %c0_i32_1 = arith.constant 0 : i32
    return %c0_i32, %c0_i32_0 : i32, i32
  }
  func.func @transform_32(%arg0: i32) -> (i32, i32) {
    %c0_i32 = arith.constant 0 : i32
    %c0_i32_0 = arith.constant 0 : i32
    %c0_i32_1 = arith.constant 0 : i32
    return %c0_i32, %c0_i32_0 : i32, i32
  }
  func.func @transform_33(%arg0: i32) -> (i32, i32) {
    %c0_i32 = arith.constant 0 : i32
    %c0_i32_0 = arith.constant 0 : i32
    %c0_i32_1 = arith.constant 0 : i32
    return %c0_i32, %c0_i32_0 : i32, i32
  }
  func.func @transform_34(%arg0: i32) -> (i32, i32) {
    %c0_i32 = arith.constant 0 : i32
    %c0_i32_0 = arith.constant 0 : i32
    %c0_i32_1 = arith.constant 0 : i32
    return %c0_i32, %c0_i32_0 : i32, i32
  }
  func.func @transform_35(%arg0: i32) -> (i32, i32) {
    %c0_i32 = arith.constant 0 : i32
    %c0_i32_0 = arith.constant 0 : i32
    %c0_i32_1 = arith.constant 0 : i32
    return %c0_i32, %c0_i32_0 : i32, i32
  }
  func.func @transform_36(%arg0: i32) -> (i32, i32) {
    %c0_i32 = arith.constant 0 : i32
    %c0_i32_0 = arith.constant 0 : i32
    %c0_i32_1 = arith.constant 0 : i32
    return %c0_i32, %c0_i32_0 : i32, i32
  }
  func.func @transform_37(%arg0: i32) -> (i32, i32) {
    %c0_i32 = arith.constant 0 : i32
    %c0_i32_0 = arith.constant 0 : i32
    %c0_i32_1 = arith.constant 0 : i32
    return %c0_i32, %c0_i32_0 : i32, i32
  }
  func.func @transform_38(%arg0: i32) -> (i32, i32) {
    %c0_i32 = arith.constant 0 : i32
    %c0_i32_0 = arith.constant 0 : i32
    %c0_i32_1 = arith.constant 0 : i32
    return %c0_i32, %c0_i32_0 : i32, i32
  }
  func.func @transform_39(%arg0: i32) -> (i32, i32) {
    %c0_i32 = arith.constant 0 : i32
    %c0_i32_0 = arith.constant 0 : i32
    %c0_i32_1 = arith.constant 0 : i32
    return %c0_i32, %c0_i32_0 : i32, i32
  }
  func.func @transform_40(%arg0: i32) -> (i32, i32) {
    %c0_i32 = arith.constant 0 : i32
    %c0_i32_0 = arith.constant 0 : i32
    %c0_i32_1 = arith.constant 0 : i32
    return %c0_i32, %c0_i32_0 : i32, i32
  }
  func.func @transform_41(%arg0: i32) -> (i32, i32) {
    %c0_i32 = arith.constant 0 : i32
    %c0_i32_0 = arith.constant 0 : i32
    %c0_i32_1 = arith.constant 0 : i32
    return %c0_i32, %c0_i32_0 : i32, i32
  }
  func.func @transform_42(%arg0: i32) -> (i32, i32) {
    %c0_i32 = arith.constant 0 : i32
    %c0_i32_0 = arith.constant 0 : i32
    %c0_i32_1 = arith.constant 0 : i32
    return %c0_i32, %c0_i32_0 : i32, i32
  }
  func.func @transform_43(%arg0: i32) -> (i32, i32) {
    %c0_i32 = arith.constant 0 : i32
    %c0_i32_0 = arith.constant 0 : i32
    %c0_i32_1 = arith.constant 0 : i32
    return %c0_i32, %c0_i32_0 : i32, i32
  }
  func.func @transform_44(%arg0: i32) -> (i32, i32) {
    %c0_i32 = arith.constant 0 : i32
    %c0_i32_0 = arith.constant 0 : i32
    %c0_i32_1 = arith.constant 0 : i32
    return %c0_i32, %c0_i32_0 : i32, i32
  }
  func.func @transform_45(%arg0: i32) -> (i32, i32, i32) {
    %c0_i32 = arith.constant 0 : i32
    %c0_i32_0 = arith.constant 0 : i32
    %c0_i32_1 = arith.constant 0 : i32
    return %arg0, %c0_i32, %c0_i32_0 : i32, i32, i32
  }
}

</mosaic_0001>

<llo_original>
// kernel: _forward_impl.1
$region0: #{_forward_impl.1}
  #allocation0 [shape = 'u32[]', space=smem, size = 0x4, offset = 0x4, fixed_abs, tag = 'smem constant byte address 0x4 - core index']
  #allocation1 [shape = 'u32[144,128]{1,0:T(1,128)}', space=vmem, size = 0x12000, scoped, tag = 'internal scratch']
  #allocation2 [shape = 'f32[128,768]{1,0:T(8,128)}', space=vmem, size = 0x60000, scoped, tag = 'scratch operand']
  #allocation3 [shape = 'f32[128,768]{1,0:T(8,128)}', space=vmem, size = 0x60000, scoped, tag = 'scratch operand']
  %s0 = inlined_call_operand.smem [shape: u32[46], index: -1, kind: input, shape index: {}]
  %s1 = sld [smem:[%s0]]
  %s2 = scalar_lea.smem %s0, 1
  %s3 = sld [smem:[%s2]]
  %s4 = scalar_lea.smem %s0, 2
  %s5 = sld [smem:[%s4]]
  %s6 = scalar_lea.smem %s0, 3
  %s7 = sld [smem:[%s6]]
  %s8 = scalar_lea.smem %s0, 4
  %s9 = sld [smem:[%s8]]
  %s10 = scalar_lea.smem %s0, 5
  %s11 = sld [smem:[%s10]]
  %s12 = scalar_lea.smem %s0, 6
  %s13 = sld [smem:[%s12]]
  %s14 = scalar_lea.smem %s0, 7
  %s15 = sld [smem:[%s14]]
  %s16 = scalar_lea.smem %s0, 8
  %s17 = sld [smem:[%s16]]
  %s18 = scalar_lea.smem %s0, 9
  %s19 = sld [smem:[%s18]]
  %s20 = scalar_lea.smem %s0, 10
  %s21 = sld [smem:[%s20]]
  %s22 = scalar_lea.smem %s0, 11
  %s23 = sld [smem:[%s22]]
  %s24 = scalar_lea.smem %s0, 12
  %s25 = sld [smem:[%s24]]
  %s26 = scalar_lea.smem %s0, 13
  %s27 = sld [smem:[%s26]]
  %s28 = scalar_lea.smem %s0, 14
  %s29 = sld [smem:[%s28]]
  %s30 = scalar_lea.smem %s0, 15
  %s31 = sld [smem:[%s30]]
  %s32 = scalar_lea.smem %s0, 16
  %s33 = sld [smem:[%s32]]
  %s34 = scalar_lea.smem %s0, 17
  %s35 = sld [smem:[%s34]]
  %s36 = scalar_lea.smem %s0, 18
  %s37 = sld [smem:[%s36]]
  %s38 = scalar_lea.smem %s0, 19
  %s39 = sld [smem:[%s38]]
  %s40 = scalar_lea.smem %s0, 20
  %s41 = sld [smem:[%s40]]
  %s42 = scalar_lea.smem %s0, 21
  %s43 = sld [smem:[%s42]]
  %s44 = scalar_lea.smem %s0, 22
  %s45 = sld [smem:[%s44]]
  %s46 = scalar_lea.smem %s0, 23
  %s47 = sld [smem:[%s46]]
  %s48 = scalar_lea.smem %s0, 24
  %s49 = sld [smem:[%s48]]
  %s50 = scalar_lea.smem %s0, 25
  %s51 = sld [smem:[%s50]]
  %s52 = scalar_lea.smem %s0, 26
  %s53 = sld [smem:[%s52]]
  %s54 = scalar_lea.smem %s0, 27
  %s55 = sld [smem:[%s54]]
  %s56 = scalar_lea.smem %s0, 28
  %s57 = sld [smem:[%s56]]
  %s58 = scalar_lea.smem %s0, 29
  %s59 = sld [smem:[%s58]]
  %s60 = scalar_lea.smem %s0, 30
  %s61 = sld [smem:[%s60]]
  %s62 = scalar_lea.smem %s0, 31
  %s63 = sld [smem:[%s62]]
  %s64 = scalar_lea.smem %s0, 32
  %s65 = sld [smem:[%s64]]
  %s66 = scalar_lea.smem %s0, 33
  %s67 = sld [smem:[%s66]]
  %s68 = scalar_lea.smem %s0, 34
  %s69 = sld [smem:[%s68]]
  %s70 = scalar_lea.smem %s0, 35
  %s71 = sld [smem:[%s70]]
  %s72 = scalar_lea.smem %s0, 36
  %s73 = sld [smem:[%s72]]
  %s74 = scalar_lea.smem %s0, 37
  %s75 = sld [smem:[%s74]]
  %s76 = scalar_lea.smem %s0, 38
  %s77 = sld [smem:[%s76]]
  %s78 = scalar_lea.smem %s0, 39
  %s79 = sld [smem:[%s78]]
  %s80 = scalar_lea.smem %s0, 40
  %s81 = sld [smem:[%s80]]
  %s82 = scalar_lea.smem %s0, 41
  %s83 = sld [smem:[%s82]]
  %s84 = scalar_lea.smem %s0, 42
  %s85 = sld [smem:[%s84]]
  %s86 = scalar_lea.smem %s0, 43
  %s87 = sld [smem:[%s86]]
  %s88 = scalar_lea.smem %s0, 44
  %s89 = sld [smem:[%s88]]
  %s90 = scalar_lea.smem %s0, 45
  %s91 = sld [smem:[%s90]]
  %s92 = sld [smem:[#allocation0]]
  $region346: #{_forward_impl.1} parent=0
    _
  %s94 = ssub.s32 1, %s92
  %s95 = scalar_select 0, %s94, %s92
  $region1: #{_forward_impl.1} parent=0
    #allocation4 [shape = 'u8[8192]{0}', space=vmem, size = 0x2000, scoped, tag = 'input window, operand 1, single buffered']
    #allocation5 [shape = 's32[1]{0}', space=sflag, size = 0x4, scoped, tag = 'scoped memory for _forward_impl.1']
    #allocation6 [shape = 's32[1]{0}', space=sflag, size = 0x4, scoped, tag = 'scoped memory for _forward_impl.1']
    #allocation7 [shape = 'u8[2048]{0}', space=vmem, size = 0x800, scoped, tag = 'input window, operand 2, single buffered']
    #allocation8 [shape = 's32[1]{0}', space=sflag, size = 0x4, scoped, tag = 'scoped memory for _forward_impl.1']
    #allocation9 [shape = 'u8[8192]{0}', space=vmem, size = 0x2000, scoped, tag = 'input window, operand 3, single buffered']
    #allocation10 [shape = 'u8[512]{0}', space=vmem, size = 0x400, scoped, tag = 'input window, operand 4, single buffered']
    #allocation11 [shape = 's32[1]{0}', space=sflag, size = 0x4, scoped, tag = 'scoped memory for _forward_impl.1']
    #allocation12 [shape = 'u8[512]{0}', space=vmem, size = 0x400, scoped, tag = 'input window, operand 6, single buffered']
    #allocation13 [shape = 'u8[8192]{0}', space=vmem, size = 0x2000, scoped, tag = 'input window, operand 7, single buffered']
    #allocation14 [shape = 's32[1]{0}', space=sflag, size = 0x4, scoped, tag = 'scoped memory for _forward_impl.1']
    #allocation15 [shape = 'u8[512]{0}', space=vmem, size = 0x400, scoped, tag = 'input window, operand 8, single buffered']
    #allocation16 [shape = 'u8[12288]{0}', space=vmem, size = 0x3000, scoped, tag = 'input window, operand 9, single buffered']
    #allocation17 [shape = 's32[1]{0}', space=sflag, size = 0x4, scoped, tag = 'scoped memory for _forward_impl.1']
    #allocation18 [shape = 'u8[512]{0}', space=vmem, size = 0x400, scoped, tag = 'input window, operand 10, single buffered']
    #allocation19 [shape = 'u8[8192]{0}', space=vmem, size = 0x2000, scoped, tag = 'input window, operand 11, single buffered']
    #allocation20 [shape = 's32[1]{0}', space=sflag, size = 0x4, scoped, tag = 'scoped memory for _forward_impl.1']
    #allocation21 [shape = 'u8[512]{0}', space=vmem, size = 0x400, scoped, tag = 'input window, operand 12, single buffered']
    #allocation22 [shape = 'u8[49152]{0}', space=vmem, size = 0xc000, scoped, tag = 'input window, operand 13, single buffered']
    #allocation23 [shape = 's32[1]{0}', space=sflag, size = 0x4, scoped, tag = 'scoped memory for _forward_impl.1']
    #allocation24 [shape = 'u8[16384]{0}', space=vmem, size = 0x4000, scoped, tag = 'input window, operand 15, single buffered']
    #allocation25 [shape = 'u8[1024]{0}', space=vmem, size = 0x400, scoped, tag = 'input window, operand 16, single buffered']
    #allocation26 [shape = 's32[1]{0}', space=sflag, size = 0x4, scoped, tag = 'scoped memory for _forward_impl.1']
    #allocation27 [shape = 'u8[98304]{0}', space=vmem, size = 0x18000, scoped, tag = 'input window, operand 17, single buffered']
    #allocation28 [shape = 'u8[1024]{0}', space=vmem, size = 0x400, scoped, tag = 'input window, operand 18, single buffered']
    #allocation29 [shape = 's32[1]{0}', space=sflag, size = 0x4, scoped, tag = 'scoped memory for _forward_impl.1']
    #allocation30 [shape = 'u8[16384]{0}', space=vmem, size = 0x4000, scoped, tag = 'input window, operand 19, single buffered']
    #allocation31 [shape = 'u8[1024]{0}', space=vmem, size = 0x400, scoped, tag = 'input window, operand 20, single buffered']
    #allocation32 [shape = 's32[1]{0}', space=sflag, size = 0x4, scoped, tag = 'scoped memory for _forward_impl.1']
    #allocation33 [shape = 'u8[98304]{0}', space=vmem, size = 0x18000, scoped, tag = 'input window, operand 21, single buffered']
    #allocation34 [shape = 'u8[1024]{0}', space=vmem, size = 0x400, scoped, tag = 'input window, operand 22, single buffered']
    #allocation35 [shape = 's32[1]{0}', space=sflag, size = 0x4, scoped, tag = 'scoped memory for _forward_impl.1']
    #allocation36 [shape = 'u8[16384]{0}', space=vmem, size = 0x4000, scoped, tag = 'input window, operand 23, single buffered']
    #allocation37 [shape = 'u8[1024]{0}', space=vmem, size = 0x400, scoped, tag = 'input window, operand 24, single buffered']
    #allocation38 [shape = 's32[1]{0}', space=sflag, size = 0x4, scoped, tag = 'scoped memory for _forward_impl.1']
    #allocation39 [shape = 'u8[98304]{0}', space=vmem, size = 0x18000, scoped, tag = 'input window, operand 25, single buffered']
    #allocation40 [shape = 'u8[1024]{0}', space=vmem, size = 0x400, scoped, tag = 'input window, operand 26, single buffered']
    #allocation41 [shape = 's32[1]{0}', space=sflag, size = 0x4, scoped, tag = 'scoped memory for _forward_impl.1']
    #allocation42 [shape = 'u8[16384]{0}', space=vmem, size = 0x4000, scoped, tag = 'input window, operand 27, single buffered']
    #allocation43 [shape = 'u8[1024]{0}', space=vmem, size = 0x400, scoped, tag = 'input window, operand 28, single buffered']
    #allocation44 [shape = 's32[1]{0}', space=sflag, size = 0x4, scoped, tag = 'scoped memory for _forward_impl.1']
    #allocation45 [shape = 'u8[98304]{0}', space=vmem, size = 0x18000, scoped, tag = 'input window, operand 29, single buffered']
    #allocation46 [shape = 'u8[1024]{0}', space=vmem, size = 0x400, scoped, tag = 'input window, operand 30, single buffered']
    #allocation47 [shape = 's32[1]{0}', space=sflag, size = 0x4, scoped, tag = 'scoped memory for _forward_impl.1']
    #allocation48 [shape = 'u8[16384]{0}', space=vmem, size = 0x4000, scoped, tag = 'input window, operand 31, single buffered']
    #allocation49 [shape = 'u8[1024]{0}', space=vmem, size = 0x400, scoped, tag = 'input window, operand 32, single buffered']
    #allocation50 [shape = 's32[1]{0}', space=sflag, size = 0x4, scoped, tag = 'scoped memory for _forward_impl.1']
    #allocation51 [shape = 'u8[98304]{0}', space=vmem, size = 0x18000, scoped, tag = 'input window, operand 33, single buffered']
    #allocation52 [shape = 'u8[1024]{0}', space=vmem, size = 0x400, scoped, tag = 'input window, operand 34, single buffered']
    #allocation53 [shape = 's32[1]{0}', space=sflag, size = 0x4, scoped, tag = 'scoped memory for _forward_impl.1']
    #allocation54 [shape = 'u8[16384]{0}', space=vmem, size = 0x4000, scoped, tag = 'input window, operand 35, single buffered']
    #allocation55 [shape = 'u8[1024]{0}', space=vmem, size = 0x400, scoped, tag = 'input window, operand 36, single buffered']
    #allocation56 [shape = 's32[1]{0}', space=sflag, size = 0x4, scoped, tag = 'scoped memory for _forward_impl.1']
    #allocation57 [shape = 'u8[147456]{0}', space=vmem, size = 0x24000, scoped, tag = 'input window, operand 37, single buffered']
    #allocation58 [shape = 'u8[1536]{0}', space=vmem, size = 0x800, scoped, tag = 'input window, operand 38, single buffered']
    #allocation59 [shape = 's32[1]{0}', space=sflag, size = 0x4, scoped, tag = 'scoped memory for _forward_impl.1']
    #allocation60 [shape = 'u8[1536]{0}', space=vmem, size = 0x800, scoped, tag = 'input window, operand 40, single buffered']
    #allocation61 [shape = 'u8[3072]{0}', space=vmem, size = 0xc00, scoped, tag = 'input window, operand 42, single buffered']
    #allocation62 [shape = 's32[1]{0}', space=sflag, size = 0x4, scoped, tag = 'scoped memory for _forward_impl.1']
    #allocation63 [shape = 'u8[512]{0}', space=vmem, size = 0x400, scoped, tag = 'input window, operand 44, single buffered']
    #allocation64 [shape = 'u8[1024]{0}', space=vmem, size = 0x400, scoped, tag = 'output window, operand 0, single buffered']
    %96 = vsyncpa [#allocation5], 0
    %97 = vsyncpa [#allocation8], 0
    %98 = vsyncpa [#allocation11], 0
    %99 = vsyncpa [#allocation14], 0
    %100 = vsyncpa [#allocation17], 0
    %101 = vsyncpa [#allocation20], 0
    %102 = vsyncpa [#allocation23], 0
    %103 = vsyncpa [#allocation26], 0
    %104 = vsyncpa [#allocation29], 0
    %105 = vsyncpa [#allocation32], 0
    %106 = vsyncpa [#allocation35], 0
    %107 = vsyncpa [#allocation38], 0
    %108 = vsyncpa [#allocation41], 0
    %109 = vsyncpa [#allocation44], 0
    %110 = vsyncpa [#allocation47], 0
    %111 = vsyncpa [#allocation50], 0
    %112 = vsyncpa [#allocation53], 0
    %113 = vsyncpa [#allocation56], 0
    %114 = vsyncpa [#allocation59], 0
    %115 = vsyncpa [#allocation62], 0
    %116 = vsyncpa [#allocation6], 0
    // Predicated region
    $region2: #{_forward_impl.1} parent=1 // pred_check
      _
    $region3: #{_forward_impl.1} parent=1 // pred_check_branch
      %118 = sbr.rel (0) target = $region5
    $region4: #{_forward_impl.1} parent=1 // pred_region
      _
    $region5: #{_forward_impl.1} parent=1 // pred_fallthru
      _
    // Predicated region
    $region6: #{_forward_impl.1} parent=1 // pred_check
      _
    $region7: #{_forward_impl.1} parent=1 // pred_check_branch
      %120 = sbr.rel (0) target = $region9
    $region8: #{_forward_impl.1} parent=1 // pred_region
      %s122 = ssub.s32 256, 256
      %123 = vsyncadd [#allocation5], %s122
      %s124 = sshll.u32 [#allocation4], 4
      %s125 = int_to_ptr.vmem [resolvable:$true] %s124
      %130 = dma.hbm_to_vmem [thread:$0]  %s3, 256, %s125, [#allocation5], 64, 64, 4
    $region9: #{_forward_impl.1} parent=1 // pred_fallthru
      _
    // Predicated region
    $region10: #{_forward_impl.1} parent=1 // pred_check
      _
    $region11: #{_forward_impl.1} parent=1 // pred_check_branch
      %132 = sbr.rel (0) target = $region13
    $region12: #{_forward_impl.1} parent=1 // pred_region
      %s134 = ssub.s32 64, 64
      %135 = vsyncadd [#allocation8], %s134
      %s137 = sshll.u32 [#allocation7], 4
      %s138 = int_to_ptr.vmem [resolvable:$true] %s137
      %140 = dma.hbm_to_vmem [thread:$0]  %s5, 64, %s138, [#allocation8]
    $region13: #{_forward_impl.1} parent=1 // pred_fallthru
      _
    // Predicated region
    $region14: #{_forward_impl.1} parent=1 // pred_check
      _
    $region15: #{_forward_impl.1} parent=1 // pred_check_branch
      %142 = sbr.rel (0) target = $region17
    $region16: #{_forward_impl.1} parent=1 // pred_region
      %s144 = ssub.s32 256, 256
      %145 = vsyncadd [#allocation8], %s144
      %s146 = sshll.u32 [#allocation9], 4
      %s147 = int_to_ptr.vmem [resolvable:$true] %s146
      %152 = dma.hbm_to_vmem [thread:$0]  %s7, 256, %s147, [#allocation8], 128, 128, 8
    $region17: #{_forward_impl.1} parent=1 // pred_fallthru
      _
    // Predicated region
    $region18: #{_forward_impl.1} parent=1 // pred_check
      _
    $region19: #{_forward_impl.1} parent=1 // pred_check_branch
      %154 = sbr.rel (0) target = $region21
    $region20: #{_forward_impl.1} parent=1 // pred_region
      %s156 = ssub.s32 16, 16
      %157 = vsyncadd [#allocation11], %s156
      %s159 = sshll.u32 [#allocation10], 4
      %s160 = int_to_ptr.vmem [resolvable:$true] %s159
      %162 = dma.hbm_to_vmem [thread:$0]  %s9, 16, %s160, [#allocation11]
    $region21: #{_forward_impl.1} parent=1 // pred_fallthru
      _
    // Predicated region
    $region22: #{_forward_impl.1} parent=1 // pred_check
      _
    $region23: #{_forward_impl.1} parent=1 // pred_check_branch
      %164 = sbr.rel (0) target = $region25
    $region24: #{_forward_impl.1} parent=1 // pred_region
      _
    $region25: #{_forward_impl.1} parent=1 // pred_fallthru
      _
    // Predicated region
    $region26: #{_forward_impl.1} parent=1 // pred_check
      _
    $region27: #{_forward_impl.1} parent=1 // pred_check_branch
      %166 = sbr.rel (0) target = $region29
    $region28: #{_forward_impl.1} parent=1 // pred_region
      %s168 = ssub.s32 16, 16
      %169 = vsyncadd [#allocation11], %s168
      %s171 = sshll.u32 [#allocation12], 4
      %s172 = int_to_ptr.vmem [resolvable:$true] %s171
      %174 = dma.hbm_to_vmem [thread:$0]  %s13, 16, %s172, [#allocation11]
    $region29: #{_forward_impl.1} parent=1 // pred_fallthru
      _
    // Predicated region
    $region30: #{_forward_impl.1} parent=1 // pred_check
      _
    $region31: #{_forward_impl.1} parent=1 // pred_check_branch
      %176 = sbr.rel (0) target = $region33
    $region32: #{_forward_impl.1} parent=1 // pred_region
      %s178 = ssub.s32 256, 256
      %179 = vsyncadd [#allocation14], %s178
      %s180 = sshll.u32 [#allocation13], 4
      %s181 = int_to_ptr.vmem [resolvable:$true] %s180
      %186 = dma.hbm_to_vmem [thread:$0]  %s15, 256, %s181, [#allocation14], 128, 128, 8
    $region33: #{_forward_impl.1} parent=1 // pred_fallthru
      _
    // Predicated region
    $region34: #{_forward_impl.1} parent=1 // pred_check
      _
    $region35: #{_forward_impl.1} parent=1 // pred_check_branch
      %188 = sbr.rel (0) target = $region37
    $region36: #{_forward_impl.1} parent=1 // pred_region
      %s190 = ssub.s32 16, 16
      %191 = vsyncadd [#allocation14], %s190
      %s193 = sshll.u32 [#allocation15], 4
      %s194 = int_to_ptr.vmem [resolvable:$true] %s193
      %196 = dma.hbm_to_vmem [thread:$0]  %s17, 16, %s194, [#allocation14]
    $region37: #{_forward_impl.1} parent=1 // pred_fallthru
      _
    // Predicated region
    $region38: #{_forward_impl.1} parent=1 // pred_check
      _
    $region39: #{_forward_impl.1} parent=1 // pred_check_branch
      %198 = sbr.rel (0) target = $region41
    $region40: #{_forward_impl.1} parent=1 // pred_region
      %s200 = ssub.s32 384, 384
      %201 = vsyncadd [#allocation17], %s200
      %s202 = sshll.u32 [#allocation16], 4
      %s203 = int_to_ptr.vmem [resolvable:$true] %s202
      %208 = dma.hbm_to_vmem [thread:$0]  %s19, 384, %s203, [#allocation17], 64, 64, 4
    $region41: #{_forward_impl.1} parent=1 // pred_fallthru
      _
    // Predicated region
    $region42: #{_forward_impl.1} parent=1 // pred_check
      _
    $region43: #{_forward_impl.1} parent=1 // pred_check_branch
      %210 = sbr.rel (0) target = $region45
    $region44: #{_forward_impl.1} parent=1 // pred_region
      %s212 = ssub.s32 16, 16
      %213 = vsyncadd [#allocation17], %s212
      %s215 = sshll.u32 [#allocation18], 4
      %s216 = int_to_ptr.vmem [resolvable:$true] %s215
      %218 = dma.hbm_to_vmem [thread:$0]  %s21, 16, %s216, [#allocation17]
    $region45: #{_forward_impl.1} parent=1 // pred_fallthru
      _
    // Predicated region
    $region46: #{_forward_impl.1} parent=1 // pred_check
      _
    $region47: #{_forward_impl.1} parent=1 // pred_check_branch
      %220 = sbr.rel (0) target = $region49
    $region48: #{_forward_impl.1} parent=1 // pred_region
      %s222 = ssub.s32 256, 256
      %223 = vsyncadd [#allocation20], %s222
      %s224 = sshll.u32 [#allocation19], 4
      %s225 = int_to_ptr.vmem [resolvable:$true] %s224
      %230 = dma.hbm_to_vmem [thread:$0]  %s23, 256, %s225, [#allocation20], 128, 128, 8
    $region49: #{_forward_impl.1} parent=1 // pred_fallthru
      _
    // Predicated region
    $region50: #{_forward_impl.1} parent=1 // pred_check
      _
    $region51: #{_forward_impl.1} parent=1 // pred_check_branch
      %232 = sbr.rel (0) target = $region53
    $region52: #{_forward_impl.1} parent=1 // pred_region
      %s234 = ssub.s32 16, 16
      %235 = vsyncadd [#allocation20], %s234
      %s237 = sshll.u32 [#allocation21], 4
      %s238 = int_to_ptr.vmem [resolvable:$true] %s237
      %240 = dma.hbm_to_vmem [thread:$0]  %s25, 16, %s238, [#allocation20]
    $region53: #{_forward_impl.1} parent=1 // pred_fallthru
      _
    // Predicated region
    $region54: #{_forward_impl.1} parent=1 // pred_check
      _
    $region55: #{_forward_impl.1} parent=1 // pred_check_branch
      %242 = sbr.rel (0) target = $region57
    $region56: #{_forward_impl.1} parent=1 // pred_region
      %s244 = ssub.s32 1536, 1536
      %245 = vsyncadd [#allocation23], %s244
      %s246 = sshll.u32 [#allocation22], 4
      %s247 = int_to_ptr.vmem [resolvable:$true] %s246
      %252 = dma.hbm_to_vmem [thread:$0]  %s27, 1536, %s247, [#allocation23], 128, 128, 8
    $region57: #{_forward_impl.1} parent=1 // pred_fallthru
      _
    // Predicated region
    $region58: #{_forward_impl.1} parent=1 // pred_check
      _
    $region59: #{_forward_impl.1} parent=1 // pred_check_branch
      %254 = sbr.rel (0) target = $region61
    $region60: #{_forward_impl.1} parent=1 // pred_region
      _
    $region61: #{_forward_impl.1} parent=1 // pred_fallthru
      _
    // Predicated region
    $region62: #{_forward_impl.1} parent=1 // pred_check
      _
    $region63: #{_forward_impl.1} parent=1 // pred_check_branch
      %256 = sbr.rel (0) target = $region65
    $region64: #{_forward_impl.1} parent=1 // pred_region
      %s258 = ssub.s32 512, 512
      %259 = vsyncadd [#allocation23], %s258
      %s260 = sshll.u32 [#allocation24], 4
      %s261 = int_to_ptr.vmem [resolvable:$true] %s260
      %266 = dma.hbm_to_vmem [thread:$0]  %s31, 512, %s261, [#allocation23], 256, 256, 16
    $region65: #{_forward_impl.1} parent=1 // pred_fallthru
      _
    // Predicated region
    $region66: #{_forward_impl.1} parent=1 // pred_check
      _
    $region67: #{_forward_impl.1} parent=1 // pred_check_branch
      %268 = sbr.rel (0) target = $region69
    $region68: #{_forward_impl.1} parent=1 // pred_region
      %s270 = ssub.s32 32, 32
      %271 = vsyncadd [#allocation26], %s270
      %s273 = sshll.u32 [#allocation25], 4
      %s274 = int_to_ptr.vmem [resolvable:$true] %s273
      %276 = dma.hbm_to_vmem [thread:$0]  %s33, 32, %s274, [#allocation26]
    $region69: #{_forward_impl.1} parent=1 // pred_fallthru
      _
    // Predicated region
    $region70: #{_forward_impl.1} parent=1 // pred_check
      _
    $region71: #{_forward_impl.1} parent=1 // pred_check_branch
      %278 = sbr.rel (0) target = $region73
    $region72: #{_forward_impl.1} parent=1 // pred_region
      %s280 = ssub.s32 3072, 3072
      %281 = vsyncadd [#allocation26], %s280
      %s282 = sshll.u32 [#allocation27], 4
      %s283 = int_to_ptr.vmem [resolvable:$true] %s282
      %288 = dma.hbm_to_vmem [thread:$0]  %s35, 3072, %s283, [#allocation26], 128, 128, 8
    $region73: #{_forward_impl.1} parent=1 // pred_fallthru
      _
    // Predicated region
    $region74: #{_forward_impl.1} parent=1 // pred_check
      _
    $region75: #{_forward_impl.1} parent=1 // pred_check_branch
      %290 = sbr.rel (0) target = $region77
    $region76: #{_forward_impl.1} parent=1 // pred_region
      %s292 = ssub.s32 32, 32
      %293 = vsyncadd [#allocation29], %s292
      %s295 = sshll.u32 [#allocation28], 4
      %s296 = int_to_ptr.vmem [resolvable:$true] %s295
      %298 = dma.hbm_to_vmem [thread:$0]  %s37, 32, %s296, [#allocation29]
    $region77: #{_forward_impl.1} parent=1 // pred_fallthru
      _
    // Predicated region
    $region78: #{_forward_impl.1} parent=1 // pred_check
      _
    $region79: #{_forward_impl.1} parent=1 // pred_check_branch
      %300 = sbr.rel (0) target = $region81
    $region80: #{_forward_impl.1} parent=1 // pred_region
      %s302 = ssub.s32 512, 512
      %303 = vsyncadd [#allocation29], %s302
      %s304 = sshll.u32 [#allocation30], 4
      %s305 = int_to_ptr.vmem [resolvable:$true] %s304
      %310 = dma.hbm_to_vmem [thread:$0]  %s39, 512, %s305, [#allocation29], 256, 256, 16
    $region81: #{_forward_impl.1} parent=1 // pred_fallthru
      _
    // Predicated region
    $region82: #{_forward_impl.1} parent=1 // pred_check
      _
    $region83: #{_forward_impl.1} parent=1 // pred_check_branch
      %312 = sbr.rel (0) target = $region85
    $region84: #{_forward_impl.1} parent=1 // pred_region
      %s314 = ssub.s32 32, 32
      %315 = vsyncadd [#allocation32], %s314
      %s317 = sshll.u32 [#allocation31], 4
      %s318 = int_to_ptr.vmem [resolvable:$true] %s317
      %320 = dma.hbm_to_vmem [thread:$0]  %s41, 32, %s318, [#allocation32]
    $region85: #{_forward_impl.1} parent=1 // pred_fallthru
      _
    // Predicated region
    $region86: #{_forward_impl.1} parent=1 // pred_check
      _
    $region87: #{_forward_impl.1} parent=1 // pred_check_branch
      %322 = sbr.rel (0) target = $region89
    $region88: #{_forward_impl.1} parent=1 // pred_region
      %s324 = ssub.s32 3072, 3072
      %325 = vsyncadd [#allocation32], %s324
      %s326 = sshll.u32 [#allocation33], 4
      %s327 = int_to_ptr.vmem [resolvable:$true] %s326
      %332 = dma.hbm_to_vmem [thread:$0]  %s43, 3072, %s327, [#allocation32], 128, 128, 8
    $region89: #{_forward_impl.1} parent=1 // pred_fallthru
      _
    // Predicated region
    $region90: #{_forward_impl.1} parent=1 // pred_check
      _
    $region91: #{_forward_impl.1} parent=1 // pred_check_branch
      %334 = sbr.rel (0) target = $region93
    $region92: #{_forward_impl.1} parent=1 // pred_region
      %s336 = ssub.s32 32, 32
      %337 = vsyncadd [#allocation35], %s336
      %s339 = sshll.u32 [#allocation34], 4
      %s340 = int_to_ptr.vmem [resolvable:$true] %s339
      %342 = dma.hbm_to_vmem [thread:$0]  %s45, 32, %s340, [#allocation35]
    $region93: #{_forward_impl.1} parent=1 // pred_fallthru
      _
    // Predicated region
    $region94: #{_forward_impl.1} parent=1 // pred_check
      _
    $region95: #{_forward_impl.1} parent=1 // pred_check_branch
      %344 = sbr.rel (0) target = $region97
    $region96: #{_forward_impl.1} parent=1 // pred_region
      %s346 = ssub.s32 512, 512
      %347 = vsyncadd [#allocation35], %s346
      %s348 = sshll.u32 [#allocation36], 4
      %s349 = int_to_ptr.vmem [resolvable:$true] %s348
      %354 = dma.hbm_to_vmem [thread:$0]  %s47, 512, %s349, [#allocation35], 256, 256, 16
    $region97: #{_forward_impl.1} parent=1 // pred_fallthru
      _
    // Predicated region
    $region98: #{_forward_impl.1} parent=1 // pred_check
      _
    $region99: #{_forward_impl.1} parent=1 // pred_check_branch
      %356 = sbr.rel (0) target = $region101
    $region100: #{_forward_impl.1} parent=1 // pred_region
      %s358 = ssub.s32 32, 32
      %359 = vsyncadd [#allocation38], %s358
      %s361 = sshll.u32 [#allocation37], 4
      %s362 = int_to_ptr.vmem [resolvable:$true] %s361
      %364 = dma.hbm_to_vmem [thread:$0]  %s49, 32, %s362, [#allocation38]
    $region101: #{_forward_impl.1} parent=1 // pred_fallthru
      _
    // Predicated region
    $region102: #{_forward_impl.1} parent=1 // pred_check
      _
    $region103: #{_forward_impl.1} parent=1 // pred_check_branch
      %366 = sbr.rel (0) target = $region105
    $region104: #{_forward_impl.1} parent=1 // pred_region
      %s368 = ssub.s32 3072, 3072
      %369 = vsyncadd [#allocation38], %s368
      %s370 = sshll.u32 [#allocation39], 4
      %s371 = int_to_ptr.vmem [resolvable:$true] %s370
      %376 = dma.hbm_to_vmem [thread:$0]  %s51, 3072, %s371, [#allocation38], 128, 128, 8
    $region105: #{_forward_impl.1} parent=1 // pred_fallthru
      _
    // Predicated region
    $region106: #{_forward_impl.1} parent=1 // pred_check
      _
    $region107: #{_forward_impl.1} parent=1 // pred_check_branch
      %378 = sbr.rel (0) target = $region109
    $region108: #{_forward_impl.1} parent=1 // pred_region
      %s380 = ssub.s32 32, 32
      %381 = vsyncadd [#allocation41], %s380
      %s383 = sshll.u32 [#allocation40], 4
      %s384 = int_to_ptr.vmem [resolvable:$true] %s383
      %386 = dma.hbm_to_vmem [thread:$0]  %s53, 32, %s384, [#allocation41]
    $region109: #{_forward_impl.1} parent=1 // pred_fallthru
      _
    // Predicated region
    $region110: #{_forward_impl.1} parent=1 // pred_check
      _
    $region111: #{_forward_impl.1} parent=1 // pred_check_branch
      %388 = sbr.rel (0) target = $region113
    $region112: #{_forward_impl.1} parent=1 // pred_region
      %s390 = ssub.s32 512, 512
      %391 = vsyncadd [#allocation41], %s390
      %s392 = sshll.u32 [#allocation42], 4
      %s393 = int_to_ptr.vmem [resolvable:$true] %s392
      %398 = dma.hbm_to_vmem [thread:$0]  %s55, 512, %s393, [#allocation41], 256, 256, 16
    $region113: #{_forward_impl.1} parent=1 // pred_fallthru
      _
    // Predicated region
    $region114: #{_forward_impl.1} parent=1 // pred_check
      _
    $region115: #{_forward_impl.1} parent=1 // pred_check_branch
      %400 = sbr.rel (0) target = $region117
    $region116: #{_forward_impl.1} parent=1 // pred_region
      %s402 = ssub.s32 32, 32
      %403 = vsyncadd [#allocation44], %s402
      %s405 = sshll.u32 [#allocation43], 4
      %s406 = int_to_ptr.vmem [resolvable:$true] %s405
      %408 = dma.hbm_to_vmem [thread:$0]  %s57, 32, %s406, [#allocation44]
    $region117: #{_forward_impl.1} parent=1 // pred_fallthru
      _
    // Predicated region
    $region118: #{_forward_impl.1} parent=1 // pred_check
      _
    $region119: #{_forward_impl.1} parent=1 // pred_check_branch
      %410 = sbr.rel (0) target = $region121
    $region120: #{_forward_impl.1} parent=1 // pred_region
      %s412 = ssub.s32 3072, 3072
      %413 = vsyncadd [#allocation44], %s412
      %s414 = sshll.u32 [#allocation45], 4
      %s415 = int_to_ptr.vmem [resolvable:$true] %s414
      %420 = dma.hbm_to_vmem [thread:$0]  %s59, 3072, %s415, [#allocation44], 128, 128, 8
    $region121: #{_forward_impl.1} parent=1 // pred_fallthru
      _
    // Predicated region
    $region122: #{_forward_impl.1} parent=1 // pred_check
      _
    $region123: #{_forward_impl.1} parent=1 // pred_check_branch
      %422 = sbr.rel (0) target = $region125
    $region124: #{_forward_impl.1} parent=1 // pred_region
      %s424 = ssub.s32 32, 32
      %425 = vsyncadd [#allocation47], %s424
      %s427 = sshll.u32 [#allocation46], 4
      %s428 = int_to_ptr.vmem [resolvable:$true] %s427
      %430 = dma.hbm_to_vmem [thread:$0]  %s61, 32, %s428, [#allocation47]
    $region125: #{_forward_impl.1} parent=1 // pred_fallthru
      _
    // Predicated region
    $region126: #{_forward_impl.1} parent=1 // pred_check
      _
    $region127: #{_forward_impl.1} parent=1 // pred_check_branch
      %432 = sbr.rel (0) target = $region129
    $region128: #{_forward_impl.1} parent=1 // pred_region
      %s434 = ssub.s32 512, 512
      %435 = vsyncadd [#allocation47], %s434
      %s436 = sshll.u32 [#allocation48], 4
      %s437 = int_to_ptr.vmem [resolvable:$true] %s436
      %442 = dma.hbm_to_vmem [thread:$0]  %s63, 512, %s437, [#allocation47], 256, 256, 16
    $region129: #{_forward_impl.1} parent=1 // pred_fallthru
      _
    // Predicated region
    $region130: #{_forward_impl.1} parent=1 // pred_check
      _
    $region131: #{_forward_impl.1} parent=1 // pred_check_branch
      %444 = sbr.rel (0) target = $region133
    $region132: #{_forward_impl.1} parent=1 // pred_region
      %s446 = ssub.s32 32, 32
      %447 = vsyncadd [#allocation50], %s446
      %s449 = sshll.u32 [#allocation49], 4
      %s450 = int_to_ptr.vmem [resolvable:$true] %s449
      %452 = dma.hbm_to_vmem [thread:$0]  %s65, 32, %s450, [#allocation50]
    $region133: #{_forward_impl.1} parent=1 // pred_fallthru
      _
    // Predicated region
    $region134: #{_forward_impl.1} parent=1 // pred_check
      _
    $region135: #{_forward_impl.1} parent=1 // pred_check_branch
      %454 = sbr.rel (0) target = $region137
    $region136: #{_forward_impl.1} parent=1 // pred_region
      %s456 = ssub.s32 3072, 3072
      %457 = vsyncadd [#allocation50], %s456
      %s458 = sshll.u32 [#allocation51], 4
      %s459 = int_to_ptr.vmem [resolvable:$true] %s458
      %464 = dma.hbm_to_vmem [thread:$0]  %s67, 3072, %s459, [#allocation50], 128, 128, 8
    $region137: #{_forward_impl.1} parent=1 // pred_fallthru
      _
    // Predicated region
    $region138: #{_forward_impl.1} parent=1 // pred_check
      _
    $region139: #{_forward_impl.1} parent=1 // pred_check_branch
      %466 = sbr.rel (0) target = $region141
    $region140: #{_forward_impl.1} parent=1 // pred_region
      %s468 = ssub.s32 32, 32
      %469 = vsyncadd [#allocation53], %s468
      %s471 = sshll.u32 [#allocation52], 4
      %s472 = int_to_ptr.vmem [resolvable:$true] %s471
      %474 = dma.hbm_to_vmem [thread:$0]  %s69, 32, %s472, [#allocation53]
    $region141: #{_forward_impl.1} parent=1 // pred_fallthru
      _
    // Predicated region
    $region142: #{_forward_impl.1} parent=1 // pred_check
      _
    $region143: #{_forward_impl.1} parent=1 // pred_check_branch
      %476 = sbr.rel (0) target = $region145
    $region144: #{_forward_impl.1} parent=1 // pred_region
      %s478 = ssub.s32 512, 512
      %479 = vsyncadd [#allocation53], %s478
      %s480 = sshll.u32 [#allocation54], 4
      %s481 = int_to_ptr.vmem [resolvable:$true] %s480
      %486 = dma.hbm_to_vmem [thread:$0]  %s71, 512, %s481, [#allocation53], 256, 256, 16
    $region145: #{_forward_impl.1} parent=1 // pred_fallthru
      _
    // Predicated region
    $region146: #{_forward_impl.1} parent=1 // pred_check
      _
    $region147: #{_forward_impl.1} parent=1 // pred_check_branch
      %488 = sbr.rel (0) target = $region149
    $region148: #{_forward_impl.1} parent=1 // pred_region
      %s490 = ssub.s32 32, 32
      %491 = vsyncadd [#allocation56], %s490
      %s493 = sshll.u32 [#allocation55], 4
      %s494 = int_to_ptr.vmem [resolvable:$true] %s493
      %496 = dma.hbm_to_vmem [thread:$0]  %s73, 32, %s494, [#allocation56]
    $region149: #{_forward_impl.1} parent=1 // pred_fallthru
      _
    // Predicated region
    $region150: #{_forward_impl.1} parent=1 // pred_check
      _
    $region151: #{_forward_impl.1} parent=1 // pred_check_branch
      %498 = sbr.rel (0) target = $region153
    $region152: #{_forward_impl.1} parent=1 // pred_region
      %s500 = ssub.s32 4608, 4608
      %501 = vsyncadd [#allocation56], %s500
      %s502 = sshll.u32 [#allocation57], 4
      %s503 = int_to_ptr.vmem [resolvable:$true] %s502
      %508 = dma.hbm_to_vmem [thread:$0]  %s75, 4608, %s503, [#allocation56], 192, 192, 12
    $region153: #{_forward_impl.1} parent=1 // pred_fallthru
      _
    // Predicated region
    $region154: #{_forward_impl.1} parent=1 // pred_check
      _
    $region155: #{_forward_impl.1} parent=1 // pred_check_branch
      %510 = sbr.rel (0) target = $region157
    $region156: #{_forward_impl.1} parent=1 // pred_region
      %s512 = ssub.s32 48, 48
      %513 = vsyncadd [#allocation59], %s512
      %s515 = sshll.u32 [#allocation58], 4
      %s516 = int_to_ptr.vmem [resolvable:$true] %s515
      %518 = dma.hbm_to_vmem [thread:$0]  %s77, 48, %s516, [#allocation59]
    $region157: #{_forward_impl.1} parent=1 // pred_fallthru
      _
    // Predicated region
    $region158: #{_forward_impl.1} parent=1 // pred_check
      _
    $region159: #{_forward_impl.1} parent=1 // pred_check_branch
      %520 = sbr.rel (0) target = $region161
    $region160: #{_forward_impl.1} parent=1 // pred_region
      _
    $region161: #{_forward_impl.1} parent=1 // pred_fallthru
      _
    // Predicated region
    $region162: #{_forward_impl.1} parent=1 // pred_check
      _
    $region163: #{_forward_impl.1} parent=1 // pred_check_branch
      %522 = sbr.rel (0) target = $region165
    $region164: #{_forward_impl.1} parent=1 // pred_region
      %s524 = ssub.s32 48, 48
      %525 = vsyncadd [#allocation59], %s524
      %s527 = sshll.u32 [#allocation60], 4
      %s528 = int_to_ptr.vmem [resolvable:$true] %s527
      %530 = dma.hbm_to_vmem [thread:$0]  %s81, 48, %s528, [#allocation59]
    $region165: #{_forward_impl.1} parent=1 // pred_fallthru
      _
    // Predicated region
    $region166: #{_forward_impl.1} parent=1 // pred_check
      _
    $region167: #{_forward_impl.1} parent=1 // pred_check_branch
      %532 = sbr.rel (0) target = $region169
    $region168: #{_forward_impl.1} parent=1 // pred_region
      _
    $region169: #{_forward_impl.1} parent=1 // pred_fallthru
      _
    // Predicated region
    $region170: #{_forward_impl.1} parent=1 // pred_check
      _
    $region171: #{_forward_impl.1} parent=1 // pred_check_branch
      %534 = sbr.rel (0) target = $region173
    $region172: #{_forward_impl.1} parent=1 // pred_region
      %s536 = ssub.s32 96, 96
      %537 = vsyncadd [#allocation62], %s536
      %s539 = sshll.u32 [#allocation61], 4
      %s540 = int_to_ptr.vmem [resolvable:$true] %s539
      %542 = dma.hbm_to_vmem [thread:$0]  %s85, 96, %s540, [#allocation62]
    $region173: #{_forward_impl.1} parent=1 // pred_fallthru
      _
    // Predicated region
    $region174: #{_forward_impl.1} parent=1 // pred_check
      _
    $region175: #{_forward_impl.1} parent=1 // pred_check_branch
      %544 = sbr.rel (0) target = $region177
    $region176: #{_forward_impl.1} parent=1 // pred_region
      _
    $region177: #{_forward_impl.1} parent=1 // pred_fallthru
      _
    // Predicated region
    $region178: #{_forward_impl.1} parent=1 // pred_check
      _
    $region179: #{_forward_impl.1} parent=1 // pred_check_branch
      %546 = sbr.rel (0) target = $region181
    $region180: #{_forward_impl.1} parent=1 // pred_region
      %s548 = ssub.s32 16, 16
      %549 = vsyncadd [#allocation62], %s548
      %s551 = sshll.u32 [#allocation63], 4
      %s552 = int_to_ptr.vmem [resolvable:$true] %s551
      %554 = dma.hbm_to_vmem [thread:$0]  %s89, 16, %s552, [#allocation62]
    $region181: #{_forward_impl.1} parent=1 // pred_fallthru
      _
    // Predicated region
    $region182: #{_forward_impl.1} parent=1 // pred_check
      _
    $region183: #{_forward_impl.1} parent=1 // pred_check_branch
      %556 = sbr.rel (0) target = $region185
    $region184: #{_forward_impl.1} parent=1 // pred_region
      %557 = dma.done [#allocation5], 256
    $region185: #{_forward_impl.1} parent=1 // pred_fallthru
      _
    // Predicated region
    $region186: #{_forward_impl.1} parent=1 // pred_check
      _
    $region187: #{_forward_impl.1} parent=1 // pred_check_branch
      %559 = sbr.rel (0) target = $region189
    $region188: #{_forward_impl.1} parent=1 // pred_region
      %560 = dma.done [#allocation8], 64
    $region189: #{_forward_impl.1} parent=1 // pred_fallthru
      _
    // Predicated region
    $region190: #{_forward_impl.1} parent=1 // pred_check
      _
    $region191: #{_forward_impl.1} parent=1 // pred_check_branch
      %562 = sbr.rel (0) target = $region193
    $region192: #{_forward_impl.1} parent=1 // pred_region
      %563 = dma.done [#allocation8], 256
    $region193: #{_forward_impl.1} parent=1 // pred_fallthru
      _
    // Predicated region
    $region194: #{_forward_impl.1} parent=1 // pred_check
      _
    $region195: #{_forward_impl.1} parent=1 // pred_check_branch
      %565 = sbr.rel (0) target = $region197
    $region196: #{_forward_impl.1} parent=1 // pred_region
      %566 = dma.done [#allocation11], 16
    $region197: #{_forward_impl.1} parent=1 // pred_fallthru
      _
    // Predicated region
    $region198: #{_forward_impl.1} parent=1 // pred_check
      _
    $region199: #{_forward_impl.1} parent=1 // pred_check_branch
      %568 = sbr.rel (0) target = $region201
    $region200: #{_forward_impl.1} parent=1 // pred_region
      %569 = dma.done [#allocation11], 16
    $region201: #{_forward_impl.1} parent=1 // pred_fallthru
      _
    // Predicated region
    $region202: #{_forward_impl.1} parent=1 // pred_check
      _
    $region203: #{_forward_impl.1} parent=1 // pred_check_branch
      %571 = sbr.rel (0) target = $region205
    $region204: #{_forward_impl.1} parent=1 // pred_region
      %572 = dma.done [#allocation14], 256
    $region205: #{_forward_impl.1} parent=1 // pred_fallthru
      _
    // Predicated region
    $region206: #{_forward_impl.1} parent=1 // pred_check
      _
    $region207: #{_forward_impl.1} parent=1 // pred_check_branch
      %574 = sbr.rel (0) target = $region209
    $region208: #{_forward_impl.1} parent=1 // pred_region
      %575 = dma.done [#allocation14], 16
    $region209: #{_forward_impl.1} parent=1 // pred_fallthru
      _
    // Predicated region
    $region210: #{_forward_impl.1} parent=1 // pred_check
      _
    $region211: #{_forward_impl.1} parent=1 // pred_check_branch
      %577 = sbr.rel (0) target = $region213
    $region212: #{_forward_impl.1} parent=1 // pred_region
      %578 = dma.done [#allocation17], 384
    $region213: #{_forward_impl.1} parent=1 // pred_fallthru
      _
    // Predicated region
    $region214: #{_forward_impl.1} parent=1 // pred_check
      _
    $region215: #{_forward_impl.1} parent=1 // pred_check_branch
      %580 = sbr.rel (0) target = $region217
    $region216: #{_forward_impl.1} parent=1 // pred_region
      %581 = dma.done [#allocation17], 16
    $region217: #{_forward_impl.1} parent=1 // pred_fallthru
      _
    // Predicated region
    $region218: #{_forward_impl.1} parent=1 // pred_check
      _
    $region219: #{_forward_impl.1} parent=1 // pred_check_branch
      %583 = sbr.rel (0) target = $region221
    $region220: #{_forward_impl.1} parent=1 // pred_region
      %584 = dma.done [#allocation20], 256
    $region221: #{_forward_impl.1} parent=1 // pred_fallthru
      _
    // Predicated region
    $region222: #{_forward_impl.1} parent=1 // pred_check
      _
    $region223: #{_forward_impl.1} parent=1 // pred_check_branch
      %586 = sbr.rel (0) target = $region225
    $region224: #{_forward_impl.1} parent=1 // pred_region
      %587 = dma.done [#allocation20], 16
    $region225: #{_forward_impl.1} parent=1 // pred_fallthru
      _
    // Predicated region
    $region226: #{_forward_impl.1} parent=1 // pred_check
      _
    $region227: #{_forward_impl.1} parent=1 // pred_check_branch
      %589 = sbr.rel (0) target = $region229
    $region228: #{_forward_impl.1} parent=1 // pred_region
      %590 = dma.done [#allocation23], 1536
    $region229: #{_forward_impl.1} parent=1 // pred_fallthru
      _
    // Predicated region
    $region230: #{_forward_impl.1} parent=1 // pred_check
      _
    $region231: #{_forward_impl.1} parent=1 // pred_check_branch
      %592 = sbr.rel (0) target = $region233
    $region232: #{_forward_impl.1} parent=1 // pred_region
      %593 = dma.done [#allocation23], 512
    $region233: #{_forward_impl.1} parent=1 // pred_fallthru
      _
    // Predicated region
    $region234: #{_forward_impl.1} parent=1 // pred_check
      _
    $region235: #{_forward_impl.1} parent=1 // pred_check_branch
      %595 = sbr.rel (0) target = $region237
    $region236: #{_forward_impl.1} parent=1 // pred_region
      %596 = dma.done [#allocation26], 32
    $region237: #{_forward_impl.1} parent=1 // pred_fallthru
      _
    // Predicated region
    $region238: #{_forward_impl.1} parent=1 // pred_check
      _
    $region239: #{_forward_impl.1} parent=1 // pred_check_branch
      %598 = sbr.rel (0) target = $region241
    $region240: #{_forward_impl.1} parent=1 // pred_region
      %599 = dma.done [#allocation26], 3072
    $region241: #{_forward_impl.1} parent=1 // pred_fallthru
      _
    // Predicated region
    $region242: #{_forward_impl.1} parent=1 // pred_check
      _
    $region243: #{_forward_impl.1} parent=1 // pred_check_branch
      %601 = sbr.rel (0) target = $region245
    $region244: #{_forward_impl.1} parent=1 // pred_region
      %602 = dma.done [#allocation29], 32
    $region245: #{_forward_impl.1} parent=1 // pred_fallthru
      _
    // Predicated region
    $region246: #{_forward_impl.1} parent=1 // pred_check
      _
    $region247: #{_forward_impl.1} parent=1 // pred_check_branch
      %604 = sbr.rel (0) target = $region249
    $region248: #{_forward_impl.1} parent=1 // pred_region
      %605 = dma.done [#allocation29], 512
    $region249: #{_forward_impl.1} parent=1 // pred_fallthru
      _
    // Predicated region
    $region250: #{_forward_impl.1} parent=1 // pred_check
      _
    $region251: #{_forward_impl.1} parent=1 // pred_check_branch
      %607 = sbr.rel (0) target = $region253
    $region252: #{_forward_impl.1} parent=1 // pred_region
      %608 = dma.done [#allocation32], 32
    $region253: #{_forward_impl.1} parent=1 // pred_fallthru
      _
    // Predicated region
    $region254: #{_forward_impl.1} parent=1 // pred_check
      _
    $region255: #{_forward_impl.1} parent=1 // pred_check_branch
      %610 = sbr.rel (0) target = $region257
    $region256: #{_forward_impl.1} parent=1 // pred_region
      %611 = dma.done [#allocation32], 3072
    $region257: #{_forward_impl.1} parent=1 // pred_fallthru
      _
    // Predicated region
    $region258: #{_forward_impl.1} parent=1 // pred_check
      _
    $region259: #{_forward_impl.1} parent=1 // pred_check_branch
      %613 = sbr.rel (0) target = $region261
    $region260: #{_forward_impl.1} parent=1 // pred_region
      %614 = dma.done [#allocation35], 32
    $region261: #{_forward_impl.1} parent=1 // pred_fallthru
      _
    // Predicated region
    $region262: #{_forward_impl.1} parent=1 // pred_check
      _
    $region263: #{_forward_impl.1} parent=1 // pred_check_branch
      %616 = sbr.rel (0) target = $region265
    $region264: #{_forward_impl.1} parent=1 // pred_region
      %617 = dma.done [#allocation35], 512
    $region265: #{_forward_impl.1} parent=1 // pred_fallthru
      _
    // Predicated region
    $region266: #{_forward_impl.1} parent=1 // pred_check
      _
    $region267: #{_forward_impl.1} parent=1 // pred_check_branch
      %619 = sbr.rel (0) target = $region269
    $region268: #{_forward_impl.1} parent=1 // pred_region
      %620 = dma.done [#allocation38], 32
    $region269: #{_forward_impl.1} parent=1 // pred_fallthru
      _
    // Predicated region
    $region270: #{_forward_impl.1} parent=1 // pred_check
      _
    $region271: #{_forward_impl.1} parent=1 // pred_check_branch
      %622 = sbr.rel (0) target = $region273
    $region272: #{_forward_impl.1} parent=1 // pred_region
      %623 = dma.done [#allocation38], 3072
    $region273: #{_forward_impl.1} parent=1 // pred_fallthru
      _
    // Predicated region
    $region274: #{_forward_impl.1} parent=1 // pred_check
      _
    $region275: #{_forward_impl.1} parent=1 // pred_check_branch
      %625 = sbr.rel (0) target = $region277
    $region276: #{_forward_impl.1} parent=1 // pred_region
      %626 = dma.done [#allocation41], 32
    $region277: #{_forward_impl.1} parent=1 // pred_fallthru
      _
    // Predicated region
    $region278: #{_forward_impl.1} parent=1 // pred_check
      _
    $region279: #{_forward_impl.1} parent=1 // pred_check_branch
      %628 = sbr.rel (0) target = $region281
    $region280: #{_forward_impl.1} parent=1 // pred_region
      %629 = dma.done [#allocation41], 512
    $region281: #{_forward_impl.1} parent=1 // pred_fallthru
      _
    // Predicated region
    $region282: #{_forward_impl.1} parent=1 // pred_check
      _
    $region283: #{_forward_impl.1} parent=1 // pred_check_branch
      %631 = sbr.rel (0) target = $region285
    $region284: #{_forward_impl.1} parent=1 // pred_region
      %632 = dma.done [#allocation44], 32
    $region285: #{_forward_impl.1} parent=1 // pred_fallthru
      _
    // Predicated region
    $region286: #{_forward_impl.1} parent=1 // pred_check
      _
    $region287: #{_forward_impl.1} parent=1 // pred_check_branch
      %634 = sbr.rel (0) target = $region289
    $region288: #{_forward_impl.1} parent=1 // pred_region
      %635 = dma.done [#allocation44], 3072
    $region289: #{_forward_impl.1} parent=1 // pred_fallthru
      _
    // Predicated region
    $region290: #{_forward_impl.1} parent=1 // pred_check
      _
    $region291: #{_forward_impl.1} parent=1 // pred_check_branch
      %637 = sbr.rel (0) target = $region293
    $region292: #{_forward_impl.1} parent=1 // pred_region
      %638 = dma.done [#allocation47], 32
    $region293: #{_forward_impl.1} parent=1 // pred_fallthru
      _
    // Predicated region
    $region294: #{_forward_impl.1} parent=1 // pred_check
      _
    $region295: #{_forward_impl.1} parent=1 // pred_check_branch
      %640 = sbr.rel (0) target = $region297
    $region296: #{_forward_impl.1} parent=1 // pred_region
      %641 = dma.done [#allocation47], 512
    $region297: #{_forward_impl.1} parent=1 // pred_fallthru
      _
    // Predicated region
    $region298: #{_forward_impl.1} parent=1 // pred_check
      _
    $region299: #{_forward_impl.1} parent=1 // pred_check_branch
      %643 = sbr.rel (0) target = $region301
    $region300: #{_forward_impl.1} parent=1 // pred_region
      %644 = dma.done [#allocation50], 32
    $region301: #{_forward_impl.1} parent=1 // pred_fallthru
      _
    // Predicated region
    $region302: #{_forward_impl.1} parent=1 // pred_check
      _
    $region303: #{_forward_impl.1} parent=1 // pred_check_branch
      %646 = sbr.rel (0) target = $region305
    $region304: #{_forward_impl.1} parent=1 // pred_region
      %647 = dma.done [#allocation50], 3072
    $region305: #{_forward_impl.1} parent=1 // pred_fallthru
      _
    // Predicated region
    $region306: #{_forward_impl.1} parent=1 // pred_check
      _
    $region307: #{_forward_impl.1} parent=1 // pred_check_branch
      %649 = sbr.rel (0) target = $region309
    $region308: #{_forward_impl.1} parent=1 // pred_region
      %650 = dma.done [#allocation53], 32
    $region309: #{_forward_impl.1} parent=1 // pred_fallthru
      _
    // Predicated region
    $region310: #{_forward_impl.1} parent=1 // pred_check
      _
    $region311: #{_forward_impl.1} parent=1 // pred_check_branch
      %652 = sbr.rel (0) target = $region313
    $region312: #{_forward_impl.1} parent=1 // pred_region
      %653 = dma.done [#allocation53], 512
    $region313: #{_forward_impl.1} parent=1 // pred_fallthru
      _
    // Predicated region
    $region314: #{_forward_impl.1} parent=1 // pred_check
      _
    $region315: #{_forward_impl.1} parent=1 // pred_check_branch
      %655 = sbr.rel (0) target = $region317
    $region316: #{_forward_impl.1} parent=1 // pred_region
      %656 = dma.done [#allocation56], 32
    $region317: #{_forward_impl.1} parent=1 // pred_fallthru
      _
    // Predicated region
    $region318: #{_forward_impl.1} parent=1 // pred_check
      _
    $region319: #{_forward_impl.1} parent=1 // pred_check_branch
      %658 = sbr.rel (0) target = $region321
    $region320: #{_forward_impl.1} parent=1 // pred_region
      %659 = dma.done [#allocation56], 4608
    $region321: #{_forward_impl.1} parent=1 // pred_fallthru
      _
    // Predicated region
    $region322: #{_forward_impl.1} parent=1 // pred_check
      _
    $region323: #{_forward_impl.1} parent=1 // pred_check_branch
      %661 = sbr.rel (0) target = $region325
    $region324: #{_forward_impl.1} parent=1 // pred_region
      %662 = dma.done [#allocation59], 48
    $region325: #{_forward_impl.1} parent=1 // pred_fallthru
      _
    // Predicated region
    $region326: #{_forward_impl.1} parent=1 // pred_check
      _
    $region327: #{_forward_impl.1} parent=1 // pred_check_branch
      %664 = sbr.rel (0) target = $region329
    $region328: #{_forward_impl.1} parent=1 // pred_region
      %665 = dma.done [#allocation59], 48
    $region329: #{_forward_impl.1} parent=1 // pred_fallthru
      _
    // Predicated region
    $region330: #{_forward_impl.1} parent=1 // pred_check
      _
    $region331: #{_forward_impl.1} parent=1 // pred_check_branch
      %667 = sbr.rel (0) target = $region333
    $region332: #{_forward_impl.1} parent=1 // pred_region
      %668 = dma.done [#allocation62], 96
    $region333: #{_forward_impl.1} parent=1 // pred_fallthru
      _
    // Predicated region
    $region334: #{_forward_impl.1} parent=1 // pred_check
      _
    $region335: #{_forward_impl.1} parent=1 // pred_check_branch
      %670 = sbr.rel (0) target = $region337
    $region336: #{_forward_impl.1} parent=1 // pred_region
      %671 = dma.done [#allocation62], 16
    $region337: #{_forward_impl.1} parent=1 // pred_fallthru
      _
    %v673 = vld [vmem:[%s1] sm:$0xff]
    %v674 = vld [vmem:[%s1 + $0x8] sm:$0xff]
    %v675 = vld [vmem:[%s1 + $0x10] sm:$0xff]
    %v676 = vld [vmem:[%s1 + $0x18] sm:$0xff]
    %v677 = vld [vmem:[%s1 + $0x20] sm:$0xff]
    %v678 = vld [vmem:[%s1 + $0x28] sm:$0xff]
    %v679 = vld [vmem:[%s1 + $0x30] sm:$0xff]
    %v680 = vld [vmem:[%s1 + $0x38] sm:$0xff]
    %v681 = vld [vmem:[%s1 + $0x40] sm:$0xff]
    %v682 = vld [vmem:[%s1 + $0x48] sm:$0xff]
    %v683 = vld [vmem:[%s1 + $0x50] sm:$0xff]
    %v684 = vld [vmem:[%s1 + $0x58] sm:$0xff]
    %v685 = vld [vmem:[%s1 + $0x60] sm:$0xff]
    %v686 = vld [vmem:[%s1 + $0x68] sm:$0xff]
    %v687 = vld [vmem:[%s1 + $0x70] sm:$0xff]
    %v688 = vld [vmem:[%s1 + $0x78] sm:$0xff]
    %v689 = vlaneseq
    %v690 = vshrl.u32 %v689, 7
    %v691 = vadd.s32 %v690, 8
    %v692 = vadd.s32 %v690, 16
    %v693 = vadd.s32 %v690, 24
    %v694 = vadd.s32 %v690, 32
    %v695 = vadd.s32 %v690, 40
    %v696 = vadd.s32 %v690, 48
    %v697 = vadd.s32 %v690, 56
    %v698 = vadd.s32 %v690, 64
    %v699 = vadd.s32 %v690, 72
    %v700 = vadd.s32 %v690, 80
    %v701 = vadd.s32 %v690, 88
    %v702 = vadd.s32 %v690, 96
    %v703 = vadd.s32 %v690, 104
    %v704 = vadd.s32 %v690, 112
    %v705 = vadd.s32 %v690, 120
    %v706 = vand.u32 %v690, 63
    %v707 = vand.u32 %v691, 63
    %v708 = vand.u32 %v692, 63
    %v709 = vand.u32 %v693, 63
    %v710 = vand.u32 %v694, 63
    %v711 = vand.u32 %v695, 63
    %v712 = vand.u32 %v696, 63
    %v713 = vand.u32 %v697, 63
    %v714 = vand.u32 %v698, 63
    %v715 = vand.u32 %v699, 63
    %v716 = vand.u32 %v700, 63
    %v717 = vand.u32 %v701, 63
    %v718 = vand.u32 %v702, 63
    %v719 = vand.u32 %v703, 63
    %v720 = vand.u32 %v704, 63
    %v721 = vand.u32 %v705, 63
    %v722 = vand.u32 %v706, 7
    %v723 = vand.u32 %v707, 7
    %v724 = vand.u32 %v708, 7
    %v725 = vand.u32 %v709, 7
    %v726 = vand.u32 %v710, 7
    %v727 = vand.u32 %v711, 7
    %v728 = vand.u32 %v712, 7
    %v729 = vand.u32 %v713, 7
    %v730 = vand.u32 %v714, 7
    %v731 = vand.u32 %v715, 7
    %v732 = vand.u32 %v716, 7
    %v733 = vand.u32 %v717, 7
    %v734 = vand.u32 %v718, 7
    %v735 = vand.u32 %v719, 7
    %v736 = vand.u32 %v720, 7
    %v737 = vand.u32 %v721, 7
    %vm738 = vcmp.ge.s32.totalorder %v706, 8
    %vm739 = vcmp.ge.s32.totalorder %v707, 8
    %vm740 = vcmp.ge.s32.totalorder %v708, 8
    %vm741 = vcmp.ge.s32.totalorder %v709, 8
    %vm742 = vcmp.ge.s32.totalorder %v710, 8
    %vm743 = vcmp.ge.s32.totalorder %v711, 8
    %vm744 = vcmp.ge.s32.totalorder %v712, 8
    %vm745 = vcmp.ge.s32.totalorder %v713, 8
    %vm746 = vcmp.ge.s32.totalorder %v714, 8
    %vm747 = vcmp.ge.s32.totalorder %v715, 8
    %vm748 = vcmp.ge.s32.totalorder %v716, 8
    %vm749 = vcmp.ge.s32.totalorder %v717, 8
    %vm750 = vcmp.ge.s32.totalorder %v718, 8
    %vm751 = vcmp.ge.s32.totalorder %v719, 8
    %vm752 = vcmp.ge.s32.totalorder %v720, 8
    %vm753 = vcmp.ge.s32.totalorder %v721, 8
    %vm754 = vcmp.ge.s32.totalorder %v722, 1
    %vm755 = vcmp.ge.s32.totalorder %v723, 1
    %vm756 = vcmp.ge.s32.totalorder %v724, 1
    %vm757 = vcmp.ge.s32.totalorder %v725, 1
    %vm758 = vcmp.ge.s32.totalorder %v726, 1
    %vm759 = vcmp.ge.s32.totalorder %v727, 1
    %vm760 = vcmp.ge.s32.totalorder %v728, 1
    %vm761 = vcmp.ge.s32.totalorder %v729, 1
    %vm762 = vcmp.ge.s32.totalorder %v730, 1
    %vm763 = vcmp.ge.s32.totalorder %v731, 1
    %vm764 = vcmp.ge.s32.totalorder %v732, 1
    %vm765 = vcmp.ge.s32.totalorder %v733, 1
    %vm766 = vcmp.ge.s32.totalorder %v734, 1
    %vm767 = vcmp.ge.s32.totalorder %v735, 1
    %vm768 = vcmp.ge.s32.totalorder %v736, 1
    %vm769 = vcmp.ge.s32.totalorder %v737, 1
    %vm770 = vmand %vm738, %vm754
    %vm771 = vmand %vm739, %vm755
    %vm772 = vmand %vm740, %vm756
    %vm773 = vmand %vm741, %vm757
    %vm774 = vmand %vm742, %vm758
    %vm775 = vmand %vm743, %vm759
    %vm776 = vmand %vm744, %vm760
    %vm777 = vmand %vm745, %vm761
    %vm778 = vmand %vm746, %vm762
    %vm779 = vmand %vm747, %vm763
    %vm780 = vmand %vm748, %vm764
    %vm781 = vmand %vm749, %vm765
    %vm782 = vmand %vm750, %vm766
    %vm783 = vmand %vm751, %vm767
    %vm784 = vmand %vm752, %vm768
    %vm785 = vmand %vm753, %vm769
    %vm786 = vcmp.le.s32.totalorder %v722, 6
    %vm787 = vcmp.le.s32.totalorder %v723, 6
    %vm788 = vcmp.le.s32.totalorder %v724, 6
    %vm789 = vcmp.le.s32.totalorder %v725, 6
    %vm790 = vcmp.le.s32.totalorder %v726, 6
    %vm791 = vcmp.le.s32.totalorder %v727, 6
    %vm792 = vcmp.le.s32.totalorder %v728, 6
    %vm793 = vcmp.le.s32.totalorder %v729, 6
    %vm794 = vcmp.le.s32.totalorder %v730, 6
    %vm795 = vcmp.le.s32.totalorder %v731, 6
    %vm796 = vcmp.le.s32.totalorder %v732, 6
    %vm797 = vcmp.le.s32.totalorder %v733, 6
    %vm798 = vcmp.le.s32.totalorder %v734, 6
    %vm799 = vcmp.le.s32.totalorder %v735, 6
    %vm800 = vcmp.le.s32.totalorder %v736, 6
    %vm801 = vcmp.le.s32.totalorder %v737, 6
    %vm802 = vmand %vm738, %vm786
    %vm803 = vmand %vm739, %vm787
    %vm804 = vmand %vm740, %vm788
    %vm805 = vmand %vm741, %vm789
    %vm806 = vmand %vm742, %vm790
    %vm807 = vmand %vm743, %vm791
    %vm808 = vmand %vm744, %vm792
    %vm809 = vmand %vm745, %vm793
    %vm810 = vmand %vm746, %vm794
    %vm811 = vmand %vm747, %vm795
    %vm812 = vmand %vm748, %vm796
    %vm813 = vmand %vm749, %vm797
    %vm814 = vmand %vm750, %vm798
    %vm815 = vmand %vm751, %vm799
    %vm816 = vmand %vm752, %vm800
    %vm817 = vmand %vm753, %vm801
    %vm818 = vcmp.lt.s32.totalorder %v706, 56
    %vm819 = vcmp.lt.s32.totalorder %v707, 56
    %vm820 = vcmp.lt.s32.totalorder %v708, 56
    %vm821 = vcmp.lt.s32.totalorder %v709, 56
    %vm822 = vcmp.lt.s32.totalorder %v710, 56
    %vm823 = vcmp.lt.s32.totalorder %v711, 56
    %vm824 = vcmp.lt.s32.totalorder %v712, 56
    %vm825 = vcmp.lt.s32.totalorder %v713, 56
    %vm826 = vcmp.lt.s32.totalorder %v714, 56
    %vm827 = vcmp.lt.s32.totalorder %v715, 56
    %vm828 = vcmp.lt.s32.totalorder %v716, 56
    %vm829 = vcmp.lt.s32.totalorder %v717, 56
    %vm830 = vcmp.lt.s32.totalorder %v718, 56
    %vm831 = vcmp.lt.s32.totalorder %v719, 56
    %vm832 = vcmp.lt.s32.totalorder %v720, 56
    %vm833 = vcmp.lt.s32.totalorder %v721, 56
    %vm834 = vmand %vm818, %vm754
    %vm835 = vmand %vm819, %vm755
    %vm836 = vmand %vm820, %vm756
    %vm837 = vmand %vm821, %vm757
    %vm838 = vmand %vm822, %vm758
    %vm839 = vmand %vm823, %vm759
    %vm840 = vmand %vm824, %vm760
    %vm841 = vmand %vm825, %vm761
    %vm842 = vmand %vm826, %vm762
    %vm843 = vmand %vm827, %vm763
    %vm844 = vmand %vm828, %vm764
    %vm845 = vmand %vm829, %vm765
    %vm846 = vmand %vm830, %vm766
    %vm847 = vmand %vm831, %vm767
    %vm848 = vmand %vm832, %vm768
    %vm849 = vmand %vm833, %vm769
    %vm850 = vmand %vm818, %vm786
    %vm851 = vmand %vm819, %vm787
    %vm852 = vmand %vm820, %vm788
    %vm853 = vmand %vm821, %vm789
    %vm854 = vmand %vm822, %vm790
    %vm855 = vmand %vm823, %vm791
    %vm856 = vmand %vm824, %vm792
    %vm857 = vmand %vm825, %vm793
    %vm858 = vmand %vm826, %vm794
    %vm859 = vmand %vm827, %vm795
    %vm860 = vmand %vm828, %vm796
    %vm861 = vmand %vm829, %vm797
    %vm862 = vmand %vm830, %vm798
    %vm863 = vmand %vm831, %vm799
    %vm864 = vmand %vm832, %vm800
    %vm865 = vmand %vm833, %vm801
    %v866 = vld [vmem:[#allocation9 + $0x4] sm:$0x1]
    %v867 = vlaneseq
    %v868 = vshrl.u32 %v867, 7
    %v869 = vsub.s32 0, %v868
    %v870 = vrot.slane %v866, %v869
    %v871 = vmul.f32 %v673, %v870
    %v872 = vmul.f32 %v674, %v870
    %v873 = vmul.f32 %v675, %v870
    %v874 = vmul.f32 %v676, %v870
    %v875 = vmul.f32 %v677, %v870
    %v876 = vmul.f32 %v678, %v870
    %v877 = vmul.f32 %v679, %v870
    %v878 = vmul.f32 %v680, %v870
    %v879 = vmul.f32 %v681, %v870
    %v880 = vmul.f32 %v682, %v870
    %v881 = vmul.f32 %v683, %v870
    %v882 = vmul.f32 %v684, %v870
    %v883 = vmul.f32 %v685, %v870
    %v884 = vmul.f32 %v686, %v870
    %v885 = vmul.f32 %v687, %v870
    %v886 = vmul.f32 %v688, %v870
    %v887 = vrot.slane %v673, 7
    %v888 = vrot.slane %v674, 7
    %v889 = vrot.slane %v675, 7
    %v890 = vrot.slane %v676, 7
    %v891 = vrot.slane %v677, 7
    %v892 = vrot.slane %v678, 7
    %v893 = vrot.slane %v679, 7
    %v894 = vrot.slane %v680, 7
    %v895 = vrot.slane %v681, 7
    %v896 = vrot.slane %v682, 7
    %v897 = vrot.slane %v683, 7
    %v898 = vrot.slane %v684, 7
    %v899 = vrot.slane %v685, 7
    %v900 = vrot.slane %v686, 7
    %v901 = vrot.slane %v687, 7
    %v902 = vrot.slane %v688, 7
    %vm903 = vcmp.lt.s32.totalorder %v690, 1
    %v904 = vsel %vm903, %v901, %v902
    %v905 = vsel %vm903, %v900, %v901
    %v906 = vsel %vm903, %v899, %v900
    %v907 = vsel %vm903, %v898, %v899
    %v908 = vsel %vm903, %v897, %v898
    %v909 = vsel %vm903, %v896, %v897
    %v910 = vsel %vm903, %v895, %v896
    %v911 = vsel %vm903, %v894, %v895
    %v912 = vsel %vm903, %v893, %v894
    %v913 = vsel %vm903, %v892, %v893
    %v914 = vsel %vm903, %v891, %v892
    %v915 = vsel %vm903, %v890, %v891
    %v916 = vsel %vm903, %v889, %v890
    %v917 = vsel %vm903, %v888, %v889
    %v918 = vsel %vm903, %v887, %v888
    %v919 = vsel %vm903, %v902, %v887
    %v920 = vsel %vm770, 1, 0
    %v921 = vsel %vm771, 1, 0
    %v922 = vsel %vm772, 1, 0
    %v923 = vsel %vm773, 1, 0
    %v924 = vsel %vm774, 1, 0
    %v925 = vsel %vm775, 1, 0
    %v926 = vsel %vm776, 1, 0
    %v927 = vsel %vm777, 1, 0
    %v928 = vsel %vm778, 1, 0
    %v929 = vsel %vm779, 1, 0
    %v930 = vsel %vm780, 1, 0
    %v931 = vsel %vm781, 1, 0
    %v932 = vsel %vm782, 1, 0
    %v933 = vsel %vm783, 1, 0
    %v934 = vsel %vm784, 1, 0
    %v935 = vsel %vm785, 1, 0
    %vm936 = vcmp.eq.s32.totalorder %v920, 1
    %vm937 = vcmp.eq.s32.totalorder %v921, 1
    %vm938 = vcmp.eq.s32.totalorder %v922, 1
    %vm939 = vcmp.eq.s32.totalorder %v923, 1
    %vm940 = vcmp.eq.s32.totalorder %v924, 1
    %vm941 = vcmp.eq.s32.totalorder %v925, 1
    %vm942 = vcmp.eq.s32.totalorder %v926, 1
    %vm943 = vcmp.eq.s32.totalorder %v927, 1
    %vm944 = vcmp.eq.s32.totalorder %v928, 1
    %vm945 = vcmp.eq.s32.totalorder %v929, 1
    %vm946 = vcmp.eq.s32.totalorder %v930, 1
    %vm947 = vcmp.eq.s32.totalorder %v931, 1
    %vm948 = vcmp.eq.s32.totalorder %v932, 1
    %vm949 = vcmp.eq.s32.totalorder %v933, 1
    %vm950 = vcmp.eq.s32.totalorder %v934, 1
    %vm951 = vcmp.eq.s32.totalorder %v935, 1
    %v952 = vsel %vm936, %v904, 0.0
    %v953 = vsel %vm937, %v919, 0.0
    %v954 = vsel %vm938, %v918, 0.0
    %v955 = vsel %vm939, %v917, 0.0
    %v956 = vsel %vm940, %v916, 0.0
    %v957 = vsel %vm941, %v915, 0.0
    %v958 = vsel %vm942, %v914, 0.0
    %v959 = vsel %vm943, %v913, 0.0
    %v960 = vsel %vm944, %v912, 0.0
    %v961 = vsel %vm945, %v911, 0.0
    %v962 = vsel %vm946, %v910, 0.0
    %v963 = vsel %vm947, %v909, 0.0
    %v964 = vsel %vm948, %v908, 0.0
    %v965 = vsel %vm949, %v907, 0.0
    %v966 = vsel %vm950, %v906, 0.0
    %v967 = vsel %vm951, %v905, 0.0
    %v968 = vld [vmem:[#allocation9] sm:$0x1]
    %v969 = vlaneseq
    %v970 = vshrl.u32 %v969, 7
    %v971 = vsub.s32 0, %v970
    %v972 = vrot.slane %v968, %v971
    %v973 = vmul.f32 %v952, %v972
    %v974 = vmul.f32 %v953, %v972
    %v975 = vmul.f32 %v954, %v972
    %v976 = vmul.f32 %v955, %v972
    %v977 = vmul.f32 %v956, %v972
    %v978 = vmul.f32 %v957, %v972
    %v979 = vmul.f32 %v958, %v972
    %v980 = vmul.f32 %v959, %v972
    %v981 = vmul.f32 %v960, %v972
    %v982 = vmul.f32 %v961, %v972
    %v983 = vmul.f32 %v962, %v972
    %v984 = vmul.f32 %v963, %v972
    %v985 = vmul.f32 %v964, %v972
    %v986 = vmul.f32 %v965, %v972
    %v987 = vmul.f32 %v966, %v972
    %v988 = vmul.f32 %v967, %v972
    %v989 = vadd.f32 %v871, %v973
    %v990 = vadd.f32 %v872, %v974
    %v991 = vadd.f32 %v873, %v975
    %v992 = vadd.f32 %v874, %v976
    %v993 = vadd.f32 %v875, %v977
    %v994 = vadd.f32 %v876, %v978
    %v995 = vadd.f32 %v877, %v979
    %v996 = vadd.f32 %v878, %v980
    %v997 = vadd.f32 %v879, %v981
    %v998 = vadd.f32 %v880, %v982
    %v999 = vadd.f32 %v881, %v983
    %v1000 = vadd.f32 %v882, %v984
    %v1001 = vadd.f32 %v883, %v985
    %v1002 = vadd.f32 %v884, %v986
    %v1003 = vadd.f32 %v885, %v987
    %v1004 = vadd.f32 %v886, %v988
    %v1005 = vsel %vm738, 1, 0
    %v1006 = vsel %vm739, 1, 0
    %v1007 = vsel %vm740, 1, 0
    %v1008 = vsel %vm741, 1, 0
    %v1009 = vsel %vm742, 1, 0
    %v1010 = vsel %vm743, 1, 0
    %v1011 = vsel %vm744, 1, 0
    %v1012 = vsel %vm745, 1, 0
    %v1013 = vsel %vm746, 1, 0
    %v1014 = vsel %vm747, 1, 0
    %v1015 = vsel %vm748, 1, 0
    %v1016 = vsel %vm749, 1, 0
    %v1017 = vsel %vm750, 1, 0
    %v1018 = vsel %vm751, 1, 0
    %v1019 = vsel %vm752, 1, 0
    %v1020 = vsel %vm753, 1, 0
    %vm1021 = vcmp.eq.s32.totalorder %v1005, 1
    %vm1022 = vcmp.eq.s32.totalorder %v1006, 1
    %vm1023 = vcmp.eq.s32.totalorder %v1007, 1
    %vm1024 = vcmp.eq.s32.totalorder %v1008, 1
    %vm1025 = vcmp.eq.s32.totalorder %v1009, 1
    %vm1026 = vcmp.eq.s32.totalorder %v1010, 1
    %vm1027 = vcmp.eq.s32.totalorder %v1011, 1
    %vm1028 = vcmp.eq.s32.totalorder %v1012, 1
    %vm1029 = vcmp.eq.s32.totalorder %v1013, 1
    %vm1030 = vcmp.eq.s32.totalorder %v1014, 1
    %vm1031 = vcmp.eq.s32.totalorder %v1015, 1
    %vm1032 = vcmp.eq.s32.totalorder %v1016, 1
    %vm1033 = vcmp.eq.s32.totalorder %v1017, 1
    %vm1034 = vcmp.eq.s32.totalorder %v1018, 1
    %vm1035 = vcmp.eq.s32.totalorder %v1019, 1
    %vm1036 = vcmp.eq.s32.totalorder %v1020, 1
    %v1037 = vsel %vm1021, %v688, 0.0
    %v1038 = vsel %vm1022, %v673, 0.0
    %v1039 = vsel %vm1023, %v674, 0.0
    %v1040 = vsel %vm1024, %v675, 0.0
    %v1041 = vsel %vm1025, %v676, 0.0
    %v1042 = vsel %vm1026, %v677, 0.0
    %v1043 = vsel %vm1027, %v678, 0.0
    %v1044 = vsel %vm1028, %v679, 0.0
    %v1045 = vsel %vm1029, %v680, 0.0
    %v1046 = vsel %vm1030, %v681, 0.0
    %v1047 = vsel %vm1031, %v682, 0.0
    %v1048 = vsel %vm1032, %v683, 0.0
    %v1049 = vsel %vm1033, %v684, 0.0
    %v1050 = vsel %vm1034, %v685, 0.0
    %v1051 = vsel %vm1035, %v686, 0.0
    %v1052 = vsel %vm1036, %v687, 0.0
    %v1053 = vld [vmem:[#allocation9 + $0x1] sm:$0x1]
    %v1054 = vlaneseq
    %v1055 = vshrl.u32 %v1054, 7
    %v1056 = vsub.s32 0, %v1055
    %v1057 = vrot.slane %v1053, %v1056
    %v1058 = vmul.f32 %v1037, %v1057
    %v1059 = vmul.f32 %v1038, %v1057
    %v1060 = vmul.f32 %v1039, %v1057
    %v1061 = vmul.f32 %v1040, %v1057
    %v1062 = vmul.f32 %v1041, %v1057
    %v1063 = vmul.f32 %v1042, %v1057
    %v1064 = vmul.f32 %v1043, %v1057
    %v1065 = vmul.f32 %v1044, %v1057
    %v1066 = vmul.f32 %v1045, %v1057
    %v1067 = vmul.f32 %v1046, %v1057
    %v1068 = vmul.f32 %v1047, %v1057
    %v1069 = vmul.f32 %v1048, %v1057
    %v1070 = vmul.f32 %v1049, %v1057
    %v1071 = vmul.f32 %v1050, %v1057
    %v1072 = vmul.f32 %v1051, %v1057
    %v1073 = vmul.f32 %v1052, %v1057
    %v1074 = vadd.f32 %v989, %v1058
    %v1075 = vadd.f32 %v990, %v1059
    %v1076 = vadd.f32 %v991, %v1060
    %v1077 = vadd.f32 %v992, %v1061
    %v1078 = vadd.f32 %v993, %v1062
    %v1079 = vadd.f32 %v994, %v1063
    %v1080 = vadd.f32 %v995, %v1064
    %v1081 = vadd.f32 %v996, %v1065
    %v1082 = vadd.f32 %v997, %v1066
    %v1083 = vadd.f32 %v998, %v1067
    %v1084 = vadd.f32 %v999, %v1068
    %v1085 = vadd.f32 %v1000, %v1069
    %v1086 = vadd.f32 %v1001, %v1070
    %v1087 = vadd.f32 %v1002, %v1071
    %v1088 = vadd.f32 %v1003, %v1072
    %v1089 = vadd.f32 %v1004, %v1073
    %v1090 = vrot.slane %v673, 1
    %v1091 = vrot.slane %v674, 1
    %v1092 = vrot.slane %v675, 1
    %v1093 = vrot.slane %v676, 1
    %v1094 = vrot.slane %v677, 1
    %v1095 = vrot.slane %v678, 1
    %v1096 = vrot.slane %v679, 1
    %v1097 = vrot.slane %v680, 1
    %v1098 = vrot.slane %v681, 1
    %v1099 = vrot.slane %v682, 1
    %v1100 = vrot.slane %v683, 1
    %v1101 = vrot.slane %v684, 1
    %v1102 = vrot.slane %v685, 1
    %v1103 = vrot.slane %v686, 1
    %v1104 = vrot.slane %v687, 1
    %v1105 = vrot.slane %v688, 1
    %vm1106 = vcmp.lt.s32.totalorder %v690, 7
    %v1107 = vsel %vm1106, %v1104, %v1105
    %v1108 = vsel %vm1106, %v1103, %v1104
    %v1109 = vsel %vm1106, %v1102, %v1103
    %v1110 = vsel %vm1106, %v1101, %v1102
    %v1111 = vsel %vm1106, %v1100, %v1101
    %v1112 = vsel %vm1106, %v1099, %v1100
    %v1113 = vsel %vm1106, %v1098, %v1099
    %v1114 = vsel %vm1106, %v1097, %v1098
    %v1115 = vsel %vm1106, %v1096, %v1097
    %v1116 = vsel %vm1106, %v1095, %v1096
    %v1117 = vsel %vm1106, %v1094, %v1095
    %v1118 = vsel %vm1106, %v1093, %v1094
    %v1119 = vsel %vm1106, %v1092, %v1093
    %v1120 = vsel %vm1106, %v1091, %v1092
    %v1121 = vsel %vm1106, %v1090, %v1091
    %v1122 = vsel %vm1106, %v1105, %v1090
    %v1123 = vsel %vm802, 1, 0
    %v1124 = vsel %vm803, 1, 0
    %v1125 = vsel %vm804, 1, 0
    %v1126 = vsel %vm805, 1, 0
    %v1127 = vsel %vm806, 1, 0
    %v1128 = vsel %vm807, 1, 0
    %v1129 = vsel %vm808, 1, 0
    %v1130 = vsel %vm809, 1, 0
    %v1131 = vsel %vm810, 1, 0
    %v1132 = vsel %vm811, 1, 0
    %v1133 = vsel %vm812, 1, 0
    %v1134 = vsel %vm813, 1, 0
    %v1135 = vsel %vm814, 1, 0
    %v1136 = vsel %vm815, 1, 0
    %v1137 = vsel %vm816, 1, 0
    %v1138 = vsel %vm817, 1, 0
    %vm1139 = vcmp.eq.s32.totalorder %v1123, 1
    %vm1140 = vcmp.eq.s32.totalorder %v1124, 1
    %vm1141 = vcmp.eq.s32.totalorder %v1125, 1
    %vm1142 = vcmp.eq.s32.totalorder %v1126, 1
    %vm1143 = vcmp.eq.s32.totalorder %v1127, 1
    %vm1144 = vcmp.eq.s32.totalorder %v1128, 1
    %vm1145 = vcmp.eq.s32.totalorder %v1129, 1
    %vm1146 = vcmp.eq.s32.totalorder %v1130, 1
    %vm1147 = vcmp.eq.s32.totalorder %v1131, 1
    %vm1148 = vcmp.eq.s32.totalorder %v1132, 1
    %vm1149 = vcmp.eq.s32.totalorder %v1133, 1
    %vm1150 = vcmp.eq.s32.totalorder %v1134, 1
    %vm1151 = vcmp.eq.s32.totalorder %v1135, 1
    %vm1152 = vcmp.eq.s32.totalorder %v1136, 1
    %vm1153 = vcmp.eq.s32.totalorder %v1137, 1
    %vm1154 = vcmp.eq.s32.totalorder %v1138, 1
    %v1155 = vsel %vm1139, %v1122, 0.0
    %v1156 = vsel %vm1140, %v1121, 0.0
    %v1157 = vsel %vm1141, %v1120, 0.0
    %v1158 = vsel %vm1142, %v1119, 0.0
    %v1159 = vsel %vm1143, %v1118, 0.0
    %v1160 = vsel %vm1144, %v1117, 0.0
    %v1161 = vsel %vm1145, %v1116, 0.0
    %v1162 = vsel %vm1146, %v1115, 0.0
    %v1163 = vsel %vm1147, %v1114, 0.0
    %v1164 = vsel %vm1148, %v1113, 0.0
    %v1165 = vsel %vm1149, %v1112, 0.0
    %v1166 = vsel %vm1150, %v1111, 0.0
    %v1167 = vsel %vm1151, %v1110, 0.0
    %v1168 = vsel %vm1152, %v1109, 0.0
    %v1169 = vsel %vm1153, %v1108, 0.0
    %v1170 = vsel %vm1154, %v1107, 0.0
    %v1171 = vld [vmem:[#allocation9 + $0x2] sm:$0x1]
    %v1172 = vlaneseq
    %v1173 = vshrl.u32 %v1172, 7
    %v1174 = vsub.s32 0, %v1173
    %v1175 = vrot.slane %v1171, %v1174
    %v1176 = vmul.f32 %v1155, %v1175
    %v1177 = vmul.f32 %v1156, %v1175
    %v1178 = vmul.f32 %v1157, %v1175
    %v1179 = vmul.f32 %v1158, %v1175
    %v1180 = vmul.f32 %v1159, %v1175
    %v1181 = vmul.f32 %v1160, %v1175
    %v1182 = vmul.f32 %v1161, %v1175
    %v1183 = vmul.f32 %v1162, %v1175
    %v1184 = vmul.f32 %v1163, %v1175
    %v1185 = vmul.f32 %v1164, %v1175
    %v1186 = vmul.f32 %v1165, %v1175
    %v1187 = vmul.f32 %v1166, %v1175
    %v1188 = vmul.f32 %v1167, %v1175
    %v1189 = vmul.f32 %v1168, %v1175
    %v1190 = vmul.f32 %v1169, %v1175
    %v1191 = vmul.f32 %v1170, %v1175
    %v1192 = vadd.f32 %v1074, %v1176
    %v1193 = vadd.f32 %v1075, %v1177
    %v1194 = vadd.f32 %v1076, %v1178
    %v1195 = vadd.f32 %v1077, %v1179
    %v1196 = vadd.f32 %v1078, %v1180
    %v1197 = vadd.f32 %v1079, %v1181
    %v1198 = vadd.f32 %v1080, %v1182
    %v1199 = vadd.f32 %v1081, %v1183
    %v1200 = vadd.f32 %v1082, %v1184
    %v1201 = vadd.f32 %v1083, %v1185
    %v1202 = vadd.f32 %v1084, %v1186
    %v1203 = vadd.f32 %v1085, %v1187
    %v1204 = vadd.f32 %v1086, %v1188
    %v1205 = vadd.f32 %v1087, %v1189
    %v1206 = vadd.f32 %v1088, %v1190
    %v1207 = vadd.f32 %v1089, %v1191
    %v1208 = vsel %vm754, 1, 0
    %v1209 = vsel %vm755, 1, 0
    %v1210 = vsel %vm756, 1, 0
    %v1211 = vsel %vm757, 1, 0
    %v1212 = vsel %vm758, 1, 0
    %v1213 = vsel %vm759, 1, 0
    %v1214 = vsel %vm760, 1, 0
    %v1215 = vsel %vm761, 1, 0
    %v1216 = vsel %vm762, 1, 0
    %v1217 = vsel %vm763, 1, 0
    %v1218 = vsel %vm764, 1, 0
    %v1219 = vsel %vm765, 1, 0
    %v1220 = vsel %vm766, 1, 0
    %v1221 = vsel %vm767, 1, 0
    %v1222 = vsel %vm768, 1, 0
    %v1223 = vsel %vm769, 1, 0
    %vm1224 = vcmp.eq.s32.totalorder %v1208, 1
    %vm1225 = vcmp.eq.s32.totalorder %v1209, 1
    %vm1226 = vcmp.eq.s32.totalorder %v1210, 1
    %vm1227 = vcmp.eq.s32.totalorder %v1211, 1
    %vm1228 = vcmp.eq.s32.totalorder %v1212, 1
    %vm1229 = vcmp.eq.s32.totalorder %v1213, 1
    %vm1230 = vcmp.eq.s32.totalorder %v1214, 1
    %vm1231 = vcmp.eq.s32.totalorder %v1215, 1
    %vm1232 = vcmp.eq.s32.totalorder %v1216, 1
    %vm1233 = vcmp.eq.s32.totalorder %v1217, 1
    %vm1234 = vcmp.eq.s32.totalorder %v1218, 1
    %vm1235 = vcmp.eq.s32.totalorder %v1219, 1
    %vm1236 = vcmp.eq.s32.totalorder %v1220, 1
    %vm1237 = vcmp.eq.s32.totalorder %v1221, 1
    %vm1238 = vcmp.eq.s32.totalorder %v1222, 1
    %vm1239 = vcmp.eq.s32.totalorder %v1223, 1
    %v1240 = vsel %vm1224, %v919, 0.0
    %v1241 = vsel %vm1225, %v918, 0.0
    %v1242 = vsel %vm1226, %v917, 0.0
    %v1243 = vsel %vm1227, %v916, 0.0
    %v1244 = vsel %vm1228, %v915, 0.0
    %v1245 = vsel %vm1229, %v914, 0.0
    %v1246 = vsel %vm1230, %v913, 0.0
    %v1247 = vsel %vm1231, %v912, 0.0
    %v1248 = vsel %vm1232, %v911, 0.0
    %v1249 = vsel %vm1233, %v910, 0.0
    %v1250 = vsel %vm1234, %v909, 0.0
    %v1251 = vsel %vm1235, %v908, 0.0
    %v1252 = vsel %vm1236, %v907, 0.0
    %v1253 = vsel %vm1237, %v906, 0.0
    %v1254 = vsel %vm1238, %v905, 0.0
    %v1255 = vsel %vm1239, %v904, 0.0
    %v1256 = vld [vmem:[#allocation9 + $0x3] sm:$0x1]
    %v1257 = vlaneseq
    %v1258 = vshrl.u32 %v1257, 7
    %v1259 = vsub.s32 0, %v1258
    %v1260 = vrot.slane %v1256, %v1259
    %v1261 = vmul.f32 %v1240, %v1260
    %v1262 = vmul.f32 %v1241, %v1260
    %v1263 = vmul.f32 %v1242, %v1260
    %v1264 = vmul.f32 %v1243, %v1260
    %v1265 = vmul.f32 %v1244, %v1260
    %v1266 = vmul.f32 %v1245, %v1260
    %v1267 = vmul.f32 %v1246, %v1260
    %v1268 = vmul.f32 %v1247, %v1260
    %v1269 = vmul.f32 %v1248, %v1260
    %v1270 = vmul.f32 %v1249, %v1260
    %v1271 = vmul.f32 %v1250, %v1260
    %v1272 = vmul.f32 %v1251, %v1260
    %v1273 = vmul.f32 %v1252, %v1260
    %v1274 = vmul.f32 %v1253, %v1260
    %v1275 = vmul.f32 %v1254, %v1260
    %v1276 = vmul.f32 %v1255, %v1260
    %v1277 = vadd.f32 %v1192, %v1261
    %v1278 = vadd.f32 %v1193, %v1262
    %v1279 = vadd.f32 %v1194, %v1263
    %v1280 = vadd.f32 %v1195, %v1264
    %v1281 = vadd.f32 %v1196, %v1265
    %v1282 = vadd.f32 %v1197, %v1266
    %v1283 = vadd.f32 %v1198, %v1267
    %v1284 = vadd.f32 %v1199, %v1268
    %v1285 = vadd.f32 %v1200, %v1269
    %v1286 = vadd.f32 %v1201, %v1270
    %v1287 = vadd.f32 %v1202, %v1271
    %v1288 = vadd.f32 %v1203, %v1272
    %v1289 = vadd.f32 %v1204, %v1273
    %v1290 = vadd.f32 %v1205, %v1274
    %v1291 = vadd.f32 %v1206, %v1275
    %v1292 = vadd.f32 %v1207, %v1276
    %v1293 = vsel %vm786, 1, 0
    %v1294 = vsel %vm787, 1, 0
    %v1295 = vsel %vm788, 1, 0
    %v1296 = vsel %vm789, 1, 0
    %v1297 = vsel %vm790, 1, 0
    %v1298 = vsel %vm791, 1, 0
    %v1299 = vsel %vm792, 1, 0
    %v1300 = vsel %vm793, 1, 0
    %v1301 = vsel %vm794, 1, 0
    %v1302 = vsel %vm795, 1, 0
    %v1303 = vsel %vm796, 1, 0
    %v1304 = vsel %vm797, 1, 0
    %v1305 = vsel %vm798, 1, 0
    %v1306 = vsel %vm799, 1, 0
    %v1307 = vsel %vm800, 1, 0
    %v1308 = vsel %vm801, 1, 0
    %vm1309 = vcmp.eq.s32.totalorder %v1293, 1
    %vm1310 = vcmp.eq.s32.totalorder %v1294, 1
    %vm1311 = vcmp.eq.s32.totalorder %v1295, 1
    %vm1312 = vcmp.eq.s32.totalorder %v1296, 1
    %vm1313 = vcmp.eq.s32.totalorder %v1297, 1
    %vm1314 = vcmp.eq.s32.totalorder %v1298, 1
    %vm1315 = vcmp.eq.s32.totalorder %v1299, 1
    %vm1316 = vcmp.eq.s32.totalorder %v1300, 1
    %vm1317 = vcmp.eq.s32.totalorder %v1301, 1
    %vm1318 = vcmp.eq.s32.totalorder %v1302, 1
    %vm1319 = vcmp.eq.s32.totalorder %v1303, 1
    %vm1320 = vcmp.eq.s32.totalorder %v1304, 1
    %vm1321 = vcmp.eq.s32.totalorder %v1305, 1
    %vm1322 = vcmp.eq.s32.totalorder %v1306, 1
    %vm1323 = vcmp.eq.s32.totalorder %v1307, 1
    %vm1324 = vcmp.eq.s32.totalorder %v1308, 1
    %v1325 = vsel %vm1309, %v1121, 0.0
    %v1326 = vsel %vm1310, %v1120, 0.0
    %v1327 = vsel %vm1311, %v1119, 0.0
    %v1328 = vsel %vm1312, %v1118, 0.0
    %v1329 = vsel %vm1313, %v1117, 0.0
    %v1330 = vsel %vm1314, %v1116, 0.0
    %v1331 = vsel %vm1315, %v1115, 0.0
    %v1332 = vsel %vm1316, %v1114, 0.0
    %v1333 = vsel %vm1317, %v1113, 0.0
    %v1334 = vsel %vm1318, %v1112, 0.0
    %v1335 = vsel %vm1319, %v1111, 0.0
    %v1336 = vsel %vm1320, %v1110, 0.0
    %v1337 = vsel %vm1321, %v1109, 0.0
    %v1338 = vsel %vm1322, %v1108, 0.0
    %v1339 = vsel %vm1323, %v1107, 0.0
    %v1340 = vsel %vm1324, %v1122, 0.0
    %v1341 = vld [vmem:[#allocation9 + $0x5] sm:$0x1]
    %v1342 = vlaneseq
    %v1343 = vshrl.u32 %v1342, 7
    %v1344 = vsub.s32 0, %v1343
    %v1345 = vrot.slane %v1341, %v1344
    %v1346 = vmul.f32 %v1325, %v1345
    %v1347 = vmul.f32 %v1326, %v1345
    %v1348 = vmul.f32 %v1327, %v1345
    %v1349 = vmul.f32 %v1328, %v1345
    %v1350 = vmul.f32 %v1329, %v1345
    %v1351 = vmul.f32 %v1330, %v1345
    %v1352 = vmul.f32 %v1331, %v1345
    %v1353 = vmul.f32 %v1332, %v1345
    %v1354 = vmul.f32 %v1333, %v1345
    %v1355 = vmul.f32 %v1334, %v1345
    %v1356 = vmul.f32 %v1335, %v1345
    %v1357 = vmul.f32 %v1336, %v1345
    %v1358 = vmul.f32 %v1337, %v1345
    %v1359 = vmul.f32 %v1338, %v1345
    %v1360 = vmul.f32 %v1339, %v1345
    %v1361 = vmul.f32 %v1340, %v1345
    %v1362 = vadd.f32 %v1277, %v1346
    %v1363 = vadd.f32 %v1278, %v1347
    %v1364 = vadd.f32 %v1279, %v1348
    %v1365 = vadd.f32 %v1280, %v1349
    %v1366 = vadd.f32 %v1281, %v1350
    %v1367 = vadd.f32 %v1282, %v1351
    %v1368 = vadd.f32 %v1283, %v1352
    %v1369 = vadd.f32 %v1284, %v1353
    %v1370 = vadd.f32 %v1285, %v1354
    %v1371 = vadd.f32 %v1286, %v1355
    %v1372 = vadd.f32 %v1287, %v1356
    %v1373 = vadd.f32 %v1288, %v1357
    %v1374 = vadd.f32 %v1289, %v1358
    %v1375 = vadd.f32 %v1290, %v1359
    %v1376 = vadd.f32 %v1291, %v1360
    %v1377 = vadd.f32 %v1292, %v1361
    %v1378 = vsel %vm834, 1, 0
    %v1379 = vsel %vm835, 1, 0
    %v1380 = vsel %vm836, 1, 0
    %v1381 = vsel %vm837, 1, 0
    %v1382 = vsel %vm838, 1, 0
    %v1383 = vsel %vm839, 1, 0
    %v1384 = vsel %vm840, 1, 0
    %v1385 = vsel %vm841, 1, 0
    %v1386 = vsel %vm842, 1, 0
    %v1387 = vsel %vm843, 1, 0
    %v1388 = vsel %vm844, 1, 0
    %v1389 = vsel %vm845, 1, 0
    %v1390 = vsel %vm846, 1, 0
    %v1391 = vsel %vm847, 1, 0
    %v1392 = vsel %vm848, 1, 0
    %v1393 = vsel %vm849, 1, 0
    %vm1394 = vcmp.eq.s32.totalorder %v1378, 1
    %vm1395 = vcmp.eq.s32.totalorder %v1379, 1
    %vm1396 = vcmp.eq.s32.totalorder %v1380, 1
    %vm1397 = vcmp.eq.s32.totalorder %v1381, 1
    %vm1398 = vcmp.eq.s32.totalorder %v1382, 1
    %vm1399 = vcmp.eq.s32.totalorder %v1383, 1
    %vm1400 = vcmp.eq.s32.totalorder %v1384, 1
    %vm1401 = vcmp.eq.s32.totalorder %v1385, 1
    %vm1402 = vcmp.eq.s32.totalorder %v1386, 1
    %vm1403 = vcmp.eq.s32.totalorder %v1387, 1
    %vm1404 = vcmp.eq.s32.totalorder %v1388, 1
    %vm1405 = vcmp.eq.s32.totalorder %v1389, 1
    %vm1406 = vcmp.eq.s32.totalorder %v1390, 1
    %vm1407 = vcmp.eq.s32.totalorder %v1391, 1
    %vm1408 = vcmp.eq.s32.totalorder %v1392, 1
    %vm1409 = vcmp.eq.s32.totalorder %v1393, 1
    %v1410 = vsel %vm1394, %v918, 0.0
    %v1411 = vsel %vm1395, %v917, 0.0
    %v1412 = vsel %vm1396, %v916, 0.0
    %v1413 = vsel %vm1397, %v915, 0.0
    %v1414 = vsel %vm1398, %v914, 0.0
    %v1415 = vsel %vm1399, %v913, 0.0
    %v1416 = vsel %vm1400, %v912, 0.0
    %v1417 = vsel %vm1401, %v911, 0.0
    %v1418 = vsel %vm1402, %v910, 0.0
    %v1419 = vsel %vm1403, %v909, 0.0
    %v1420 = vsel %vm1404, %v908, 0.0
    %v1421 = vsel %vm1405, %v907, 0.0
    %v1422 = vsel %vm1406, %v906, 0.0
    %v1423 = vsel %vm1407, %v905, 0.0
    %v1424 = vsel %vm1408, %v904, 0.0
    %v1425 = vsel %vm1409, %v919, 0.0
    %v1426 = vld [vmem:[#allocation9 + $0x6] sm:$0x1]
    %v1427 = vlaneseq
    %v1428 = vshrl.u32 %v1427, 7
    %v1429 = vsub.s32 0, %v1428
    %v1430 = vrot.slane %v1426, %v1429
    %v1431 = vmul.f32 %v1410, %v1430
    %v1432 = vmul.f32 %v1411, %v1430
    %v1433 = vmul.f32 %v1412, %v1430
    %v1434 = vmul.f32 %v1413, %v1430
    %v1435 = vmul.f32 %v1414, %v1430
    %v1436 = vmul.f32 %v1415, %v1430
    %v1437 = vmul.f32 %v1416, %v1430
    %v1438 = vmul.f32 %v1417, %v1430
    %v1439 = vmul.f32 %v1418, %v1430
    %v1440 = vmul.f32 %v1419, %v1430
    %v1441 = vmul.f32 %v1420, %v1430
    %v1442 = vmul.f32 %v1421, %v1430
    %v1443 = vmul.f32 %v1422, %v1430
    %v1444 = vmul.f32 %v1423, %v1430
    %v1445 = vmul.f32 %v1424, %v1430
    %v1446 = vmul.f32 %v1425, %v1430
    %v1447 = vadd.f32 %v1362, %v1431
    %v1448 = vadd.f32 %v1363, %v1432
    %v1449 = vadd.f32 %v1364, %v1433
    %v1450 = vadd.f32 %v1365, %v1434
    %v1451 = vadd.f32 %v1366, %v1435
    %v1452 = vadd.f32 %v1367, %v1436
    %v1453 = vadd.f32 %v1368, %v1437
    %v1454 = vadd.f32 %v1369, %v1438
    %v1455 = vadd.f32 %v1370, %v1439
    %v1456 = vadd.f32 %v1371, %v1440
    %v1457 = vadd.f32 %v1372, %v1441
    %v1458 = vadd.f32 %v1373, %v1442
    %v1459 = vadd.f32 %v1374, %v1443
    %v1460 = vadd.f32 %v1375, %v1444
    %v1461 = vadd.f32 %v1376, %v1445
    %v1462 = vadd.f32 %v1377, %v1446
    %v1463 = vsel %vm818, 1, 0
    %v1464 = vsel %vm819, 1, 0
    %v1465 = vsel %vm820, 1, 0
    %v1466 = vsel %vm821, 1, 0
    %v1467 = vsel %vm822, 1, 0
    %v1468 = vsel %vm823, 1, 0
    %v1469 = vsel %vm824, 1, 0
    %v1470 = vsel %vm825, 1, 0
    %v1471 = vsel %vm826, 1, 0
    %v1472 = vsel %vm827, 1, 0
    %v1473 = vsel %vm828, 1, 0
    %v1474 = vsel %vm829, 1, 0
    %v1475 = vsel %vm830, 1, 0
    %v1476 = vsel %vm831, 1, 0
    %v1477 = vsel %vm832, 1, 0
    %v1478 = vsel %vm833, 1, 0
    %vm1479 = vcmp.eq.s32.totalorder %v1463, 1
    %vm1480 = vcmp.eq.s32.totalorder %v1464, 1
    %vm1481 = vcmp.eq.s32.totalorder %v1465, 1
    %vm1482 = vcmp.eq.s32.totalorder %v1466, 1
    %vm1483 = vcmp.eq.s32.totalorder %v1467, 1
    %vm1484 = vcmp.eq.s32.totalorder %v1468, 1
    %vm1485 = vcmp.eq.s32.totalorder %v1469, 1
    %vm1486 = vcmp.eq.s32.totalorder %v1470, 1
    %vm1487 = vcmp.eq.s32.totalorder %v1471, 1
    %vm1488 = vcmp.eq.s32.totalorder %v1472, 1
    %vm1489 = vcmp.eq.s32.totalorder %v1473, 1
    %vm1490 = vcmp.eq.s32.totalorder %v1474, 1
    %vm1491 = vcmp.eq.s32.totalorder %v1475, 1
    %vm1492 = vcmp.eq.s32.totalorder %v1476, 1
    %vm1493 = vcmp.eq.s32.totalorder %v1477, 1
    %vm1494 = vcmp.eq.s32.totalorder %v1478, 1
    %v1495 = vsel %vm1479, %v674, 0.0
    %v1496 = vsel %vm1480, %v675, 0.0
    %v1497 = vsel %vm1481, %v676, 0.0
    %v1498 = vsel %vm1482, %v677, 0.0
    %v1499 = vsel %vm1483, %v678, 0.0
    %v1500 = vsel %vm1484, %v679, 0.0
    %v1501 = vsel %vm1485, %v680, 0.0
    %v1502 = vsel %vm1486, %v681, 0.0
    %v1503 = vsel %vm1487, %v682, 0.0
    %v1504 = vsel %vm1488, %v683, 0.0
    %v1505 = vsel %vm1489, %v684, 0.0
    %v1506 = vsel %vm1490, %v685, 0.0
    %v1507 = vsel %vm1491, %v686, 0.0
    %v1508 = vsel %vm1492, %v687, 0.0
    %v1509 = vsel %vm1493, %v688, 0.0
    %v1510 = vsel %vm1494, %v673, 0.0
    %v1511 = vld [vmem:[#allocation9 + $0x7] sm:$0x1]
    %v1512 = vlaneseq
    %v1513 = vshrl.u32 %v1512, 7
    %v1514 = vsub.s32 0, %v1513
    %v1515 = vrot.slane %v1511, %v1514
    %v1516 = vmul.f32 %v1495, %v1515
    %v1517 = vmul.f32 %v1496, %v1515
    %v1518 = vmul.f32 %v1497, %v1515
    %v1519 = vmul.f32 %v1498, %v1515
    %v1520 = vmul.f32 %v1499, %v1515
    %v1521 = vmul.f32 %v1500, %v1515
    %v1522 = vmul.f32 %v1501, %v1515
    %v1523 = vmul.f32 %v1502, %v1515
    %v1524 = vmul.f32 %v1503, %v1515
    %v1525 = vmul.f32 %v1504, %v1515
    %v1526 = vmul.f32 %v1505, %v1515
    %v1527 = vmul.f32 %v1506, %v1515
    %v1528 = vmul.f32 %v1507, %v1515
    %v1529 = vmul.f32 %v1508, %v1515
    %v1530 = vmul.f32 %v1509, %v1515
    %v1531 = vmul.f32 %v1510, %v1515
    %v1532 = vadd.f32 %v1447, %v1516
    %v1533 = vadd.f32 %v1448, %v1517
    %v1534 = vadd.f32 %v1449, %v1518
    %v1535 = vadd.f32 %v1450, %v1519
    %v1536 = vadd.f32 %v1451, %v1520
    %v1537 = vadd.f32 %v1452, %v1521
    %v1538 = vadd.f32 %v1453, %v1522
    %v1539 = vadd.f32 %v1454, %v1523
    %v1540 = vadd.f32 %v1455, %v1524
    %v1541 = vadd.f32 %v1456, %v1525
    %v1542 = vadd.f32 %v1457, %v1526
    %v1543 = vadd.f32 %v1458, %v1527
    %v1544 = vadd.f32 %v1459, %v1528
    %v1545 = vadd.f32 %v1460, %v1529
    %v1546 = vadd.f32 %v1461, %v1530
    %v1547 = vadd.f32 %v1462, %v1531
    %v1548 = vsel %vm850, 1, 0
    %v1549 = vsel %vm851, 1, 0
    %v1550 = vsel %vm852, 1, 0
    %v1551 = vsel %vm853, 1, 0
    %v1552 = vsel %vm854, 1, 0
    %v1553 = vsel %vm855, 1, 0
    %v1554 = vsel %vm856, 1, 0
    %v1555 = vsel %vm857, 1, 0
    %v1556 = vsel %vm858, 1, 0
    %v1557 = vsel %vm859, 1, 0
    %v1558 = vsel %vm860, 1, 0
    %v1559 = vsel %vm861, 1, 0
    %v1560 = vsel %vm862, 1, 0
    %v1561 = vsel %vm863, 1, 0
    %v1562 = vsel %vm864, 1, 0
    %v1563 = vsel %vm865, 1, 0
    %vm1564 = vcmp.eq.s32.totalorder %v1548, 1
    %vm1565 = vcmp.eq.s32.totalorder %v1549, 1
    %vm1566 = vcmp.eq.s32.totalorder %v1550, 1
    %vm1567 = vcmp.eq.s32.totalorder %v1551, 1
    %vm1568 = vcmp.eq.s32.totalorder %v1552, 1
    %vm1569 = vcmp.eq.s32.totalorder %v1553, 1
    %vm1570 = vcmp.eq.s32.totalorder %v1554, 1
    %vm1571 = vcmp.eq.s32.totalorder %v1555, 1
    %vm1572 = vcmp.eq.s32.totalorder %v1556, 1
    %vm1573 = vcmp.eq.s32.totalorder %v1557, 1
    %vm1574 = vcmp.eq.s32.totalorder %v1558, 1
    %vm1575 = vcmp.eq.s32.totalorder %v1559, 1
    %vm1576 = vcmp.eq.s32.totalorder %v1560, 1
    %vm1577 = vcmp.eq.s32.totalorder %v1561, 1
    %vm1578 = vcmp.eq.s32.totalorder %v1562, 1
    %vm1579 = vcmp.eq.s32.totalorder %v1563, 1
    %v1580 = vsel %vm1564, %v1120, 0.0
    %v1581 = vsel %vm1565, %v1119, 0.0
    %v1582 = vsel %vm1566, %v1118, 0.0
    %v1583 = vsel %vm1567, %v1117, 0.0
    %v1584 = vsel %vm1568, %v1116, 0.0
    %v1585 = vsel %vm1569, %v1115, 0.0
    %v1586 = vsel %vm1570, %v1114, 0.0
    %v1587 = vsel %vm1571, %v1113, 0.0
    %v1588 = vsel %vm1572, %v1112, 0.0
    %v1589 = vsel %vm1573, %v1111, 0.0
    %v1590 = vsel %vm1574, %v1110, 0.0
    %v1591 = vsel %vm1575, %v1109, 0.0
    %v1592 = vsel %vm1576, %v1108, 0.0
    %v1593 = vsel %vm1577, %v1107, 0.0
    %v1594 = vsel %vm1578, %v1122, 0.0
    %v1595 = vsel %vm1579, %v1121, 0.0
    %v1596 = vld [vmem:[#allocation9 + $0x8] sm:$0x1]
    %v1597 = vlaneseq
    %v1598 = vshrl.u32 %v1597, 7
    %v1599 = vsub.s32 0, %v1598
    %v1600 = vrot.slane %v1596, %v1599
    %v1601 = vmul.f32 %v1580, %v1600
    %v1602 = vmul.f32 %v1581, %v1600
    %v1603 = vmul.f32 %v1582, %v1600
    %v1604 = vmul.f32 %v1583, %v1600
    %v1605 = vmul.f32 %v1584, %v1600
    %v1606 = vmul.f32 %v1585, %v1600
    %v1607 = vmul.f32 %v1586, %v1600
    %v1608 = vmul.f32 %v1587, %v1600
    %v1609 = vmul.f32 %v1588, %v1600
    %v1610 = vmul.f32 %v1589, %v1600
    %v1611 = vmul.f32 %v1590, %v1600
    %v1612 = vmul.f32 %v1591, %v1600
    %v1613 = vmul.f32 %v1592, %v1600
    %v1614 = vmul.f32 %v1593, %v1600
    %v1615 = vmul.f32 %v1594, %v1600
    %v1616 = vmul.f32 %v1595, %v1600
    %v1617 = vadd.f32 %v1532, %v1601
    %v1618 = vadd.f32 %v1533, %v1602
    %v1619 = vadd.f32 %v1534, %v1603
    %v1620 = vadd.f32 %v1535, %v1604
    %v1621 = vadd.f32 %v1536, %v1605
    %v1622 = vadd.f32 %v1537, %v1606
    %v1623 = vadd.f32 %v1538, %v1607
    %v1624 = vadd.f32 %v1539, %v1608
    %v1625 = vadd.f32 %v1540, %v1609
    %v1626 = vadd.f32 %v1541, %v1610
    %v1627 = vadd.f32 %v1542, %v1611
    %v1628 = vadd.f32 %v1543, %v1612
    %v1629 = vadd.f32 %v1544, %v1613
    %v1630 = vadd.f32 %v1545, %v1614
    %v1631 = vadd.f32 %v1546, %v1615
    %v1632 = vadd.f32 %v1547, %v1616
    %v1633 = vld [vmem:[#allocation10] sm:$0x1]
    %v1635 = vlaneseq
    %v1636 = vshrl.u32 %v1635, 7
    %v1637 = vsub.s32 0, %v1636
    %v1638 = vrot.slane %v1633, %v1637
    %v1640 = vadd.f32 %v1617, %v1638
    %v1641 = vadd.f32 %v1618, %v1638
    %v1642 = vadd.f32 %v1619, %v1638
    %v1643 = vadd.f32 %v1620, %v1638
    %v1644 = vadd.f32 %v1621, %v1638
    %v1645 = vadd.f32 %v1622, %v1638
    %v1646 = vadd.f32 %v1623, %v1638
    %v1647 = vadd.f32 %v1624, %v1638
    %v1648 = vadd.f32 %v1625, %v1638
    %v1649 = vadd.f32 %v1626, %v1638
    %v1650 = vadd.f32 %v1627, %v1638
    %v1651 = vadd.f32 %v1628, %v1638
    %v1652 = vadd.f32 %v1629, %v1638
    %v1653 = vadd.f32 %v1630, %v1638
    %v1654 = vadd.f32 %v1631, %v1638
    %v1655 = vadd.f32 %v1632, %v1638
    %v1656 = vmax.f32 %v1640, 0.0
    %v1657 = vmax.f32 %v1641, 0.0
    %v1658 = vmax.f32 %v1642, 0.0
    %v1659 = vmax.f32 %v1643, 0.0
    %v1660 = vmax.f32 %v1644, 0.0
    %v1661 = vmax.f32 %v1645, 0.0
    %v1662 = vmax.f32 %v1646, 0.0
    %v1663 = vmax.f32 %v1647, 0.0
    %v1664 = vmax.f32 %v1648, 0.0
    %v1665 = vmax.f32 %v1649, 0.0
    %v1666 = vmax.f32 %v1650, 0.0
    %v1667 = vmax.f32 %v1651, 0.0
    %v1668 = vmax.f32 %v1652, 0.0
    %v1669 = vmax.f32 %v1653, 0.0
    %v1670 = vmax.f32 %v1654, 0.0
    %v1671 = vmax.f32 %v1655, 0.0
    %v1672 = vpack.c.bf16 %v1657, %v1656
    %v1673 = vpack.c.bf16 %v1659, %v1658
    %v1674 = vpack.c.bf16 %v1661, %v1660
    %v1675 = vpack.c.bf16 %v1663, %v1662
    %v1676 = vpack.c.bf16 %v1665, %v1664
    %v1677 = vpack.c.bf16 %v1667, %v1666
    %v1678 = vpack.c.bf16 %v1669, %v1668
    %v1679 = vpack.c.bf16 %v1671, %v1670
    %v1680 = vld [vmem:[%s11] sm:$0xf]
    %v1681 = vld [vmem:[%s11 + $0x4] sm:$0xf]
    %v1682 = vld [vmem:[%s11 + $0x8] sm:$0xf]
    %v1683 = vld [vmem:[#allocation12] sm:$0x1]
    %v1685 = vlaneseq
    %v1686 = vshrl.u32 %v1685, 7
    %v1687 = vsub.s32 0, %v1686
    %v1688 = vrot.slane %v1683, %v1687
    %v1693 = vunpack.c.l.b16 %v1680
    %v1694 = vunpack.c.l.b16 %v1681
    %v1695 = vunpack.c.l.b16 %v1682
    %v1696 = vpack.c.b16 %v1694, %v1693
    %v1697 = vpack.c.b16 %v1695, %v1695
    %vm1699 = vcmask 195584
    %v1701 = vsel %vm1699, %v1672, 0
    %v1704 = vsel %vm1699, %v1673, 0
    %v1707 = vsel %vm1699, %v1674, 0
    %v1710 = vsel %vm1699, %v1675, 0
    %v1713 = vsel %vm1699, %v1676, 0
    %v1716 = vsel %vm1699, %v1677, 0
    %v1719 = vsel %vm1699, %v1678, 0
    %v1722 = vsel %vm1699, %v1679, 0
    %vm1724 = vcmask 1043456
    %v1726 = vsel %vm1724, %v1697, 0
    %1728 = vmatprep.subr.bf16.mxu0 0
    %1729 = vmatpush1.bf16.msra.mxu0 %v1696
    %1730 = vmatprep.subr.bf16.mxu0 0
    %1731 = vmatpush1.bf16.msra.mxu0 %v1726
    %1732 = vmatprep.subr.bf16.mxu0 0
    %1733 = vmatpush1.bf16.msra.mxu0 0
    %1734 = vmatprep.subr.bf16.mxu0 0
    %1735 = vmatpush1.bf16.msra.mxu0 0
    %1736 = vmatprep.subr.bf16.mxu0 0
    %1737 = vmatpush1.bf16.msra.mxu0 0
    %1738 = vmatprep.subr.bf16.mxu0 0
    %1739 = vmatpush1.bf16.msra.mxu0 0
    %1740 = vmatprep.subr.bf16.mxu0 0
    %1741 = vmatpush1.bf16.msra.mxu0 0
    %1742 = vmatprep.subr.bf16.mxu0 0
    %1743 = vmatpush1.bf16.msra.mxu0 0
    %1744 = vmatprep.subr.bf16.mxu0 0
    %1745 = vmatpush1.bf16.msra.mxu0 0
    %1746 = vmatprep.subr.bf16.mxu0 0
    %1747 = vmatpush1.bf16.msra.mxu0 0
    %1748 = vmatprep.subr.bf16.mxu0 0
    %1749 = vmatpush1.bf16.msra.mxu0 0
    %1750 = vmatprep.subr.bf16.mxu0 0
    %1751 = vmatpush1.bf16.msra.mxu0 0
    %1752 = vmatprep.subr.bf16.mxu0 0
    %1753 = vmatpush1.bf16.msra.mxu0 0
    %1754 = vmatprep.subr.bf16.mxu0 0
    %1755 = vmatpush1.bf16.msra.mxu0 0
    %1756 = vmatprep.subr.bf16.mxu0 0
    %1757 = vmatpush1.bf16.msra.mxu0 0
    %1758 = vmatprep.subr.bf16.mxu0 0
    %1759 = vmatpush1.bf16.msra.mxu0 0
    %1760 = vmatprep.mubr.bf16.mxu0 0
    %1761 = vmatmul.mubr.bf16.gmra.mrb[0].mxu0 %v1701
    %v1762 = vpop.f32.mrb[0].mxu0
    %v1763 = vadd.f32 %v1688, %v1762
    %v1764 = vpop.f32.mrb[0].mxu0
    %v1765 = vpop.f32.mrb[0].mxu0
    %v1766 = vadd.f32 %v1688, %v1765
    %v1767 = vpop.f32.mrb[0].mxu0
    %1768 = vmatprep.mubr.bf16.mxu0 0
    %1769 = vmatmul.mubr.bf16.gmra.mrb[0].mxu0 %v1704
    %v1770 = vpop.f32.mrb[0].mxu0
    %v1771 = vadd.f32 %v1688, %v1770
    %v1772 = vpop.f32.mrb[0].mxu0
    %v1773 = vpop.f32.mrb[0].mxu0
    %v1774 = vadd.f32 %v1688, %v1773
    %v1775 = vpop.f32.mrb[0].mxu0
    %1776 = vmatprep.mubr.bf16.mxu0 0
    %1777 = vmatmul.mubr.bf16.gmra.mrb[0].mxu0 %v1707
    %v1778 = vpop.f32.mrb[0].mxu0
    %v1779 = vadd.f32 %v1688, %v1778
    %v1780 = vpop.f32.mrb[0].mxu0
    %v1781 = vpop.f32.mrb[0].mxu0
    %v1782 = vadd.f32 %v1688, %v1781
    %v1783 = vpop.f32.mrb[0].mxu0
    %1784 = vmatprep.mubr.bf16.mxu0 0
    %1785 = vmatmul.mubr.bf16.gmra.mrb[0].mxu0 %v1710
    %v1786 = vpop.f32.mrb[0].mxu0
    %v1787 = vadd.f32 %v1688, %v1786
    %v1788 = vpop.f32.mrb[0].mxu0
    %v1789 = vpop.f32.mrb[0].mxu0
    %v1790 = vadd.f32 %v1688, %v1789
    %v1791 = vpop.f32.mrb[0].mxu0
    %1792 = vmatprep.mubr.bf16.mxu0 0
    %1793 = vmatmul.mubr.bf16.gmra.mrb[0].mxu0 %v1713
    %v1794 = vpop.f32.mrb[0].mxu0
    %v1795 = vadd.f32 %v1688, %v1794
    %v1796 = vpop.f32.mrb[0].mxu0
    %v1797 = vpop.f32.mrb[0].mxu0
    %v1798 = vadd.f32 %v1688, %v1797
    %v1799 = vpop.f32.mrb[0].mxu0
    %1800 = vmatprep.mubr.bf16.mxu0 0
    %1801 = vmatmul.mubr.bf16.gmra.mrb[0].mxu0 %v1716
    %v1802 = vpop.f32.mrb[0].mxu0
    %v1803 = vadd.f32 %v1688, %v1802
    %v1804 = vpop.f32.mrb[0].mxu0
    %v1805 = vpop.f32.mrb[0].mxu0
    %v1806 = vadd.f32 %v1688, %v1805
    %v1807 = vpop.f32.mrb[0].mxu0
    %1808 = vmatprep.mubr.bf16.mxu0 0
    %1809 = vmatmul.mubr.bf16.gmra.mrb[0].mxu0 %v1719
    %v1810 = vpop.f32.mrb[0].mxu0
    %v1811 = vadd.f32 %v1688, %v1810
    %v1812 = vpop.f32.mrb[0].mxu0
    %v1813 = vpop.f32.mrb[0].mxu0
    %v1814 = vadd.f32 %v1688, %v1813
    %v1815 = vpop.f32.mrb[0].mxu0
    %1816 = vmatprep.mubr.bf16.mxu0 0
    %1817 = vmatmul.mubr.bf16.gmra.mrb[0].mxu0 %v1722
    %v1818 = vpop.f32.mrb[0].mxu0
    %v1819 = vadd.f32 %v1688, %v1818
    %v1820 = vpop.f32.mrb[0].mxu0
    %v1821 = vpop.f32.mrb[0].mxu0
    %v1822 = vadd.f32 %v1688, %v1821
    %v1823 = vpop.f32.mrb[0].mxu0
    %1824 = vdwg.mxu0
    %v1825 = vmax.f32 %v1763, 0.0
    %v1826 = vmax.f32 %v1766, 0.0
    %v1827 = vmax.f32 %v1771, 0.0
    %v1828 = vmax.f32 %v1774, 0.0
    %v1829 = vmax.f32 %v1779, 0.0
    %v1830 = vmax.f32 %v1782, 0.0
    %v1831 = vmax.f32 %v1787, 0.0
    %v1832 = vmax.f32 %v1790, 0.0
    %v1833 = vmax.f32 %v1795, 0.0
    %v1834 = vmax.f32 %v1798, 0.0
    %v1835 = vmax.f32 %v1803, 0.0
    %v1836 = vmax.f32 %v1806, 0.0
    %v1837 = vmax.f32 %v1811, 0.0
    %v1838 = vmax.f32 %v1814, 0.0
    %v1839 = vmax.f32 %v1819, 0.0
    %v1840 = vmax.f32 %v1822, 0.0
    %vm1841 = vcmask 392192
    %1842 = vst.msk [vmem:[#allocation2] sm:$0xff] %vm1841, %v1825
    %1843 = vst.msk [vmem:[#allocation2 + $0x30] sm:$0xff] %vm1841, %v1826
    %1844 = vst.msk [vmem:[#allocation2 + $0x60] sm:$0xff] %vm1841, %v1827
    %1845 = vst.msk [vmem:[#allocation2 + $0x90] sm:$0xff] %vm1841, %v1828
    %1846 = vst.msk [vmem:[#allocation2 + $0xc0] sm:$0xff] %vm1841, %v1829
    %1847 = vst.msk [vmem:[#allocation2 + $0xf0] sm:$0xff] %vm1841, %v1830
    %1848 = vst.msk [vmem:[#allocation2 + $0x120] sm:$0xff] %vm1841, %v1831
    %1849 = vst.msk [vmem:[#allocation2 + $0x150] sm:$0xff] %vm1841, %v1832
    %1850 = vst.msk [vmem:[#allocation2 + $0x180] sm:$0xff] %vm1841, %v1833
    %1851 = vst.msk [vmem:[#allocation2 + $0x1b0] sm:$0xff] %vm1841, %v1834
    %1852 = vst.msk [vmem:[#allocation2 + $0x1e0] sm:$0xff] %vm1841, %v1835
    %1853 = vst.msk [vmem:[#allocation2 + $0x210] sm:$0xff] %vm1841, %v1836
    %1854 = vst.msk [vmem:[#allocation2 + $0x240] sm:$0xff] %vm1841, %v1837
    %1855 = vst.msk [vmem:[#allocation2 + $0x270] sm:$0xff] %vm1841, %v1838
    %1856 = vst.msk [vmem:[#allocation2 + $0x2a0] sm:$0xff] %vm1841, %v1839
    %1857 = vst.msk [vmem:[#allocation2 + $0x2d0] sm:$0xff] %vm1841, %v1840
    %v1858 = vld [vmem:[#allocation2] sm:$0xff]
    %v1859 = vld [vmem:[#allocation2 + $0x30] sm:$0xff]
    %v1860 = vld [vmem:[#allocation2 + $0x60] sm:$0xff]
    %v1861 = vld [vmem:[#allocation2 + $0x90] sm:$0xff]
    %v1862 = vld [vmem:[#allocation2 + $0xc0] sm:$0xff]
    %v1863 = vld [vmem:[#allocation2 + $0xf0] sm:$0xff]
    %v1864 = vld [vmem:[#allocation2 + $0x120] sm:$0xff]
    %v1865 = vld [vmem:[#allocation2 + $0x150] sm:$0xff]
    %v1866 = vld [vmem:[#allocation2 + $0x180] sm:$0xff]
    %v1867 = vld [vmem:[#allocation2 + $0x1b0] sm:$0xff]
    %v1868 = vld [vmem:[#allocation2 + $0x1e0] sm:$0xff]
    %v1869 = vld [vmem:[#allocation2 + $0x210] sm:$0xff]
    %v1870 = vld [vmem:[#allocation2 + $0x240] sm:$0xff]
    %v1871 = vld [vmem:[#allocation2 + $0x270] sm:$0xff]
    %v1872 = vld [vmem:[#allocation2 + $0x2a0] sm:$0xff]
    %v1873 = vld [vmem:[#allocation2 + $0x2d0] sm:$0xff]
    %v1874 = vld [vmem:[#allocation13 + $0x4] sm:$0x1]
    %v1875 = vlaneseq
    %v1876 = vshrl.u32 %v1875, 7
    %v1877 = vsub.s32 0, %v1876
    %v1878 = vrot.slane %v1874, %v1877
    %v1879 = vmul.f32 %v1858, %v1878
    %v1880 = vmul.f32 %v1859, %v1878
    %v1881 = vmul.f32 %v1860, %v1878
    %v1882 = vmul.f32 %v1861, %v1878
    %v1883 = vmul.f32 %v1862, %v1878
    %v1884 = vmul.f32 %v1863, %v1878
    %v1885 = vmul.f32 %v1864, %v1878
    %v1886 = vmul.f32 %v1865, %v1878
    %v1887 = vmul.f32 %v1866, %v1878
    %v1888 = vmul.f32 %v1867, %v1878
    %v1889 = vmul.f32 %v1868, %v1878
    %v1890 = vmul.f32 %v1869, %v1878
    %v1891 = vmul.f32 %v1870, %v1878
    %v1892 = vmul.f32 %v1871, %v1878
    %v1893 = vmul.f32 %v1872, %v1878
    %v1894 = vmul.f32 %v1873, %v1878
    %v1895 = vrot.slane %v1858, 7
    %v1896 = vrot.slane %v1859, 7
    %v1897 = vrot.slane %v1860, 7
    %v1898 = vrot.slane %v1861, 7
    %v1899 = vrot.slane %v1862, 7
    %v1900 = vrot.slane %v1863, 7
    %v1901 = vrot.slane %v1864, 7
    %v1902 = vrot.slane %v1865, 7
    %v1903 = vrot.slane %v1866, 7
    %v1904 = vrot.slane %v1867, 7
    %v1905 = vrot.slane %v1868, 7
    %v1906 = vrot.slane %v1869, 7
    %v1907 = vrot.slane %v1870, 7
    %v1908 = vrot.slane %v1871, 7
    %v1909 = vrot.slane %v1872, 7
    %v1910 = vrot.slane %v1873, 7
    %v1911 = vsel %vm903, %v1909, %v1910
    %v1912 = vsel %vm903, %v1908, %v1909
    %v1913 = vsel %vm903, %v1907, %v1908
    %v1914 = vsel %vm903, %v1906, %v1907
    %v1915 = vsel %vm903, %v1905, %v1906
    %v1916 = vsel %vm903, %v1904, %v1905
    %v1917 = vsel %vm903, %v1903, %v1904
    %v1918 = vsel %vm903, %v1902, %v1903
    %v1919 = vsel %vm903, %v1901, %v1902
    %v1920 = vsel %vm903, %v1900, %v1901
    %v1921 = vsel %vm903, %v1899, %v1900
    %v1922 = vsel %vm903, %v1898, %v1899
    %v1923 = vsel %vm903, %v1897, %v1898
    %v1924 = vsel %vm903, %v1896, %v1897
    %v1925 = vsel %vm903, %v1895, %v1896
    %v1926 = vsel %vm903, %v1910, %v1895
    %v1927 = vsel %vm936, %v1911, 0.0
    %v1928 = vsel %vm937, %v1926, 0.0
    %v1929 = vsel %vm938, %v1925, 0.0
    %v1930 = vsel %vm939, %v1924, 0.0
    %v1931 = vsel %vm940, %v1923, 0.0
    %v1932 = vsel %vm941, %v1922, 0.0
    %v1933 = vsel %vm942, %v1921, 0.0
    %v1934 = vsel %vm943, %v1920, 0.0
    %v1935 = vsel %vm944, %v1919, 0.0
    %v1936 = vsel %vm945, %v1918, 0.0
    %v1937 = vsel %vm946, %v1917, 0.0
    %v1938 = vsel %vm947, %v1916, 0.0
    %v1939 = vsel %vm948, %v1915, 0.0
    %v1940 = vsel %vm949, %v1914, 0.0
    %v1941 = vsel %vm950, %v1913, 0.0
    %v1942 = vsel %vm951, %v1912, 0.0
    %v1943 = vld [vmem:[#allocation13] sm:$0x1]
    %v1944 = vlaneseq
    %v1945 = vshrl.u32 %v1944, 7
    %v1946 = vsub.s32 0, %v1945
    %v1947 = vrot.slane %v1943, %v1946
    %v1948 = vmul.f32 %v1927, %v1947
    %v1949 = vmul.f32 %v1928, %v1947
    %v1950 = vmul.f32 %v1929, %v1947
    %v1951 = vmul.f32 %v1930, %v1947
    %v1952 = vmul.f32 %v1931, %v1947
    %v1953 = vmul.f32 %v1932, %v1947
    %v1954 = vmul.f32 %v1933, %v1947
    %v1955 = vmul.f32 %v1934, %v1947
    %v1956 = vmul.f32 %v1935, %v1947
    %v1957 = vmul.f32 %v1936, %v1947
    %v1958 = vmul.f32 %v1937, %v1947
    %v1959 = vmul.f32 %v1938, %v1947
    %v1960 = vmul.f32 %v1939, %v1947
    %v1961 = vmul.f32 %v1940, %v1947
    %v1962 = vmul.f32 %v1941, %v1947
    %v1963 = vmul.f32 %v1942, %v1947
    %v1964 = vadd.f32 %v1879, %v1948
    %v1965 = vadd.f32 %v1880, %v1949
    %v1966 = vadd.f32 %v1881, %v1950
    %v1967 = vadd.f32 %v1882, %v1951
    %v1968 = vadd.f32 %v1883, %v1952
    %v1969 = vadd.f32 %v1884, %v1953
    %v1970 = vadd.f32 %v1885, %v1954
    %v1971 = vadd.f32 %v1886, %v1955
    %v1972 = vadd.f32 %v1887, %v1956
    %v1973 = vadd.f32 %v1888, %v1957
    %v1974 = vadd.f32 %v1889, %v1958
    %v1975 = vadd.f32 %v1890, %v1959
    %v1976 = vadd.f32 %v1891, %v1960
    %v1977 = vadd.f32 %v1892, %v1961
    %v1978 = vadd.f32 %v1893, %v1962
    %v1979 = vadd.f32 %v1894, %v1963
    %v1980 = vsel %vm1021, %v1873, 0.0
    %v1981 = vsel %vm1022, %v1858, 0.0
    %v1982 = vsel %vm1023, %v1859, 0.0
    %v1983 = vsel %vm1024, %v1860, 0.0
    %v1984 = vsel %vm1025, %v1861, 0.0
    %v1985 = vsel %vm1026, %v1862, 0.0
    %v1986 = vsel %vm1027, %v1863, 0.0
    %v1987 = vsel %vm1028, %v1864, 0.0
    %v1988 = vsel %vm1029, %v1865, 0.0
    %v1989 = vsel %vm1030, %v1866, 0.0
    %v1990 = vsel %vm1031, %v1867, 0.0
    %v1991 = vsel %vm1032, %v1868, 0.0
    %v1992 = vsel %vm1033, %v1869, 0.0
    %v1993 = vsel %vm1034, %v1870, 0.0
    %v1994 = vsel %vm1035, %v1871, 0.0
    %v1995 = vsel %vm1036, %v1872, 0.0
    %v1996 = vld [vmem:[#allocation13 + $0x1] sm:$0x1]
    %v1997 = vlaneseq
    %v1998 = vshrl.u32 %v1997, 7
    %v1999 = vsub.s32 0, %v1998
    %v2000 = vrot.slane %v1996, %v1999
    %v2001 = vmul.f32 %v1980, %v2000
    %v2002 = vmul.f32 %v1981, %v2000
    %v2003 = vmul.f32 %v1982, %v2000
    %v2004 = vmul.f32 %v1983, %v2000
    %v2005 = vmul.f32 %v1984, %v2000
    %v2006 = vmul.f32 %v1985, %v2000
    %v2007 = vmul.f32 %v1986, %v2000
    %v2008 = vmul.f32 %v1987, %v2000
    %v2009 = vmul.f32 %v1988, %v2000
    %v2010 = vmul.f32 %v1989, %v2000
    %v2011 = vmul.f32 %v1990, %v2000
    %v2012 = vmul.f32 %v1991, %v2000
    %v2013 = vmul.f32 %v1992, %v2000
    %v2014 = vmul.f32 %v1993, %v2000
    %v2015 = vmul.f32 %v1994, %v2000
    %v2016 = vmul.f32 %v1995, %v2000
    %v2017 = vadd.f32 %v1964, %v2001
    %v2018 = vadd.f32 %v1965, %v2002
    %v2019 = vadd.f32 %v1966, %v2003
    %v2020 = vadd.f32 %v1967, %v2004
    %v2021 = vadd.f32 %v1968, %v2005
    %v2022 = vadd.f32 %v1969, %v2006
    %v2023 = vadd.f32 %v1970, %v2007
    %v2024 = vadd.f32 %v1971, %v2008
    %v2025 = vadd.f32 %v1972, %v2009
    %v2026 = vadd.f32 %v1973, %v2010
    %v2027 = vadd.f32 %v1974, %v2011
    %v2028 = vadd.f32 %v1975, %v2012
    %v2029 = vadd.f32 %v1976, %v2013
    %v2030 = vadd.f32 %v1977, %v2014
    %v2031 = vadd.f32 %v1978, %v2015
    %v2032 = vadd.f32 %v1979, %v2016
    %v2033 = vrot.slane %v1858, 1
    %v2034 = vrot.slane %v1859, 1
    %v2035 = vrot.slane %v1860, 1
    %v2036 = vrot.slane %v1861, 1
    %v2037 = vrot.slane %v1862, 1
    %v2038 = vrot.slane %v1863, 1
    %v2039 = vrot.slane %v1864, 1
    %v2040 = vrot.slane %v1865, 1
    %v2041 = vrot.slane %v1866, 1
    %v2042 = vrot.slane %v1867, 1
    %v2043 = vrot.slane %v1868, 1
    %v2044 = vrot.slane %v1869, 1
    %v2045 = vrot.slane %v1870, 1
    %v2046 = vrot.slane %v1871, 1
    %v2047 = vrot.slane %v1872, 1
    %v2048 = vrot.slane %v1873, 1
    %v2049 = vsel %vm1106, %v2047, %v2048
    %v2050 = vsel %vm1106, %v2046, %v2047
    %v2051 = vsel %vm1106, %v2045, %v2046
    %v2052 = vsel %vm1106, %v2044, %v2045
    %v2053 = vsel %vm1106, %v2043, %v2044
    %v2054 = vsel %vm1106, %v2042, %v2043
    %v2055 = vsel %vm1106, %v2041, %v2042
    %v2056 = vsel %vm1106, %v2040, %v2041
    %v2057 = vsel %vm1106, %v2039, %v2040
    %v2058 = vsel %vm1106, %v2038, %v2039
    %v2059 = vsel %vm1106, %v2037, %v2038
    %v2060 = vsel %vm1106, %v2036, %v2037
    %v2061 = vsel %vm1106, %v2035, %v2036
    %v2062 = vsel %vm1106, %v2034, %v2035
    %v2063 = vsel %vm1106, %v2033, %v2034
    %v2064 = vsel %vm1106, %v2048, %v2033
    %v2065 = vsel %vm1139, %v2064, 0.0
    %v2066 = vsel %vm1140, %v2063, 0.0
    %v2067 = vsel %vm1141, %v2062, 0.0
    %v2068 = vsel %vm1142, %v2061, 0.0
    %v2069 = vsel %vm1143, %v2060, 0.0
    %v2070 = vsel %vm1144, %v2059, 0.0
    %v2071 = vsel %vm1145, %v2058, 0.0
    %v2072 = vsel %vm1146, %v2057, 0.0
    %v2073 = vsel %vm1147, %v2056, 0.0
    %v2074 = vsel %vm1148, %v2055, 0.0
    %v2075 = vsel %vm1149, %v2054, 0.0
    %v2076 = vsel %vm1150, %v2053, 0.0
    %v2077 = vsel %vm1151, %v2052, 0.0
    %v2078 = vsel %vm1152, %v2051, 0.0
    %v2079 = vsel %vm1153, %v2050, 0.0
    %v2080 = vsel %vm1154, %v2049, 0.0
    %v2081 = vld [vmem:[#allocation13 + $0x2] sm:$0x1]
    %v2082 = vlaneseq
    %v2083 = vshrl.u32 %v2082, 7
    %v2084 = vsub.s32 0, %v2083
    %v2085 = vrot.slane %v2081, %v2084
    %v2086 = vmul.f32 %v2065, %v2085
    %v2087 = vmul.f32 %v2066, %v2085
    %v2088 = vmul.f32 %v2067, %v2085
    %v2089 = vmul.f32 %v2068, %v2085
    %v2090 = vmul.f32 %v2069, %v2085
    %v2091 = vmul.f32 %v2070, %v2085
    %v2092 = vmul.f32 %v2071, %v2085
    %v2093 = vmul.f32 %v2072, %v2085
    %v2094 = vmul.f32 %v2073, %v2085
    %v2095 = vmul.f32 %v2074, %v2085
    %v2096 = vmul.f32 %v2075, %v2085
    %v2097 = vmul.f32 %v2076, %v2085
    %v2098 = vmul.f32 %v2077, %v2085
    %v2099 = vmul.f32 %v2078, %v2085
    %v2100 = vmul.f32 %v2079, %v2085
    %v2101 = vmul.f32 %v2080, %v2085
    %v2102 = vadd.f32 %v2017, %v2086
    %v2103 = vadd.f32 %v2018, %v2087
    %v2104 = vadd.f32 %v2019, %v2088
    %v2105 = vadd.f32 %v2020, %v2089
    %v2106 = vadd.f32 %v2021, %v2090
    %v2107 = vadd.f32 %v2022, %v2091
    %v2108 = vadd.f32 %v2023, %v2092
    %v2109 = vadd.f32 %v2024, %v2093
    %v2110 = vadd.f32 %v2025, %v2094
    %v2111 = vadd.f32 %v2026, %v2095
    %v2112 = vadd.f32 %v2027, %v2096
    %v2113 = vadd.f32 %v2028, %v2097
    %v2114 = vadd.f32 %v2029, %v2098
    %v2115 = vadd.f32 %v2030, %v2099
    %v2116 = vadd.f32 %v2031, %v2100
    %v2117 = vadd.f32 %v2032, %v2101
    %v2118 = vsel %vm1224, %v1926, 0.0
    %v2119 = vsel %vm1225, %v1925, 0.0
    %v2120 = vsel %vm1226, %v1924, 0.0
    %v2121 = vsel %vm1227, %v1923, 0.0
    %v2122 = vsel %vm1228, %v1922, 0.0
    %v2123 = vsel %vm1229, %v1921, 0.0
    %v2124 = vsel %vm1230, %v1920, 0.0
    %v2125 = vsel %vm1231, %v1919, 0.0
    %v2126 = vsel %vm1232, %v1918, 0.0
    %v2127 = vsel %vm1233, %v1917, 0.0
    %v2128 = vsel %vm1234, %v1916, 0.0
    %v2129 = vsel %vm1235, %v1915, 0.0
    %v2130 = vsel %vm1236, %v1914, 0.0
    %v2131 = vsel %vm1237, %v1913, 0.0
    %v2132 = vsel %vm1238, %v1912, 0.0
    %v2133 = vsel %vm1239, %v1911, 0.0
    %v2134 = vld [vmem:[#allocation13 + $0x3] sm:$0x1]
    %v2135 = vlaneseq
    %v2136 = vshrl.u32 %v2135, 7
    %v2137 = vsub.s32 0, %v2136
    %v2138 = vrot.slane %v2134, %v2137
    %v2139 = vmul.f32 %v2118, %v2138
    %v2140 = vmul.f32 %v2119, %v2138
    %v2141 = vmul.f32 %v2120, %v2138
    %v2142 = vmul.f32 %v2121, %v2138
    %v2143 = vmul.f32 %v2122, %v2138
    %v2144 = vmul.f32 %v2123, %v2138
    %v2145 = vmul.f32 %v2124, %v2138
    %v2146 = vmul.f32 %v2125, %v2138
    %v2147 = vmul.f32 %v2126, %v2138
    %v2148 = vmul.f32 %v2127, %v2138
    %v2149 = vmul.f32 %v2128, %v2138
    %v2150 = vmul.f32 %v2129, %v2138
    %v2151 = vmul.f32 %v2130, %v2138
    %v2152 = vmul.f32 %v2131, %v2138
    %v2153 = vmul.f32 %v2132, %v2138
    %v2154 = vmul.f32 %v2133, %v2138
    %v2155 = vadd.f32 %v2102, %v2139
    %v2156 = vadd.f32 %v2103, %v2140
    %v2157 = vadd.f32 %v2104, %v2141
    %v2158 = vadd.f32 %v2105, %v2142
    %v2159 = vadd.f32 %v2106, %v2143
    %v2160 = vadd.f32 %v2107, %v2144
    %v2161 = vadd.f32 %v2108, %v2145
    %v2162 = vadd.f32 %v2109, %v2146
    %v2163 = vadd.f32 %v2110, %v2147
    %v2164 = vadd.f32 %v2111, %v2148
    %v2165 = vadd.f32 %v2112, %v2149
    %v2166 = vadd.f32 %v2113, %v2150
    %v2167 = vadd.f32 %v2114, %v2151
    %v2168 = vadd.f32 %v2115, %v2152
    %v2169 = vadd.f32 %v2116, %v2153
    %v2170 = vadd.f32 %v2117, %v2154
    %v2171 = vsel %vm1309, %v2063, 0.0
    %v2172 = vsel %vm1310, %v2062, 0.0
    %v2173 = vsel %vm1311, %v2061, 0.0
    %v2174 = vsel %vm1312, %v2060, 0.0
    %v2175 = vsel %vm1313, %v2059, 0.0
    %v2176 = vsel %vm1314, %v2058, 0.0
    %v2177 = vsel %vm1315, %v2057, 0.0
    %v2178 = vsel %vm1316, %v2056, 0.0
    %v2179 = vsel %vm1317, %v2055, 0.0
    %v2180 = vsel %vm1318, %v2054, 0.0
    %v2181 = vsel %vm1319, %v2053, 0.0
    %v2182 = vsel %vm1320, %v2052, 0.0
    %v2183 = vsel %vm1321, %v2051, 0.0
    %v2184 = vsel %vm1322, %v2050, 0.0
    %v2185 = vsel %vm1323, %v2049, 0.0
    %v2186 = vsel %vm1324, %v2064, 0.0
    %v2187 = vld [vmem:[#allocation13 + $0x5] sm:$0x1]
    %v2188 = vlaneseq
    %v2189 = vshrl.u32 %v2188, 7
    %v2190 = vsub.s32 0, %v2189
    %v2191 = vrot.slane %v2187, %v2190
    %v2192 = vmul.f32 %v2171, %v2191
    %v2193 = vmul.f32 %v2172, %v2191
    %v2194 = vmul.f32 %v2173, %v2191
    %v2195 = vmul.f32 %v2174, %v2191
    %v2196 = vmul.f32 %v2175, %v2191
    %v2197 = vmul.f32 %v2176, %v2191
    %v2198 = vmul.f32 %v2177, %v2191
    %v2199 = vmul.f32 %v2178, %v2191
    %v2200 = vmul.f32 %v2179, %v2191
    %v2201 = vmul.f32 %v2180, %v2191
    %v2202 = vmul.f32 %v2181, %v2191
    %v2203 = vmul.f32 %v2182, %v2191
    %v2204 = vmul.f32 %v2183, %v2191
    %v2205 = vmul.f32 %v2184, %v2191
    %v2206 = vmul.f32 %v2185, %v2191
    %v2207 = vmul.f32 %v2186, %v2191
    %v2208 = vadd.f32 %v2155, %v2192
    %v2209 = vadd.f32 %v2156, %v2193
    %v2210 = vadd.f32 %v2157, %v2194
    %v2211 = vadd.f32 %v2158, %v2195
    %v2212 = vadd.f32 %v2159, %v2196
    %v2213 = vadd.f32 %v2160, %v2197
    %v2214 = vadd.f32 %v2161, %v2198
    %v2215 = vadd.f32 %v2162, %v2199
    %v2216 = vadd.f32 %v2163, %v2200
    %v2217 = vadd.f32 %v2164, %v2201
    %v2218 = vadd.f32 %v2165, %v2202
    %v2219 = vadd.f32 %v2166, %v2203
    %v2220 = vadd.f32 %v2167, %v2204
    %v2221 = vadd.f32 %v2168, %v2205
    %v2222 = vadd.f32 %v2169, %v2206
    %v2223 = vadd.f32 %v2170, %v2207
    %v2224 = vsel %vm1394, %v1925, 0.0
    %v2225 = vsel %vm1395, %v1924, 0.0
    %v2226 = vsel %vm1396, %v1923, 0.0
    %v2227 = vsel %vm1397, %v1922, 0.0
    %v2228 = vsel %vm1398, %v1921, 0.0
    %v2229 = vsel %vm1399, %v1920, 0.0
    %v2230 = vsel %vm1400, %v1919, 0.0
    %v2231 = vsel %vm1401, %v1918, 0.0
    %v2232 = vsel %vm1402, %v1917, 0.0
    %v2233 = vsel %vm1403, %v1916, 0.0
    %v2234 = vsel %vm1404, %v1915, 0.0
    %v2235 = vsel %vm1405, %v1914, 0.0
    %v2236 = vsel %vm1406, %v1913, 0.0
    %v2237 = vsel %vm1407, %v1912, 0.0
    %v2238 = vsel %vm1408, %v1911, 0.0
    %v2239 = vsel %vm1409, %v1926, 0.0
    %v2240 = vld [vmem:[#allocation13 + $0x6] sm:$0x1]
    %v2241 = vlaneseq
    %v2242 = vshrl.u32 %v2241, 7
    %v2243 = vsub.s32 0, %v2242
    %v2244 = vrot.slane %v2240, %v2243
    %v2245 = vmul.f32 %v2224, %v2244
    %v2246 = vmul.f32 %v2225, %v2244
    %v2247 = vmul.f32 %v2226, %v2244
    %v2248 = vmul.f32 %v2227, %v2244
    %v2249 = vmul.f32 %v2228, %v2244
    %v2250 = vmul.f32 %v2229, %v2244
    %v2251 = vmul.f32 %v2230, %v2244
    %v2252 = vmul.f32 %v2231, %v2244
    %v2253 = vmul.f32 %v2232, %v2244
    %v2254 = vmul.f32 %v2233, %v2244
    %v2255 = vmul.f32 %v2234, %v2244
    %v2256 = vmul.f32 %v2235, %v2244
    %v2257 = vmul.f32 %v2236, %v2244
    %v2258 = vmul.f32 %v2237, %v2244
    %v2259 = vmul.f32 %v2238, %v2244
    %v2260 = vmul.f32 %v2239, %v2244
    %v2261 = vadd.f32 %v2208, %v2245
    %v2262 = vadd.f32 %v2209, %v2246
    %v2263 = vadd.f32 %v2210, %v2247
    %v2264 = vadd.f32 %v2211, %v2248
    %v2265 = vadd.f32 %v2212, %v2249
    %v2266 = vadd.f32 %v2213, %v2250
    %v2267 = vadd.f32 %v2214, %v2251
    %v2268 = vadd.f32 %v2215, %v2252
    %v2269 = vadd.f32 %v2216, %v2253
    %v2270 = vadd.f32 %v2217, %v2254
    %v2271 = vadd.f32 %v2218, %v2255
    %v2272 = vadd.f32 %v2219, %v2256
    %v2273 = vadd.f32 %v2220, %v2257
    %v2274 = vadd.f32 %v2221, %v2258
    %v2275 = vadd.f32 %v2222, %v2259
    %v2276 = vadd.f32 %v2223, %v2260
    %v2277 = vsel %vm1479, %v1859, 0.0
    %v2278 = vsel %vm1480, %v1860, 0.0
    %v2279 = vsel %vm1481, %v1861, 0.0
    %v2280 = vsel %vm1482, %v1862, 0.0
    %v2281 = vsel %vm1483, %v1863, 0.0
    %v2282 = vsel %vm1484, %v1864, 0.0
    %v2283 = vsel %vm1485, %v1865, 0.0
    %v2284 = vsel %vm1486, %v1866, 0.0
    %v2285 = vsel %vm1487, %v1867, 0.0
    %v2286 = vsel %vm1488, %v1868, 0.0
    %v2287 = vsel %vm1489, %v1869, 0.0
    %v2288 = vsel %vm1490, %v1870, 0.0
    %v2289 = vsel %vm1491, %v1871, 0.0
    %v2290 = vsel %vm1492, %v1872, 0.0
    %v2291 = vsel %vm1493, %v1873, 0.0
    %v2292 = vsel %vm1494, %v1858, 0.0
    %v2293 = vld [vmem:[#allocation13 + $0x7] sm:$0x1]
    %v2294 = vlaneseq
    %v2295 = vshrl.u32 %v2294, 7
    %v2296 = vsub.s32 0, %v2295
    %v2297 = vrot.slane %v2293, %v2296
    %v2298 = vmul.f32 %v2277, %v2297
    %v2299 = vmul.f32 %v2278, %v2297
    %v2300 = vmul.f32 %v2279, %v2297
    %v2301 = vmul.f32 %v2280, %v2297
    %v2302 = vmul.f32 %v2281, %v2297
    %v2303 = vmul.f32 %v2282, %v2297
    %v2304 = vmul.f32 %v2283, %v2297
    %v2305 = vmul.f32 %v2284, %v2297
    %v2306 = vmul.f32 %v2285, %v2297
    %v2307 = vmul.f32 %v2286, %v2297
    %v2308 = vmul.f32 %v2287, %v2297
    %v2309 = vmul.f32 %v2288, %v2297
    %v2310 = vmul.f32 %v2289, %v2297
    %v2311 = vmul.f32 %v2290, %v2297
    %v2312 = vmul.f32 %v2291, %v2297
    %v2313 = vmul.f32 %v2292, %v2297
    %v2314 = vadd.f32 %v2261, %v2298
    %v2315 = vadd.f32 %v2262, %v2299
    %v2316 = vadd.f32 %v2263, %v2300
    %v2317 = vadd.f32 %v2264, %v2301
    %v2318 = vadd.f32 %v2265, %v2302
    %v2319 = vadd.f32 %v2266, %v2303
    %v2320 = vadd.f32 %v2267, %v2304
    %v2321 = vadd.f32 %v2268, %v2305
    %v2322 = vadd.f32 %v2269, %v2306
    %v2323 = vadd.f32 %v2270, %v2307
    %v2324 = vadd.f32 %v2271, %v2308
    %v2325 = vadd.f32 %v2272, %v2309
    %v2326 = vadd.f32 %v2273, %v2310
    %v2327 = vadd.f32 %v2274, %v2311
    %v2328 = vadd.f32 %v2275, %v2312
    %v2329 = vadd.f32 %v2276, %v2313
    %v2330 = vsel %vm1564, %v2062, 0.0
    %v2331 = vsel %vm1565, %v2061, 0.0
    %v2332 = vsel %vm1566, %v2060, 0.0
    %v2333 = vsel %vm1567, %v2059, 0.0
    %v2334 = vsel %vm1568, %v2058, 0.0
    %v2335 = vsel %vm1569, %v2057, 0.0
    %v2336 = vsel %vm1570, %v2056, 0.0
    %v2337 = vsel %vm1571, %v2055, 0.0
    %v2338 = vsel %vm1572, %v2054, 0.0
    %v2339 = vsel %vm1573, %v2053, 0.0
    %v2340 = vsel %vm1574, %v2052, 0.0
    %v2341 = vsel %vm1575, %v2051, 0.0
    %v2342 = vsel %vm1576, %v2050, 0.0
    %v2343 = vsel %vm1577, %v2049, 0.0
    %v2344 = vsel %vm1578, %v2064, 0.0
    %v2345 = vsel %vm1579, %v2063, 0.0
    %v2346 = vld [vmem:[#allocation13 + $0x8] sm:$0x1]
    %v2347 = vlaneseq
    %v2348 = vshrl.u32 %v2347, 7
    %v2349 = vsub.s32 0, %v2348
    %v2350 = vrot.slane %v2346, %v2349
    %v2351 = vmul.f32 %v2330, %v2350
    %v2352 = vmul.f32 %v2331, %v2350
    %v2353 = vmul.f32 %v2332, %v2350
    %v2354 = vmul.f32 %v2333, %v2350
    %v2355 = vmul.f32 %v2334, %v2350
    %v2356 = vmul.f32 %v2335, %v2350
    %v2357 = vmul.f32 %v2336, %v2350
    %v2358 = vmul.f32 %v2337, %v2350
    %v2359 = vmul.f32 %v2338, %v2350
    %v2360 = vmul.f32 %v2339, %v2350
    %v2361 = vmul.f32 %v2340, %v2350
    %v2362 = vmul.f32 %v2341, %v2350
    %v2363 = vmul.f32 %v2342, %v2350
    %v2364 = vmul.f32 %v2343, %v2350
    %v2365 = vmul.f32 %v2344, %v2350
    %v2366 = vmul.f32 %v2345, %v2350
    %v2367 = vadd.f32 %v2314, %v2351
    %v2368 = vadd.f32 %v2315, %v2352
    %v2369 = vadd.f32 %v2316, %v2353
    %v2370 = vadd.f32 %v2317, %v2354
    %v2371 = vadd.f32 %v2318, %v2355
    %v2372 = vadd.f32 %v2319, %v2356
    %v2373 = vadd.f32 %v2320, %v2357
    %v2374 = vadd.f32 %v2321, %v2358
    %v2375 = vadd.f32 %v2322, %v2359
    %v2376 = vadd.f32 %v2323, %v2360
    %v2377 = vadd.f32 %v2324, %v2361
    %v2378 = vadd.f32 %v2325, %v2362
    %v2379 = vadd.f32 %v2326, %v2363
    %v2380 = vadd.f32 %v2327, %v2364
    %v2381 = vadd.f32 %v2328, %v2365
    %v2382 = vadd.f32 %v2329, %v2366
    %v2383 = vld [vmem:[#allocation15] sm:$0x1]
    %v2385 = vlaneseq
    %v2386 = vshrl.u32 %v2385, 7
    %v2387 = vsub.s32 0, %v2386
    %v2388 = vrot.slane %v2383, %v2387
    %v2390 = vadd.f32 %v2367, %v2388
    %v2391 = vadd.f32 %v2368, %v2388
    %v2392 = vadd.f32 %v2369, %v2388
    %v2393 = vadd.f32 %v2370, %v2388
    %v2394 = vadd.f32 %v2371, %v2388
    %v2395 = vadd.f32 %v2372, %v2388
    %v2396 = vadd.f32 %v2373, %v2388
    %v2397 = vadd.f32 %v2374, %v2388
    %v2398 = vadd.f32 %v2375, %v2388
    %v2399 = vadd.f32 %v2376, %v2388
    %v2400 = vadd.f32 %v2377, %v2388
    %v2401 = vadd.f32 %v2378, %v2388
    %v2402 = vadd.f32 %v2379, %v2388
    %v2403 = vadd.f32 %v2380, %v2388
    %v2404 = vadd.f32 %v2381, %v2388
    %v2405 = vadd.f32 %v2382, %v2388
    %v2406 = vmax.f32 %v2390, 0.0
    %v2407 = vmax.f32 %v2391, 0.0
    %v2408 = vmax.f32 %v2392, 0.0
    %v2409 = vmax.f32 %v2393, 0.0
    %v2410 = vmax.f32 %v2394, 0.0
    %v2411 = vmax.f32 %v2395, 0.0
    %v2412 = vmax.f32 %v2396, 0.0
    %v2413 = vmax.f32 %v2397, 0.0
    %v2414 = vmax.f32 %v2398, 0.0
    %v2415 = vmax.f32 %v2399, 0.0
    %v2416 = vmax.f32 %v2400, 0.0
    %v2417 = vmax.f32 %v2401, 0.0
    %v2418 = vmax.f32 %v2402, 0.0
    %v2419 = vmax.f32 %v2403, 0.0
    %v2420 = vmax.f32 %v2404, 0.0
    %v2421 = vmax.f32 %v2405, 0.0
    %v2422 = vpack.c.bf16 %v2407, %v2406
    %v2423 = vpack.c.bf16 %v2409, %v2408
    %v2424 = vpack.c.bf16 %v2411, %v2410
    %v2425 = vpack.c.bf16 %v2413, %v2412
    %v2426 = vpack.c.bf16 %v2415, %v2414
    %v2427 = vpack.c.bf16 %v2417, %v2416
    %v2428 = vpack.c.bf16 %v2419, %v2418
    %v2429 = vpack.c.bf16 %v2421, %v2420
    %v2430 = vld [vmem:[#allocation4] sm:$0xf]
    %v2431 = vld [vmem:[#allocation4 + $0x4] sm:$0xf]
    %v2432 = vld [vmem:[#allocation4 + $0x8] sm:$0xf]
    %v2433 = vld [vmem:[#allocation4 + $0xc] sm:$0xf]
    %v2438 = vunpack.c.l.b16 %v2430
    %v2439 = vunpack.c.l.b16 %v2431
    %v2440 = vunpack.c.l.b16 %v2432
    %v2441 = vunpack.c.l.b16 %v2433
    %v2442 = vpack.c.b16 %v2439, %v2438
    %v2443 = vpack.c.b16 %v2441, %v2440
    %2446 = vmatprep.subr.bf16.mxu0 0
    %2447 = vmatpush1.bf16.msra.mxu0 %v2422
    %2448 = vmatprep.subr.bf16.mxu0 0
    %2449 = vmatpush1.bf16.msra.mxu0 %v2423
    %2450 = vmatprep.subr.bf16.mxu0 0
    %2451 = vmatpush1.bf16.msra.mxu0 %v2424
    %2452 = vmatprep.subr.bf16.mxu0 0
    %2453 = vmatpush1.bf16.msra.mxu0 %v2425
    %2454 = vmatprep.subr.bf16.mxu0 0
    %2455 = vmatpush1.bf16.msra.mxu0 %v2426
    %2456 = vmatprep.subr.bf16.mxu0 0
    %2457 = vmatpush1.bf16.msra.mxu0 %v2427
    %2458 = vmatprep.subr.bf16.mxu0 0
    %2459 = vmatpush1.bf16.msra.mxu0 %v2428
    %2460 = vmatprep.subr.bf16.mxu0 0
    %2461 = vmatpush1.bf16.msra.mxu0 %v2429
    %2462 = vmatprep.subr.bf16.mxu0 0
    %2463 = vmatpush1.bf16.msra.mxu0 0
    %2464 = vmatprep.subr.bf16.mxu0 0
    %2465 = vmatpush1.bf16.msra.mxu0 0
    %2466 = vmatprep.subr.bf16.mxu0 0
    %2467 = vmatpush1.bf16.msra.mxu0 0
    %2468 = vmatprep.subr.bf16.mxu0 0
    %2469 = vmatpush1.bf16.msra.mxu0 0
    %2470 = vmatprep.subr.bf16.mxu0 0
    %2471 = vmatpush1.bf16.msra.mxu0 0
    %2472 = vmatprep.subr.bf16.mxu0 0
    %2473 = vmatpush1.bf16.msra.mxu0 0
    %2474 = vmatprep.subr.bf16.mxu0 0
    %2475 = vmatpush1.bf16.msra.mxu0 0
    %2476 = vmatprep.subr.bf16.mxu0 0
    %2477 = vmatpush1.bf16.msra.mxu0 0
    %2478 = vmatprep.mubr.bf16.mxu0 0
    %2479 = vmatmul.mubr.bf16.gmra.mrb[0].mxu0 %v2442
    %v2480 = vpop.f32.mrb[0].mxu0
    %v2481 = vadd.f32 0.0, %v2480
    %v2482 = vpop.f32.mrb[0].mxu0
    %v2483 = vpop.f32.mrb[0].mxu0
    %v2484 = vadd.f32 0.0, %v2483
    %v2485 = vpop.f32.mrb[0].mxu0
    %2486 = vmatprep.mubr.bf16.mxu0 0
    %2487 = vmatmul.mubr.bf16.gmra.mrb[0].mxu0 %v2443
    %v2488 = vpop.f32.mrb[0].mxu0
    %v2489 = vadd.f32 0.0, %v2488
    %v2490 = vpop.f32.mrb[0].mxu0
    %v2491 = vpop.f32.mrb[0].mxu0
    %v2492 = vadd.f32 0.0, %v2491
    %v2493 = vpop.f32.mrb[0].mxu0
    %2494 = vdwg.mxu0
    %v2495 = vpack.c.bf16 %v2484, %v2481
    %v2496 = vpack.c.bf16 %v2492, %v2489
    %v2497 = vld [vmem:[#allocation16] sm:$0xf]
    %v2498 = vld [vmem:[#allocation16 + $0x4] sm:$0xf]
    %v2499 = vld [vmem:[#allocation16 + $0x8] sm:$0xf]
    %v2500 = vld [vmem:[#allocation16 + $0xc] sm:$0xf]
    %v2501 = vld [vmem:[#allocation16 + $0x10] sm:$0xf]
    %v2502 = vld [vmem:[#allocation16 + $0x14] sm:$0xf]
    %v2503 = vld [vmem:[#allocation18] sm:$0x1]
    %v2505 = vlaneseq
    %v2506 = vshrl.u32 %v2505, 7
    %v2507 = vsub.s32 0, %v2506
    %v2508 = vrot.slane %v2503, %v2507
    %v2516 = vunpack.c.l.b16 %v2497
    %v2517 = vunpack.c.l.b16 %v2498
    %v2518 = vunpack.c.l.b16 %v2499
    %v2519 = vunpack.c.l.b16 %v2500
    %v2520 = vunpack.c.l.b16 %v2501
    %v2521 = vunpack.c.l.b16 %v2502
    %v2522 = vpack.c.b16 %v2517, %v2516
    %v2523 = vpack.c.b16 %v2519, %v2518
    %v2524 = vpack.c.b16 %v2521, %v2520
    %v2529 = vsel %vm1841, %v2495, 0
    %v2532 = vsel %vm1841, %v2496, 0
    %2534 = vmatprep.subr.bf16.mxu0 0
    %2535 = vmatpush1.bf16.msra.mxu0 %v2522
    %2536 = vmatprep.subr.bf16.mxu0 0
    %2537 = vmatpush1.bf16.msra.mxu0 %v2523
    %2538 = vmatprep.subr.bf16.mxu0 0
    %2539 = vmatpush1.bf16.msra.mxu0 %v2524
    %2540 = vmatprep.subr.bf16.mxu0 0
    %2541 = vmatpush1.bf16.msra.mxu0 0
    %2542 = vmatprep.subr.bf16.mxu0 0
    %2543 = vmatpush1.bf16.msra.mxu0 0
    %2544 = vmatprep.subr.bf16.mxu0 0
    %2545 = vmatpush1.bf16.msra.mxu0 0
    %2546 = vmatprep.subr.bf16.mxu0 0
    %2547 = vmatpush1.bf16.msra.mxu0 0
    %2548 = vmatprep.subr.bf16.mxu0 0
    %2549 = vmatpush1.bf16.msra.mxu0 0
    %2550 = vmatprep.subr.bf16.mxu0 0
    %2551 = vmatpush1.bf16.msra.mxu0 0
    %2552 = vmatprep.subr.bf16.mxu0 0
    %2553 = vmatpush1.bf16.msra.mxu0 0
    %2554 = vmatprep.subr.bf16.mxu0 0
    %2555 = vmatpush1.bf16.msra.mxu0 0
    %2556 = vmatprep.subr.bf16.mxu0 0
    %2557 = vmatpush1.bf16.msra.mxu0 0
    %2558 = vmatprep.subr.bf16.mxu0 0
    %2559 = vmatpush1.bf16.msra.mxu0 0
    %2560 = vmatprep.subr.bf16.mxu0 0
    %2561 = vmatpush1.bf16.msra.mxu0 0
    %2562 = vmatprep.subr.bf16.mxu0 0
    %2563 = vmatpush1.bf16.msra.mxu0 0
    %2564 = vmatprep.subr.bf16.mxu0 0
    %2565 = vmatpush1.bf16.msra.mxu0 0
    %2566 = vmatprep.mubr.bf16.mxu0 0
    %2567 = vmatmul.mubr.bf16.gmra.mrb[0].mxu0 %v2529
    %v2568 = vpop.f32.mrb[0].mxu0
    %v2569 = vadd.f32 %v2508, %v2568
    %v2570 = vpop.f32.mrb[0].mxu0
    %v2571 = vpop.f32.mrb[0].mxu0
    %v2572 = vadd.f32 %v2508, %v2571
    %v2573 = vpop.f32.mrb[0].mxu0
    %2574 = vmatprep.mubr.bf16.mxu0 0
    %2575 = vmatmul.mubr.bf16.gmra.mrb[0].mxu0 %v2532
    %v2576 = vpop.f32.mrb[0].mxu0
    %v2577 = vadd.f32 %v2508, %v2576
    %v2578 = vpop.f32.mrb[0].mxu0
    %v2579 = vpop.f32.mrb[0].mxu0
    %v2580 = vadd.f32 %v2508, %v2579
    %v2581 = vpop.f32.mrb[0].mxu0
    %2582 = vdwg.mxu0
    %v2583 = vmax.f32 %v2569, 0.0
    %v2584 = vmax.f32 %v2572, 0.0
    %v2585 = vmax.f32 %v2577, 0.0
    %v2586 = vmax.f32 %v2580, 0.0
    %vm2587 = vcmask 785408
    %2588 = vst.msk [vmem:[#allocation3] sm:$0xff] %vm2587, %v2583
    %2589 = vst.msk [vmem:[#allocation3 + $0x30] sm:$0xff] %vm2587, %v2584
    %2590 = vst.msk [vmem:[#allocation3 + $0x60] sm:$0xff] %vm2587, %v2585
    %2591 = vst.msk [vmem:[#allocation3 + $0x90] sm:$0xff] %vm2587, %v2586
    %v2592 = vld [vmem:[#allocation3] sm:$0xff]
    %v2593 = vld [vmem:[#allocation3 + $0x30] sm:$0xff]
    %v2594 = vld [vmem:[#allocation3 + $0x60] sm:$0xff]
    %v2595 = vld [vmem:[#allocation3 + $0x90] sm:$0xff]
    %v2596 = vand.u32 %v690, 15
    %v2597 = vand.u32 %v691, 15
    %v2598 = vand.u32 %v692, 15
    %v2599 = vand.u32 %v693, 15
    %v2600 = vand.u32 %v2596, 3
    %v2601 = vand.u32 %v2597, 3
    %v2602 = vand.u32 %v2598, 3
    %v2603 = vand.u32 %v2599, 3
    %vm2604 = vcmp.ge.s32.totalorder %v2596, 4
    %vm2605 = vcmp.ge.s32.totalorder %v2597, 4
    %vm2606 = vcmp.ge.s32.totalorder %v2598, 4
    %vm2607 = vcmp.ge.s32.totalorder %v2599, 4
    %vm2608 = vcmp.ge.s32.totalorder %v2600, 1
    %vm2609 = vcmp.ge.s32.totalorder %v2601, 1
    %vm2610 = vcmp.ge.s32.totalorder %v2602, 1
    %vm2611 = vcmp.ge.s32.totalorder %v2603, 1
    %vm2612 = vmand %vm2604, %vm2608
    %vm2613 = vmand %vm2605, %vm2609
    %vm2614 = vmand %vm2606, %vm2610
    %vm2615 = vmand %vm2607, %vm2611
    %vm2616 = vcmp.le.s32.totalorder %v2600, 2
    %vm2617 = vcmp.le.s32.totalorder %v2601, 2
    %vm2618 = vcmp.le.s32.totalorder %v2602, 2
    %vm2619 = vcmp.le.s32.totalorder %v2603, 2
    %vm2620 = vmand %vm2604, %vm2616
    %vm2621 = vmand %vm2605, %vm2617
    %vm2622 = vmand %vm2606, %vm2618
    %vm2623 = vmand %vm2607, %vm2619
    %vm2624 = vcmp.lt.s32.totalorder %v2596, 12
    %vm2625 = vcmp.lt.s32.totalorder %v2597, 12
    %vm2626 = vcmp.lt.s32.totalorder %v2598, 12
    %vm2627 = vcmp.lt.s32.totalorder %v2599, 12
    %vm2628 = vmand %vm2624, %vm2608
    %vm2629 = vmand %vm2625, %vm2609
    %vm2630 = vmand %vm2626, %vm2610
    %vm2631 = vmand %vm2627, %vm2611
    %vm2632 = vmand %vm2624, %vm2616
    %vm2633 = vmand %vm2625, %vm2617
    %vm2634 = vmand %vm2626, %vm2618
    %vm2635 = vmand %vm2627, %vm2619
    %v2636 = vld [vmem:[#allocation19 + $0x4] sm:$0x1]
    %v2637 = vlaneseq
    %v2638 = vshrl.u32 %v2637, 7
    %v2639 = vsub.s32 0, %v2638
    %v2640 = vrot.slane %v2636, %v2639
    %v2641 = vmul.f32 %v2592, %v2640
    %v2642 = vmul.f32 %v2593, %v2640
    %v2643 = vmul.f32 %v2594, %v2640
    %v2644 = vmul.f32 %v2595, %v2640
    %v2645 = vrot.slane %v2592, 3
    %v2646 = vrot.slane %v2593, 3
    %v2647 = vrot.slane %v2594, 3
    %v2648 = vrot.slane %v2595, 3
    %vm2649 = vcmp.lt.s32.totalorder %v690, 5
    %v2650 = vsel %vm2649, %v2647, %v2648
    %v2651 = vsel %vm2649, %v2646, %v2647
    %v2652 = vsel %vm2649, %v2645, %v2646
    %v2653 = vsel %vm2649, %v2648, %v2645
    %v2654 = vsel %vm2612, 1, 0
    %v2655 = vsel %vm2613, 1, 0
    %v2656 = vsel %vm2614, 1, 0
    %v2657 = vsel %vm2615, 1, 0
    %vm2658 = vcmp.eq.s32.totalorder %v2654, 1
    %vm2659 = vcmp.eq.s32.totalorder %v2655, 1
    %vm2660 = vcmp.eq.s32.totalorder %v2656, 1
    %vm2661 = vcmp.eq.s32.totalorder %v2657, 1
    %v2662 = vsel %vm2658, %v2653, 0.0
    %v2663 = vsel %vm2659, %v2652, 0.0
    %v2664 = vsel %vm2660, %v2651, 0.0
    %v2665 = vsel %vm2661, %v2650, 0.0
    %v2666 = vld [vmem:[#allocation19] sm:$0x1]
    %v2667 = vlaneseq
    %v2668 = vshrl.u32 %v2667, 7
    %v2669 = vsub.s32 0, %v2668
    %v2670 = vrot.slane %v2666, %v2669
    %v2671 = vmul.f32 %v2662, %v2670
    %v2672 = vmul.f32 %v2663, %v2670
    %v2673 = vmul.f32 %v2664, %v2670
    %v2674 = vmul.f32 %v2665, %v2670
    %v2675 = vadd.f32 %v2641, %v2671
    %v2676 = vadd.f32 %v2642, %v2672
    %v2677 = vadd.f32 %v2643, %v2673
    %v2678 = vadd.f32 %v2644, %v2674
    %v2679 = vrot.slane %v2592, 4
    %v2680 = vrot.slane %v2593, 4
    %v2681 = vrot.slane %v2594, 4
    %v2682 = vrot.slane %v2595, 4
    %vm2683 = vcmp.lt.s32.totalorder %v690, 4
    %v2684 = vsel %vm2683, %v2681, %v2682
    %v2685 = vsel %vm2683, %v2680, %v2681
    %v2686 = vsel %vm2683, %v2679, %v2680
    %v2687 = vsel %vm2683, %v2682, %v2679
    %v2688 = vsel %vm2604, 1, 0
    %v2689 = vsel %vm2605, 1, 0
    %v2690 = vsel %vm2606, 1, 0
    %v2691 = vsel %vm2607, 1, 0
    %vm2692 = vcmp.eq.s32.totalorder %v2688, 1
    %vm2693 = vcmp.eq.s32.totalorder %v2689, 1
    %vm2694 = vcmp.eq.s32.totalorder %v2690, 1
    %vm2695 = vcmp.eq.s32.totalorder %v2691, 1
    %v2696 = vsel %vm2692, %v2687, 0.0
    %v2697 = vsel %vm2693, %v2686, 0.0
    %v2698 = vsel %vm2694, %v2685, 0.0
    %v2699 = vsel %vm2695, %v2684, 0.0
    %v2700 = vld [vmem:[#allocation19 + $0x1] sm:$0x1]
    %v2701 = vlaneseq
    %v2702 = vshrl.u32 %v2701, 7
    %v2703 = vsub.s32 0, %v2702
    %v2704 = vrot.slane %v2700, %v2703
    %v2705 = vmul.f32 %v2696, %v2704
    %v2706 = vmul.f32 %v2697, %v2704
    %v2707 = vmul.f32 %v2698, %v2704
    %v2708 = vmul.f32 %v2699, %v2704
    %v2709 = vadd.f32 %v2675, %v2705
    %v2710 = vadd.f32 %v2676, %v2706
    %v2711 = vadd.f32 %v2677, %v2707
    %v2712 = vadd.f32 %v2678, %v2708
    %v2713 = vrot.slane %v2592, 5
    %v2714 = vrot.slane %v2593, 5
    %v2715 = vrot.slane %v2594, 5
    %v2716 = vrot.slane %v2595, 5
    %vm2717 = vcmp.lt.s32.totalorder %v690, 3
    %v2718 = vsel %vm2717, %v2715, %v2716
    %v2719 = vsel %vm2717, %v2714, %v2715
    %v2720 = vsel %vm2717, %v2713, %v2714
    %v2721 = vsel %vm2717, %v2716, %v2713
    %v2722 = vsel %vm2620, 1, 0
    %v2723 = vsel %vm2621, 1, 0
    %v2724 = vsel %vm2622, 1, 0
    %v2725 = vsel %vm2623, 1, 0
    %vm2726 = vcmp.eq.s32.totalorder %v2722, 1
    %vm2727 = vcmp.eq.s32.totalorder %v2723, 1
    %vm2728 = vcmp.eq.s32.totalorder %v2724, 1
    %vm2729 = vcmp.eq.s32.totalorder %v2725, 1
    %v2730 = vsel %vm2726, %v2721, 0.0
    %v2731 = vsel %vm2727, %v2720, 0.0
    %v2732 = vsel %vm2728, %v2719, 0.0
    %v2733 = vsel %vm2729, %v2718, 0.0
    %v2734 = vld [vmem:[#allocation19 + $0x2] sm:$0x1]
    %v2735 = vlaneseq
    %v2736 = vshrl.u32 %v2735, 7
    %v2737 = vsub.s32 0, %v2736
    %v2738 = vrot.slane %v2734, %v2737
    %v2739 = vmul.f32 %v2730, %v2738
    %v2740 = vmul.f32 %v2731, %v2738
    %v2741 = vmul.f32 %v2732, %v2738
    %v2742 = vmul.f32 %v2733, %v2738
    %v2743 = vadd.f32 %v2709, %v2739
    %v2744 = vadd.f32 %v2710, %v2740
    %v2745 = vadd.f32 %v2711, %v2741
    %v2746 = vadd.f32 %v2712, %v2742
    %v2747 = vrot.slane %v2592, 7
    %v2748 = vrot.slane %v2593, 7
    %v2749 = vrot.slane %v2594, 7
    %v2750 = vrot.slane %v2595, 7
    %v2751 = vsel %vm903, %v2749, %v2750
    %v2752 = vsel %vm903, %v2748, %v2749
    %v2753 = vsel %vm903, %v2747, %v2748
    %v2754 = vsel %vm903, %v2750, %v2747
    %v2755 = vsel %vm2608, 1, 0
    %v2756 = vsel %vm2609, 1, 0
    %v2757 = vsel %vm2610, 1, 0
    %v2758 = vsel %vm2611, 1, 0
    %vm2759 = vcmp.eq.s32.totalorder %v2755, 1
    %vm2760 = vcmp.eq.s32.totalorder %v2756, 1
    %vm2761 = vcmp.eq.s32.totalorder %v2757, 1
    %vm2762 = vcmp.eq.s32.totalorder %v2758, 1
    %v2763 = vsel %vm2759, %v2754, 0.0
    %v2764 = vsel %vm2760, %v2753, 0.0
    %v2765 = vsel %vm2761, %v2752, 0.0
    %v2766 = vsel %vm2762, %v2751, 0.0
    %v2767 = vld [vmem:[#allocation19 + $0x3] sm:$0x1]
    %v2768 = vlaneseq
    %v2769 = vshrl.u32 %v2768, 7
    %v2770 = vsub.s32 0, %v2769
    %v2771 = vrot.slane %v2767, %v2770
    %v2772 = vmul.f32 %v2763, %v2771
    %v2773 = vmul.f32 %v2764, %v2771
    %v2774 = vmul.f32 %v2765, %v2771
    %v2775 = vmul.f32 %v2766, %v2771
    %v2776 = vadd.f32 %v2743, %v2772
    %v2777 = vadd.f32 %v2744, %v2773
    %v2778 = vadd.f32 %v2745, %v2774
    %v2779 = vadd.f32 %v2746, %v2775
    %v2780 = vrot.slane %v2592, 1
    %v2781 = vrot.slane %v2593, 1
    %v2782 = vrot.slane %v2594, 1
    %v2783 = vrot.slane %v2595, 1
    %v2784 = vsel %vm1106, %v2782, %v2783
    %v2785 = vsel %vm1106, %v2781, %v2782
    %v2786 = vsel %vm1106, %v2780, %v2781
    %v2787 = vsel %vm1106, %v2783, %v2780
    %v2788 = vsel %vm2616, 1, 0
    %v2789 = vsel %vm2617, 1, 0
    %v2790 = vsel %vm2618, 1, 0
    %v2791 = vsel %vm2619, 1, 0
    %vm2792 = vcmp.eq.s32.totalorder %v2788, 1
    %vm2793 = vcmp.eq.s32.totalorder %v2789, 1
    %vm2794 = vcmp.eq.s32.totalorder %v2790, 1
    %vm2795 = vcmp.eq.s32.totalorder %v2791, 1
    %v2796 = vsel %vm2792, %v2786, 0.0
    %v2797 = vsel %vm2793, %v2785, 0.0
    %v2798 = vsel %vm2794, %v2784, 0.0
    %v2799 = vsel %vm2795, %v2787, 0.0
    %v2800 = vld [vmem:[#allocation19 + $0x5] sm:$0x1]
    %v2801 = vlaneseq
    %v2802 = vshrl.u32 %v2801, 7
    %v2803 = vsub.s32 0, %v2802
    %v2804 = vrot.slane %v2800, %v2803
    %v2805 = vmul.f32 %v2796, %v2804
    %v2806 = vmul.f32 %v2797, %v2804
    %v2807 = vmul.f32 %v2798, %v2804
    %v2808 = vmul.f32 %v2799, %v2804
    %v2809 = vadd.f32 %v2776, %v2805
    %v2810 = vadd.f32 %v2777, %v2806
    %v2811 = vadd.f32 %v2778, %v2807
    %v2812 = vadd.f32 %v2779, %v2808
    %v2813 = vsel %vm2628, 1, 0
    %v2814 = vsel %vm2629, 1, 0
    %v2815 = vsel %vm2630, 1, 0
    %v2816 = vsel %vm2631, 1, 0
    %vm2817 = vcmp.eq.s32.totalorder %v2813, 1
    %vm2818 = vcmp.eq.s32.totalorder %v2814, 1
    %vm2819 = vcmp.eq.s32.totalorder %v2815, 1
    %vm2820 = vcmp.eq.s32.totalorder %v2816, 1
    %v2821 = vsel %vm2817, %v2652, 0.0
    %v2822 = vsel %vm2818, %v2651, 0.0
    %v2823 = vsel %vm2819, %v2650, 0.0
    %v2824 = vsel %vm2820, %v2653, 0.0
    %v2825 = vld [vmem:[#allocation19 + $0x6] sm:$0x1]
    %v2826 = vlaneseq
    %v2827 = vshrl.u32 %v2826, 7
    %v2828 = vsub.s32 0, %v2827
    %v2829 = vrot.slane %v2825, %v2828
    %v2830 = vmul.f32 %v2821, %v2829
    %v2831 = vmul.f32 %v2822, %v2829
    %v2832 = vmul.f32 %v2823, %v2829
    %v2833 = vmul.f32 %v2824, %v2829
    %v2834 = vadd.f32 %v2809, %v2830
    %v2835 = vadd.f32 %v2810, %v2831
    %v2836 = vadd.f32 %v2811, %v2832
    %v2837 = vadd.f32 %v2812, %v2833
    %v2838 = vsel %vm2624, 1, 0
    %v2839 = vsel %vm2625, 1, 0
    %v2840 = vsel %vm2626, 1, 0
    %v2841 = vsel %vm2627, 1, 0
    %vm2842 = vcmp.eq.s32.totalorder %v2838, 1
    %vm2843 = vcmp.eq.s32.totalorder %v2839, 1
    %vm2844 = vcmp.eq.s32.totalorder %v2840, 1
    %vm2845 = vcmp.eq.s32.totalorder %v2841, 1
    %v2846 = vsel %vm2842, %v2686, 0.0
    %v2847 = vsel %vm2843, %v2685, 0.0
    %v2848 = vsel %vm2844, %v2684, 0.0
    %v2849 = vsel %vm2845, %v2687, 0.0
    %v2850 = vld [vmem:[#allocation19 + $0x7] sm:$0x1]
    %v2851 = vlaneseq
    %v2852 = vshrl.u32 %v2851, 7
    %v2853 = vsub.s32 0, %v2852
    %v2854 = vrot.slane %v2850, %v2853
    %v2855 = vmul.f32 %v2846, %v2854
    %v2856 = vmul.f32 %v2847, %v2854
    %v2857 = vmul.f32 %v2848, %v2854
    %v2858 = vmul.f32 %v2849, %v2854
    %v2859 = vadd.f32 %v2834, %v2855
    %v2860 = vadd.f32 %v2835, %v2856
    %v2861 = vadd.f32 %v2836, %v2857
    %v2862 = vadd.f32 %v2837, %v2858
    %v2863 = vsel %vm2632, 1, 0
    %v2864 = vsel %vm2633, 1, 0
    %v2865 = vsel %vm2634, 1, 0
    %v2866 = vsel %vm2635, 1, 0
    %vm2867 = vcmp.eq.s32.totalorder %v2863, 1
    %vm2868 = vcmp.eq.s32.totalorder %v2864, 1
    %vm2869 = vcmp.eq.s32.totalorder %v2865, 1
    %vm2870 = vcmp.eq.s32.totalorder %v2866, 1
    %v2871 = vsel %vm2867, %v2720, 0.0
    %v2872 = vsel %vm2868, %v2719, 0.0
    %v2873 = vsel %vm2869, %v2718, 0.0
    %v2874 = vsel %vm2870, %v2721, 0.0
    %v2875 = vld [vmem:[#allocation19 + $0x8] sm:$0x1]
    %v2876 = vlaneseq
    %v2877 = vshrl.u32 %v2876, 7
    %v2878 = vsub.s32 0, %v2877
    %v2879 = vrot.slane %v2875, %v2878
    %v2880 = vmul.f32 %v2871, %v2879
    %v2881 = vmul.f32 %v2872, %v2879
    %v2882 = vmul.f32 %v2873, %v2879
    %v2883 = vmul.f32 %v2874, %v2879
    %v2884 = vadd.f32 %v2859, %v2880
    %v2885 = vadd.f32 %v2860, %v2881
    %v2886 = vadd.f32 %v2861, %v2882
    %v2887 = vadd.f32 %v2862, %v2883
    %v2888 = vld [vmem:[#allocation21] sm:$0x1]
    %v2890 = vlaneseq
    %v2891 = vshrl.u32 %v2890, 7
    %v2892 = vsub.s32 0, %v2891
    %v2893 = vrot.slane %v2888, %v2892
    %v2895 = vadd.f32 %v2884, %v2893
    %v2896 = vadd.f32 %v2885, %v2893
    %v2897 = vadd.f32 %v2886, %v2893
    %v2898 = vadd.f32 %v2887, %v2893
    %v2899 = vmax.f32 %v2895, 0.0
    %v2900 = vmax.f32 %v2896, 0.0
    %v2901 = vmax.f32 %v2897, 0.0
    %v2902 = vmax.f32 %v2898, 0.0
    %v2903 = vpack.c.bf16 %v2900, %v2899
    %v2904 = vpack.c.bf16 %v2902, %v2901
    %v2905 = vld [vmem:[#allocation22] sm:$0xff]
    %v2906 = vld [vmem:[#allocation22 + $0x8] sm:$0xff]
    %v2907 = vld [vmem:[#allocation22 + $0x10] sm:$0xff]
    %v2908 = vld [vmem:[#allocation22 + $0x18] sm:$0xff]
    %v2909 = vld [vmem:[#allocation22 + $0x20] sm:$0xff]
    %v2910 = vld [vmem:[#allocation22 + $0x28] sm:$0xff]
    %v2911 = vld [vmem:[#allocation22 + $0x30] sm:$0xff]
    %v2912 = vld [vmem:[#allocation22 + $0x38] sm:$0xff]
    %v2913 = vld [vmem:[#allocation22 + $0x40] sm:$0xff]
    %v2914 = vld [vmem:[#allocation22 + $0x48] sm:$0xff]
    %v2915 = vld [vmem:[#allocation22 + $0x50] sm:$0xff]
    %v2916 = vld [vmem:[#allocation22 + $0x58] sm:$0xff]
    %v2917 = vld [vmem:[%s29] sm:$0x3]
    %v2919 = vlaneseq
    %v2920 = vshrl.u32 %v2919, 7
    %v2921 = vsub.s32 0, %v2920
    %v2922 = vrot.slane %v2917, %v2921
    %v2923 = vlaneseq
    %v2924 = vshrl.u32 %v2923, 7
    %v2925 = vsub.s32 1, %v2924
    %v2926 = vrot.slane %v2917, %v2925
    %v2941 = vunpack.c.l.b16 %v2905
    %v2942 = vunpack.c.h.b16 %v2905
    %v2943 = vunpack.c.l.b16 %v2906
    %v2944 = vunpack.c.h.b16 %v2906
    %v2945 = vunpack.c.l.b16 %v2907
    %v2946 = vunpack.c.h.b16 %v2907
    %v2947 = vunpack.c.l.b16 %v2908
    %v2948 = vunpack.c.h.b16 %v2908
    %v2949 = vunpack.c.l.b16 %v2909
    %v2950 = vunpack.c.h.b16 %v2909
    %v2951 = vunpack.c.l.b16 %v2910
    %v2952 = vunpack.c.h.b16 %v2910
    %v2953 = vunpack.c.l.b16 %v2911
    %v2954 = vunpack.c.h.b16 %v2911
    %v2955 = vunpack.c.l.b16 %v2912
    %v2956 = vunpack.c.h.b16 %v2912
    %v2957 = vunpack.c.l.b16 %v2913
    %v2958 = vunpack.c.h.b16 %v2913
    %v2959 = vunpack.c.l.b16 %v2914
    %v2960 = vunpack.c.h.b16 %v2914
    %v2961 = vunpack.c.l.b16 %v2915
    %v2962 = vunpack.c.h.b16 %v2915
    %v2963 = vunpack.c.l.b16 %v2916
    %v2964 = vunpack.c.h.b16 %v2916
    %v2965 = vpack.c.b16 %v2943, %v2941
    %v2966 = vpack.c.b16 %v2944, %v2942
    %v2967 = vpack.c.b16 %v2947, %v2945
    %v2968 = vpack.c.b16 %v2948, %v2946
    %v2969 = vpack.c.b16 %v2951, %v2949
    %v2970 = vpack.c.b16 %v2952, %v2950
    %v2971 = vpack.c.b16 %v2955, %v2953
    %v2972 = vpack.c.b16 %v2956, %v2954
    %v2973 = vpack.c.b16 %v2959, %v2957
    %v2974 = vpack.c.b16 %v2960, %v2958
    %v2975 = vpack.c.b16 %v2963, %v2961
    %v2976 = vpack.c.b16 %v2964, %v2962
    %v2990 = vsel %vm2587, %v2903, 0
    %v2993 = vsel %vm2587, %v2904, 0
    %2995 = vmatprep.subr.bf16.mxu0 %v2966
    %2996 = vmatpush1.bf16.msra.mxu0 %v2965
    %2997 = vmatprep.subr.bf16.mxu0 %v2968
    %2998 = vmatpush1.bf16.msra.mxu0 %v2967
    %2999 = vmatprep.subr.bf16.mxu0 %v2970
    %3000 = vmatpush1.bf16.msra.mxu0 %v2969
    %3001 = vmatprep.subr.bf16.mxu0 %v2972
    %3002 = vmatpush1.bf16.msra.mxu0 %v2971
    %3003 = vmatprep.subr.bf16.mxu0 %v2974
    %3004 = vmatpush1.bf16.msra.mxu0 %v2973
    %3005 = vmatprep.subr.bf16.mxu0 %v2976
    %3006 = vmatpush1.bf16.msra.mxu0 %v2975
    %3007 = vmatprep.subr.bf16.mxu0 0
    %3008 = vmatpush1.bf16.msra.mxu0 0
    %3009 = vmatprep.subr.bf16.mxu0 0
    %3010 = vmatpush1.bf16.msra.mxu0 0
    %3011 = vmatprep.subr.bf16.mxu0 0
    %3012 = vmatpush1.bf16.msra.mxu0 0
    %3013 = vmatprep.subr.bf16.mxu0 0
    %3014 = vmatpush1.bf16.msra.mxu0 0
    %3015 = vmatprep.subr.bf16.mxu0 0
    %3016 = vmatpush1.bf16.msra.mxu0 0
    %3017 = vmatprep.subr.bf16.mxu0 0
    %3018 = vmatpush1.bf16.msra.mxu0 0
    %3019 = vmatprep.subr.bf16.mxu0 0
    %3020 = vmatpush1.bf16.msra.mxu0 0
    %3021 = vmatprep.subr.bf16.mxu0 0
    %3022 = vmatpush1.bf16.msra.mxu0 0
    %3023 = vmatprep.subr.bf16.mxu0 0
    %3024 = vmatpush1.bf16.msra.mxu0 0
    %3025 = vmatprep.subr.bf16.mxu0 0
    %3026 = vmatpush1.bf16.msra.mxu0 0
    %3027 = vmatprep.mubr.bf16.mxu0 0
    %3028 = vmatmul.mubr.bf16.gmra.mrb[0].mxu0 %v2990
    %v3029 = vpop.f32.mrb[0].mxu0
    %v3030 = vadd.f32 %v2922, %v3029
    %v3031 = vpop.f32.mrb[0].mxu0
    %v3032 = vadd.f32 %v2926, %v3031
    %v3033 = vpop.f32.mrb[0].mxu0
    %v3034 = vadd.f32 %v2922, %v3033
    %v3035 = vpop.f32.mrb[0].mxu0
    %v3036 = vadd.f32 %v2926, %v3035
    %3037 = vmatprep.mubr.bf16.mxu0 0
    %3038 = vmatmul.mubr.bf16.gmra.mrb[0].mxu0 %v2993
    %v3039 = vpop.f32.mrb[0].mxu0
    %v3040 = vadd.f32 %v2922, %v3039
    %v3041 = vpop.f32.mrb[0].mxu0
    %v3042 = vadd.f32 %v2926, %v3041
    %v3043 = vpop.f32.mrb[0].mxu0
    %v3044 = vadd.f32 %v2922, %v3043
    %v3045 = vpop.f32.mrb[0].mxu0
    %v3046 = vadd.f32 %v2926, %v3045
    %3047 = vdwg.mxu0
    %v3048 = vmax.f32 %v3030, 0.0
    %v3049 = vmax.f32 %v3032, 0.0
    %v3050 = vmax.f32 %v3034, 0.0
    %v3051 = vmax.f32 %v3036, 0.0
    %v3052 = vmax.f32 %v3040, 0.0
    %v3053 = vmax.f32 %v3042, 0.0
    %v3054 = vmax.f32 %v3044, 0.0
    %v3055 = vmax.f32 %v3046, 0.0
    %3056 = vst [vmem:[#allocation2] sm:$0xff] %v3048
    %vm3057 = vcmask 523264
    %3058 = vst.msk [vmem:[#allocation2 + $0x8] sm:$0xff] %vm3057, %v3049
    %3059 = vst [vmem:[#allocation2 + $0x30] sm:$0xff] %v3050
    %3060 = vst.msk [vmem:[#allocation2 + $0x38] sm:$0xff] %vm3057, %v3051
    %3061 = vst [vmem:[#allocation2 + $0x60] sm:$0xff] %v3052
    %3062 = vst.msk [vmem:[#allocation2 + $0x68] sm:$0xff] %vm3057, %v3053
    %3063 = vst [vmem:[#allocation2 + $0x90] sm:$0xff] %v3054
    %3064 = vst.msk [vmem:[#allocation2 + $0x98] sm:$0xff] %vm3057, %v3055
    %v3065 = vld [vmem:[#allocation2] sm:$0xff]
    %v3066 = vld [vmem:[#allocation2 + $0x8] sm:$0xff]
    %v3067 = vld [vmem:[#allocation2 + $0x30] sm:$0xff]
    %v3068 = vld [vmem:[#allocation2 + $0x38] sm:$0xff]
    %v3069 = vld [vmem:[#allocation2 + $0x60] sm:$0xff]
    %v3070 = vld [vmem:[#allocation2 + $0x68] sm:$0xff]
    %v3071 = vld [vmem:[#allocation2 + $0x90] sm:$0xff]
    %v3072 = vld [vmem:[#allocation2 + $0x98] sm:$0xff]
    %s3073 = scalar_lea.vmem [#allocation24], 4
    %v3074 = vld [vmem:[%s3073] ss:$8 sm:$0x3]
    %v3076 = vlaneseq
    %v3077 = vshrl.u32 %v3076, 7
    %v3078 = vsub.s32 0, %v3077
    %v3079 = vrot.slane %v3074, %v3078
    %v3080 = vlaneseq
    %v3081 = vshrl.u32 %v3080, 7
    %v3082 = vsub.s32 1, %v3081
    %v3083 = vrot.slane %v3074, %v3082
    %v3086 = vmul.f32 %v3065, %v3079
    %v3087 = vmul.f32 %v3066, %v3083
    %v3088 = vmul.f32 %v3067, %v3079
    %v3089 = vmul.f32 %v3068, %v3083
    %v3090 = vmul.f32 %v3069, %v3079
    %v3091 = vmul.f32 %v3070, %v3083
    %v3092 = vmul.f32 %v3071, %v3079
    %v3093 = vmul.f32 %v3072, %v3083
    %v3094 = vrot.slane %v3065, 3
    %v3095 = vrot.slane %v3066, 3
    %v3096 = vrot.slane %v3067, 3
    %v3097 = vrot.slane %v3068, 3
    %v3098 = vrot.slane %v3069, 3
    %v3099 = vrot.slane %v3070, 3
    %v3100 = vrot.slane %v3071, 3
    %v3101 = vrot.slane %v3072, 3
    %v3102 = vsel %vm2649, %v3098, %v3100
    %v3103 = vsel %vm2649, %v3099, %v3101
    %v3104 = vsel %vm2649, %v3096, %v3098
    %v3105 = vsel %vm2649, %v3097, %v3099
    %v3106 = vsel %vm2649, %v3094, %v3096
    %v3107 = vsel %vm2649, %v3095, %v3097
    %v3108 = vsel %vm2649, %v3100, %v3094
    %v3109 = vsel %vm2649, %v3101, %v3095
    %v3110 = vsel %vm2658, %v3108, 0.0
    %v3111 = vsel %vm2658, %v3109, 0.0
    %v3112 = vsel %vm2659, %v3106, 0.0
    %v3113 = vsel %vm2659, %v3107, 0.0
    %v3114 = vsel %vm2660, %v3104, 0.0
    %v3115 = vsel %vm2660, %v3105, 0.0
    %v3116 = vsel %vm2661, %v3102, 0.0
    %v3117 = vsel %vm2661, %v3103, 0.0
    %v3118 = vld [vmem:[#allocation24] ss:$8 sm:$0x3]
    %v3120 = vlaneseq
    %v3121 = vshrl.u32 %v3120, 7
    %v3122 = vsub.s32 0, %v3121
    %v3123 = vrot.slane %v3118, %v3122
    %v3124 = vlaneseq
    %v3125 = vshrl.u32 %v3124, 7
    %v3126 = vsub.s32 1, %v3125
    %v3127 = vrot.slane %v3118, %v3126
    %v3130 = vmul.f32 %v3110, %v3123
    %v3131 = vmul.f32 %v3111, %v3127
    %v3132 = vmul.f32 %v3112, %v3123
    %v3133 = vmul.f32 %v3113, %v3127
    %v3134 = vmul.f32 %v3114, %v3123
    %v3135 = vmul.f32 %v3115, %v3127
    %v3136 = vmul.f32 %v3116, %v3123
    %v3137 = vmul.f32 %v3117, %v3127
    %v3138 = vadd.f32 %v3086, %v3130
    %v3139 = vadd.f32 %v3087, %v3131
    %v3140 = vadd.f32 %v3088, %v3132
    %v3141 = vadd.f32 %v3089, %v3133
    %v3142 = vadd.f32 %v3090, %v3134
    %v3143 = vadd.f32 %v3091, %v3135
    %v3144 = vadd.f32 %v3092, %v3136
    %v3145 = vadd.f32 %v3093, %v3137
    %v3146 = vrot.slane %v3065, 4
    %v3147 = vrot.slane %v3066, 4
    %v3148 = vrot.slane %v3067, 4
    %v3149 = vrot.slane %v3068, 4
    %v3150 = vrot.slane %v3069, 4
    %v3151 = vrot.slane %v3070, 4
    %v3152 = vrot.slane %v3071, 4
    %v3153 = vrot.slane %v3072, 4
    %v3154 = vsel %vm2683, %v3150, %v3152
    %v3155 = vsel %vm2683, %v3151, %v3153
    %v3156 = vsel %vm2683, %v3148, %v3150
    %v3157 = vsel %vm2683, %v3149, %v3151
    %v3158 = vsel %vm2683, %v3146, %v3148
    %v3159 = vsel %vm2683, %v3147, %v3149
    %v3160 = vsel %vm2683, %v3152, %v3146
    %v3161 = vsel %vm2683, %v3153, %v3147
    %v3162 = vsel %vm2692, %v3160, 0.0
    %v3163 = vsel %vm2692, %v3161, 0.0
    %v3164 = vsel %vm2693, %v3158, 0.0
    %v3165 = vsel %vm2693, %v3159, 0.0
    %v3166 = vsel %vm2694, %v3156, 0.0
    %v3167 = vsel %vm2694, %v3157, 0.0
    %v3168 = vsel %vm2695, %v3154, 0.0
    %v3169 = vsel %vm2695, %v3155, 0.0
    %s3170 = scalar_lea.vmem [#allocation24], 1
    %v3171 = vld [vmem:[%s3170] ss:$8 sm:$0x3]
    %v3173 = vlaneseq
    %v3174 = vshrl.u32 %v3173, 7
    %v3175 = vsub.s32 0, %v3174
    %v3176 = vrot.slane %v3171, %v3175
    %v3177 = vlaneseq
    %v3178 = vshrl.u32 %v3177, 7
    %v3179 = vsub.s32 1, %v3178
    %v3180 = vrot.slane %v3171, %v3179
    %v3183 = vmul.f32 %v3162, %v3176
    %v3184 = vmul.f32 %v3163, %v3180
    %v3185 = vmul.f32 %v3164, %v3176
    %v3186 = vmul.f32 %v3165, %v3180
    %v3187 = vmul.f32 %v3166, %v3176
    %v3188 = vmul.f32 %v3167, %v3180
    %v3189 = vmul.f32 %v3168, %v3176
    %v3190 = vmul.f32 %v3169, %v3180
    %v3191 = vadd.f32 %v3138, %v3183
    %v3192 = vadd.f32 %v3139, %v3184
    %v3193 = vadd.f32 %v3140, %v3185
    %v3194 = vadd.f32 %v3141, %v3186
    %v3195 = vadd.f32 %v3142, %v3187
    %v3196 = vadd.f32 %v3143, %v3188
    %v3197 = vadd.f32 %v3144, %v3189
    %v3198 = vadd.f32 %v3145, %v3190
    %v3199 = vrot.slane %v3065, 5
    %v3200 = vrot.slane %v3066, 5
    %v3201 = vrot.slane %v3067, 5
    %v3202 = vrot.slane %v3068, 5
    %v3203 = vrot.slane %v3069, 5
    %v3204 = vrot.slane %v3070, 5
    %v3205 = vrot.slane %v3071, 5
    %v3206 = vrot.slane %v3072, 5
    %v3207 = vsel %vm2717, %v3203, %v3205
    %v3208 = vsel %vm2717, %v3204, %v3206
    %v3209 = vsel %vm2717, %v3201, %v3203
    %v3210 = vsel %vm2717, %v3202, %v3204
    %v3211 = vsel %vm2717, %v3199, %v3201
    %v3212 = vsel %vm2717, %v3200, %v3202
    %v3213 = vsel %vm2717, %v3205, %v3199
    %v3214 = vsel %vm2717, %v3206, %v3200
    %v3215 = vsel %vm2726, %v3213, 0.0
    %v3216 = vsel %vm2726, %v3214, 0.0
    %v3217 = vsel %vm2727, %v3211, 0.0
    %v3218 = vsel %vm2727, %v3212, 0.0
    %v3219 = vsel %vm2728, %v3209, 0.0
    %v3220 = vsel %vm2728, %v3210, 0.0
    %v3221 = vsel %vm2729, %v3207, 0.0
    %v3222 = vsel %vm2729, %v3208, 0.0
    %s3223 = scalar_lea.vmem [#allocation24], 2
    %v3224 = vld [vmem:[%s3223] ss:$8 sm:$0x3]
    %v3226 = vlaneseq
    %v3227 = vshrl.u32 %v3226, 7
    %v3228 = vsub.s32 0, %v3227
    %v3229 = vrot.slane %v3224, %v3228
    %v3230 = vlaneseq
    %v3231 = vshrl.u32 %v3230, 7
    %v3232 = vsub.s32 1, %v3231
    %v3233 = vrot.slane %v3224, %v3232
    %v3236 = vmul.f32 %v3215, %v3229
    %v3237 = vmul.f32 %v3216, %v3233
    %v3238 = vmul.f32 %v3217, %v3229
    %v3239 = vmul.f32 %v3218, %v3233
    %v3240 = vmul.f32 %v3219, %v3229
    %v3241 = vmul.f32 %v3220, %v3233
    %v3242 = vmul.f32 %v3221, %v3229
    %v3243 = vmul.f32 %v3222, %v3233
    %v3244 = vadd.f32 %v3191, %v3236
    %v3245 = vadd.f32 %v3192, %v3237
    %v3246 = vadd.f32 %v3193, %v3238
    %v3247 = vadd.f32 %v3194, %v3239
    %v3248 = vadd.f32 %v3195, %v3240
    %v3249 = vadd.f32 %v3196, %v3241
    %v3250 = vadd.f32 %v3197, %v3242
    %v3251 = vadd.f32 %v3198, %v3243
    %v3252 = vrot.slane %v3065, 7
    %v3253 = vrot.slane %v3066, 7
    %v3254 = vrot.slane %v3067, 7
    %v3255 = vrot.slane %v3068, 7
    %v3256 = vrot.slane %v3069, 7
    %v3257 = vrot.slane %v3070, 7
    %v3258 = vrot.slane %v3071, 7
    %v3259 = vrot.slane %v3072, 7
    %v3260 = vsel %vm903, %v3256, %v3258
    %v3261 = vsel %vm903, %v3257, %v3259
    %v3262 = vsel %vm903, %v3254, %v3256
    %v3263 = vsel %vm903, %v3255, %v3257
    %v3264 = vsel %vm903, %v3252, %v3254
    %v3265 = vsel %vm903, %v3253, %v3255
    %v3266 = vsel %vm903, %v3258, %v3252
    %v3267 = vsel %vm903, %v3259, %v3253
    %v3268 = vsel %vm2759, %v3266, 0.0
    %v3269 = vsel %vm2759, %v3267, 0.0
    %v3270 = vsel %vm2760, %v3264, 0.0
    %v3271 = vsel %vm2760, %v3265, 0.0
    %v3272 = vsel %vm2761, %v3262, 0.0
    %v3273 = vsel %vm2761, %v3263, 0.0
    %v3274 = vsel %vm2762, %v3260, 0.0
    %v3275 = vsel %vm2762, %v3261, 0.0
    %s3276 = scalar_lea.vmem [#allocation24], 3
    %v3277 = vld [vmem:[%s3276] ss:$8 sm:$0x3]
    %v3279 = vlaneseq
    %v3280 = vshrl.u32 %v3279, 7
    %v3281 = vsub.s32 0, %v3280
    %v3282 = vrot.slane %v3277, %v3281
    %v3283 = vlaneseq
    %v3284 = vshrl.u32 %v3283, 7
    %v3285 = vsub.s32 1, %v3284
    %v3286 = vrot.slane %v3277, %v3285
    %v3289 = vmul.f32 %v3268, %v3282
    %v3290 = vmul.f32 %v3269, %v3286
    %v3291 = vmul.f32 %v3270, %v3282
    %v3292 = vmul.f32 %v3271, %v3286
    %v3293 = vmul.f32 %v3272, %v3282
    %v3294 = vmul.f32 %v3273, %v3286
    %v3295 = vmul.f32 %v3274, %v3282
    %v3296 = vmul.f32 %v3275, %v3286
    %v3297 = vadd.f32 %v3244, %v3289
    %v3298 = vadd.f32 %v3245, %v3290
    %v3299 = vadd.f32 %v3246, %v3291
    %v3300 = vadd.f32 %v3247, %v3292
    %v3301 = vadd.f32 %v3248, %v3293
    %v3302 = vadd.f32 %v3249, %v3294
    %v3303 = vadd.f32 %v3250, %v3295
    %v3304 = vadd.f32 %v3251, %v3296
    %v3305 = vrot.slane %v3065, 1
    %v3306 = vrot.slane %v3066, 1
    %v3307 = vrot.slane %v3067, 1
    %v3308 = vrot.slane %v3068, 1
    %v3309 = vrot.slane %v3069, 1
    %v3310 = vrot.slane %v3070, 1
    %v3311 = vrot.slane %v3071, 1
    %v3312 = vrot.slane %v3072, 1
    %v3313 = vsel %vm1106, %v3309, %v3311
    %v3314 = vsel %vm1106, %v3310, %v3312
    %v3315 = vsel %vm1106, %v3307, %v3309
    %v3316 = vsel %vm1106, %v3308, %v3310
    %v3317 = vsel %vm1106, %v3305, %v3307
    %v3318 = vsel %vm1106, %v3306, %v3308
    %v3319 = vsel %vm1106, %v3311, %v3305
    %v3320 = vsel %vm1106, %v3312, %v3306
    %v3321 = vsel %vm2792, %v3317, 0.0
    %v3322 = vsel %vm2792, %v3318, 0.0
    %v3323 = vsel %vm2793, %v3315, 0.0
    %v3324 = vsel %vm2793, %v3316, 0.0
    %v3325 = vsel %vm2794, %v3313, 0.0
    %v3326 = vsel %vm2794, %v3314, 0.0
    %v3327 = vsel %vm2795, %v3319, 0.0
    %v3328 = vsel %vm2795, %v3320, 0.0
    %s3329 = scalar_lea.vmem [#allocation24], 5
    %v3330 = vld [vmem:[%s3329] ss:$8 sm:$0x3]
    %v3332 = vlaneseq
    %v3333 = vshrl.u32 %v3332, 7
    %v3334 = vsub.s32 0, %v3333
    %v3335 = vrot.slane %v3330, %v3334
    %v3336 = vlaneseq
    %v3337 = vshrl.u32 %v3336, 7
    %v3338 = vsub.s32 1, %v3337
    %v3339 = vrot.slane %v3330, %v3338
    %v3342 = vmul.f32 %v3321, %v3335
    %v3343 = vmul.f32 %v3322, %v3339
    %v3344 = vmul.f32 %v3323, %v3335
    %v3345 = vmul.f32 %v3324, %v3339
    %v3346 = vmul.f32 %v3325, %v3335
    %v3347 = vmul.f32 %v3326, %v3339
    %v3348 = vmul.f32 %v3327, %v3335
    %v3349 = vmul.f32 %v3328, %v3339
    %v3350 = vadd.f32 %v3297, %v3342
    %v3351 = vadd.f32 %v3298, %v3343
    %v3352 = vadd.f32 %v3299, %v3344
    %v3353 = vadd.f32 %v3300, %v3345
    %v3354 = vadd.f32 %v3301, %v3346
    %v3355 = vadd.f32 %v3302, %v3347
    %v3356 = vadd.f32 %v3303, %v3348
    %v3357 = vadd.f32 %v3304, %v3349
    %v3358 = vsel %vm2817, %v3106, 0.0
    %v3359 = vsel %vm2817, %v3107, 0.0
    %v3360 = vsel %vm2818, %v3104, 0.0
    %v3361 = vsel %vm2818, %v3105, 0.0
    %v3362 = vsel %vm2819, %v3102, 0.0
    %v3363 = vsel %vm2819, %v3103, 0.0
    %v3364 = vsel %vm2820, %v3108, 0.0
    %v3365 = vsel %vm2820, %v3109, 0.0
    %s3366 = scalar_lea.vmem [#allocation24], 6
    %v3367 = vld [vmem:[%s3366] ss:$8 sm:$0x3]
    %v3369 = vlaneseq
    %v3370 = vshrl.u32 %v3369, 7
    %v3371 = vsub.s32 0, %v3370
    %v3372 = vrot.slane %v3367, %v3371
    %v3373 = vlaneseq
    %v3374 = vshrl.u32 %v3373, 7
    %v3375 = vsub.s32 1, %v3374
    %v3376 = vrot.slane %v3367, %v3375
    %v3379 = vmul.f32 %v3358, %v3372
    %v3380 = vmul.f32 %v3359, %v3376
    %v3381 = vmul.f32 %v3360, %v3372
    %v3382 = vmul.f32 %v3361, %v3376
    %v3383 = vmul.f32 %v3362, %v3372
    %v3384 = vmul.f32 %v3363, %v3376
    %v3385 = vmul.f32 %v3364, %v3372
    %v3386 = vmul.f32 %v3365, %v3376
    %v3387 = vadd.f32 %v3350, %v3379
    %v3388 = vadd.f32 %v3351, %v3380
    %v3389 = vadd.f32 %v3352, %v3381
    %v3390 = vadd.f32 %v3353, %v3382
    %v3391 = vadd.f32 %v3354, %v3383
    %v3392 = vadd.f32 %v3355, %v3384
    %v3393 = vadd.f32 %v3356, %v3385
    %v3394 = vadd.f32 %v3357, %v3386
    %v3395 = vsel %vm2842, %v3158, 0.0
    %v3396 = vsel %vm2842, %v3159, 0.0
    %v3397 = vsel %vm2843, %v3156, 0.0
    %v3398 = vsel %vm2843, %v3157, 0.0
    %v3399 = vsel %vm2844, %v3154, 0.0
    %v3400 = vsel %vm2844, %v3155, 0.0
    %v3401 = vsel %vm2845, %v3160, 0.0
    %v3402 = vsel %vm2845, %v3161, 0.0
    %s3403 = scalar_lea.vmem [#allocation24], 7
    %v3404 = vld [vmem:[%s3403] ss:$8 sm:$0x3]
    %v3406 = vlaneseq
    %v3407 = vshrl.u32 %v3406, 7
    %v3408 = vsub.s32 0, %v3407
    %v3409 = vrot.slane %v3404, %v3408
    %v3410 = vlaneseq
    %v3411 = vshrl.u32 %v3410, 7
    %v3412 = vsub.s32 1, %v3411
    %v3413 = vrot.slane %v3404, %v3412
    %v3416 = vmul.f32 %v3395, %v3409
    %v3417 = vmul.f32 %v3396, %v3413
    %v3418 = vmul.f32 %v3397, %v3409
    %v3419 = vmul.f32 %v3398, %v3413
    %v3420 = vmul.f32 %v3399, %v3409
    %v3421 = vmul.f32 %v3400, %v3413
    %v3422 = vmul.f32 %v3401, %v3409
    %v3423 = vmul.f32 %v3402, %v3413
    %v3424 = vadd.f32 %v3387, %v3416
    %v3425 = vadd.f32 %v3388, %v3417
    %v3426 = vadd.f32 %v3389, %v3418
    %v3427 = vadd.f32 %v3390, %v3419
    %v3428 = vadd.f32 %v3391, %v3420
    %v3429 = vadd.f32 %v3392, %v3421
    %v3430 = vadd.f32 %v3393, %v3422
    %v3431 = vadd.f32 %v3394, %v3423
    %v3432 = vsel %vm2867, %v3211, 0.0
    %v3433 = vsel %vm2867, %v3212, 0.0
    %v3434 = vsel %vm2868, %v3209, 0.0
    %v3435 = vsel %vm2868, %v3210, 0.0
    %v3436 = vsel %vm2869, %v3207, 0.0
    %v3437 = vsel %vm2869, %v3208, 0.0
    %v3438 = vsel %vm2870, %v3213, 0.0
    %v3439 = vsel %vm2870, %v3214, 0.0
    %s3440 = scalar_lea.vmem [#allocation24], 16
    %v3441 = vld [vmem:[%s3440] ss:$8 sm:$0x3]
    %v3443 = vlaneseq
    %v3444 = vshrl.u32 %v3443, 7
    %v3445 = vsub.s32 0, %v3444
    %v3446 = vrot.slane %v3441, %v3445
    %v3447 = vlaneseq
    %v3448 = vshrl.u32 %v3447, 7
    %v3449 = vsub.s32 1, %v3448
    %v3450 = vrot.slane %v3441, %v3449
    %v3453 = vmul.f32 %v3432, %v3446
    %v3454 = vmul.f32 %v3433, %v3450
    %v3455 = vmul.f32 %v3434, %v3446
    %v3456 = vmul.f32 %v3435, %v3450
    %v3457 = vmul.f32 %v3436, %v3446
    %v3458 = vmul.f32 %v3437, %v3450
    %v3459 = vmul.f32 %v3438, %v3446
    %v3460 = vmul.f32 %v3439, %v3450
    %v3461 = vadd.f32 %v3424, %v3453
    %v3462 = vadd.f32 %v3425, %v3454
    %v3463 = vadd.f32 %v3426, %v3455
    %v3464 = vadd.f32 %v3427, %v3456
    %v3465 = vadd.f32 %v3428, %v3457
    %v3466 = vadd.f32 %v3429, %v3458
    %v3467 = vadd.f32 %v3430, %v3459
    %v3468 = vadd.f32 %v3431, %v3460
    %v3469 = vld [vmem:[#allocation25] sm:$0x3]
    %v3471 = vlaneseq
    %v3472 = vshrl.u32 %v3471, 7
    %v3473 = vsub.s32 0, %v3472
    %v3474 = vrot.slane %v3469, %v3473
    %v3475 = vlaneseq
    %v3476 = vshrl.u32 %v3475, 7
    %v3477 = vsub.s32 1, %v3476
    %v3478 = vrot.slane %v3469, %v3477
    %v3481 = vadd.f32 %v3461, %v3474
    %v3482 = vadd.f32 %v3462, %v3478
    %v3483 = vadd.f32 %v3463, %v3474
    %v3484 = vadd.f32 %v3464, %v3478
    %v3485 = vadd.f32 %v3465, %v3474
    %v3486 = vadd.f32 %v3466, %v3478
    %v3487 = vadd.f32 %v3467, %v3474
    %v3488 = vadd.f32 %v3468, %v3478
    %v3489 = vmax.f32 %v3481, 0.0
    %v3490 = vmax.f32 %v3482, 0.0
    %v3491 = vmax.f32 %v3483, 0.0
    %v3492 = vmax.f32 %v3484, 0.0
    %v3493 = vmax.f32 %v3485, 0.0
    %v3494 = vmax.f32 %v3486, 0.0
    %v3495 = vmax.f32 %v3487, 0.0
    %v3496 = vmax.f32 %v3488, 0.0
    %v3497 = vpack.c.bf16 %v3491, %v3489
    %v3498 = vpack.c.bf16 %v3492, %v3490
    %v3499 = vpack.c.bf16 %v3495, %v3493
    %v3500 = vpack.c.bf16 %v3496, %v3494
    %v3501 = vld [vmem:[#allocation27] sm:$0xff]
    %v3502 = vld [vmem:[#allocation27 + $0x8] sm:$0xff]
    %v3503 = vld [vmem:[#allocation27 + $0x10] sm:$0xff]
    %v3504 = vld [vmem:[#allocation27 + $0x18] sm:$0xff]
    %v3505 = vld [vmem:[#allocation27 + $0x20] sm:$0xff]
    %v3506 = vld [vmem:[#allocation27 + $0x28] sm:$0xff]
    %v3507 = vld [vmem:[#allocation27 + $0x30] sm:$0xff]
    %v3508 = vld [vmem:[#allocation27 + $0x38] sm:$0xff]
    %v3509 = vld [vmem:[#allocation27 + $0x40] sm:$0xff]
    %v3510 = vld [vmem:[#allocation27 + $0x48] sm:$0xff]
    %v3511 = vld [vmem:[#allocation27 + $0x50] sm:$0xff]
    %v3512 = vld [vmem:[#allocation27 + $0x58] sm:$0xff]
    %v3513 = vld [vmem:[#allocation27 + $0x60] sm:$0xff]
    %v3514 = vld [vmem:[#allocation27 + $0x68] sm:$0xff]
    %v3515 = vld [vmem:[#allocation27 + $0x70] sm:$0xff]
    %v3516 = vld [vmem:[#allocation27 + $0x78] sm:$0xff]
    %v3517 = vld [vmem:[#allocation27 + $0x80] sm:$0xff]
    %v3518 = vld [vmem:[#allocation27 + $0x88] sm:$0xff]
    %v3519 = vld [vmem:[#allocation27 + $0x90] sm:$0xff]
    %v3520 = vld [vmem:[#allocation27 + $0x98] sm:$0xff]
    %v3521 = vld [vmem:[#allocation27 + $0xa0] sm:$0xff]
    %v3522 = vld [vmem:[#allocation27 + $0xa8] sm:$0xff]
    %v3523 = vld [vmem:[#allocation27 + $0xb0] sm:$0xff]
    %v3524 = vld [vmem:[#allocation27 + $0xb8] sm:$0xff]
    %v3525 = vld [vmem:[#allocation28] sm:$0x3]
    %v3527 = vlaneseq
    %v3528 = vshrl.u32 %v3527, 7
    %v3529 = vsub.s32 0, %v3528
    %v3530 = vrot.slane %v3525, %v3529
    %v3531 = vlaneseq
    %v3532 = vshrl.u32 %v3531, 7
    %v3533 = vsub.s32 1, %v3532
    %v3534 = vrot.slane %v3525, %v3533
    %v3561 = vunpack.c.l.b16 %v3501
    %v3562 = vunpack.c.h.b16 %v3501
    %v3563 = vunpack.c.l.b16 %v3502
    %v3564 = vunpack.c.h.b16 %v3502
    %v3565 = vunpack.c.l.b16 %v3503
    %v3566 = vunpack.c.h.b16 %v3503
    %v3567 = vunpack.c.l.b16 %v3504
    %v3568 = vunpack.c.h.b16 %v3504
    %v3569 = vunpack.c.l.b16 %v3505
    %v3570 = vunpack.c.h.b16 %v3505
    %v3571 = vunpack.c.l.b16 %v3506
    %v3572 = vunpack.c.h.b16 %v3506
    %v3573 = vunpack.c.l.b16 %v3507
    %v3574 = vunpack.c.h.b16 %v3507
    %v3575 = vunpack.c.l.b16 %v3508
    %v3576 = vunpack.c.h.b16 %v3508
    %v3577 = vunpack.c.l.b16 %v3509
    %v3578 = vunpack.c.h.b16 %v3509
    %v3579 = vunpack.c.l.b16 %v3510
    %v3580 = vunpack.c.h.b16 %v3510
    %v3581 = vunpack.c.l.b16 %v3511
    %v3582 = vunpack.c.h.b16 %v3511
    %v3583 = vunpack.c.l.b16 %v3512
    %v3584 = vunpack.c.h.b16 %v3512
    %v3585 = vunpack.c.l.b16 %v3513
    %v3586 = vunpack.c.h.b16 %v3513
    %v3587 = vunpack.c.l.b16 %v3514
    %v3588 = vunpack.c.h.b16 %v3514
    %v3589 = vunpack.c.l.b16 %v3515
    %v3590 = vunpack.c.h.b16 %v3515
    %v3591 = vunpack.c.l.b16 %v3516
    %v3592 = vunpack.c.h.b16 %v3516
    %v3593 = vunpack.c.l.b16 %v3517
    %v3594 = vunpack.c.h.b16 %v3517
    %v3595 = vunpack.c.l.b16 %v3518
    %v3596 = vunpack.c.h.b16 %v3518
    %v3597 = vunpack.c.l.b16 %v3519
    %v3598 = vunpack.c.h.b16 %v3519
    %v3599 = vunpack.c.l.b16 %v3520
    %v3600 = vunpack.c.h.b16 %v3520
    %v3601 = vunpack.c.l.b16 %v3521
    %v3602 = vunpack.c.h.b16 %v3521
    %v3603 = vunpack.c.l.b16 %v3522
    %v3604 = vunpack.c.h.b16 %v3522
    %v3605 = vunpack.c.l.b16 %v3523
    %v3606 = vunpack.c.h.b16 %v3523
    %v3607 = vunpack.c.l.b16 %v3524
    %v3608 = vunpack.c.h.b16 %v3524
    %v3609 = vpack.c.b16 %v3563, %v3561
    %v3610 = vpack.c.b16 %v3564, %v3562
    %v3611 = vpack.c.b16 %v3567, %v3565
    %v3612 = vpack.c.b16 %v3568, %v3566
    %v3613 = vpack.c.b16 %v3571, %v3569
    %v3614 = vpack.c.b16 %v3572, %v3570
    %v3615 = vpack.c.b16 %v3575, %v3573
    %v3616 = vpack.c.b16 %v3576, %v3574
    %v3617 = vpack.c.b16 %v3579, %v3577
    %v3618 = vpack.c.b16 %v3580, %v3578
    %v3619 = vpack.c.b16 %v3583, %v3581
    %v3620 = vpack.c.b16 %v3584, %v3582
    %v3621 = vpack.c.b16 %v3587, %v3585
    %v3622 = vpack.c.b16 %v3588, %v3586
    %v3623 = vpack.c.b16 %v3591, %v3589
    %v3624 = vpack.c.b16 %v3592, %v3590
    %v3625 = vpack.c.b16 %v3595, %v3593
    %v3626 = vpack.c.b16 %v3596, %v3594
    %v3627 = vpack.c.b16 %v3599, %v3597
    %v3628 = vpack.c.b16 %v3600, %v3598
    %v3629 = vpack.c.b16 %v3603, %v3601
    %v3630 = vpack.c.b16 %v3604, %v3602
    %v3631 = vpack.c.b16 %v3607, %v3605
    %v3632 = vpack.c.b16 %v3608, %v3606
    %v3658 = vsel %vm3057, %v3498, 0
    %v3661 = vsel %vm3057, %v3500, 0
    %3663 = vmatprep.subr.bf16.mxu0 %v3610
    %3664 = vmatpush1.bf16.msra.mxu0 %v3609
    %3665 = vmatprep.subr.bf16.mxu0 %v3612
    %3666 = vmatpush1.bf16.msra.mxu0 %v3611
    %3667 = vmatprep.subr.bf16.mxu0 %v3614
    %3668 = vmatpush1.bf16.msra.mxu0 %v3613
    %3669 = vmatprep.subr.bf16.mxu0 %v3616
    %3670 = vmatpush1.bf16.msra.mxu0 %v3615
    %3671 = vmatprep.subr.bf16.mxu0 %v3618
    %3672 = vmatpush1.bf16.msra.mxu0 %v3617
    %3673 = vmatprep.subr.bf16.mxu0 %v3620
    %3674 = vmatpush1.bf16.msra.mxu0 %v3619
    %3675 = vmatprep.subr.bf16.mxu0 %v3622
    %3676 = vmatpush1.bf16.msra.mxu0 %v3621
    %3677 = vmatprep.subr.bf16.mxu0 %v3624
    %3678 = vmatpush1.bf16.msra.mxu0 %v3623
    %3679 = vmatprep.subr.bf16.mxu0 %v3626
    %3680 = vmatpush1.bf16.msra.mxu0 %v3625
    %3681 = vmatprep.subr.bf16.mxu0 %v3628
    %3682 = vmatpush1.bf16.msra.mxu0 %v3627
    %3683 = vmatprep.subr.bf16.mxu0 %v3630
    %3684 = vmatpush1.bf16.msra.mxu0 %v3629
    %3685 = vmatprep.subr.bf16.mxu0 %v3632
    %3686 = vmatpush1.bf16.msra.mxu0 %v3631
    %3687 = vmatprep.subr.bf16.mxu0 0
    %3688 = vmatpush1.bf16.msra.mxu0 0
    %3689 = vmatprep.subr.bf16.mxu0 0
    %3690 = vmatpush1.bf16.msra.mxu0 0
    %3691 = vmatprep.subr.bf16.mxu0 0
    %3692 = vmatpush1.bf16.msra.mxu0 0
    %3693 = vmatprep.subr.bf16.mxu0 0
    %3694 = vmatpush1.bf16.msra.mxu0 0
    %3695 = vmatprep.mubr.bf16.mxu0 %v3658
    %3696 = vmatmul.mubr.bf16.gmra.mrb[0].mxu0 %v3497
    %v3697 = vpop.f32.mrb[0].mxu0
    %v3698 = vadd.f32 %v3530, %v3697
    %v3699 = vpop.f32.mrb[0].mxu0
    %v3700 = vadd.f32 %v3534, %v3699
    %v3701 = vpop.f32.mrb[0].mxu0
    %v3702 = vadd.f32 %v3530, %v3701
    %v3703 = vpop.f32.mrb[0].mxu0
    %v3704 = vadd.f32 %v3534, %v3703
    %3705 = vmatprep.mubr.bf16.mxu0 %v3661
    %3706 = vmatmul.mubr.bf16.gmra.mrb[0].mxu0 %v3499
    %v3707 = vpop.f32.mrb[0].mxu0
    %v3708 = vadd.f32 %v3530, %v3707
    %v3709 = vpop.f32.mrb[0].mxu0
    %v3710 = vadd.f32 %v3534, %v3709
    %v3711 = vpop.f32.mrb[0].mxu0
    %v3712 = vadd.f32 %v3530, %v3711
    %v3713 = vpop.f32.mrb[0].mxu0
    %v3714 = vadd.f32 %v3534, %v3713
    %3715 = vdwg.mxu0
    %v3716 = vmax.f32 %v3698, 0.0
    %v3717 = vmax.f32 %v3700, 0.0
    %v3718 = vmax.f32 %v3702, 0.0
    %v3719 = vmax.f32 %v3704, 0.0
    %v3720 = vmax.f32 %v3708, 0.0
    %v3721 = vmax.f32 %v3710, 0.0
    %v3722 = vmax.f32 %v3712, 0.0
    %v3723 = vmax.f32 %v3714, 0.0
    %3724 = vst [vmem:[#allocation3] sm:$0xff] %v3716
    %3725 = vst.msk [vmem:[#allocation3 + $0x8] sm:$0xff] %vm3057, %v3717
    %3726 = vst [vmem:[#allocation3 + $0x30] sm:$0xff] %v3718
    %3727 = vst.msk [vmem:[#allocation3 + $0x38] sm:$0xff] %vm3057, %v3719
    %3728 = vst [vmem:[#allocation3 + $0x60] sm:$0xff] %v3720
    %3729 = vst.msk [vmem:[#allocation3 + $0x68] sm:$0xff] %vm3057, %v3721
    %3730 = vst [vmem:[#allocation3 + $0x90] sm:$0xff] %v3722
    %3731 = vst.msk [vmem:[#allocation3 + $0x98] sm:$0xff] %vm3057, %v3723
    %v3732 = vld [vmem:[#allocation3] sm:$0xff]
    %v3733 = vld [vmem:[#allocation3 + $0x8] sm:$0xff]
    %v3734 = vld [vmem:[#allocation3 + $0x30] sm:$0xff]
    %v3735 = vld [vmem:[#allocation3 + $0x38] sm:$0xff]
    %v3736 = vld [vmem:[#allocation3 + $0x60] sm:$0xff]
    %v3737 = vld [vmem:[#allocation3 + $0x68] sm:$0xff]
    %v3738 = vld [vmem:[#allocation3 + $0x90] sm:$0xff]
    %v3739 = vld [vmem:[#allocation3 + $0x98] sm:$0xff]
    %s3740 = scalar_lea.vmem [#allocation30], 4
    %v3741 = vld [vmem:[%s3740] ss:$8 sm:$0x3]
    %v3743 = vlaneseq
    %v3744 = vshrl.u32 %v3743, 7
    %v3745 = vsub.s32 0, %v3744
    %v3746 = vrot.slane %v3741, %v3745
    %v3747 = vlaneseq
    %v3748 = vshrl.u32 %v3747, 7
    %v3749 = vsub.s32 1, %v3748
    %v3750 = vrot.slane %v3741, %v3749
    %v3753 = vmul.f32 %v3732, %v3746
    %v3754 = vmul.f32 %v3733, %v3750
    %v3755 = vmul.f32 %v3734, %v3746
    %v3756 = vmul.f32 %v3735, %v3750
    %v3757 = vmul.f32 %v3736, %v3746
    %v3758 = vmul.f32 %v3737, %v3750
    %v3759 = vmul.f32 %v3738, %v3746
    %v3760 = vmul.f32 %v3739, %v3750
    %v3761 = vrot.slane %v3732, 3
    %v3762 = vrot.slane %v3733, 3
    %v3763 = vrot.slane %v3734, 3
    %v3764 = vrot.slane %v3735, 3
    %v3765 = vrot.slane %v3736, 3
    %v3766 = vrot.slane %v3737, 3
    %v3767 = vrot.slane %v3738, 3
    %v3768 = vrot.slane %v3739, 3
    %v3769 = vsel %vm2649, %v3765, %v3767
    %v3770 = vsel %vm2649, %v3766, %v3768
    %v3771 = vsel %vm2649, %v3763, %v3765
    %v3772 = vsel %vm2649, %v3764, %v3766
    %v3773 = vsel %vm2649, %v3761, %v3763
    %v3774 = vsel %vm2649, %v3762, %v3764
    %v3775 = vsel %vm2649, %v3767, %v3761
    %v3776 = vsel %vm2649, %v3768, %v3762
    %v3777 = vsel %vm2658, %v3775, 0.0
    %v3778 = vsel %vm2658, %v3776, 0.0
    %v3779 = vsel %vm2659, %v3773, 0.0
    %v3780 = vsel %vm2659, %v3774, 0.0
    %v3781 = vsel %vm2660, %v3771, 0.0
    %v3782 = vsel %vm2660, %v3772, 0.0
    %v3783 = vsel %vm2661, %v3769, 0.0
    %v3784 = vsel %vm2661, %v3770, 0.0
    %v3785 = vld [vmem:[#allocation30] ss:$8 sm:$0x3]
    %v3787 = vlaneseq
    %v3788 = vshrl.u32 %v3787, 7
    %v3789 = vsub.s32 0, %v3788
    %v3790 = vrot.slane %v3785, %v3789
    %v3791 = vlaneseq
    %v3792 = vshrl.u32 %v3791, 7
    %v3793 = vsub.s32 1, %v3792
    %v3794 = vrot.slane %v3785, %v3793
    %v3797 = vmul.f32 %v3777, %v3790
    %v3798 = vmul.f32 %v3778, %v3794
    %v3799 = vmul.f32 %v3779, %v3790
    %v3800 = vmul.f32 %v3780, %v3794
    %v3801 = vmul.f32 %v3781, %v3790
    %v3802 = vmul.f32 %v3782, %v3794
    %v3803 = vmul.f32 %v3783, %v3790
    %v3804 = vmul.f32 %v3784, %v3794
    %v3805 = vadd.f32 %v3753, %v3797
    %v3806 = vadd.f32 %v3754, %v3798
    %v3807 = vadd.f32 %v3755, %v3799
    %v3808 = vadd.f32 %v3756, %v3800
    %v3809 = vadd.f32 %v3757, %v3801
    %v3810 = vadd.f32 %v3758, %v3802
    %v3811 = vadd.f32 %v3759, %v3803
    %v3812 = vadd.f32 %v3760, %v3804
    %v3813 = vrot.slane %v3732, 4
    %v3814 = vrot.slane %v3733, 4
    %v3815 = vrot.slane %v3734, 4
    %v3816 = vrot.slane %v3735, 4
    %v3817 = vrot.slane %v3736, 4
    %v3818 = vrot.slane %v3737, 4
    %v3819 = vrot.slane %v3738, 4
    %v3820 = vrot.slane %v3739, 4
    %v3821 = vsel %vm2683, %v3817, %v3819
    %v3822 = vsel %vm2683, %v3818, %v3820
    %v3823 = vsel %vm2683, %v3815, %v3817
    %v3824 = vsel %vm2683, %v3816, %v3818
    %v3825 = vsel %vm2683, %v3813, %v3815
    %v3826 = vsel %vm2683, %v3814, %v3816
    %v3827 = vsel %vm2683, %v3819, %v3813
    %v3828 = vsel %vm2683, %v3820, %v3814
    %v3829 = vsel %vm2692, %v3827, 0.0
    %v3830 = vsel %vm2692, %v3828, 0.0
    %v3831 = vsel %vm2693, %v3825, 0.0
    %v3832 = vsel %vm2693, %v3826, 0.0
    %v3833 = vsel %vm2694, %v3823, 0.0
    %v3834 = vsel %vm2694, %v3824, 0.0
    %v3835 = vsel %vm2695, %v3821, 0.0
    %v3836 = vsel %vm2695, %v3822, 0.0
    %s3837 = scalar_lea.vmem [#allocation30], 1
    %v3838 = vld [vmem:[%s3837] ss:$8 sm:$0x3]
    %v3840 = vlaneseq
    %v3841 = vshrl.u32 %v3840, 7
    %v3842 = vsub.s32 0, %v3841
    %v3843 = vrot.slane %v3838, %v3842
    %v3844 = vlaneseq
    %v3845 = vshrl.u32 %v3844, 7
    %v3846 = vsub.s32 1, %v3845
    %v3847 = vrot.slane %v3838, %v3846
    %v3850 = vmul.f32 %v3829, %v3843
    %v3851 = vmul.f32 %v3830, %v3847
    %v3852 = vmul.f32 %v3831, %v3843
    %v3853 = vmul.f32 %v3832, %v3847
    %v3854 = vmul.f32 %v3833, %v3843
    %v3855 = vmul.f32 %v3834, %v3847
    %v3856 = vmul.f32 %v3835, %v3843
    %v3857 = vmul.f32 %v3836, %v3847
    %v3858 = vadd.f32 %v3805, %v3850
    %v3859 = vadd.f32 %v3806, %v3851
    %v3860 = vadd.f32 %v3807, %v3852
    %v3861 = vadd.f32 %v3808, %v3853
    %v3862 = vadd.f32 %v3809, %v3854
    %v3863 = vadd.f32 %v3810, %v3855
    %v3864 = vadd.f32 %v3811, %v3856
    %v3865 = vadd.f32 %v3812, %v3857
    %v3866 = vrot.slane %v3732, 5
    %v3867 = vrot.slane %v3733, 5
    %v3868 = vrot.slane %v3734, 5
    %v3869 = vrot.slane %v3735, 5
    %v3870 = vrot.slane %v3736, 5
    %v3871 = vrot.slane %v3737, 5
    %v3872 = vrot.slane %v3738, 5
    %v3873 = vrot.slane %v3739, 5
    %v3874 = vsel %vm2717, %v3870, %v3872
    %v3875 = vsel %vm2717, %v3871, %v3873
    %v3876 = vsel %vm2717, %v3868, %v3870
    %v3877 = vsel %vm2717, %v3869, %v3871
    %v3878 = vsel %vm2717, %v3866, %v3868
    %v3879 = vsel %vm2717, %v3867, %v3869
    %v3880 = vsel %vm2717, %v3872, %v3866
    %v3881 = vsel %vm2717, %v3873, %v3867
    %v3882 = vsel %vm2726, %v3880, 0.0
    %v3883 = vsel %vm2726, %v3881, 0.0
    %v3884 = vsel %vm2727, %v3878, 0.0
    %v3885 = vsel %vm2727, %v3879, 0.0
    %v3886 = vsel %vm2728, %v3876, 0.0
    %v3887 = vsel %vm2728, %v3877, 0.0
    %v3888 = vsel %vm2729, %v3874, 0.0
    %v3889 = vsel %vm2729, %v3875, 0.0
    %s3890 = scalar_lea.vmem [#allocation30], 2
    %v3891 = vld [vmem:[%s3890] ss:$8 sm:$0x3]
    %v3893 = vlaneseq
    %v3894 = vshrl.u32 %v3893, 7
    %v3895 = vsub.s32 0, %v3894
    %v3896 = vrot.slane %v3891, %v3895
    %v3897 = vlaneseq
    %v3898 = vshrl.u32 %v3897, 7
    %v3899 = vsub.s32 1, %v3898
    %v3900 = vrot.slane %v3891, %v3899
    %v3903 = vmul.f32 %v3882, %v3896
    %v3904 = vmul.f32 %v3883, %v3900
    %v3905 = vmul.f32 %v3884, %v3896
    %v3906 = vmul.f32 %v3885, %v3900
    %v3907 = vmul.f32 %v3886, %v3896
    %v3908 = vmul.f32 %v3887, %v3900
    %v3909 = vmul.f32 %v3888, %v3896
    %v3910 = vmul.f32 %v3889, %v3900
    %v3911 = vadd.f32 %v3858, %v3903
    %v3912 = vadd.f32 %v3859, %v3904
    %v3913 = vadd.f32 %v3860, %v3905
    %v3914 = vadd.f32 %v3861, %v3906
    %v3915 = vadd.f32 %v3862, %v3907
    %v3916 = vadd.f32 %v3863, %v3908
    %v3917 = vadd.f32 %v3864, %v3909
    %v3918 = vadd.f32 %v3865, %v3910
    %v3919 = vrot.slane %v3732, 7
    %v3920 = vrot.slane %v3733, 7
    %v3921 = vrot.slane %v3734, 7
    %v3922 = vrot.slane %v3735, 7
    %v3923 = vrot.slane %v3736, 7
    %v3924 = vrot.slane %v3737, 7
    %v3925 = vrot.slane %v3738, 7
    %v3926 = vrot.slane %v3739, 7
    %v3927 = vsel %vm903, %v3923, %v3925
    %v3928 = vsel %vm903, %v3924, %v3926
    %v3929 = vsel %vm903, %v3921, %v3923
    %v3930 = vsel %vm903, %v3922, %v3924
    %v3931 = vsel %vm903, %v3919, %v3921
    %v3932 = vsel %vm903, %v3920, %v3922
    %v3933 = vsel %vm903, %v3925, %v3919
    %v3934 = vsel %vm903, %v3926, %v3920
    %v3935 = vsel %vm2759, %v3933, 0.0
    %v3936 = vsel %vm2759, %v3934, 0.0
    %v3937 = vsel %vm2760, %v3931, 0.0
    %v3938 = vsel %vm2760, %v3932, 0.0
    %v3939 = vsel %vm2761, %v3929, 0.0
    %v3940 = vsel %vm2761, %v3930, 0.0
    %v3941 = vsel %vm2762, %v3927, 0.0
    %v3942 = vsel %vm2762, %v3928, 0.0
    %s3943 = scalar_lea.vmem [#allocation30], 3
    %v3944 = vld [vmem:[%s3943] ss:$8 sm:$0x3]
    %v3946 = vlaneseq
    %v3947 = vshrl.u32 %v3946, 7
    %v3948 = vsub.s32 0, %v3947
    %v3949 = vrot.slane %v3944, %v3948
    %v3950 = vlaneseq
    %v3951 = vshrl.u32 %v3950, 7
    %v3952 = vsub.s32 1, %v3951
    %v3953 = vrot.slane %v3944, %v3952
    %v3956 = vmul.f32 %v3935, %v3949
    %v3957 = vmul.f32 %v3936, %v3953
    %v3958 = vmul.f32 %v3937, %v3949
    %v3959 = vmul.f32 %v3938, %v3953
    %v3960 = vmul.f32 %v3939, %v3949
    %v3961 = vmul.f32 %v3940, %v3953
    %v3962 = vmul.f32 %v3941, %v3949
    %v3963 = vmul.f32 %v3942, %v3953
    %v3964 = vadd.f32 %v3911, %v3956
    %v3965 = vadd.f32 %v3912, %v3957
    %v3966 = vadd.f32 %v3913, %v3958
    %v3967 = vadd.f32 %v3914, %v3959
    %v3968 = vadd.f32 %v3915, %v3960
    %v3969 = vadd.f32 %v3916, %v3961
    %v3970 = vadd.f32 %v3917, %v3962
    %v3971 = vadd.f32 %v3918, %v3963
    %v3972 = vrot.slane %v3732, 1
    %v3973 = vrot.slane %v3733, 1
    %v3974 = vrot.slane %v3734, 1
    %v3975 = vrot.slane %v3735, 1
    %v3976 = vrot.slane %v3736, 1
    %v3977 = vrot.slane %v3737, 1
    %v3978 = vrot.slane %v3738, 1
    %v3979 = vrot.slane %v3739, 1
    %v3980 = vsel %vm1106, %v3976, %v3978
    %v3981 = vsel %vm1106, %v3977, %v3979
    %v3982 = vsel %vm1106, %v3974, %v3976
    %v3983 = vsel %vm1106, %v3975, %v3977
    %v3984 = vsel %vm1106, %v3972, %v3974
    %v3985 = vsel %vm1106, %v3973, %v3975
    %v3986 = vsel %vm1106, %v3978, %v3972
    %v3987 = vsel %vm1106, %v3979, %v3973
    %v3988 = vsel %vm2792, %v3984, 0.0
    %v3989 = vsel %vm2792, %v3985, 0.0
    %v3990 = vsel %vm2793, %v3982, 0.0
    %v3991 = vsel %vm2793, %v3983, 0.0
    %v3992 = vsel %vm2794, %v3980, 0.0
    %v3993 = vsel %vm2794, %v3981, 0.0
    %v3994 = vsel %vm2795, %v3986, 0.0
    %v3995 = vsel %vm2795, %v3987, 0.0
    %s3996 = scalar_lea.vmem [#allocation30], 5
    %v3997 = vld [vmem:[%s3996] ss:$8 sm:$0x3]
    %v3999 = vlaneseq
    %v4000 = vshrl.u32 %v3999, 7
    %v4001 = vsub.s32 0, %v4000
    %v4002 = vrot.slane %v3997, %v4001
    %v4003 = vlaneseq
    %v4004 = vshrl.u32 %v4003, 7
    %v4005 = vsub.s32 1, %v4004
    %v4006 = vrot.slane %v3997, %v4005
    %v4009 = vmul.f32 %v3988, %v4002
    %v4010 = vmul.f32 %v3989, %v4006
    %v4011 = vmul.f32 %v3990, %v4002
    %v4012 = vmul.f32 %v3991, %v4006
    %v4013 = vmul.f32 %v3992, %v4002
    %v4014 = vmul.f32 %v3993, %v4006
    %v4015 = vmul.f32 %v3994, %v4002
    %v4016 = vmul.f32 %v3995, %v4006
    %v4017 = vadd.f32 %v3964, %v4009
    %v4018 = vadd.f32 %v3965, %v4010
    %v4019 = vadd.f32 %v3966, %v4011
    %v4020 = vadd.f32 %v3967, %v4012
    %v4021 = vadd.f32 %v3968, %v4013
    %v4022 = vadd.f32 %v3969, %v4014
    %v4023 = vadd.f32 %v3970, %v4015
    %v4024 = vadd.f32 %v3971, %v4016
    %v4025 = vsel %vm2817, %v3773, 0.0
    %v4026 = vsel %vm2817, %v3774, 0.0
    %v4027 = vsel %vm2818, %v3771, 0.0
    %v4028 = vsel %vm2818, %v3772, 0.0
    %v4029 = vsel %vm2819, %v3769, 0.0
    %v4030 = vsel %vm2819, %v3770, 0.0
    %v4031 = vsel %vm2820, %v3775, 0.0
    %v4032 = vsel %vm2820, %v3776, 0.0
    %s4033 = scalar_lea.vmem [#allocation30], 6
    %v4034 = vld [vmem:[%s4033] ss:$8 sm:$0x3]
    %v4036 = vlaneseq
    %v4037 = vshrl.u32 %v4036, 7
    %v4038 = vsub.s32 0, %v4037
    %v4039 = vrot.slane %v4034, %v4038
    %v4040 = vlaneseq
    %v4041 = vshrl.u32 %v4040, 7
    %v4042 = vsub.s32 1, %v4041
    %v4043 = vrot.slane %v4034, %v4042
    %v4046 = vmul.f32 %v4025, %v4039
    %v4047 = vmul.f32 %v4026, %v4043
    %v4048 = vmul.f32 %v4027, %v4039
    %v4049 = vmul.f32 %v4028, %v4043
    %v4050 = vmul.f32 %v4029, %v4039
    %v4051 = vmul.f32 %v4030, %v4043
    %v4052 = vmul.f32 %v4031, %v4039
    %v4053 = vmul.f32 %v4032, %v4043
    %v4054 = vadd.f32 %v4017, %v4046
    %v4055 = vadd.f32 %v4018, %v4047
    %v4056 = vadd.f32 %v4019, %v4048
    %v4057 = vadd.f32 %v4020, %v4049
    %v4058 = vadd.f32 %v4021, %v4050
    %v4059 = vadd.f32 %v4022, %v4051
    %v4060 = vadd.f32 %v4023, %v4052
    %v4061 = vadd.f32 %v4024, %v4053
    %v4062 = vsel %vm2842, %v3825, 0.0
    %v4063 = vsel %vm2842, %v3826, 0.0
    %v4064 = vsel %vm2843, %v3823, 0.0
    %v4065 = vsel %vm2843, %v3824, 0.0
    %v4066 = vsel %vm2844, %v3821, 0.0
    %v4067 = vsel %vm2844, %v3822, 0.0
    %v4068 = vsel %vm2845, %v3827, 0.0
    %v4069 = vsel %vm2845, %v3828, 0.0
    %s4070 = scalar_lea.vmem [#allocation30], 7
    %v4071 = vld [vmem:[%s4070] ss:$8 sm:$0x3]
    %v4073 = vlaneseq
    %v4074 = vshrl.u32 %v4073, 7
    %v4075 = vsub.s32 0, %v4074
    %v4076 = vrot.slane %v4071, %v4075
    %v4077 = vlaneseq
    %v4078 = vshrl.u32 %v4077, 7
    %v4079 = vsub.s32 1, %v4078
    %v4080 = vrot.slane %v4071, %v4079
    %v4083 = vmul.f32 %v4062, %v4076
    %v4084 = vmul.f32 %v4063, %v4080
    %v4085 = vmul.f32 %v4064, %v4076
    %v4086 = vmul.f32 %v4065, %v4080
    %v4087 = vmul.f32 %v4066, %v4076
    %v4088 = vmul.f32 %v4067, %v4080
    %v4089 = vmul.f32 %v4068, %v4076
    %v4090 = vmul.f32 %v4069, %v4080
    %v4091 = vadd.f32 %v4054, %v4083
    %v4092 = vadd.f32 %v4055, %v4084
    %v4093 = vadd.f32 %v4056, %v4085
    %v4094 = vadd.f32 %v4057, %v4086
    %v4095 = vadd.f32 %v4058, %v4087
    %v4096 = vadd.f32 %v4059, %v4088
    %v4097 = vadd.f32 %v4060, %v4089
    %v4098 = vadd.f32 %v4061, %v4090
    %v4099 = vsel %vm2867, %v3878, 0.0
    %v4100 = vsel %vm2867, %v3879, 0.0
    %v4101 = vsel %vm2868, %v3876, 0.0
    %v4102 = vsel %vm2868, %v3877, 0.0
    %v4103 = vsel %vm2869, %v3874, 0.0
    %v4104 = vsel %vm2869, %v3875, 0.0
    %v4105 = vsel %vm2870, %v3880, 0.0
    %v4106 = vsel %vm2870, %v3881, 0.0
    %s4107 = scalar_lea.vmem [#allocation30], 16
    %v4108 = vld [vmem:[%s4107] ss:$8 sm:$0x3]
    %v4110 = vlaneseq
    %v4111 = vshrl.u32 %v4110, 7
    %v4112 = vsub.s32 0, %v4111
    %v4113 = vrot.slane %v4108, %v4112
    %v4114 = vlaneseq
    %v4115 = vshrl.u32 %v4114, 7
    %v4116 = vsub.s32 1, %v4115
    %v4117 = vrot.slane %v4108, %v4116
    %v4120 = vmul.f32 %v4099, %v4113
    %v4121 = vmul.f32 %v4100, %v4117
    %v4122 = vmul.f32 %v4101, %v4113
    %v4123 = vmul.f32 %v4102, %v4117
    %v4124 = vmul.f32 %v4103, %v4113
    %v4125 = vmul.f32 %v4104, %v4117
    %v4126 = vmul.f32 %v4105, %v4113
    %v4127 = vmul.f32 %v4106, %v4117
    %v4128 = vadd.f32 %v4091, %v4120
    %v4129 = vadd.f32 %v4092, %v4121
    %v4130 = vadd.f32 %v4093, %v4122
    %v4131 = vadd.f32 %v4094, %v4123
    %v4132 = vadd.f32 %v4095, %v4124
    %v4133 = vadd.f32 %v4096, %v4125
    %v4134 = vadd.f32 %v4097, %v4126
    %v4135 = vadd.f32 %v4098, %v4127
    %v4136 = vld [vmem:[#allocation31] sm:$0x3]
    %v4138 = vlaneseq
    %v4139 = vshrl.u32 %v4138, 7
    %v4140 = vsub.s32 0, %v4139
    %v4141 = vrot.slane %v4136, %v4140
    %v4142 = vlaneseq
    %v4143 = vshrl.u32 %v4142, 7
    %v4144 = vsub.s32 1, %v4143
    %v4145 = vrot.slane %v4136, %v4144
    %v4148 = vadd.f32 %v4128, %v4141
    %v4149 = vadd.f32 %v4129, %v4145
    %v4150 = vadd.f32 %v4130, %v4141
    %v4151 = vadd.f32 %v4131, %v4145
    %v4152 = vadd.f32 %v4132, %v4141
    %v4153 = vadd.f32 %v4133, %v4145
    %v4154 = vadd.f32 %v4134, %v4141
    %v4155 = vadd.f32 %v4135, %v4145
    %v4156 = vmax.f32 %v4148, 0.0
    %v4157 = vmax.f32 %v4149, 0.0
    %v4158 = vmax.f32 %v4150, 0.0
    %v4159 = vmax.f32 %v4151, 0.0
    %v4160 = vmax.f32 %v4152, 0.0
    %v4161 = vmax.f32 %v4153, 0.0
    %v4162 = vmax.f32 %v4154, 0.0
    %v4163 = vmax.f32 %v4155, 0.0
    %v4164 = vpack.c.bf16 %v4158, %v4156
    %v4165 = vpack.c.bf16 %v4159, %v4157
    %v4166 = vpack.c.bf16 %v4162, %v4160
    %v4167 = vpack.c.bf16 %v4163, %v4161
    %v4168 = vld [vmem:[#allocation33] sm:$0xff]
    %v4169 = vld [vmem:[#allocation33 + $0x8] sm:$0xff]
    %v4170 = vld [vmem:[#allocation33 + $0x10] sm:$0xff]
    %v4171 = vld [vmem:[#allocation33 + $0x18] sm:$0xff]
    %v4172 = vld [vmem:[#allocation33 + $0x20] sm:$0xff]
    %v4173 = vld [vmem:[#allocation33 + $0x28] sm:$0xff]
    %v4174 = vld [vmem:[#allocation33 + $0x30] sm:$0xff]
    %v4175 = vld [vmem:[#allocation33 + $0x38] sm:$0xff]
    %v4176 = vld [vmem:[#allocation33 + $0x40] sm:$0xff]
    %v4177 = vld [vmem:[#allocation33 + $0x48] sm:$0xff]
    %v4178 = vld [vmem:[#allocation33 + $0x50] sm:$0xff]
    %v4179 = vld [vmem:[#allocation33 + $0x58] sm:$0xff]
    %v4180 = vld [vmem:[#allocation33 + $0x60] sm:$0xff]
    %v4181 = vld [vmem:[#allocation33 + $0x68] sm:$0xff]
    %v4182 = vld [vmem:[#allocation33 + $0x70] sm:$0xff]
    %v4183 = vld [vmem:[#allocation33 + $0x78] sm:$0xff]
    %v4184 = vld [vmem:[#allocation33 + $0x80] sm:$0xff]
    %v4185 = vld [vmem:[#allocation33 + $0x88] sm:$0xff]
    %v4186 = vld [vmem:[#allocation33 + $0x90] sm:$0xff]
    %v4187 = vld [vmem:[#allocation33 + $0x98] sm:$0xff]
    %v4188 = vld [vmem:[#allocation33 + $0xa0] sm:$0xff]
    %v4189 = vld [vmem:[#allocation33 + $0xa8] sm:$0xff]
    %v4190 = vld [vmem:[#allocation33 + $0xb0] sm:$0xff]
    %v4191 = vld [vmem:[#allocation33 + $0xb8] sm:$0xff]
    %v4192 = vld [vmem:[#allocation34] sm:$0x3]
    %v4194 = vlaneseq
    %v4195 = vshrl.u32 %v4194, 7
    %v4196 = vsub.s32 0, %v4195
    %v4197 = vrot.slane %v4192, %v4196
    %v4198 = vlaneseq
    %v4199 = vshrl.u32 %v4198, 7
    %v4200 = vsub.s32 1, %v4199
    %v4201 = vrot.slane %v4192, %v4200
    %v4228 = vunpack.c.l.b16 %v4168
    %v4229 = vunpack.c.h.b16 %v4168
    %v4230 = vunpack.c.l.b16 %v4169
    %v4231 = vunpack.c.h.b16 %v4169
    %v4232 = vunpack.c.l.b16 %v4170
    %v4233 = vunpack.c.h.b16 %v4170
    %v4234 = vunpack.c.l.b16 %v4171
    %v4235 = vunpack.c.h.b16 %v4171
    %v4236 = vunpack.c.l.b16 %v4172
    %v4237 = vunpack.c.h.b16 %v4172
    %v4238 = vunpack.c.l.b16 %v4173
    %v4239 = vunpack.c.h.b16 %v4173
    %v4240 = vunpack.c.l.b16 %v4174
    %v4241 = vunpack.c.h.b16 %v4174
    %v4242 = vunpack.c.l.b16 %v4175
    %v4243 = vunpack.c.h.b16 %v4175
    %v4244 = vunpack.c.l.b16 %v4176
    %v4245 = vunpack.c.h.b16 %v4176
    %v4246 = vunpack.c.l.b16 %v4177
    %v4247 = vunpack.c.h.b16 %v4177
    %v4248 = vunpack.c.l.b16 %v4178
    %v4249 = vunpack.c.h.b16 %v4178
    %v4250 = vunpack.c.l.b16 %v4179
    %v4251 = vunpack.c.h.b16 %v4179
    %v4252 = vunpack.c.l.b16 %v4180
    %v4253 = vunpack.c.h.b16 %v4180
    %v4254 = vunpack.c.l.b16 %v4181
    %v4255 = vunpack.c.h.b16 %v4181
    %v4256 = vunpack.c.l.b16 %v4182
    %v4257 = vunpack.c.h.b16 %v4182
    %v4258 = vunpack.c.l.b16 %v4183
    %v4259 = vunpack.c.h.b16 %v4183
    %v4260 = vunpack.c.l.b16 %v4184
    %v4261 = vunpack.c.h.b16 %v4184
    %v4262 = vunpack.c.l.b16 %v4185
    %v4263 = vunpack.c.h.b16 %v4185
    %v4264 = vunpack.c.l.b16 %v4186
    %v4265 = vunpack.c.h.b16 %v4186
    %v4266 = vunpack.c.l.b16 %v4187
    %v4267 = vunpack.c.h.b16 %v4187
    %v4268 = vunpack.c.l.b16 %v4188
    %v4269 = vunpack.c.h.b16 %v4188
    %v4270 = vunpack.c.l.b16 %v4189
    %v4271 = vunpack.c.h.b16 %v4189
    %v4272 = vunpack.c.l.b16 %v4190
    %v4273 = vunpack.c.h.b16 %v4190
    %v4274 = vunpack.c.l.b16 %v4191
    %v4275 = vunpack.c.h.b16 %v4191
    %v4276 = vpack.c.b16 %v4230, %v4228
    %v4277 = vpack.c.b16 %v4231, %v4229
    %v4278 = vpack.c.b16 %v4234, %v4232
    %v4279 = vpack.c.b16 %v4235, %v4233
    %v4280 = vpack.c.b16 %v4238, %v4236
    %v4281 = vpack.c.b16 %v4239, %v4237
    %v4282 = vpack.c.b16 %v4242, %v4240
    %v4283 = vpack.c.b16 %v4243, %v4241
    %v4284 = vpack.c.b16 %v4246, %v4244
    %v4285 = vpack.c.b16 %v4247, %v4245
    %v4286 = vpack.c.b16 %v4250, %v4248
    %v4287 = vpack.c.b16 %v4251, %v4249
    %v4288 = vpack.c.b16 %v4254, %v4252
    %v4289 = vpack.c.b16 %v4255, %v4253
    %v4290 = vpack.c.b16 %v4258, %v4256
    %v4291 = vpack.c.b16 %v4259, %v4257
    %v4292 = vpack.c.b16 %v4262, %v4260
    %v4293 = vpack.c.b16 %v4263, %v4261
    %v4294 = vpack.c.b16 %v4266, %v4264
    %v4295 = vpack.c.b16 %v4267, %v4265
    %v4296 = vpack.c.b16 %v4270, %v4268
    %v4297 = vpack.c.b16 %v4271, %v4269
    %v4298 = vpack.c.b16 %v4274, %v4272
    %v4299 = vpack.c.b16 %v4275, %v4273
    %v4325 = vsel %vm3057, %v4165, 0
    %v4328 = vsel %vm3057, %v4167, 0
    %4330 = vmatprep.subr.bf16.mxu0 %v4277
    %4331 = vmatpush1.bf16.msra.mxu0 %v4276
    %4332 = vmatprep.subr.bf16.mxu0 %v4279
    %4333 = vmatpush1.bf16.msra.mxu0 %v4278
    %4334 = vmatprep.subr.bf16.mxu0 %v4281
    %4335 = vmatpush1.bf16.msra.mxu0 %v4280
    %4336 = vmatprep.subr.bf16.mxu0 %v4283
    %4337 = vmatpush1.bf16.msra.mxu0 %v4282
    %4338 = vmatprep.subr.bf16.mxu0 %v4285
    %4339 = vmatpush1.bf16.msra.mxu0 %v4284
    %4340 = vmatprep.subr.bf16.mxu0 %v4287
    %4341 = vmatpush1.bf16.msra.mxu0 %v4286
    %4342 = vmatprep.subr.bf16.mxu0 %v4289
    %4343 = vmatpush1.bf16.msra.mxu0 %v4288
    %4344 = vmatprep.subr.bf16.mxu0 %v4291
    %4345 = vmatpush1.bf16.msra.mxu0 %v4290
    %4346 = vmatprep.subr.bf16.mxu0 %v4293
    %4347 = vmatpush1.bf16.msra.mxu0 %v4292
    %4348 = vmatprep.subr.bf16.mxu0 %v4295
    %4349 = vmatpush1.bf16.msra.mxu0 %v4294
    %4350 = vmatprep.subr.bf16.mxu0 %v4297
    %4351 = vmatpush1.bf16.msra.mxu0 %v4296
    %4352 = vmatprep.subr.bf16.mxu0 %v4299
    %4353 = vmatpush1.bf16.msra.mxu0 %v4298
    %4354 = vmatprep.subr.bf16.mxu0 0
    %4355 = vmatpush1.bf16.msra.mxu0 0
    %4356 = vmatprep.subr.bf16.mxu0 0
    %4357 = vmatpush1.bf16.msra.mxu0 0
    %4358 = vmatprep.subr.bf16.mxu0 0
    %4359 = vmatpush1.bf16.msra.mxu0 0
    %4360 = vmatprep.subr.bf16.mxu0 0
    %4361 = vmatpush1.bf16.msra.mxu0 0
    %4362 = vmatprep.mubr.bf16.mxu0 %v4325
    %4363 = vmatmul.mubr.bf16.gmra.mrb[0].mxu0 %v4164
    %v4364 = vpop.f32.mrb[0].mxu0
    %v4365 = vadd.f32 %v4197, %v4364
    %v4366 = vpop.f32.mrb[0].mxu0
    %v4367 = vadd.f32 %v4201, %v4366
    %v4368 = vpop.f32.mrb[0].mxu0
    %v4369 = vadd.f32 %v4197, %v4368
    %v4370 = vpop.f32.mrb[0].mxu0
    %v4371 = vadd.f32 %v4201, %v4370
    %4372 = vmatprep.mubr.bf16.mxu0 %v4328
    %4373 = vmatmul.mubr.bf16.gmra.mrb[0].mxu0 %v4166
    %v4374 = vpop.f32.mrb[0].mxu0
    %v4375 = vadd.f32 %v4197, %v4374
    %v4376 = vpop.f32.mrb[0].mxu0
    %v4377 = vadd.f32 %v4201, %v4376
    %v4378 = vpop.f32.mrb[0].mxu0
    %v4379 = vadd.f32 %v4197, %v4378
    %v4380 = vpop.f32.mrb[0].mxu0
    %v4381 = vadd.f32 %v4201, %v4380
    %4382 = vdwg.mxu0
    %v4383 = vmax.f32 %v4365, 0.0
    %v4384 = vmax.f32 %v4367, 0.0
    %v4385 = vmax.f32 %v4369, 0.0
    %v4386 = vmax.f32 %v4371, 0.0
    %v4387 = vmax.f32 %v4375, 0.0
    %v4388 = vmax.f32 %v4377, 0.0
    %v4389 = vmax.f32 %v4379, 0.0
    %v4390 = vmax.f32 %v4381, 0.0
    %4391 = vst [vmem:[#allocation2] sm:$0xff] %v4383
    %4392 = vst.msk [vmem:[#allocation2 + $0x8] sm:$0xff] %vm3057, %v4384
    %4393 = vst [vmem:[#allocation2 + $0x30] sm:$0xff] %v4385
    %4394 = vst.msk [vmem:[#allocation2 + $0x38] sm:$0xff] %vm3057, %v4386
    %4395 = vst [vmem:[#allocation2 + $0x60] sm:$0xff] %v4387
    %4396 = vst.msk [vmem:[#allocation2 + $0x68] sm:$0xff] %vm3057, %v4388
    %4397 = vst [vmem:[#allocation2 + $0x90] sm:$0xff] %v4389
    %4398 = vst.msk [vmem:[#allocation2 + $0x98] sm:$0xff] %vm3057, %v4390
    %v4399 = vld [vmem:[#allocation2] sm:$0xff]
    %v4400 = vld [vmem:[#allocation2 + $0x8] sm:$0xff]
    %v4401 = vld [vmem:[#allocation2 + $0x30] sm:$0xff]
    %v4402 = vld [vmem:[#allocation2 + $0x38] sm:$0xff]
    %v4403 = vld [vmem:[#allocation2 + $0x60] sm:$0xff]
    %v4404 = vld [vmem:[#allocation2 + $0x68] sm:$0xff]
    %v4405 = vld [vmem:[#allocation2 + $0x90] sm:$0xff]
    %v4406 = vld [vmem:[#allocation2 + $0x98] sm:$0xff]
    %s4407 = scalar_lea.vmem [#allocation36], 4
    %v4408 = vld [vmem:[%s4407] ss:$8 sm:$0x3]
    %v4410 = vlaneseq
    %v4411 = vshrl.u32 %v4410, 7
    %v4412 = vsub.s32 0, %v4411
    %v4413 = vrot.slane %v4408, %v4412
    %v4414 = vlaneseq
    %v4415 = vshrl.u32 %v4414, 7
    %v4416 = vsub.s32 1, %v4415
    %v4417 = vrot.slane %v4408, %v4416
    %v4420 = vmul.f32 %v4399, %v4413
    %v4421 = vmul.f32 %v4400, %v4417
    %v4422 = vmul.f32 %v4401, %v4413
    %v4423 = vmul.f32 %v4402, %v4417
    %v4424 = vmul.f32 %v4403, %v4413
    %v4425 = vmul.f32 %v4404, %v4417
    %v4426 = vmul.f32 %v4405, %v4413
    %v4427 = vmul.f32 %v4406, %v4417
    %v4428 = vrot.slane %v4399, 3
    %v4429 = vrot.slane %v4400, 3
    %v4430 = vrot.slane %v4401, 3
    %v4431 = vrot.slane %v4402, 3
    %v4432 = vrot.slane %v4403, 3
    %v4433 = vrot.slane %v4404, 3
    %v4434 = vrot.slane %v4405, 3
    %v4435 = vrot.slane %v4406, 3
    %v4436 = vsel %vm2649, %v4432, %v4434
    %v4437 = vsel %vm2649, %v4433, %v4435
    %v4438 = vsel %vm2649, %v4430, %v4432
    %v4439 = vsel %vm2649, %v4431, %v4433
    %v4440 = vsel %vm2649, %v4428, %v4430
    %v4441 = vsel %vm2649, %v4429, %v4431
    %v4442 = vsel %vm2649, %v4434, %v4428
    %v4443 = vsel %vm2649, %v4435, %v4429
    %v4444 = vsel %vm2658, %v4442, 0.0
    %v4445 = vsel %vm2658, %v4443, 0.0
    %v4446 = vsel %vm2659, %v4440, 0.0
    %v4447 = vsel %vm2659, %v4441, 0.0
    %v4448 = vsel %vm2660, %v4438, 0.0
    %v4449 = vsel %vm2660, %v4439, 0.0
    %v4450 = vsel %vm2661, %v4436, 0.0
    %v4451 = vsel %vm2661, %v4437, 0.0
    %v4452 = vld [vmem:[#allocation36] ss:$8 sm:$0x3]
    %v4454 = vlaneseq
    %v4455 = vshrl.u32 %v4454, 7
    %v4456 = vsub.s32 0, %v4455
    %v4457 = vrot.slane %v4452, %v4456
    %v4458 = vlaneseq
    %v4459 = vshrl.u32 %v4458, 7
    %v4460 = vsub.s32 1, %v4459
    %v4461 = vrot.slane %v4452, %v4460
    %v4464 = vmul.f32 %v4444, %v4457
    %v4465 = vmul.f32 %v4445, %v4461
    %v4466 = vmul.f32 %v4446, %v4457
    %v4467 = vmul.f32 %v4447, %v4461
    %v4468 = vmul.f32 %v4448, %v4457
    %v4469 = vmul.f32 %v4449, %v4461
    %v4470 = vmul.f32 %v4450, %v4457
    %v4471 = vmul.f32 %v4451, %v4461
    %v4472 = vadd.f32 %v4420, %v4464
    %v4473 = vadd.f32 %v4421, %v4465
    %v4474 = vadd.f32 %v4422, %v4466
    %v4475 = vadd.f32 %v4423, %v4467
    %v4476 = vadd.f32 %v4424, %v4468
    %v4477 = vadd.f32 %v4425, %v4469
    %v4478 = vadd.f32 %v4426, %v4470
    %v4479 = vadd.f32 %v4427, %v4471
    %v4480 = vrot.slane %v4399, 4
    %v4481 = vrot.slane %v4400, 4
    %v4482 = vrot.slane %v4401, 4
    %v4483 = vrot.slane %v4402, 4
    %v4484 = vrot.slane %v4403, 4
    %v4485 = vrot.slane %v4404, 4
    %v4486 = vrot.slane %v4405, 4
    %v4487 = vrot.slane %v4406, 4
    %v4488 = vsel %vm2683, %v4484, %v4486
    %v4489 = vsel %vm2683, %v4485, %v4487
    %v4490 = vsel %vm2683, %v4482, %v4484
    %v4491 = vsel %vm2683, %v4483, %v4485
    %v4492 = vsel %vm2683, %v4480, %v4482
    %v4493 = vsel %vm2683, %v4481, %v4483
    %v4494 = vsel %vm2683, %v4486, %v4480
    %v4495 = vsel %vm2683, %v4487, %v4481
    %v4496 = vsel %vm2692, %v4494, 0.0
    %v4497 = vsel %vm2692, %v4495, 0.0
    %v4498 = vsel %vm2693, %v4492, 0.0
    %v4499 = vsel %vm2693, %v4493, 0.0
    %v4500 = vsel %vm2694, %v4490, 0.0
    %v4501 = vsel %vm2694, %v4491, 0.0
    %v4502 = vsel %vm2695, %v4488, 0.0
    %v4503 = vsel %vm2695, %v4489, 0.0
    %s4504 = scalar_lea.vmem [#allocation36], 1
    %v4505 = vld [vmem:[%s4504] ss:$8 sm:$0x3]
    %v4507 = vlaneseq
    %v4508 = vshrl.u32 %v4507, 7
    %v4509 = vsub.s32 0, %v4508
    %v4510 = vrot.slane %v4505, %v4509
    %v4511 = vlaneseq
    %v4512 = vshrl.u32 %v4511, 7
    %v4513 = vsub.s32 1, %v4512
    %v4514 = vrot.slane %v4505, %v4513
    %v4517 = vmul.f32 %v4496, %v4510
    %v4518 = vmul.f32 %v4497, %v4514
    %v4519 = vmul.f32 %v4498, %v4510
    %v4520 = vmul.f32 %v4499, %v4514
    %v4521 = vmul.f32 %v4500, %v4510
    %v4522 = vmul.f32 %v4501, %v4514
    %v4523 = vmul.f32 %v4502, %v4510
    %v4524 = vmul.f32 %v4503, %v4514
    %v4525 = vadd.f32 %v4472, %v4517
    %v4526 = vadd.f32 %v4473, %v4518
    %v4527 = vadd.f32 %v4474, %v4519
    %v4528 = vadd.f32 %v4475, %v4520
    %v4529 = vadd.f32 %v4476, %v4521
    %v4530 = vadd.f32 %v4477, %v4522
    %v4531 = vadd.f32 %v4478, %v4523
    %v4532 = vadd.f32 %v4479, %v4524
    %v4533 = vrot.slane %v4399, 5
    %v4534 = vrot.slane %v4400, 5
    %v4535 = vrot.slane %v4401, 5
    %v4536 = vrot.slane %v4402, 5
    %v4537 = vrot.slane %v4403, 5
    %v4538 = vrot.slane %v4404, 5
    %v4539 = vrot.slane %v4405, 5
    %v4540 = vrot.slane %v4406, 5
    %v4541 = vsel %vm2717, %v4537, %v4539
    %v4542 = vsel %vm2717, %v4538, %v4540
    %v4543 = vsel %vm2717, %v4535, %v4537
    %v4544 = vsel %vm2717, %v4536, %v4538
    %v4545 = vsel %vm2717, %v4533, %v4535
    %v4546 = vsel %vm2717, %v4534, %v4536
    %v4547 = vsel %vm2717, %v4539, %v4533
    %v4548 = vsel %vm2717, %v4540, %v4534
    %v4549 = vsel %vm2726, %v4547, 0.0
    %v4550 = vsel %vm2726, %v4548, 0.0
    %v4551 = vsel %vm2727, %v4545, 0.0
    %v4552 = vsel %vm2727, %v4546, 0.0
    %v4553 = vsel %vm2728, %v4543, 0.0
    %v4554 = vsel %vm2728, %v4544, 0.0
    %v4555 = vsel %vm2729, %v4541, 0.0
    %v4556 = vsel %vm2729, %v4542, 0.0
    %s4557 = scalar_lea.vmem [#allocation36], 2
    %v4558 = vld [vmem:[%s4557] ss:$8 sm:$0x3]
    %v4560 = vlaneseq
    %v4561 = vshrl.u32 %v4560, 7
    %v4562 = vsub.s32 0, %v4561
    %v4563 = vrot.slane %v4558, %v4562
    %v4564 = vlaneseq
    %v4565 = vshrl.u32 %v4564, 7
    %v4566 = vsub.s32 1, %v4565
    %v4567 = vrot.slane %v4558, %v4566
    %v4570 = vmul.f32 %v4549, %v4563
    %v4571 = vmul.f32 %v4550, %v4567
    %v4572 = vmul.f32 %v4551, %v4563
    %v4573 = vmul.f32 %v4552, %v4567
    %v4574 = vmul.f32 %v4553, %v4563
    %v4575 = vmul.f32 %v4554, %v4567
    %v4576 = vmul.f32 %v4555, %v4563
    %v4577 = vmul.f32 %v4556, %v4567
    %v4578 = vadd.f32 %v4525, %v4570
    %v4579 = vadd.f32 %v4526, %v4571
    %v4580 = vadd.f32 %v4527, %v4572
    %v4581 = vadd.f32 %v4528, %v4573
    %v4582 = vadd.f32 %v4529, %v4574
    %v4583 = vadd.f32 %v4530, %v4575
    %v4584 = vadd.f32 %v4531, %v4576
    %v4585 = vadd.f32 %v4532, %v4577
    %v4586 = vrot.slane %v4399, 7
    %v4587 = vrot.slane %v4400, 7
    %v4588 = vrot.slane %v4401, 7
    %v4589 = vrot.slane %v4402, 7
    %v4590 = vrot.slane %v4403, 7
    %v4591 = vrot.slane %v4404, 7
    %v4592 = vrot.slane %v4405, 7
    %v4593 = vrot.slane %v4406, 7
    %v4594 = vsel %vm903, %v4590, %v4592
    %v4595 = vsel %vm903, %v4591, %v4593
    %v4596 = vsel %vm903, %v4588, %v4590
    %v4597 = vsel %vm903, %v4589, %v4591
    %v4598 = vsel %vm903, %v4586, %v4588
    %v4599 = vsel %vm903, %v4587, %v4589
    %v4600 = vsel %vm903, %v4592, %v4586
    %v4601 = vsel %vm903, %v4593, %v4587
    %v4602 = vsel %vm2759, %v4600, 0.0
    %v4603 = vsel %vm2759, %v4601, 0.0
    %v4604 = vsel %vm2760, %v4598, 0.0
    %v4605 = vsel %vm2760, %v4599, 0.0
    %v4606 = vsel %vm2761, %v4596, 0.0
    %v4607 = vsel %vm2761, %v4597, 0.0
    %v4608 = vsel %vm2762, %v4594, 0.0
    %v4609 = vsel %vm2762, %v4595, 0.0
    %s4610 = scalar_lea.vmem [#allocation36], 3
    %v4611 = vld [vmem:[%s4610] ss:$8 sm:$0x3]
    %v4613 = vlaneseq
    %v4614 = vshrl.u32 %v4613, 7
    %v4615 = vsub.s32 0, %v4614
    %v4616 = vrot.slane %v4611, %v4615
    %v4617 = vlaneseq
    %v4618 = vshrl.u32 %v4617, 7
    %v4619 = vsub.s32 1, %v4618
    %v4620 = vrot.slane %v4611, %v4619
    %v4623 = vmul.f32 %v4602, %v4616
    %v4624 = vmul.f32 %v4603, %v4620
    %v4625 = vmul.f32 %v4604, %v4616
    %v4626 = vmul.f32 %v4605, %v4620
    %v4627 = vmul.f32 %v4606, %v4616
    %v4628 = vmul.f32 %v4607, %v4620
    %v4629 = vmul.f32 %v4608, %v4616
    %v4630 = vmul.f32 %v4609, %v4620
    %v4631 = vadd.f32 %v4578, %v4623
    %v4632 = vadd.f32 %v4579, %v4624
    %v4633 = vadd.f32 %v4580, %v4625
    %v4634 = vadd.f32 %v4581, %v4626
    %v4635 = vadd.f32 %v4582, %v4627
    %v4636 = vadd.f32 %v4583, %v4628
    %v4637 = vadd.f32 %v4584, %v4629
    %v4638 = vadd.f32 %v4585, %v4630
    %v4639 = vrot.slane %v4399, 1
    %v4640 = vrot.slane %v4400, 1
    %v4641 = vrot.slane %v4401, 1
    %v4642 = vrot.slane %v4402, 1
    %v4643 = vrot.slane %v4403, 1
    %v4644 = vrot.slane %v4404, 1
    %v4645 = vrot.slane %v4405, 1
    %v4646 = vrot.slane %v4406, 1
    %v4647 = vsel %vm1106, %v4643, %v4645
    %v4648 = vsel %vm1106, %v4644, %v4646
    %v4649 = vsel %vm1106, %v4641, %v4643
    %v4650 = vsel %vm1106, %v4642, %v4644
    %v4651 = vsel %vm1106, %v4639, %v4641
    %v4652 = vsel %vm1106, %v4640, %v4642
    %v4653 = vsel %vm1106, %v4645, %v4639
    %v4654 = vsel %vm1106, %v4646, %v4640
    %v4655 = vsel %vm2792, %v4651, 0.0
    %v4656 = vsel %vm2792, %v4652, 0.0
    %v4657 = vsel %vm2793, %v4649, 0.0
    %v4658 = vsel %vm2793, %v4650, 0.0
    %v4659 = vsel %vm2794, %v4647, 0.0
    %v4660 = vsel %vm2794, %v4648, 0.0
    %v4661 = vsel %vm2795, %v4653, 0.0
    %v4662 = vsel %vm2795, %v4654, 0.0
    %s4663 = scalar_lea.vmem [#allocation36], 5
    %v4664 = vld [vmem:[%s4663] ss:$8 sm:$0x3]
    %v4666 = vlaneseq
    %v4667 = vshrl.u32 %v4666, 7
    %v4668 = vsub.s32 0, %v4667
    %v4669 = vrot.slane %v4664, %v4668
    %v4670 = vlaneseq
    %v4671 = vshrl.u32 %v4670, 7
    %v4672 = vsub.s32 1, %v4671
    %v4673 = vrot.slane %v4664, %v4672
    %v4676 = vmul.f32 %v4655, %v4669
    %v4677 = vmul.f32 %v4656, %v4673
    %v4678 = vmul.f32 %v4657, %v4669
    %v4679 = vmul.f32 %v4658, %v4673
    %v4680 = vmul.f32 %v4659, %v4669
    %v4681 = vmul.f32 %v4660, %v4673
    %v4682 = vmul.f32 %v4661, %v4669
    %v4683 = vmul.f32 %v4662, %v4673
    %v4684 = vadd.f32 %v4631, %v4676
    %v4685 = vadd.f32 %v4632, %v4677
    %v4686 = vadd.f32 %v4633, %v4678
    %v4687 = vadd.f32 %v4634, %v4679
    %v4688 = vadd.f32 %v4635, %v4680
    %v4689 = vadd.f32 %v4636, %v4681
    %v4690 = vadd.f32 %v4637, %v4682
    %v4691 = vadd.f32 %v4638, %v4683
    %v4692 = vsel %vm2817, %v4440, 0.0
    %v4693 = vsel %vm2817, %v4441, 0.0
    %v4694 = vsel %vm2818, %v4438, 0.0
    %v4695 = vsel %vm2818, %v4439, 0.0
    %v4696 = vsel %vm2819, %v4436, 0.0
    %v4697 = vsel %vm2819, %v4437, 0.0
    %v4698 = vsel %vm2820, %v4442, 0.0
    %v4699 = vsel %vm2820, %v4443, 0.0
    %s4700 = scalar_lea.vmem [#allocation36], 6
    %v4701 = vld [vmem:[%s4700] ss:$8 sm:$0x3]
    %v4703 = vlaneseq
    %v4704 = vshrl.u32 %v4703, 7
    %v4705 = vsub.s32 0, %v4704
    %v4706 = vrot.slane %v4701, %v4705
    %v4707 = vlaneseq
    %v4708 = vshrl.u32 %v4707, 7
    %v4709 = vsub.s32 1, %v4708
    %v4710 = vrot.slane %v4701, %v4709
    %v4713 = vmul.f32 %v4692, %v4706
    %v4714 = vmul.f32 %v4693, %v4710
    %v4715 = vmul.f32 %v4694, %v4706
    %v4716 = vmul.f32 %v4695, %v4710
    %v4717 = vmul.f32 %v4696, %v4706
    %v4718 = vmul.f32 %v4697, %v4710
    %v4719 = vmul.f32 %v4698, %v4706
    %v4720 = vmul.f32 %v4699, %v4710
    %v4721 = vadd.f32 %v4684, %v4713
    %v4722 = vadd.f32 %v4685, %v4714
    %v4723 = vadd.f32 %v4686, %v4715
    %v4724 = vadd.f32 %v4687, %v4716
    %v4725 = vadd.f32 %v4688, %v4717
    %v4726 = vadd.f32 %v4689, %v4718
    %v4727 = vadd.f32 %v4690, %v4719
    %v4728 = vadd.f32 %v4691, %v4720
    %v4729 = vsel %vm2842, %v4492, 0.0
    %v4730 = vsel %vm2842, %v4493, 0.0
    %v4731 = vsel %vm2843, %v4490, 0.0
    %v4732 = vsel %vm2843, %v4491, 0.0
    %v4733 = vsel %vm2844, %v4488, 0.0
    %v4734 = vsel %vm2844, %v4489, 0.0
    %v4735 = vsel %vm2845, %v4494, 0.0
    %v4736 = vsel %vm2845, %v4495, 0.0
    %s4737 = scalar_lea.vmem [#allocation36], 7
    %v4738 = vld [vmem:[%s4737] ss:$8 sm:$0x3]
    %v4740 = vlaneseq
    %v4741 = vshrl.u32 %v4740, 7
    %v4742 = vsub.s32 0, %v4741
    %v4743 = vrot.slane %v4738, %v4742
    %v4744 = vlaneseq
    %v4745 = vshrl.u32 %v4744, 7
    %v4746 = vsub.s32 1, %v4745
    %v4747 = vrot.slane %v4738, %v4746
    %v4750 = vmul.f32 %v4729, %v4743
    %v4751 = vmul.f32 %v4730, %v4747
    %v4752 = vmul.f32 %v4731, %v4743
    %v4753 = vmul.f32 %v4732, %v4747
    %v4754 = vmul.f32 %v4733, %v4743
    %v4755 = vmul.f32 %v4734, %v4747
    %v4756 = vmul.f32 %v4735, %v4743
    %v4757 = vmul.f32 %v4736, %v4747
    %v4758 = vadd.f32 %v4721, %v4750
    %v4759 = vadd.f32 %v4722, %v4751
    %v4760 = vadd.f32 %v4723, %v4752
    %v4761 = vadd.f32 %v4724, %v4753
    %v4762 = vadd.f32 %v4725, %v4754
    %v4763 = vadd.f32 %v4726, %v4755
    %v4764 = vadd.f32 %v4727, %v4756
    %v4765 = vadd.f32 %v4728, %v4757
    %v4766 = vsel %vm2867, %v4545, 0.0
    %v4767 = vsel %vm2867, %v4546, 0.0
    %v4768 = vsel %vm2868, %v4543, 0.0
    %v4769 = vsel %vm2868, %v4544, 0.0
    %v4770 = vsel %vm2869, %v4541, 0.0
    %v4771 = vsel %vm2869, %v4542, 0.0
    %v4772 = vsel %vm2870, %v4547, 0.0
    %v4773 = vsel %vm2870, %v4548, 0.0
    %s4774 = scalar_lea.vmem [#allocation36], 16
    %v4775 = vld [vmem:[%s4774] ss:$8 sm:$0x3]
    %v4777 = vlaneseq
    %v4778 = vshrl.u32 %v4777, 7
    %v4779 = vsub.s32 0, %v4778
    %v4780 = vrot.slane %v4775, %v4779
    %v4781 = vlaneseq
    %v4782 = vshrl.u32 %v4781, 7
    %v4783 = vsub.s32 1, %v4782
    %v4784 = vrot.slane %v4775, %v4783
    %v4787 = vmul.f32 %v4766, %v4780
    %v4788 = vmul.f32 %v4767, %v4784
    %v4789 = vmul.f32 %v4768, %v4780
    %v4790 = vmul.f32 %v4769, %v4784
    %v4791 = vmul.f32 %v4770, %v4780
    %v4792 = vmul.f32 %v4771, %v4784
    %v4793 = vmul.f32 %v4772, %v4780
    %v4794 = vmul.f32 %v4773, %v4784
    %v4795 = vadd.f32 %v4758, %v4787
    %v4796 = vadd.f32 %v4759, %v4788
    %v4797 = vadd.f32 %v4760, %v4789
    %v4798 = vadd.f32 %v4761, %v4790
    %v4799 = vadd.f32 %v4762, %v4791
    %v4800 = vadd.f32 %v4763, %v4792
    %v4801 = vadd.f32 %v4764, %v4793
    %v4802 = vadd.f32 %v4765, %v4794
    %v4803 = vld [vmem:[#allocation37] sm:$0x3]
    %v4805 = vlaneseq
    %v4806 = vshrl.u32 %v4805, 7
    %v4807 = vsub.s32 0, %v4806
    %v4808 = vrot.slane %v4803, %v4807
    %v4809 = vlaneseq
    %v4810 = vshrl.u32 %v4809, 7
    %v4811 = vsub.s32 1, %v4810
    %v4812 = vrot.slane %v4803, %v4811
    %v4815 = vadd.f32 %v4795, %v4808
    %v4816 = vadd.f32 %v4796, %v4812
    %v4817 = vadd.f32 %v4797, %v4808
    %v4818 = vadd.f32 %v4798, %v4812
    %v4819 = vadd.f32 %v4799, %v4808
    %v4820 = vadd.f32 %v4800, %v4812
    %v4821 = vadd.f32 %v4801, %v4808
    %v4822 = vadd.f32 %v4802, %v4812
    %v4823 = vmax.f32 %v4815, 0.0
    %v4824 = vmax.f32 %v4816, 0.0
    %v4825 = vmax.f32 %v4817, 0.0
    %v4826 = vmax.f32 %v4818, 0.0
    %v4827 = vmax.f32 %v4819, 0.0
    %v4828 = vmax.f32 %v4820, 0.0
    %v4829 = vmax.f32 %v4821, 0.0
    %v4830 = vmax.f32 %v4822, 0.0
    %v4831 = vpack.c.bf16 %v4825, %v4823
    %v4832 = vpack.c.bf16 %v4826, %v4824
    %v4833 = vpack.c.bf16 %v4829, %v4827
    %v4834 = vpack.c.bf16 %v4830, %v4828
    %v4835 = vld [vmem:[#allocation39] sm:$0xff]
    %v4836 = vld [vmem:[#allocation39 + $0x8] sm:$0xff]
    %v4837 = vld [vmem:[#allocation39 + $0x10] sm:$0xff]
    %v4838 = vld [vmem:[#allocation39 + $0x18] sm:$0xff]
    %v4839 = vld [vmem:[#allocation39 + $0x20] sm:$0xff]
    %v4840 = vld [vmem:[#allocation39 + $0x28] sm:$0xff]
    %v4841 = vld [vmem:[#allocation39 + $0x30] sm:$0xff]
    %v4842 = vld [vmem:[#allocation39 + $0x38] sm:$0xff]
    %v4843 = vld [vmem:[#allocation39 + $0x40] sm:$0xff]
    %v4844 = vld [vmem:[#allocation39 + $0x48] sm:$0xff]
    %v4845 = vld [vmem:[#allocation39 + $0x50] sm:$0xff]
    %v4846 = vld [vmem:[#allocation39 + $0x58] sm:$0xff]
    %v4847 = vld [vmem:[#allocation39 + $0x60] sm:$0xff]
    %v4848 = vld [vmem:[#allocation39 + $0x68] sm:$0xff]
    %v4849 = vld [vmem:[#allocation39 + $0x70] sm:$0xff]
    %v4850 = vld [vmem:[#allocation39 + $0x78] sm:$0xff]
    %v4851 = vld [vmem:[#allocation39 + $0x80] sm:$0xff]
    %v4852 = vld [vmem:[#allocation39 + $0x88] sm:$0xff]
    %v4853 = vld [vmem:[#allocation39 + $0x90] sm:$0xff]
    %v4854 = vld [vmem:[#allocation39 + $0x98] sm:$0xff]
    %v4855 = vld [vmem:[#allocation39 + $0xa0] sm:$0xff]
    %v4856 = vld [vmem:[#allocation39 + $0xa8] sm:$0xff]
    %v4857 = vld [vmem:[#allocation39 + $0xb0] sm:$0xff]
    %v4858 = vld [vmem:[#allocation39 + $0xb8] sm:$0xff]
    %v4859 = vld [vmem:[#allocation40] sm:$0x3]
    %v4861 = vlaneseq
    %v4862 = vshrl.u32 %v4861, 7
    %v4863 = vsub.s32 0, %v4862
    %v4864 = vrot.slane %v4859, %v4863
    %v4865 = vlaneseq
    %v4866 = vshrl.u32 %v4865, 7
    %v4867 = vsub.s32 1, %v4866
    %v4868 = vrot.slane %v4859, %v4867
    %v4895 = vunpack.c.l.b16 %v4835
    %v4896 = vunpack.c.h.b16 %v4835
    %v4897 = vunpack.c.l.b16 %v4836
    %v4898 = vunpack.c.h.b16 %v4836
    %v4899 = vunpack.c.l.b16 %v4837
    %v4900 = vunpack.c.h.b16 %v4837
    %v4901 = vunpack.c.l.b16 %v4838
    %v4902 = vunpack.c.h.b16 %v4838
    %v4903 = vunpack.c.l.b16 %v4839
    %v4904 = vunpack.c.h.b16 %v4839
    %v4905 = vunpack.c.l.b16 %v4840
    %v4906 = vunpack.c.h.b16 %v4840
    %v4907 = vunpack.c.l.b16 %v4841
    %v4908 = vunpack.c.h.b16 %v4841
    %v4909 = vunpack.c.l.b16 %v4842
    %v4910 = vunpack.c.h.b16 %v4842
    %v4911 = vunpack.c.l.b16 %v4843
    %v4912 = vunpack.c.h.b16 %v4843
    %v4913 = vunpack.c.l.b16 %v4844
    %v4914 = vunpack.c.h.b16 %v4844
    %v4915 = vunpack.c.l.b16 %v4845
    %v4916 = vunpack.c.h.b16 %v4845
    %v4917 = vunpack.c.l.b16 %v4846
    %v4918 = vunpack.c.h.b16 %v4846
    %v4919 = vunpack.c.l.b16 %v4847
    %v4920 = vunpack.c.h.b16 %v4847
    %v4921 = vunpack.c.l.b16 %v4848
    %v4922 = vunpack.c.h.b16 %v4848
    %v4923 = vunpack.c.l.b16 %v4849
    %v4924 = vunpack.c.h.b16 %v4849
    %v4925 = vunpack.c.l.b16 %v4850
    %v4926 = vunpack.c.h.b16 %v4850
    %v4927 = vunpack.c.l.b16 %v4851
    %v4928 = vunpack.c.h.b16 %v4851
    %v4929 = vunpack.c.l.b16 %v4852
    %v4930 = vunpack.c.h.b16 %v4852
    %v4931 = vunpack.c.l.b16 %v4853
    %v4932 = vunpack.c.h.b16 %v4853
    %v4933 = vunpack.c.l.b16 %v4854
    %v4934 = vunpack.c.h.b16 %v4854
    %v4935 = vunpack.c.l.b16 %v4855
    %v4936 = vunpack.c.h.b16 %v4855
    %v4937 = vunpack.c.l.b16 %v4856
    %v4938 = vunpack.c.h.b16 %v4856
    %v4939 = vunpack.c.l.b16 %v4857
    %v4940 = vunpack.c.h.b16 %v4857
    %v4941 = vunpack.c.l.b16 %v4858
    %v4942 = vunpack.c.h.b16 %v4858
    %v4943 = vpack.c.b16 %v4897, %v4895
    %v4944 = vpack.c.b16 %v4898, %v4896
    %v4945 = vpack.c.b16 %v4901, %v4899
    %v4946 = vpack.c.b16 %v4902, %v4900
    %v4947 = vpack.c.b16 %v4905, %v4903
    %v4948 = vpack.c.b16 %v4906, %v4904
    %v4949 = vpack.c.b16 %v4909, %v4907
    %v4950 = vpack.c.b16 %v4910, %v4908
    %v4951 = vpack.c.b16 %v4913, %v4911
    %v4952 = vpack.c.b16 %v4914, %v4912
    %v4953 = vpack.c.b16 %v4917, %v4915
    %v4954 = vpack.c.b16 %v4918, %v4916
    %v4955 = vpack.c.b16 %v4921, %v4919
    %v4956 = vpack.c.b16 %v4922, %v4920
    %v4957 = vpack.c.b16 %v4925, %v4923
    %v4958 = vpack.c.b16 %v4926, %v4924
    %v4959 = vpack.c.b16 %v4929, %v4927
    %v4960 = vpack.c.b16 %v4930, %v4928
    %v4961 = vpack.c.b16 %v4933, %v4931
    %v4962 = vpack.c.b16 %v4934, %v4932
    %v4963 = vpack.c.b16 %v4937, %v4935
    %v4964 = vpack.c.b16 %v4938, %v4936
    %v4965 = vpack.c.b16 %v4941, %v4939
    %v4966 = vpack.c.b16 %v4942, %v4940
    %v4992 = vsel %vm3057, %v4832, 0
    %v4995 = vsel %vm3057, %v4834, 0
    %4997 = vmatprep.subr.bf16.mxu0 %v4944
    %4998 = vmatpush1.bf16.msra.mxu0 %v4943
    %4999 = vmatprep.subr.bf16.mxu0 %v4946
    %5000 = vmatpush1.bf16.msra.mxu0 %v4945
    %5001 = vmatprep.subr.bf16.mxu0 %v4948
    %5002 = vmatpush1.bf16.msra.mxu0 %v4947
    %5003 = vmatprep.subr.bf16.mxu0 %v4950
    %5004 = vmatpush1.bf16.msra.mxu0 %v4949
    %5005 = vmatprep.subr.bf16.mxu0 %v4952
    %5006 = vmatpush1.bf16.msra.mxu0 %v4951
    %5007 = vmatprep.subr.bf16.mxu0 %v4954
    %5008 = vmatpush1.bf16.msra.mxu0 %v4953
    %5009 = vmatprep.subr.bf16.mxu0 %v4956
    %5010 = vmatpush1.bf16.msra.mxu0 %v4955
    %5011 = vmatprep.subr.bf16.mxu0 %v4958
    %5012 = vmatpush1.bf16.msra.mxu0 %v4957
    %5013 = vmatprep.subr.bf16.mxu0 %v4960
    %5014 = vmatpush1.bf16.msra.mxu0 %v4959
    %5015 = vmatprep.subr.bf16.mxu0 %v4962
    %5016 = vmatpush1.bf16.msra.mxu0 %v4961
    %5017 = vmatprep.subr.bf16.mxu0 %v4964
    %5018 = vmatpush1.bf16.msra.mxu0 %v4963
    %5019 = vmatprep.subr.bf16.mxu0 %v4966
    %5020 = vmatpush1.bf16.msra.mxu0 %v4965
    %5021 = vmatprep.subr.bf16.mxu0 0
    %5022 = vmatpush1.bf16.msra.mxu0 0
    %5023 = vmatprep.subr.bf16.mxu0 0
    %5024 = vmatpush1.bf16.msra.mxu0 0
    %5025 = vmatprep.subr.bf16.mxu0 0
    %5026 = vmatpush1.bf16.msra.mxu0 0
    %5027 = vmatprep.subr.bf16.mxu0 0
    %5028 = vmatpush1.bf16.msra.mxu0 0
    %5029 = vmatprep.mubr.bf16.mxu0 %v4992
    %5030 = vmatmul.mubr.bf16.gmra.mrb[0].mxu0 %v4831
    %v5031 = vpop.f32.mrb[0].mxu0
    %v5032 = vadd.f32 %v4864, %v5031
    %v5033 = vpop.f32.mrb[0].mxu0
    %v5034 = vadd.f32 %v4868, %v5033
    %v5035 = vpop.f32.mrb[0].mxu0
    %v5036 = vadd.f32 %v4864, %v5035
    %v5037 = vpop.f32.mrb[0].mxu0
    %v5038 = vadd.f32 %v4868, %v5037
    %5039 = vmatprep.mubr.bf16.mxu0 %v4995
    %5040 = vmatmul.mubr.bf16.gmra.mrb[0].mxu0 %v4833
    %v5041 = vpop.f32.mrb[0].mxu0
    %v5042 = vadd.f32 %v4864, %v5041
    %v5043 = vpop.f32.mrb[0].mxu0
    %v5044 = vadd.f32 %v4868, %v5043
    %v5045 = vpop.f32.mrb[0].mxu0
    %v5046 = vadd.f32 %v4864, %v5045
    %v5047 = vpop.f32.mrb[0].mxu0
    %v5048 = vadd.f32 %v4868, %v5047
    %5049 = vdwg.mxu0
    %v5050 = vmax.f32 %v5032, 0.0
    %v5051 = vmax.f32 %v5034, 0.0
    %v5052 = vmax.f32 %v5036, 0.0
    %v5053 = vmax.f32 %v5038, 0.0
    %v5054 = vmax.f32 %v5042, 0.0
    %v5055 = vmax.f32 %v5044, 0.0
    %v5056 = vmax.f32 %v5046, 0.0
    %v5057 = vmax.f32 %v5048, 0.0
    %5058 = vst [vmem:[#allocation3] sm:$0xff] %v5050
    %5059 = vst.msk [vmem:[#allocation3 + $0x8] sm:$0xff] %vm3057, %v5051
    %5060 = vst [vmem:[#allocation3 + $0x30] sm:$0xff] %v5052
    %5061 = vst.msk [vmem:[#allocation3 + $0x38] sm:$0xff] %vm3057, %v5053
    %5062 = vst [vmem:[#allocation3 + $0x60] sm:$0xff] %v5054
    %5063 = vst.msk [vmem:[#allocation3 + $0x68] sm:$0xff] %vm3057, %v5055
    %5064 = vst [vmem:[#allocation3 + $0x90] sm:$0xff] %v5056
    %5065 = vst.msk [vmem:[#allocation3 + $0x98] sm:$0xff] %vm3057, %v5057
    %v5066 = vld [vmem:[#allocation3] sm:$0xff]
    %v5067 = vld [vmem:[#allocation3 + $0x8] sm:$0xff]
    %v5068 = vld [vmem:[#allocation3 + $0x30] sm:$0xff]
    %v5069 = vld [vmem:[#allocation3 + $0x38] sm:$0xff]
    %v5070 = vld [vmem:[#allocation3 + $0x60] sm:$0xff]
    %v5071 = vld [vmem:[#allocation3 + $0x68] sm:$0xff]
    %v5072 = vld [vmem:[#allocation3 + $0x90] sm:$0xff]
    %v5073 = vld [vmem:[#allocation3 + $0x98] sm:$0xff]
    %s5074 = scalar_lea.vmem [#allocation42], 4
    %v5075 = vld [vmem:[%s5074] ss:$8 sm:$0x3]
    %v5077 = vlaneseq
    %v5078 = vshrl.u32 %v5077, 7
    %v5079 = vsub.s32 0, %v5078
    %v5080 = vrot.slane %v5075, %v5079
    %v5081 = vlaneseq
    %v5082 = vshrl.u32 %v5081, 7
    %v5083 = vsub.s32 1, %v5082
    %v5084 = vrot.slane %v5075, %v5083
    %v5087 = vmul.f32 %v5066, %v5080
    %v5088 = vmul.f32 %v5067, %v5084
    %v5089 = vmul.f32 %v5068, %v5080
    %v5090 = vmul.f32 %v5069, %v5084
    %v5091 = vmul.f32 %v5070, %v5080
    %v5092 = vmul.f32 %v5071, %v5084
    %v5093 = vmul.f32 %v5072, %v5080
    %v5094 = vmul.f32 %v5073, %v5084
    %v5095 = vrot.slane %v5066, 3
    %v5096 = vrot.slane %v5067, 3
    %v5097 = vrot.slane %v5068, 3
    %v5098 = vrot.slane %v5069, 3
    %v5099 = vrot.slane %v5070, 3
    %v5100 = vrot.slane %v5071, 3
    %v5101 = vrot.slane %v5072, 3
    %v5102 = vrot.slane %v5073, 3
    %v5103 = vsel %vm2649, %v5099, %v5101
    %v5104 = vsel %vm2649, %v5100, %v5102
    %v5105 = vsel %vm2649, %v5097, %v5099
    %v5106 = vsel %vm2649, %v5098, %v5100
    %v5107 = vsel %vm2649, %v5095, %v5097
    %v5108 = vsel %vm2649, %v5096, %v5098
    %v5109 = vsel %vm2649, %v5101, %v5095
    %v5110 = vsel %vm2649, %v5102, %v5096
    %v5111 = vsel %vm2658, %v5109, 0.0
    %v5112 = vsel %vm2658, %v5110, 0.0
    %v5113 = vsel %vm2659, %v5107, 0.0
    %v5114 = vsel %vm2659, %v5108, 0.0
    %v5115 = vsel %vm2660, %v5105, 0.0
    %v5116 = vsel %vm2660, %v5106, 0.0
    %v5117 = vsel %vm2661, %v5103, 0.0
    %v5118 = vsel %vm2661, %v5104, 0.0
    %v5119 = vld [vmem:[#allocation42] ss:$8 sm:$0x3]
    %v5121 = vlaneseq
    %v5122 = vshrl.u32 %v5121, 7
    %v5123 = vsub.s32 0, %v5122
    %v5124 = vrot.slane %v5119, %v5123
    %v5125 = vlaneseq
    %v5126 = vshrl.u32 %v5125, 7
    %v5127 = vsub.s32 1, %v5126
    %v5128 = vrot.slane %v5119, %v5127
    %v5131 = vmul.f32 %v5111, %v5124
    %v5132 = vmul.f32 %v5112, %v5128
    %v5133 = vmul.f32 %v5113, %v5124
    %v5134 = vmul.f32 %v5114, %v5128
    %v5135 = vmul.f32 %v5115, %v5124
    %v5136 = vmul.f32 %v5116, %v5128
    %v5137 = vmul.f32 %v5117, %v5124
    %v5138 = vmul.f32 %v5118, %v5128
    %v5139 = vadd.f32 %v5087, %v5131
    %v5140 = vadd.f32 %v5088, %v5132
    %v5141 = vadd.f32 %v5089, %v5133
    %v5142 = vadd.f32 %v5090, %v5134
    %v5143 = vadd.f32 %v5091, %v5135
    %v5144 = vadd.f32 %v5092, %v5136
    %v5145 = vadd.f32 %v5093, %v5137
    %v5146 = vadd.f32 %v5094, %v5138
    %v5147 = vrot.slane %v5066, 4
    %v5148 = vrot.slane %v5067, 4
    %v5149 = vrot.slane %v5068, 4
    %v5150 = vrot.slane %v5069, 4
    %v5151 = vrot.slane %v5070, 4
    %v5152 = vrot.slane %v5071, 4
    %v5153 = vrot.slane %v5072, 4
    %v5154 = vrot.slane %v5073, 4
    %v5155 = vsel %vm2683, %v5151, %v5153
    %v5156 = vsel %vm2683, %v5152, %v5154
    %v5157 = vsel %vm2683, %v5149, %v5151
    %v5158 = vsel %vm2683, %v5150, %v5152
    %v5159 = vsel %vm2683, %v5147, %v5149
    %v5160 = vsel %vm2683, %v5148, %v5150
    %v5161 = vsel %vm2683, %v5153, %v5147
    %v5162 = vsel %vm2683, %v5154, %v5148
    %v5163 = vsel %vm2692, %v5161, 0.0
    %v5164 = vsel %vm2692, %v5162, 0.0
    %v5165 = vsel %vm2693, %v5159, 0.0
    %v5166 = vsel %vm2693, %v5160, 0.0
    %v5167 = vsel %vm2694, %v5157, 0.0
    %v5168 = vsel %vm2694, %v5158, 0.0
    %v5169 = vsel %vm2695, %v5155, 0.0
    %v5170 = vsel %vm2695, %v5156, 0.0
    %s5171 = scalar_lea.vmem [#allocation42], 1
    %v5172 = vld [vmem:[%s5171] ss:$8 sm:$0x3]
    %v5174 = vlaneseq
    %v5175 = vshrl.u32 %v5174, 7
    %v5176 = vsub.s32 0, %v5175
    %v5177 = vrot.slane %v5172, %v5176
    %v5178 = vlaneseq
    %v5179 = vshrl.u32 %v5178, 7
    %v5180 = vsub.s32 1, %v5179
    %v5181 = vrot.slane %v5172, %v5180
    %v5184 = vmul.f32 %v5163, %v5177
    %v5185 = vmul.f32 %v5164, %v5181
    %v5186 = vmul.f32 %v5165, %v5177
    %v5187 = vmul.f32 %v5166, %v5181
    %v5188 = vmul.f32 %v5167, %v5177
    %v5189 = vmul.f32 %v5168, %v5181
    %v5190 = vmul.f32 %v5169, %v5177
    %v5191 = vmul.f32 %v5170, %v5181
    %v5192 = vadd.f32 %v5139, %v5184
    %v5193 = vadd.f32 %v5140, %v5185
    %v5194 = vadd.f32 %v5141, %v5186
    %v5195 = vadd.f32 %v5142, %v5187
    %v5196 = vadd.f32 %v5143, %v5188
    %v5197 = vadd.f32 %v5144, %v5189
    %v5198 = vadd.f32 %v5145, %v5190
    %v5199 = vadd.f32 %v5146, %v5191
    %v5200 = vrot.slane %v5066, 5
    %v5201 = vrot.slane %v5067, 5
    %v5202 = vrot.slane %v5068, 5
    %v5203 = vrot.slane %v5069, 5
    %v5204 = vrot.slane %v5070, 5
    %v5205 = vrot.slane %v5071, 5
    %v5206 = vrot.slane %v5072, 5
    %v5207 = vrot.slane %v5073, 5
    %v5208 = vsel %vm2717, %v5204, %v5206
    %v5209 = vsel %vm2717, %v5205, %v5207
    %v5210 = vsel %vm2717, %v5202, %v5204
    %v5211 = vsel %vm2717, %v5203, %v5205
    %v5212 = vsel %vm2717, %v5200, %v5202
    %v5213 = vsel %vm2717, %v5201, %v5203
    %v5214 = vsel %vm2717, %v5206, %v5200
    %v5215 = vsel %vm2717, %v5207, %v5201
    %v5216 = vsel %vm2726, %v5214, 0.0
    %v5217 = vsel %vm2726, %v5215, 0.0
    %v5218 = vsel %vm2727, %v5212, 0.0
    %v5219 = vsel %vm2727, %v5213, 0.0
    %v5220 = vsel %vm2728, %v5210, 0.0
    %v5221 = vsel %vm2728, %v5211, 0.0
    %v5222 = vsel %vm2729, %v5208, 0.0
    %v5223 = vsel %vm2729, %v5209, 0.0
    %s5224 = scalar_lea.vmem [#allocation42], 2
    %v5225 = vld [vmem:[%s5224] ss:$8 sm:$0x3]
    %v5227 = vlaneseq
    %v5228 = vshrl.u32 %v5227, 7
    %v5229 = vsub.s32 0, %v5228
    %v5230 = vrot.slane %v5225, %v5229
    %v5231 = vlaneseq
    %v5232 = vshrl.u32 %v5231, 7
    %v5233 = vsub.s32 1, %v5232
    %v5234 = vrot.slane %v5225, %v5233
    %v5237 = vmul.f32 %v5216, %v5230
    %v5238 = vmul.f32 %v5217, %v5234
    %v5239 = vmul.f32 %v5218, %v5230
    %v5240 = vmul.f32 %v5219, %v5234
    %v5241 = vmul.f32 %v5220, %v5230
    %v5242 = vmul.f32 %v5221, %v5234
    %v5243 = vmul.f32 %v5222, %v5230
    %v5244 = vmul.f32 %v5223, %v5234
    %v5245 = vadd.f32 %v5192, %v5237
    %v5246 = vadd.f32 %v5193, %v5238
    %v5247 = vadd.f32 %v5194, %v5239
    %v5248 = vadd.f32 %v5195, %v5240
    %v5249 = vadd.f32 %v5196, %v5241
    %v5250 = vadd.f32 %v5197, %v5242
    %v5251 = vadd.f32 %v5198, %v5243
    %v5252 = vadd.f32 %v5199, %v5244
    %v5253 = vrot.slane %v5066, 7
    %v5254 = vrot.slane %v5067, 7
    %v5255 = vrot.slane %v5068, 7
    %v5256 = vrot.slane %v5069, 7
    %v5257 = vrot.slane %v5070, 7
    %v5258 = vrot.slane %v5071, 7
    %v5259 = vrot.slane %v5072, 7
    %v5260 = vrot.slane %v5073, 7
    %v5261 = vsel %vm903, %v5257, %v5259
    %v5262 = vsel %vm903, %v5258, %v5260
    %v5263 = vsel %vm903, %v5255, %v5257
    %v5264 = vsel %vm903, %v5256, %v5258
    %v5265 = vsel %vm903, %v5253, %v5255
    %v5266 = vsel %vm903, %v5254, %v5256
    %v5267 = vsel %vm903, %v5259, %v5253
    %v5268 = vsel %vm903, %v5260, %v5254
    %v5269 = vsel %vm2759, %v5267, 0.0
    %v5270 = vsel %vm2759, %v5268, 0.0
    %v5271 = vsel %vm2760, %v5265, 0.0
    %v5272 = vsel %vm2760, %v5266, 0.0
    %v5273 = vsel %vm2761, %v5263, 0.0
    %v5274 = vsel %vm2761, %v5264, 0.0
    %v5275 = vsel %vm2762, %v5261, 0.0
    %v5276 = vsel %vm2762, %v5262, 0.0
    %s5277 = scalar_lea.vmem [#allocation42], 3
    %v5278 = vld [vmem:[%s5277] ss:$8 sm:$0x3]
    %v5280 = vlaneseq
    %v5281 = vshrl.u32 %v5280, 7
    %v5282 = vsub.s32 0, %v5281
    %v5283 = vrot.slane %v5278, %v5282
    %v5284 = vlaneseq
    %v5285 = vshrl.u32 %v5284, 7
    %v5286 = vsub.s32 1, %v5285
    %v5287 = vrot.slane %v5278, %v5286
    %v5290 = vmul.f32 %v5269, %v5283
    %v5291 = vmul.f32 %v5270, %v5287
    %v5292 = vmul.f32 %v5271, %v5283
    %v5293 = vmul.f32 %v5272, %v5287
    %v5294 = vmul.f32 %v5273, %v5283
    %v5295 = vmul.f32 %v5274, %v5287
    %v5296 = vmul.f32 %v5275, %v5283
    %v5297 = vmul.f32 %v5276, %v5287
    %v5298 = vadd.f32 %v5245, %v5290
    %v5299 = vadd.f32 %v5246, %v5291
    %v5300 = vadd.f32 %v5247, %v5292
    %v5301 = vadd.f32 %v5248, %v5293
    %v5302 = vadd.f32 %v5249, %v5294
    %v5303 = vadd.f32 %v5250, %v5295
    %v5304 = vadd.f32 %v5251, %v5296
    %v5305 = vadd.f32 %v5252, %v5297
    %v5306 = vrot.slane %v5066, 1
    %v5307 = vrot.slane %v5067, 1
    %v5308 = vrot.slane %v5068, 1
    %v5309 = vrot.slane %v5069, 1
    %v5310 = vrot.slane %v5070, 1
    %v5311 = vrot.slane %v5071, 1
    %v5312 = vrot.slane %v5072, 1
    %v5313 = vrot.slane %v5073, 1
    %v5314 = vsel %vm1106, %v5310, %v5312
    %v5315 = vsel %vm1106, %v5311, %v5313
    %v5316 = vsel %vm1106, %v5308, %v5310
    %v5317 = vsel %vm1106, %v5309, %v5311
    %v5318 = vsel %vm1106, %v5306, %v5308
    %v5319 = vsel %vm1106, %v5307, %v5309
    %v5320 = vsel %vm1106, %v5312, %v5306
    %v5321 = vsel %vm1106, %v5313, %v5307
    %v5322 = vsel %vm2792, %v5318, 0.0
    %v5323 = vsel %vm2792, %v5319, 0.0
    %v5324 = vsel %vm2793, %v5316, 0.0
    %v5325 = vsel %vm2793, %v5317, 0.0
    %v5326 = vsel %vm2794, %v5314, 0.0
    %v5327 = vsel %vm2794, %v5315, 0.0
    %v5328 = vsel %vm2795, %v5320, 0.0
    %v5329 = vsel %vm2795, %v5321, 0.0
    %s5330 = scalar_lea.vmem [#allocation42], 5
    %v5331 = vld [vmem:[%s5330] ss:$8 sm:$0x3]
    %v5333 = vlaneseq
    %v5334 = vshrl.u32 %v5333, 7
    %v5335 = vsub.s32 0, %v5334
    %v5336 = vrot.slane %v5331, %v5335
    %v5337 = vlaneseq
    %v5338 = vshrl.u32 %v5337, 7
    %v5339 = vsub.s32 1, %v5338
    %v5340 = vrot.slane %v5331, %v5339
    %v5343 = vmul.f32 %v5322, %v5336
    %v5344 = vmul.f32 %v5323, %v5340
    %v5345 = vmul.f32 %v5324, %v5336
    %v5346 = vmul.f32 %v5325, %v5340
    %v5347 = vmul.f32 %v5326, %v5336
    %v5348 = vmul.f32 %v5327, %v5340
    %v5349 = vmul.f32 %v5328, %v5336
    %v5350 = vmul.f32 %v5329, %v5340
    %v5351 = vadd.f32 %v5298, %v5343
    %v5352 = vadd.f32 %v5299, %v5344
    %v5353 = vadd.f32 %v5300, %v5345
    %v5354 = vadd.f32 %v5301, %v5346
    %v5355 = vadd.f32 %v5302, %v5347
    %v5356 = vadd.f32 %v5303, %v5348
    %v5357 = vadd.f32 %v5304, %v5349
    %v5358 = vadd.f32 %v5305, %v5350
    %v5359 = vsel %vm2817, %v5107, 0.0
    %v5360 = vsel %vm2817, %v5108, 0.0
    %v5361 = vsel %vm2818, %v5105, 0.0
    %v5362 = vsel %vm2818, %v5106, 0.0
    %v5363 = vsel %vm2819, %v5103, 0.0
    %v5364 = vsel %vm2819, %v5104, 0.0
    %v5365 = vsel %vm2820, %v5109, 0.0
    %v5366 = vsel %vm2820, %v5110, 0.0
    %s5367 = scalar_lea.vmem [#allocation42], 6
    %v5368 = vld [vmem:[%s5367] ss:$8 sm:$0x3]
    %v5370 = vlaneseq
    %v5371 = vshrl.u32 %v5370, 7
    %v5372 = vsub.s32 0, %v5371
    %v5373 = vrot.slane %v5368, %v5372
    %v5374 = vlaneseq
    %v5375 = vshrl.u32 %v5374, 7
    %v5376 = vsub.s32 1, %v5375
    %v5377 = vrot.slane %v5368, %v5376
    %v5380 = vmul.f32 %v5359, %v5373
    %v5381 = vmul.f32 %v5360, %v5377
    %v5382 = vmul.f32 %v5361, %v5373
    %v5383 = vmul.f32 %v5362, %v5377
    %v5384 = vmul.f32 %v5363, %v5373
    %v5385 = vmul.f32 %v5364, %v5377
    %v5386 = vmul.f32 %v5365, %v5373
    %v5387 = vmul.f32 %v5366, %v5377
    %v5388 = vadd.f32 %v5351, %v5380
    %v5389 = vadd.f32 %v5352, %v5381
    %v5390 = vadd.f32 %v5353, %v5382
    %v5391 = vadd.f32 %v5354, %v5383
    %v5392 = vadd.f32 %v5355, %v5384
    %v5393 = vadd.f32 %v5356, %v5385
    %v5394 = vadd.f32 %v5357, %v5386
    %v5395 = vadd.f32 %v5358, %v5387
    %v5396 = vsel %vm2842, %v5159, 0.0
    %v5397 = vsel %vm2842, %v5160, 0.0
    %v5398 = vsel %vm2843, %v5157, 0.0
    %v5399 = vsel %vm2843, %v5158, 0.0
    %v5400 = vsel %vm2844, %v5155, 0.0
    %v5401 = vsel %vm2844, %v5156, 0.0
    %v5402 = vsel %vm2845, %v5161, 0.0
    %v5403 = vsel %vm2845, %v5162, 0.0
    %s5404 = scalar_lea.vmem [#allocation42], 7
    %v5405 = vld [vmem:[%s5404] ss:$8 sm:$0x3]
    %v5407 = vlaneseq
    %v5408 = vshrl.u32 %v5407, 7
    %v5409 = vsub.s32 0, %v5408
    %v5410 = vrot.slane %v5405, %v5409
    %v5411 = vlaneseq
    %v5412 = vshrl.u32 %v5411, 7
    %v5413 = vsub.s32 1, %v5412
    %v5414 = vrot.slane %v5405, %v5413
    %v5417 = vmul.f32 %v5396, %v5410
    %v5418 = vmul.f32 %v5397, %v5414
    %v5419 = vmul.f32 %v5398, %v5410
    %v5420 = vmul.f32 %v5399, %v5414
    %v5421 = vmul.f32 %v5400, %v5410
    %v5422 = vmul.f32 %v5401, %v5414
    %v5423 = vmul.f32 %v5402, %v5410
    %v5424 = vmul.f32 %v5403, %v5414
    %v5425 = vadd.f32 %v5388, %v5417
    %v5426 = vadd.f32 %v5389, %v5418
    %v5427 = vadd.f32 %v5390, %v5419
    %v5428 = vadd.f32 %v5391, %v5420
    %v5429 = vadd.f32 %v5392, %v5421
    %v5430 = vadd.f32 %v5393, %v5422
    %v5431 = vadd.f32 %v5394, %v5423
    %v5432 = vadd.f32 %v5395, %v5424
    %v5433 = vsel %vm2867, %v5212, 0.0
    %v5434 = vsel %vm2867, %v5213, 0.0
    %v5435 = vsel %vm2868, %v5210, 0.0
    %v5436 = vsel %vm2868, %v5211, 0.0
    %v5437 = vsel %vm2869, %v5208, 0.0
    %v5438 = vsel %vm2869, %v5209, 0.0
    %v5439 = vsel %vm2870, %v5214, 0.0
    %v5440 = vsel %vm2870, %v5215, 0.0
    %s5441 = scalar_lea.vmem [#allocation42], 16
    %v5442 = vld [vmem:[%s5441] ss:$8 sm:$0x3]
    %v5444 = vlaneseq
    %v5445 = vshrl.u32 %v5444, 7
    %v5446 = vsub.s32 0, %v5445
    %v5447 = vrot.slane %v5442, %v5446
    %v5448 = vlaneseq
    %v5449 = vshrl.u32 %v5448, 7
    %v5450 = vsub.s32 1, %v5449
    %v5451 = vrot.slane %v5442, %v5450
    %v5454 = vmul.f32 %v5433, %v5447
    %v5455 = vmul.f32 %v5434, %v5451
    %v5456 = vmul.f32 %v5435, %v5447
    %v5457 = vmul.f32 %v5436, %v5451
    %v5458 = vmul.f32 %v5437, %v5447
    %v5459 = vmul.f32 %v5438, %v5451
    %v5460 = vmul.f32 %v5439, %v5447
    %v5461 = vmul.f32 %v5440, %v5451
    %v5462 = vadd.f32 %v5425, %v5454
    %v5463 = vadd.f32 %v5426, %v5455
    %v5464 = vadd.f32 %v5427, %v5456
    %v5465 = vadd.f32 %v5428, %v5457
    %v5466 = vadd.f32 %v5429, %v5458
    %v5467 = vadd.f32 %v5430, %v5459
    %v5468 = vadd.f32 %v5431, %v5460
    %v5469 = vadd.f32 %v5432, %v5461
    %v5470 = vld [vmem:[#allocation43] sm:$0x3]
    %v5472 = vlaneseq
    %v5473 = vshrl.u32 %v5472, 7
    %v5474 = vsub.s32 0, %v5473
    %v5475 = vrot.slane %v5470, %v5474
    %v5476 = vlaneseq
    %v5477 = vshrl.u32 %v5476, 7
    %v5478 = vsub.s32 1, %v5477
    %v5479 = vrot.slane %v5470, %v5478
    %v5482 = vadd.f32 %v5462, %v5475
    %v5483 = vadd.f32 %v5463, %v5479
    %v5484 = vadd.f32 %v5464, %v5475
    %v5485 = vadd.f32 %v5465, %v5479
    %v5486 = vadd.f32 %v5466, %v5475
    %v5487 = vadd.f32 %v5467, %v5479
    %v5488 = vadd.f32 %v5468, %v5475
    %v5489 = vadd.f32 %v5469, %v5479
    %v5490 = vmax.f32 %v5482, 0.0
    %v5491 = vmax.f32 %v5483, 0.0
    %v5492 = vmax.f32 %v5484, 0.0
    %v5493 = vmax.f32 %v5485, 0.0
    %v5494 = vmax.f32 %v5486, 0.0
    %v5495 = vmax.f32 %v5487, 0.0
    %v5496 = vmax.f32 %v5488, 0.0
    %v5497 = vmax.f32 %v5489, 0.0
    %v5498 = vpack.c.bf16 %v5492, %v5490
    %v5499 = vpack.c.bf16 %v5493, %v5491
    %v5500 = vpack.c.bf16 %v5496, %v5494
    %v5501 = vpack.c.bf16 %v5497, %v5495
    %v5502 = vld [vmem:[#allocation45] sm:$0xff]
    %v5503 = vld [vmem:[#allocation45 + $0x8] sm:$0xff]
    %v5504 = vld [vmem:[#allocation45 + $0x10] sm:$0xff]
    %v5505 = vld [vmem:[#allocation45 + $0x18] sm:$0xff]
    %v5506 = vld [vmem:[#allocation45 + $0x20] sm:$0xff]
    %v5507 = vld [vmem:[#allocation45 + $0x28] sm:$0xff]
    %v5508 = vld [vmem:[#allocation45 + $0x30] sm:$0xff]
    %v5509 = vld [vmem:[#allocation45 + $0x38] sm:$0xff]
    %v5510 = vld [vmem:[#allocation45 + $0x40] sm:$0xff]
    %v5511 = vld [vmem:[#allocation45 + $0x48] sm:$0xff]
    %v5512 = vld [vmem:[#allocation45 + $0x50] sm:$0xff]
    %v5513 = vld [vmem:[#allocation45 + $0x58] sm:$0xff]
    %v5514 = vld [vmem:[#allocation45 + $0x60] sm:$0xff]
    %v5515 = vld [vmem:[#allocation45 + $0x68] sm:$0xff]
    %v5516 = vld [vmem:[#allocation45 + $0x70] sm:$0xff]
    %v5517 = vld [vmem:[#allocation45 + $0x78] sm:$0xff]
    %v5518 = vld [vmem:[#allocation45 + $0x80] sm:$0xff]
    %v5519 = vld [vmem:[#allocation45 + $0x88] sm:$0xff]
    %v5520 = vld [vmem:[#allocation45 + $0x90] sm:$0xff]
    %v5521 = vld [vmem:[#allocation45 + $0x98] sm:$0xff]
    %v5522 = vld [vmem:[#allocation45 + $0xa0] sm:$0xff]
    %v5523 = vld [vmem:[#allocation45 + $0xa8] sm:$0xff]
    %v5524 = vld [vmem:[#allocation45 + $0xb0] sm:$0xff]
    %v5525 = vld [vmem:[#allocation45 + $0xb8] sm:$0xff]
    %v5526 = vld [vmem:[#allocation46] sm:$0x3]
    %v5528 = vlaneseq
    %v5529 = vshrl.u32 %v5528, 7
    %v5530 = vsub.s32 0, %v5529
    %v5531 = vrot.slane %v5526, %v5530
    %v5532 = vlaneseq
    %v5533 = vshrl.u32 %v5532, 7
    %v5534 = vsub.s32 1, %v5533
    %v5535 = vrot.slane %v5526, %v5534
    %v5562 = vunpack.c.l.b16 %v5502
    %v5563 = vunpack.c.h.b16 %v5502
    %v5564 = vunpack.c.l.b16 %v5503
    %v5565 = vunpack.c.h.b16 %v5503
    %v5566 = vunpack.c.l.b16 %v5504
    %v5567 = vunpack.c.h.b16 %v5504
    %v5568 = vunpack.c.l.b16 %v5505
    %v5569 = vunpack.c.h.b16 %v5505
    %v5570 = vunpack.c.l.b16 %v5506
    %v5571 = vunpack.c.h.b16 %v5506
    %v5572 = vunpack.c.l.b16 %v5507
    %v5573 = vunpack.c.h.b16 %v5507
    %v5574 = vunpack.c.l.b16 %v5508
    %v5575 = vunpack.c.h.b16 %v5508
    %v5576 = vunpack.c.l.b16 %v5509
    %v5577 = vunpack.c.h.b16 %v5509
    %v5578 = vunpack.c.l.b16 %v5510
    %v5579 = vunpack.c.h.b16 %v5510
    %v5580 = vunpack.c.l.b16 %v5511
    %v5581 = vunpack.c.h.b16 %v5511
    %v5582 = vunpack.c.l.b16 %v5512
    %v5583 = vunpack.c.h.b16 %v5512
    %v5584 = vunpack.c.l.b16 %v5513
    %v5585 = vunpack.c.h.b16 %v5513
    %v5586 = vunpack.c.l.b16 %v5514
    %v5587 = vunpack.c.h.b16 %v5514
    %v5588 = vunpack.c.l.b16 %v5515
    %v5589 = vunpack.c.h.b16 %v5515
    %v5590 = vunpack.c.l.b16 %v5516
    %v5591 = vunpack.c.h.b16 %v5516
    %v5592 = vunpack.c.l.b16 %v5517
    %v5593 = vunpack.c.h.b16 %v5517
    %v5594 = vunpack.c.l.b16 %v5518
    %v5595 = vunpack.c.h.b16 %v5518
    %v5596 = vunpack.c.l.b16 %v5519
    %v5597 = vunpack.c.h.b16 %v5519
    %v5598 = vunpack.c.l.b16 %v5520
    %v5599 = vunpack.c.h.b16 %v5520
    %v5600 = vunpack.c.l.b16 %v5521
    %v5601 = vunpack.c.h.b16 %v5521
    %v5602 = vunpack.c.l.b16 %v5522
    %v5603 = vunpack.c.h.b16 %v5522
    %v5604 = vunpack.c.l.b16 %v5523
    %v5605 = vunpack.c.h.b16 %v5523
    %v5606 = vunpack.c.l.b16 %v5524
    %v5607 = vunpack.c.h.b16 %v5524
    %v5608 = vunpack.c.l.b16 %v5525
    %v5609 = vunpack.c.h.b16 %v5525
    %v5610 = vpack.c.b16 %v5564, %v5562
    %v5611 = vpack.c.b16 %v5565, %v5563
    %v5612 = vpack.c.b16 %v5568, %v5566
    %v5613 = vpack.c.b16 %v5569, %v5567
    %v5614 = vpack.c.b16 %v5572, %v5570
    %v5615 = vpack.c.b16 %v5573, %v5571
    %v5616 = vpack.c.b16 %v5576, %v5574
    %v5617 = vpack.c.b16 %v5577, %v5575
    %v5618 = vpack.c.b16 %v5580, %v5578
    %v5619 = vpack.c.b16 %v5581, %v5579
    %v5620 = vpack.c.b16 %v5584, %v5582
    %v5621 = vpack.c.b16 %v5585, %v5583
    %v5622 = vpack.c.b16 %v5588, %v5586
    %v5623 = vpack.c.b16 %v5589, %v5587
    %v5624 = vpack.c.b16 %v5592, %v5590
    %v5625 = vpack.c.b16 %v5593, %v5591
    %v5626 = vpack.c.b16 %v5596, %v5594
    %v5627 = vpack.c.b16 %v5597, %v5595
    %v5628 = vpack.c.b16 %v5600, %v5598
    %v5629 = vpack.c.b16 %v5601, %v5599
    %v5630 = vpack.c.b16 %v5604, %v5602
    %v5631 = vpack.c.b16 %v5605, %v5603
    %v5632 = vpack.c.b16 %v5608, %v5606
    %v5633 = vpack.c.b16 %v5609, %v5607
    %v5659 = vsel %vm3057, %v5499, 0
    %v5662 = vsel %vm3057, %v5501, 0
    %5664 = vmatprep.subr.bf16.mxu0 %v5611
    %5665 = vmatpush1.bf16.msra.mxu0 %v5610
    %5666 = vmatprep.subr.bf16.mxu0 %v5613
    %5667 = vmatpush1.bf16.msra.mxu0 %v5612
    %5668 = vmatprep.subr.bf16.mxu0 %v5615
    %5669 = vmatpush1.bf16.msra.mxu0 %v5614
    %5670 = vmatprep.subr.bf16.mxu0 %v5617
    %5671 = vmatpush1.bf16.msra.mxu0 %v5616
    %5672 = vmatprep.subr.bf16.mxu0 %v5619
    %5673 = vmatpush1.bf16.msra.mxu0 %v5618
    %5674 = vmatprep.subr.bf16.mxu0 %v5621
    %5675 = vmatpush1.bf16.msra.mxu0 %v5620
    %5676 = vmatprep.subr.bf16.mxu0 %v5623
    %5677 = vmatpush1.bf16.msra.mxu0 %v5622
    %5678 = vmatprep.subr.bf16.mxu0 %v5625
    %5679 = vmatpush1.bf16.msra.mxu0 %v5624
    %5680 = vmatprep.subr.bf16.mxu0 %v5627
    %5681 = vmatpush1.bf16.msra.mxu0 %v5626
    %5682 = vmatprep.subr.bf16.mxu0 %v5629
    %5683 = vmatpush1.bf16.msra.mxu0 %v5628
    %5684 = vmatprep.subr.bf16.mxu0 %v5631
    %5685 = vmatpush1.bf16.msra.mxu0 %v5630
    %5686 = vmatprep.subr.bf16.mxu0 %v5633
    %5687 = vmatpush1.bf16.msra.mxu0 %v5632
    %5688 = vmatprep.subr.bf16.mxu0 0
    %5689 = vmatpush1.bf16.msra.mxu0 0
    %5690 = vmatprep.subr.bf16.mxu0 0
    %5691 = vmatpush1.bf16.msra.mxu0 0
    %5692 = vmatprep.subr.bf16.mxu0 0
    %5693 = vmatpush1.bf16.msra.mxu0 0
    %5694 = vmatprep.subr.bf16.mxu0 0
    %5695 = vmatpush1.bf16.msra.mxu0 0
    %5696 = vmatprep.mubr.bf16.mxu0 %v5659
    %5697 = vmatmul.mubr.bf16.gmra.mrb[0].mxu0 %v5498
    %v5698 = vpop.f32.mrb[0].mxu0
    %v5699 = vadd.f32 %v5531, %v5698
    %v5700 = vpop.f32.mrb[0].mxu0
    %v5701 = vadd.f32 %v5535, %v5700
    %v5702 = vpop.f32.mrb[0].mxu0
    %v5703 = vadd.f32 %v5531, %v5702
    %v5704 = vpop.f32.mrb[0].mxu0
    %v5705 = vadd.f32 %v5535, %v5704
    %5706 = vmatprep.mubr.bf16.mxu0 %v5662
    %5707 = vmatmul.mubr.bf16.gmra.mrb[0].mxu0 %v5500
    %v5708 = vpop.f32.mrb[0].mxu0
    %v5709 = vadd.f32 %v5531, %v5708
    %v5710 = vpop.f32.mrb[0].mxu0
    %v5711 = vadd.f32 %v5535, %v5710
    %v5712 = vpop.f32.mrb[0].mxu0
    %v5713 = vadd.f32 %v5531, %v5712
    %v5714 = vpop.f32.mrb[0].mxu0
    %v5715 = vadd.f32 %v5535, %v5714
    %5716 = vdwg.mxu0
    %v5717 = vmax.f32 %v5699, 0.0
    %v5718 = vmax.f32 %v5701, 0.0
    %v5719 = vmax.f32 %v5703, 0.0
    %v5720 = vmax.f32 %v5705, 0.0
    %v5721 = vmax.f32 %v5709, 0.0
    %v5722 = vmax.f32 %v5711, 0.0
    %v5723 = vmax.f32 %v5713, 0.0
    %v5724 = vmax.f32 %v5715, 0.0
    %5725 = vst [vmem:[#allocation2] sm:$0xff] %v5717
    %5726 = vst.msk [vmem:[#allocation2 + $0x8] sm:$0xff] %vm3057, %v5718
    %5727 = vst [vmem:[#allocation2 + $0x30] sm:$0xff] %v5719
    %5728 = vst.msk [vmem:[#allocation2 + $0x38] sm:$0xff] %vm3057, %v5720
    %5729 = vst [vmem:[#allocation2 + $0x60] sm:$0xff] %v5721
    %5730 = vst.msk [vmem:[#allocation2 + $0x68] sm:$0xff] %vm3057, %v5722
    %5731 = vst [vmem:[#allocation2 + $0x90] sm:$0xff] %v5723
    %5732 = vst.msk [vmem:[#allocation2 + $0x98] sm:$0xff] %vm3057, %v5724
    %v5733 = vld [vmem:[#allocation2] sm:$0xff]
    %v5734 = vld [vmem:[#allocation2 + $0x8] sm:$0xff]
    %v5735 = vld [vmem:[#allocation2 + $0x30] sm:$0xff]
    %v5736 = vld [vmem:[#allocation2 + $0x38] sm:$0xff]
    %v5737 = vld [vmem:[#allocation2 + $0x60] sm:$0xff]
    %v5738 = vld [vmem:[#allocation2 + $0x68] sm:$0xff]
    %v5739 = vld [vmem:[#allocation2 + $0x90] sm:$0xff]
    %v5740 = vld [vmem:[#allocation2 + $0x98] sm:$0xff]
    %s5741 = scalar_lea.vmem [#allocation48], 4
    %v5742 = vld [vmem:[%s5741] ss:$8 sm:$0x3]
    %v5744 = vlaneseq
    %v5745 = vshrl.u32 %v5744, 7
    %v5746 = vsub.s32 0, %v5745
    %v5747 = vrot.slane %v5742, %v5746
    %v5748 = vlaneseq
    %v5749 = vshrl.u32 %v5748, 7
    %v5750 = vsub.s32 1, %v5749
    %v5751 = vrot.slane %v5742, %v5750
    %v5754 = vmul.f32 %v5733, %v5747
    %v5755 = vmul.f32 %v5734, %v5751
    %v5756 = vmul.f32 %v5735, %v5747
    %v5757 = vmul.f32 %v5736, %v5751
    %v5758 = vmul.f32 %v5737, %v5747
    %v5759 = vmul.f32 %v5738, %v5751
    %v5760 = vmul.f32 %v5739, %v5747
    %v5761 = vmul.f32 %v5740, %v5751
    %v5762 = vrot.slane %v5733, 3
    %v5763 = vrot.slane %v5734, 3
    %v5764 = vrot.slane %v5735, 3
    %v5765 = vrot.slane %v5736, 3
    %v5766 = vrot.slane %v5737, 3
    %v5767 = vrot.slane %v5738, 3
    %v5768 = vrot.slane %v5739, 3
    %v5769 = vrot.slane %v5740, 3
    %v5770 = vsel %vm2649, %v5766, %v5768
    %v5771 = vsel %vm2649, %v5767, %v5769
    %v5772 = vsel %vm2649, %v5764, %v5766
    %v5773 = vsel %vm2649, %v5765, %v5767
    %v5774 = vsel %vm2649, %v5762, %v5764
    %v5775 = vsel %vm2649, %v5763, %v5765
    %v5776 = vsel %vm2649, %v5768, %v5762
    %v5777 = vsel %vm2649, %v5769, %v5763
    %v5778 = vsel %vm2658, %v5776, 0.0
    %v5779 = vsel %vm2658, %v5777, 0.0
    %v5780 = vsel %vm2659, %v5774, 0.0
    %v5781 = vsel %vm2659, %v5775, 0.0
    %v5782 = vsel %vm2660, %v5772, 0.0
    %v5783 = vsel %vm2660, %v5773, 0.0
    %v5784 = vsel %vm2661, %v5770, 0.0
    %v5785 = vsel %vm2661, %v5771, 0.0
    %v5786 = vld [vmem:[#allocation48] ss:$8 sm:$0x3]
    %v5788 = vlaneseq
    %v5789 = vshrl.u32 %v5788, 7
    %v5790 = vsub.s32 0, %v5789
    %v5791 = vrot.slane %v5786, %v5790
    %v5792 = vlaneseq
    %v5793 = vshrl.u32 %v5792, 7
    %v5794 = vsub.s32 1, %v5793
    %v5795 = vrot.slane %v5786, %v5794
    %v5798 = vmul.f32 %v5778, %v5791
    %v5799 = vmul.f32 %v5779, %v5795
    %v5800 = vmul.f32 %v5780, %v5791
    %v5801 = vmul.f32 %v5781, %v5795
    %v5802 = vmul.f32 %v5782, %v5791
    %v5803 = vmul.f32 %v5783, %v5795
    %v5804 = vmul.f32 %v5784, %v5791
    %v5805 = vmul.f32 %v5785, %v5795
    %v5806 = vadd.f32 %v5754, %v5798
    %v5807 = vadd.f32 %v5755, %v5799
    %v5808 = vadd.f32 %v5756, %v5800
    %v5809 = vadd.f32 %v5757, %v5801
    %v5810 = vadd.f32 %v5758, %v5802
    %v5811 = vadd.f32 %v5759, %v5803
    %v5812 = vadd.f32 %v5760, %v5804
    %v5813 = vadd.f32 %v5761, %v5805
    %v5814 = vrot.slane %v5733, 4
    %v5815 = vrot.slane %v5734, 4
    %v5816 = vrot.slane %v5735, 4
    %v5817 = vrot.slane %v5736, 4
    %v5818 = vrot.slane %v5737, 4
    %v5819 = vrot.slane %v5738, 4
    %v5820 = vrot.slane %v5739, 4
    %v5821 = vrot.slane %v5740, 4
    %v5822 = vsel %vm2683, %v5818, %v5820
    %v5823 = vsel %vm2683, %v5819, %v5821
    %v5824 = vsel %vm2683, %v5816, %v5818
    %v5825 = vsel %vm2683, %v5817, %v5819
    %v5826 = vsel %vm2683, %v5814, %v5816
    %v5827 = vsel %vm2683, %v5815, %v5817
    %v5828 = vsel %vm2683, %v5820, %v5814
    %v5829 = vsel %vm2683, %v5821, %v5815
    %v5830 = vsel %vm2692, %v5828, 0.0
    %v5831 = vsel %vm2692, %v5829, 0.0
    %v5832 = vsel %vm2693, %v5826, 0.0
    %v5833 = vsel %vm2693, %v5827, 0.0
    %v5834 = vsel %vm2694, %v5824, 0.0
    %v5835 = vsel %vm2694, %v5825, 0.0
    %v5836 = vsel %vm2695, %v5822, 0.0
    %v5837 = vsel %vm2695, %v5823, 0.0
    %s5838 = scalar_lea.vmem [#allocation48], 1
    %v5839 = vld [vmem:[%s5838] ss:$8 sm:$0x3]
    %v5841 = vlaneseq
    %v5842 = vshrl.u32 %v5841, 7
    %v5843 = vsub.s32 0, %v5842
    %v5844 = vrot.slane %v5839, %v5843
    %v5845 = vlaneseq
    %v5846 = vshrl.u32 %v5845, 7
    %v5847 = vsub.s32 1, %v5846
    %v5848 = vrot.slane %v5839, %v5847
    %v5851 = vmul.f32 %v5830, %v5844
    %v5852 = vmul.f32 %v5831, %v5848
    %v5853 = vmul.f32 %v5832, %v5844
    %v5854 = vmul.f32 %v5833, %v5848
    %v5855 = vmul.f32 %v5834, %v5844
    %v5856 = vmul.f32 %v5835, %v5848
    %v5857 = vmul.f32 %v5836, %v5844
    %v5858 = vmul.f32 %v5837, %v5848
    %v5859 = vadd.f32 %v5806, %v5851
    %v5860 = vadd.f32 %v5807, %v5852
    %v5861 = vadd.f32 %v5808, %v5853
    %v5862 = vadd.f32 %v5809, %v5854
    %v5863 = vadd.f32 %v5810, %v5855
    %v5864 = vadd.f32 %v5811, %v5856
    %v5865 = vadd.f32 %v5812, %v5857
    %v5866 = vadd.f32 %v5813, %v5858
    %v5867 = vrot.slane %v5733, 5
    %v5868 = vrot.slane %v5734, 5
    %v5869 = vrot.slane %v5735, 5
    %v5870 = vrot.slane %v5736, 5
    %v5871 = vrot.slane %v5737, 5
    %v5872 = vrot.slane %v5738, 5
    %v5873 = vrot.slane %v5739, 5
    %v5874 = vrot.slane %v5740, 5
    %v5875 = vsel %vm2717, %v5871, %v5873
    %v5876 = vsel %vm2717, %v5872, %v5874
    %v5877 = vsel %vm2717, %v5869, %v5871
    %v5878 = vsel %vm2717, %v5870, %v5872
    %v5879 = vsel %vm2717, %v5867, %v5869
    %v5880 = vsel %vm2717, %v5868, %v5870
    %v5881 = vsel %vm2717, %v5873, %v5867
    %v5882 = vsel %vm2717, %v5874, %v5868
    %v5883 = vsel %vm2726, %v5881, 0.0
    %v5884 = vsel %vm2726, %v5882, 0.0
    %v5885 = vsel %vm2727, %v5879, 0.0
    %v5886 = vsel %vm2727, %v5880, 0.0
    %v5887 = vsel %vm2728, %v5877, 0.0
    %v5888 = vsel %vm2728, %v5878, 0.0
    %v5889 = vsel %vm2729, %v5875, 0.0
    %v5890 = vsel %vm2729, %v5876, 0.0
    %s5891 = scalar_lea.vmem [#allocation48], 2
    %v5892 = vld [vmem:[%s5891] ss:$8 sm:$0x3]
    %v5894 = vlaneseq
    %v5895 = vshrl.u32 %v5894, 7
    %v5896 = vsub.s32 0, %v5895
    %v5897 = vrot.slane %v5892, %v5896
    %v5898 = vlaneseq
    %v5899 = vshrl.u32 %v5898, 7
    %v5900 = vsub.s32 1, %v5899
    %v5901 = vrot.slane %v5892, %v5900
    %v5904 = vmul.f32 %v5883, %v5897
    %v5905 = vmul.f32 %v5884, %v5901
    %v5906 = vmul.f32 %v5885, %v5897
    %v5907 = vmul.f32 %v5886, %v5901
    %v5908 = vmul.f32 %v5887, %v5897
    %v5909 = vmul.f32 %v5888, %v5901
    %v5910 = vmul.f32 %v5889, %v5897
    %v5911 = vmul.f32 %v5890, %v5901
    %v5912 = vadd.f32 %v5859, %v5904
    %v5913 = vadd.f32 %v5860, %v5905
    %v5914 = vadd.f32 %v5861, %v5906
    %v5915 = vadd.f32 %v5862, %v5907
    %v5916 = vadd.f32 %v5863, %v5908
    %v5917 = vadd.f32 %v5864, %v5909
    %v5918 = vadd.f32 %v5865, %v5910
    %v5919 = vadd.f32 %v5866, %v5911
    %v5920 = vrot.slane %v5733, 7
    %v5921 = vrot.slane %v5734, 7
    %v5922 = vrot.slane %v5735, 7
    %v5923 = vrot.slane %v5736, 7
    %v5924 = vrot.slane %v5737, 7
    %v5925 = vrot.slane %v5738, 7
    %v5926 = vrot.slane %v5739, 7
    %v5927 = vrot.slane %v5740, 7
    %v5928 = vsel %vm903, %v5924, %v5926
    %v5929 = vsel %vm903, %v5925, %v5927
    %v5930 = vsel %vm903, %v5922, %v5924
    %v5931 = vsel %vm903, %v5923, %v5925
    %v5932 = vsel %vm903, %v5920, %v5922
    %v5933 = vsel %vm903, %v5921, %v5923
    %v5934 = vsel %vm903, %v5926, %v5920
    %v5935 = vsel %vm903, %v5927, %v5921
    %v5936 = vsel %vm2759, %v5934, 0.0
    %v5937 = vsel %vm2759, %v5935, 0.0
    %v5938 = vsel %vm2760, %v5932, 0.0
    %v5939 = vsel %vm2760, %v5933, 0.0
    %v5940 = vsel %vm2761, %v5930, 0.0
    %v5941 = vsel %vm2761, %v5931, 0.0
    %v5942 = vsel %vm2762, %v5928, 0.0
    %v5943 = vsel %vm2762, %v5929, 0.0
    %s5944 = scalar_lea.vmem [#allocation48], 3
    %v5945 = vld [vmem:[%s5944] ss:$8 sm:$0x3]
    %v5947 = vlaneseq
    %v5948 = vshrl.u32 %v5947, 7
    %v5949 = vsub.s32 0, %v5948
    %v5950 = vrot.slane %v5945, %v5949
    %v5951 = vlaneseq
    %v5952 = vshrl.u32 %v5951, 7
    %v5953 = vsub.s32 1, %v5952
    %v5954 = vrot.slane %v5945, %v5953
    %v5957 = vmul.f32 %v5936, %v5950
    %v5958 = vmul.f32 %v5937, %v5954
    %v5959 = vmul.f32 %v5938, %v5950
    %v5960 = vmul.f32 %v5939, %v5954
    %v5961 = vmul.f32 %v5940, %v5950
    %v5962 = vmul.f32 %v5941, %v5954
    %v5963 = vmul.f32 %v5942, %v5950
    %v5964 = vmul.f32 %v5943, %v5954
    %v5965 = vadd.f32 %v5912, %v5957
    %v5966 = vadd.f32 %v5913, %v5958
    %v5967 = vadd.f32 %v5914, %v5959
    %v5968 = vadd.f32 %v5915, %v5960
    %v5969 = vadd.f32 %v5916, %v5961
    %v5970 = vadd.f32 %v5917, %v5962
    %v5971 = vadd.f32 %v5918, %v5963
    %v5972 = vadd.f32 %v5919, %v5964
    %v5973 = vrot.slane %v5733, 1
    %v5974 = vrot.slane %v5734, 1
    %v5975 = vrot.slane %v5735, 1
    %v5976 = vrot.slane %v5736, 1
    %v5977 = vrot.slane %v5737, 1
    %v5978 = vrot.slane %v5738, 1
    %v5979 = vrot.slane %v5739, 1
    %v5980 = vrot.slane %v5740, 1
    %v5981 = vsel %vm1106, %v5977, %v5979
    %v5982 = vsel %vm1106, %v5978, %v5980
    %v5983 = vsel %vm1106, %v5975, %v5977
    %v5984 = vsel %vm1106, %v5976, %v5978
    %v5985 = vsel %vm1106, %v5973, %v5975
    %v5986 = vsel %vm1106, %v5974, %v5976
    %v5987 = vsel %vm1106, %v5979, %v5973
    %v5988 = vsel %vm1106, %v5980, %v5974
    %v5989 = vsel %vm2792, %v5985, 0.0
    %v5990 = vsel %vm2792, %v5986, 0.0
    %v5991 = vsel %vm2793, %v5983, 0.0
    %v5992 = vsel %vm2793, %v5984, 0.0
    %v5993 = vsel %vm2794, %v5981, 0.0
    %v5994 = vsel %vm2794, %v5982, 0.0
    %v5995 = vsel %vm2795, %v5987, 0.0
    %v5996 = vsel %vm2795, %v5988, 0.0
    %s5997 = scalar_lea.vmem [#allocation48], 5
    %v5998 = vld [vmem:[%s5997] ss:$8 sm:$0x3]
    %v6000 = vlaneseq
    %v6001 = vshrl.u32 %v6000, 7
    %v6002 = vsub.s32 0, %v6001
    %v6003 = vrot.slane %v5998, %v6002
    %v6004 = vlaneseq
    %v6005 = vshrl.u32 %v6004, 7
    %v6006 = vsub.s32 1, %v6005
    %v6007 = vrot.slane %v5998, %v6006
    %v6010 = vmul.f32 %v5989, %v6003
    %v6011 = vmul.f32 %v5990, %v6007
    %v6012 = vmul.f32 %v5991, %v6003
    %v6013 = vmul.f32 %v5992, %v6007
    %v6014 = vmul.f32 %v5993, %v6003
    %v6015 = vmul.f32 %v5994, %v6007
    %v6016 = vmul.f32 %v5995, %v6003
    %v6017 = vmul.f32 %v5996, %v6007
    %v6018 = vadd.f32 %v5965, %v6010
    %v6019 = vadd.f32 %v5966, %v6011
    %v6020 = vadd.f32 %v5967, %v6012
    %v6021 = vadd.f32 %v5968, %v6013
    %v6022 = vadd.f32 %v5969, %v6014
    %v6023 = vadd.f32 %v5970, %v6015
    %v6024 = vadd.f32 %v5971, %v6016
    %v6025 = vadd.f32 %v5972, %v6017
    %v6026 = vsel %vm2817, %v5774, 0.0
    %v6027 = vsel %vm2817, %v5775, 0.0
    %v6028 = vsel %vm2818, %v5772, 0.0
    %v6029 = vsel %vm2818, %v5773, 0.0
    %v6030 = vsel %vm2819, %v5770, 0.0
    %v6031 = vsel %vm2819, %v5771, 0.0
    %v6032 = vsel %vm2820, %v5776, 0.0
    %v6033 = vsel %vm2820, %v5777, 0.0
    %s6034 = scalar_lea.vmem [#allocation48], 6
    %v6035 = vld [vmem:[%s6034] ss:$8 sm:$0x3]
    %v6037 = vlaneseq
    %v6038 = vshrl.u32 %v6037, 7
    %v6039 = vsub.s32 0, %v6038
    %v6040 = vrot.slane %v6035, %v6039
    %v6041 = vlaneseq
    %v6042 = vshrl.u32 %v6041, 7
    %v6043 = vsub.s32 1, %v6042
    %v6044 = vrot.slane %v6035, %v6043
    %v6047 = vmul.f32 %v6026, %v6040
    %v6048 = vmul.f32 %v6027, %v6044
    %v6049 = vmul.f32 %v6028, %v6040
    %v6050 = vmul.f32 %v6029, %v6044
    %v6051 = vmul.f32 %v6030, %v6040
    %v6052 = vmul.f32 %v6031, %v6044
    %v6053 = vmul.f32 %v6032, %v6040
    %v6054 = vmul.f32 %v6033, %v6044
    %v6055 = vadd.f32 %v6018, %v6047
    %v6056 = vadd.f32 %v6019, %v6048
    %v6057 = vadd.f32 %v6020, %v6049
    %v6058 = vadd.f32 %v6021, %v6050
    %v6059 = vadd.f32 %v6022, %v6051
    %v6060 = vadd.f32 %v6023, %v6052
    %v6061 = vadd.f32 %v6024, %v6053
    %v6062 = vadd.f32 %v6025, %v6054
    %v6063 = vsel %vm2842, %v5826, 0.0
    %v6064 = vsel %vm2842, %v5827, 0.0
    %v6065 = vsel %vm2843, %v5824, 0.0
    %v6066 = vsel %vm2843, %v5825, 0.0
    %v6067 = vsel %vm2844, %v5822, 0.0
    %v6068 = vsel %vm2844, %v5823, 0.0
    %v6069 = vsel %vm2845, %v5828, 0.0
    %v6070 = vsel %vm2845, %v5829, 0.0
    %s6071 = scalar_lea.vmem [#allocation48], 7
    %v6072 = vld [vmem:[%s6071] ss:$8 sm:$0x3]
    %v6074 = vlaneseq
    %v6075 = vshrl.u32 %v6074, 7
    %v6076 = vsub.s32 0, %v6075
    %v6077 = vrot.slane %v6072, %v6076
    %v6078 = vlaneseq
    %v6079 = vshrl.u32 %v6078, 7
    %v6080 = vsub.s32 1, %v6079
    %v6081 = vrot.slane %v6072, %v6080
    %v6084 = vmul.f32 %v6063, %v6077
    %v6085 = vmul.f32 %v6064, %v6081
    %v6086 = vmul.f32 %v6065, %v6077
    %v6087 = vmul.f32 %v6066, %v6081
    %v6088 = vmul.f32 %v6067, %v6077
    %v6089 = vmul.f32 %v6068, %v6081
    %v6090 = vmul.f32 %v6069, %v6077
    %v6091 = vmul.f32 %v6070, %v6081
    %v6092 = vadd.f32 %v6055, %v6084
    %v6093 = vadd.f32 %v6056, %v6085
    %v6094 = vadd.f32 %v6057, %v6086
    %v6095 = vadd.f32 %v6058, %v6087
    %v6096 = vadd.f32 %v6059, %v6088
    %v6097 = vadd.f32 %v6060, %v6089
    %v6098 = vadd.f32 %v6061, %v6090
    %v6099 = vadd.f32 %v6062, %v6091
    %v6100 = vsel %vm2867, %v5879, 0.0
    %v6101 = vsel %vm2867, %v5880, 0.0
    %v6102 = vsel %vm2868, %v5877, 0.0
    %v6103 = vsel %vm2868, %v5878, 0.0
    %v6104 = vsel %vm2869, %v5875, 0.0
    %v6105 = vsel %vm2869, %v5876, 0.0
    %v6106 = vsel %vm2870, %v5881, 0.0
    %v6107 = vsel %vm2870, %v5882, 0.0
    %s6108 = scalar_lea.vmem [#allocation48], 16
    %v6109 = vld [vmem:[%s6108] ss:$8 sm:$0x3]
    %v6111 = vlaneseq
    %v6112 = vshrl.u32 %v6111, 7
    %v6113 = vsub.s32 0, %v6112
    %v6114 = vrot.slane %v6109, %v6113
    %v6115 = vlaneseq
    %v6116 = vshrl.u32 %v6115, 7
    %v6117 = vsub.s32 1, %v6116
    %v6118 = vrot.slane %v6109, %v6117
    %v6121 = vmul.f32 %v6100, %v6114
    %v6122 = vmul.f32 %v6101, %v6118
    %v6123 = vmul.f32 %v6102, %v6114
    %v6124 = vmul.f32 %v6103, %v6118
    %v6125 = vmul.f32 %v6104, %v6114
    %v6126 = vmul.f32 %v6105, %v6118
    %v6127 = vmul.f32 %v6106, %v6114
    %v6128 = vmul.f32 %v6107, %v6118
    %v6129 = vadd.f32 %v6092, %v6121
    %v6130 = vadd.f32 %v6093, %v6122
    %v6131 = vadd.f32 %v6094, %v6123
    %v6132 = vadd.f32 %v6095, %v6124
    %v6133 = vadd.f32 %v6096, %v6125
    %v6134 = vadd.f32 %v6097, %v6126
    %v6135 = vadd.f32 %v6098, %v6127
    %v6136 = vadd.f32 %v6099, %v6128
    %v6137 = vld [vmem:[#allocation49] sm:$0x3]
    %v6139 = vlaneseq
    %v6140 = vshrl.u32 %v6139, 7
    %v6141 = vsub.s32 0, %v6140
    %v6142 = vrot.slane %v6137, %v6141
    %v6143 = vlaneseq
    %v6144 = vshrl.u32 %v6143, 7
    %v6145 = vsub.s32 1, %v6144
    %v6146 = vrot.slane %v6137, %v6145
    %v6149 = vadd.f32 %v6129, %v6142
    %v6150 = vadd.f32 %v6130, %v6146
    %v6151 = vadd.f32 %v6131, %v6142
    %v6152 = vadd.f32 %v6132, %v6146
    %v6153 = vadd.f32 %v6133, %v6142
    %v6154 = vadd.f32 %v6134, %v6146
    %v6155 = vadd.f32 %v6135, %v6142
    %v6156 = vadd.f32 %v6136, %v6146
    %v6157 = vmax.f32 %v6149, 0.0
    %v6158 = vmax.f32 %v6150, 0.0
    %v6159 = vmax.f32 %v6151, 0.0
    %v6160 = vmax.f32 %v6152, 0.0
    %v6161 = vmax.f32 %v6153, 0.0
    %v6162 = vmax.f32 %v6154, 0.0
    %v6163 = vmax.f32 %v6155, 0.0
    %v6164 = vmax.f32 %v6156, 0.0
    %v6165 = vpack.c.bf16 %v6159, %v6157
    %v6166 = vpack.c.bf16 %v6160, %v6158
    %v6167 = vpack.c.bf16 %v6163, %v6161
    %v6168 = vpack.c.bf16 %v6164, %v6162
    %v6169 = vld [vmem:[#allocation51] sm:$0xff]
    %v6170 = vld [vmem:[#allocation51 + $0x8] sm:$0xff]
    %v6171 = vld [vmem:[#allocation51 + $0x10] sm:$0xff]
    %v6172 = vld [vmem:[#allocation51 + $0x18] sm:$0xff]
    %v6173 = vld [vmem:[#allocation51 + $0x20] sm:$0xff]
    %v6174 = vld [vmem:[#allocation51 + $0x28] sm:$0xff]
    %v6175 = vld [vmem:[#allocation51 + $0x30] sm:$0xff]
    %v6176 = vld [vmem:[#allocation51 + $0x38] sm:$0xff]
    %v6177 = vld [vmem:[#allocation51 + $0x40] sm:$0xff]
    %v6178 = vld [vmem:[#allocation51 + $0x48] sm:$0xff]
    %v6179 = vld [vmem:[#allocation51 + $0x50] sm:$0xff]
    %v6180 = vld [vmem:[#allocation51 + $0x58] sm:$0xff]
    %v6181 = vld [vmem:[#allocation51 + $0x60] sm:$0xff]
    %v6182 = vld [vmem:[#allocation51 + $0x68] sm:$0xff]
    %v6183 = vld [vmem:[#allocation51 + $0x70] sm:$0xff]
    %v6184 = vld [vmem:[#allocation51 + $0x78] sm:$0xff]
    %v6185 = vld [vmem:[#allocation51 + $0x80] sm:$0xff]
    %v6186 = vld [vmem:[#allocation51 + $0x88] sm:$0xff]
    %v6187 = vld [vmem:[#allocation51 + $0x90] sm:$0xff]
    %v6188 = vld [vmem:[#allocation51 + $0x98] sm:$0xff]
    %v6189 = vld [vmem:[#allocation51 + $0xa0] sm:$0xff]
    %v6190 = vld [vmem:[#allocation51 + $0xa8] sm:$0xff]
    %v6191 = vld [vmem:[#allocation51 + $0xb0] sm:$0xff]
    %v6192 = vld [vmem:[#allocation51 + $0xb8] sm:$0xff]
    %v6193 = vld [vmem:[#allocation52] sm:$0x3]
    %v6195 = vlaneseq
    %v6196 = vshrl.u32 %v6195, 7
    %v6197 = vsub.s32 0, %v6196
    %v6198 = vrot.slane %v6193, %v6197
    %v6199 = vlaneseq
    %v6200 = vshrl.u32 %v6199, 7
    %v6201 = vsub.s32 1, %v6200
    %v6202 = vrot.slane %v6193, %v6201
    %v6229 = vunpack.c.l.b16 %v6169
    %v6230 = vunpack.c.h.b16 %v6169
    %v6231 = vunpack.c.l.b16 %v6170
    %v6232 = vunpack.c.h.b16 %v6170
    %v6233 = vunpack.c.l.b16 %v6171
    %v6234 = vunpack.c.h.b16 %v6171
    %v6235 = vunpack.c.l.b16 %v6172
    %v6236 = vunpack.c.h.b16 %v6172
    %v6237 = vunpack.c.l.b16 %v6173
    %v6238 = vunpack.c.h.b16 %v6173
    %v6239 = vunpack.c.l.b16 %v6174
    %v6240 = vunpack.c.h.b16 %v6174
    %v6241 = vunpack.c.l.b16 %v6175
    %v6242 = vunpack.c.h.b16 %v6175
    %v6243 = vunpack.c.l.b16 %v6176
    %v6244 = vunpack.c.h.b16 %v6176
    %v6245 = vunpack.c.l.b16 %v6177
    %v6246 = vunpack.c.h.b16 %v6177
    %v6247 = vunpack.c.l.b16 %v6178
    %v6248 = vunpack.c.h.b16 %v6178
    %v6249 = vunpack.c.l.b16 %v6179
    %v6250 = vunpack.c.h.b16 %v6179
    %v6251 = vunpack.c.l.b16 %v6180
    %v6252 = vunpack.c.h.b16 %v6180
    %v6253 = vunpack.c.l.b16 %v6181
    %v6254 = vunpack.c.h.b16 %v6181
    %v6255 = vunpack.c.l.b16 %v6182
    %v6256 = vunpack.c.h.b16 %v6182
    %v6257 = vunpack.c.l.b16 %v6183
    %v6258 = vunpack.c.h.b16 %v6183
    %v6259 = vunpack.c.l.b16 %v6184
    %v6260 = vunpack.c.h.b16 %v6184
    %v6261 = vunpack.c.l.b16 %v6185
    %v6262 = vunpack.c.h.b16 %v6185
    %v6263 = vunpack.c.l.b16 %v6186
    %v6264 = vunpack.c.h.b16 %v6186
    %v6265 = vunpack.c.l.b16 %v6187
    %v6266 = vunpack.c.h.b16 %v6187
    %v6267 = vunpack.c.l.b16 %v6188
    %v6268 = vunpack.c.h.b16 %v6188
    %v6269 = vunpack.c.l.b16 %v6189
    %v6270 = vunpack.c.h.b16 %v6189
    %v6271 = vunpack.c.l.b16 %v6190
    %v6272 = vunpack.c.h.b16 %v6190
    %v6273 = vunpack.c.l.b16 %v6191
    %v6274 = vunpack.c.h.b16 %v6191
    %v6275 = vunpack.c.l.b16 %v6192
    %v6276 = vunpack.c.h.b16 %v6192
    %v6277 = vpack.c.b16 %v6231, %v6229
    %v6278 = vpack.c.b16 %v6232, %v6230
    %v6279 = vpack.c.b16 %v6235, %v6233
    %v6280 = vpack.c.b16 %v6236, %v6234
    %v6281 = vpack.c.b16 %v6239, %v6237
    %v6282 = vpack.c.b16 %v6240, %v6238
    %v6283 = vpack.c.b16 %v6243, %v6241
    %v6284 = vpack.c.b16 %v6244, %v6242
    %v6285 = vpack.c.b16 %v6247, %v6245
    %v6286 = vpack.c.b16 %v6248, %v6246
    %v6287 = vpack.c.b16 %v6251, %v6249
    %v6288 = vpack.c.b16 %v6252, %v6250
    %v6289 = vpack.c.b16 %v6255, %v6253
    %v6290 = vpack.c.b16 %v6256, %v6254
    %v6291 = vpack.c.b16 %v6259, %v6257
    %v6292 = vpack.c.b16 %v6260, %v6258
    %v6293 = vpack.c.b16 %v6263, %v6261
    %v6294 = vpack.c.b16 %v6264, %v6262
    %v6295 = vpack.c.b16 %v6267, %v6265
    %v6296 = vpack.c.b16 %v6268, %v6266
    %v6297 = vpack.c.b16 %v6271, %v6269
    %v6298 = vpack.c.b16 %v6272, %v6270
    %v6299 = vpack.c.b16 %v6275, %v6273
    %v6300 = vpack.c.b16 %v6276, %v6274
    %v6326 = vsel %vm3057, %v6166, 0
    %v6329 = vsel %vm3057, %v6168, 0
    %6331 = vmatprep.subr.bf16.mxu0 %v6278
    %6332 = vmatpush1.bf16.msra.mxu0 %v6277
    %6333 = vmatprep.subr.bf16.mxu0 %v6280
    %6334 = vmatpush1.bf16.msra.mxu0 %v6279
    %6335 = vmatprep.subr.bf16.mxu0 %v6282
    %6336 = vmatpush1.bf16.msra.mxu0 %v6281
    %6337 = vmatprep.subr.bf16.mxu0 %v6284
    %6338 = vmatpush1.bf16.msra.mxu0 %v6283
    %6339 = vmatprep.subr.bf16.mxu0 %v6286
    %6340 = vmatpush1.bf16.msra.mxu0 %v6285
    %6341 = vmatprep.subr.bf16.mxu0 %v6288
    %6342 = vmatpush1.bf16.msra.mxu0 %v6287
    %6343 = vmatprep.subr.bf16.mxu0 %v6290
    %6344 = vmatpush1.bf16.msra.mxu0 %v6289
    %6345 = vmatprep.subr.bf16.mxu0 %v6292
    %6346 = vmatpush1.bf16.msra.mxu0 %v6291
    %6347 = vmatprep.subr.bf16.mxu0 %v6294
    %6348 = vmatpush1.bf16.msra.mxu0 %v6293
    %6349 = vmatprep.subr.bf16.mxu0 %v6296
    %6350 = vmatpush1.bf16.msra.mxu0 %v6295
    %6351 = vmatprep.subr.bf16.mxu0 %v6298
    %6352 = vmatpush1.bf16.msra.mxu0 %v6297
    %6353 = vmatprep.subr.bf16.mxu0 %v6300
    %6354 = vmatpush1.bf16.msra.mxu0 %v6299
    %6355 = vmatprep.subr.bf16.mxu0 0
    %6356 = vmatpush1.bf16.msra.mxu0 0
    %6357 = vmatprep.subr.bf16.mxu0 0
    %6358 = vmatpush1.bf16.msra.mxu0 0
    %6359 = vmatprep.subr.bf16.mxu0 0
    %6360 = vmatpush1.bf16.msra.mxu0 0
    %6361 = vmatprep.subr.bf16.mxu0 0
    %6362 = vmatpush1.bf16.msra.mxu0 0
    %6363 = vmatprep.mubr.bf16.mxu0 %v6326
    %6364 = vmatmul.mubr.bf16.gmra.mrb[0].mxu0 %v6165
    %v6365 = vpop.f32.mrb[0].mxu0
    %v6366 = vadd.f32 %v6198, %v6365
    %v6367 = vpop.f32.mrb[0].mxu0
    %v6368 = vadd.f32 %v6202, %v6367
    %v6369 = vpop.f32.mrb[0].mxu0
    %v6370 = vadd.f32 %v6198, %v6369
    %v6371 = vpop.f32.mrb[0].mxu0
    %v6372 = vadd.f32 %v6202, %v6371
    %6373 = vmatprep.mubr.bf16.mxu0 %v6329
    %6374 = vmatmul.mubr.bf16.gmra.mrb[0].mxu0 %v6167
    %v6375 = vpop.f32.mrb[0].mxu0
    %v6376 = vadd.f32 %v6198, %v6375
    %v6377 = vpop.f32.mrb[0].mxu0
    %v6378 = vadd.f32 %v6202, %v6377
    %v6379 = vpop.f32.mrb[0].mxu0
    %v6380 = vadd.f32 %v6198, %v6379
    %v6381 = vpop.f32.mrb[0].mxu0
    %v6382 = vadd.f32 %v6202, %v6381
    %6383 = vdwg.mxu0
    %v6384 = vmax.f32 %v6366, 0.0
    %v6385 = vmax.f32 %v6368, 0.0
    %v6386 = vmax.f32 %v6370, 0.0
    %v6387 = vmax.f32 %v6372, 0.0
    %v6388 = vmax.f32 %v6376, 0.0
    %v6389 = vmax.f32 %v6378, 0.0
    %v6390 = vmax.f32 %v6380, 0.0
    %v6391 = vmax.f32 %v6382, 0.0
    %6392 = vst [vmem:[#allocation3] sm:$0xff] %v6384
    %6393 = vst.msk [vmem:[#allocation3 + $0x8] sm:$0xff] %vm3057, %v6385
    %6394 = vst [vmem:[#allocation3 + $0x30] sm:$0xff] %v6386
    %6395 = vst.msk [vmem:[#allocation3 + $0x38] sm:$0xff] %vm3057, %v6387
    %6396 = vst [vmem:[#allocation3 + $0x60] sm:$0xff] %v6388
    %6397 = vst.msk [vmem:[#allocation3 + $0x68] sm:$0xff] %vm3057, %v6389
    %6398 = vst [vmem:[#allocation3 + $0x90] sm:$0xff] %v6390
    %6399 = vst.msk [vmem:[#allocation3 + $0x98] sm:$0xff] %vm3057, %v6391
    %v6400 = vld [vmem:[#allocation3] sm:$0xff]
    %v6401 = vld [vmem:[#allocation3 + $0x8] sm:$0xff]
    %v6402 = vld [vmem:[#allocation3 + $0x30] sm:$0xff]
    %v6403 = vld [vmem:[#allocation3 + $0x38] sm:$0xff]
    %v6404 = vld [vmem:[#allocation3 + $0x60] sm:$0xff]
    %v6405 = vld [vmem:[#allocation3 + $0x68] sm:$0xff]
    %v6406 = vld [vmem:[#allocation3 + $0x90] sm:$0xff]
    %v6407 = vld [vmem:[#allocation3 + $0x98] sm:$0xff]
    %s6408 = scalar_lea.vmem [#allocation54], 4
    %v6409 = vld [vmem:[%s6408] ss:$8 sm:$0x3]
    %v6411 = vlaneseq
    %v6412 = vshrl.u32 %v6411, 7
    %v6413 = vsub.s32 0, %v6412
    %v6414 = vrot.slane %v6409, %v6413
    %v6415 = vlaneseq
    %v6416 = vshrl.u32 %v6415, 7
    %v6417 = vsub.s32 1, %v6416
    %v6418 = vrot.slane %v6409, %v6417
    %v6421 = vmul.f32 %v6400, %v6414
    %v6422 = vmul.f32 %v6401, %v6418
    %v6423 = vmul.f32 %v6402, %v6414
    %v6424 = vmul.f32 %v6403, %v6418
    %v6425 = vmul.f32 %v6404, %v6414
    %v6426 = vmul.f32 %v6405, %v6418
    %v6427 = vmul.f32 %v6406, %v6414
    %v6428 = vmul.f32 %v6407, %v6418
    %v6429 = vrot.slane %v6400, 3
    %v6430 = vrot.slane %v6401, 3
    %v6431 = vrot.slane %v6402, 3
    %v6432 = vrot.slane %v6403, 3
    %v6433 = vrot.slane %v6404, 3
    %v6434 = vrot.slane %v6405, 3
    %v6435 = vrot.slane %v6406, 3
    %v6436 = vrot.slane %v6407, 3
    %v6437 = vsel %vm2649, %v6433, %v6435
    %v6438 = vsel %vm2649, %v6434, %v6436
    %v6439 = vsel %vm2649, %v6431, %v6433
    %v6440 = vsel %vm2649, %v6432, %v6434
    %v6441 = vsel %vm2649, %v6429, %v6431
    %v6442 = vsel %vm2649, %v6430, %v6432
    %v6443 = vsel %vm2649, %v6435, %v6429
    %v6444 = vsel %vm2649, %v6436, %v6430
    %v6445 = vsel %vm2658, %v6443, 0.0
    %v6446 = vsel %vm2658, %v6444, 0.0
    %v6447 = vsel %vm2659, %v6441, 0.0
    %v6448 = vsel %vm2659, %v6442, 0.0
    %v6449 = vsel %vm2660, %v6439, 0.0
    %v6450 = vsel %vm2660, %v6440, 0.0
    %v6451 = vsel %vm2661, %v6437, 0.0
    %v6452 = vsel %vm2661, %v6438, 0.0
    %v6453 = vld [vmem:[#allocation54] ss:$8 sm:$0x3]
    %v6455 = vlaneseq
    %v6456 = vshrl.u32 %v6455, 7
    %v6457 = vsub.s32 0, %v6456
    %v6458 = vrot.slane %v6453, %v6457
    %v6459 = vlaneseq
    %v6460 = vshrl.u32 %v6459, 7
    %v6461 = vsub.s32 1, %v6460
    %v6462 = vrot.slane %v6453, %v6461
    %v6465 = vmul.f32 %v6445, %v6458
    %v6466 = vmul.f32 %v6446, %v6462
    %v6467 = vmul.f32 %v6447, %v6458
    %v6468 = vmul.f32 %v6448, %v6462
    %v6469 = vmul.f32 %v6449, %v6458
    %v6470 = vmul.f32 %v6450, %v6462
    %v6471 = vmul.f32 %v6451, %v6458
    %v6472 = vmul.f32 %v6452, %v6462
    %v6473 = vadd.f32 %v6421, %v6465
    %v6474 = vadd.f32 %v6422, %v6466
    %v6475 = vadd.f32 %v6423, %v6467
    %v6476 = vadd.f32 %v6424, %v6468
    %v6477 = vadd.f32 %v6425, %v6469
    %v6478 = vadd.f32 %v6426, %v6470
    %v6479 = vadd.f32 %v6427, %v6471
    %v6480 = vadd.f32 %v6428, %v6472
    %v6481 = vrot.slane %v6400, 4
    %v6482 = vrot.slane %v6401, 4
    %v6483 = vrot.slane %v6402, 4
    %v6484 = vrot.slane %v6403, 4
    %v6485 = vrot.slane %v6404, 4
    %v6486 = vrot.slane %v6405, 4
    %v6487 = vrot.slane %v6406, 4
    %v6488 = vrot.slane %v6407, 4
    %v6489 = vsel %vm2683, %v6485, %v6487
    %v6490 = vsel %vm2683, %v6486, %v6488
    %v6491 = vsel %vm2683, %v6483, %v6485
    %v6492 = vsel %vm2683, %v6484, %v6486
    %v6493 = vsel %vm2683, %v6481, %v6483
    %v6494 = vsel %vm2683, %v6482, %v6484
    %v6495 = vsel %vm2683, %v6487, %v6481
    %v6496 = vsel %vm2683, %v6488, %v6482
    %v6497 = vsel %vm2692, %v6495, 0.0
    %v6498 = vsel %vm2692, %v6496, 0.0
    %v6499 = vsel %vm2693, %v6493, 0.0
    %v6500 = vsel %vm2693, %v6494, 0.0
    %v6501 = vsel %vm2694, %v6491, 0.0
    %v6502 = vsel %vm2694, %v6492, 0.0
    %v6503 = vsel %vm2695, %v6489, 0.0
    %v6504 = vsel %vm2695, %v6490, 0.0
    %s6505 = scalar_lea.vmem [#allocation54], 1
    %v6506 = vld [vmem:[%s6505] ss:$8 sm:$0x3]
    %v6508 = vlaneseq
    %v6509 = vshrl.u32 %v6508, 7
    %v6510 = vsub.s32 0, %v6509
    %v6511 = vrot.slane %v6506, %v6510
    %v6512 = vlaneseq
    %v6513 = vshrl.u32 %v6512, 7
    %v6514 = vsub.s32 1, %v6513
    %v6515 = vrot.slane %v6506, %v6514
    %v6518 = vmul.f32 %v6497, %v6511
    %v6519 = vmul.f32 %v6498, %v6515
    %v6520 = vmul.f32 %v6499, %v6511
    %v6521 = vmul.f32 %v6500, %v6515
    %v6522 = vmul.f32 %v6501, %v6511
    %v6523 = vmul.f32 %v6502, %v6515
    %v6524 = vmul.f32 %v6503, %v6511
    %v6525 = vmul.f32 %v6504, %v6515
    %v6526 = vadd.f32 %v6473, %v6518
    %v6527 = vadd.f32 %v6474, %v6519
    %v6528 = vadd.f32 %v6475, %v6520
    %v6529 = vadd.f32 %v6476, %v6521
    %v6530 = vadd.f32 %v6477, %v6522
    %v6531 = vadd.f32 %v6478, %v6523
    %v6532 = vadd.f32 %v6479, %v6524
    %v6533 = vadd.f32 %v6480, %v6525
    %v6534 = vrot.slane %v6400, 5
    %v6535 = vrot.slane %v6401, 5
    %v6536 = vrot.slane %v6402, 5
    %v6537 = vrot.slane %v6403, 5
    %v6538 = vrot.slane %v6404, 5
    %v6539 = vrot.slane %v6405, 5
    %v6540 = vrot.slane %v6406, 5
    %v6541 = vrot.slane %v6407, 5
    %v6542 = vsel %vm2717, %v6538, %v6540
    %v6543 = vsel %vm2717, %v6539, %v6541
    %v6544 = vsel %vm2717, %v6536, %v6538
    %v6545 = vsel %vm2717, %v6537, %v6539
    %v6546 = vsel %vm2717, %v6534, %v6536
    %v6547 = vsel %vm2717, %v6535, %v6537
    %v6548 = vsel %vm2717, %v6540, %v6534
    %v6549 = vsel %vm2717, %v6541, %v6535
    %v6550 = vsel %vm2726, %v6548, 0.0
    %v6551 = vsel %vm2726, %v6549, 0.0
    %v6552 = vsel %vm2727, %v6546, 0.0
    %v6553 = vsel %vm2727, %v6547, 0.0
    %v6554 = vsel %vm2728, %v6544, 0.0
    %v6555 = vsel %vm2728, %v6545, 0.0
    %v6556 = vsel %vm2729, %v6542, 0.0
    %v6557 = vsel %vm2729, %v6543, 0.0
    %s6558 = scalar_lea.vmem [#allocation54], 2
    %v6559 = vld [vmem:[%s6558] ss:$8 sm:$0x3]
    %v6561 = vlaneseq
    %v6562 = vshrl.u32 %v6561, 7
    %v6563 = vsub.s32 0, %v6562
    %v6564 = vrot.slane %v6559, %v6563
    %v6565 = vlaneseq
    %v6566 = vshrl.u32 %v6565, 7
    %v6567 = vsub.s32 1, %v6566
    %v6568 = vrot.slane %v6559, %v6567
    %v6571 = vmul.f32 %v6550, %v6564
    %v6572 = vmul.f32 %v6551, %v6568
    %v6573 = vmul.f32 %v6552, %v6564
    %v6574 = vmul.f32 %v6553, %v6568
    %v6575 = vmul.f32 %v6554, %v6564
    %v6576 = vmul.f32 %v6555, %v6568
    %v6577 = vmul.f32 %v6556, %v6564
    %v6578 = vmul.f32 %v6557, %v6568
    %v6579 = vadd.f32 %v6526, %v6571
    %v6580 = vadd.f32 %v6527, %v6572
    %v6581 = vadd.f32 %v6528, %v6573
    %v6582 = vadd.f32 %v6529, %v6574
    %v6583 = vadd.f32 %v6530, %v6575
    %v6584 = vadd.f32 %v6531, %v6576
    %v6585 = vadd.f32 %v6532, %v6577
    %v6586 = vadd.f32 %v6533, %v6578
    %v6587 = vrot.slane %v6400, 7
    %v6588 = vrot.slane %v6401, 7
    %v6589 = vrot.slane %v6402, 7
    %v6590 = vrot.slane %v6403, 7
    %v6591 = vrot.slane %v6404, 7
    %v6592 = vrot.slane %v6405, 7
    %v6593 = vrot.slane %v6406, 7
    %v6594 = vrot.slane %v6407, 7
    %v6595 = vsel %vm903, %v6591, %v6593
    %v6596 = vsel %vm903, %v6592, %v6594
    %v6597 = vsel %vm903, %v6589, %v6591
    %v6598 = vsel %vm903, %v6590, %v6592
    %v6599 = vsel %vm903, %v6587, %v6589
    %v6600 = vsel %vm903, %v6588, %v6590
    %v6601 = vsel %vm903, %v6593, %v6587
    %v6602 = vsel %vm903, %v6594, %v6588
    %v6603 = vsel %vm2759, %v6601, 0.0
    %v6604 = vsel %vm2759, %v6602, 0.0
    %v6605 = vsel %vm2760, %v6599, 0.0
    %v6606 = vsel %vm2760, %v6600, 0.0
    %v6607 = vsel %vm2761, %v6597, 0.0
    %v6608 = vsel %vm2761, %v6598, 0.0
    %v6609 = vsel %vm2762, %v6595, 0.0
    %v6610 = vsel %vm2762, %v6596, 0.0
    %s6611 = scalar_lea.vmem [#allocation54], 3
    %v6612 = vld [vmem:[%s6611] ss:$8 sm:$0x3]
    %v6614 = vlaneseq
    %v6615 = vshrl.u32 %v6614, 7
    %v6616 = vsub.s32 0, %v6615
    %v6617 = vrot.slane %v6612, %v6616
    %v6618 = vlaneseq
    %v6619 = vshrl.u32 %v6618, 7
    %v6620 = vsub.s32 1, %v6619
    %v6621 = vrot.slane %v6612, %v6620
    %v6624 = vmul.f32 %v6603, %v6617
    %v6625 = vmul.f32 %v6604, %v6621
    %v6626 = vmul.f32 %v6605, %v6617
    %v6627 = vmul.f32 %v6606, %v6621
    %v6628 = vmul.f32 %v6607, %v6617
    %v6629 = vmul.f32 %v6608, %v6621
    %v6630 = vmul.f32 %v6609, %v6617
    %v6631 = vmul.f32 %v6610, %v6621
    %v6632 = vadd.f32 %v6579, %v6624
    %v6633 = vadd.f32 %v6580, %v6625
    %v6634 = vadd.f32 %v6581, %v6626
    %v6635 = vadd.f32 %v6582, %v6627
    %v6636 = vadd.f32 %v6583, %v6628
    %v6637 = vadd.f32 %v6584, %v6629
    %v6638 = vadd.f32 %v6585, %v6630
    %v6639 = vadd.f32 %v6586, %v6631
    %v6640 = vrot.slane %v6400, 1
    %v6641 = vrot.slane %v6401, 1
    %v6642 = vrot.slane %v6402, 1
    %v6643 = vrot.slane %v6403, 1
    %v6644 = vrot.slane %v6404, 1
    %v6645 = vrot.slane %v6405, 1
    %v6646 = vrot.slane %v6406, 1
    %v6647 = vrot.slane %v6407, 1
    %v6648 = vsel %vm1106, %v6644, %v6646
    %v6649 = vsel %vm1106, %v6645, %v6647
    %v6650 = vsel %vm1106, %v6642, %v6644
    %v6651 = vsel %vm1106, %v6643, %v6645
    %v6652 = vsel %vm1106, %v6640, %v6642
    %v6653 = vsel %vm1106, %v6641, %v6643
    %v6654 = vsel %vm1106, %v6646, %v6640
    %v6655 = vsel %vm1106, %v6647, %v6641
    %v6656 = vsel %vm2792, %v6652, 0.0
    %v6657 = vsel %vm2792, %v6653, 0.0
    %v6658 = vsel %vm2793, %v6650, 0.0
    %v6659 = vsel %vm2793, %v6651, 0.0
    %v6660 = vsel %vm2794, %v6648, 0.0
    %v6661 = vsel %vm2794, %v6649, 0.0
    %v6662 = vsel %vm2795, %v6654, 0.0
    %v6663 = vsel %vm2795, %v6655, 0.0
    %s6664 = scalar_lea.vmem [#allocation54], 5
    %v6665 = vld [vmem:[%s6664] ss:$8 sm:$0x3]
    %v6667 = vlaneseq
    %v6668 = vshrl.u32 %v6667, 7
    %v6669 = vsub.s32 0, %v6668
    %v6670 = vrot.slane %v6665, %v6669
    %v6671 = vlaneseq
    %v6672 = vshrl.u32 %v6671, 7
    %v6673 = vsub.s32 1, %v6672
    %v6674 = vrot.slane %v6665, %v6673
    %v6677 = vmul.f32 %v6656, %v6670
    %v6678 = vmul.f32 %v6657, %v6674
    %v6679 = vmul.f32 %v6658, %v6670
    %v6680 = vmul.f32 %v6659, %v6674
    %v6681 = vmul.f32 %v6660, %v6670
    %v6682 = vmul.f32 %v6661, %v6674
    %v6683 = vmul.f32 %v6662, %v6670
    %v6684 = vmul.f32 %v6663, %v6674
    %v6685 = vadd.f32 %v6632, %v6677
    %v6686 = vadd.f32 %v6633, %v6678
    %v6687 = vadd.f32 %v6634, %v6679
    %v6688 = vadd.f32 %v6635, %v6680
    %v6689 = vadd.f32 %v6636, %v6681
    %v6690 = vadd.f32 %v6637, %v6682
    %v6691 = vadd.f32 %v6638, %v6683
    %v6692 = vadd.f32 %v6639, %v6684
    %v6693 = vsel %vm2817, %v6441, 0.0
    %v6694 = vsel %vm2817, %v6442, 0.0
    %v6695 = vsel %vm2818, %v6439, 0.0
    %v6696 = vsel %vm2818, %v6440, 0.0
    %v6697 = vsel %vm2819, %v6437, 0.0
    %v6698 = vsel %vm2819, %v6438, 0.0
    %v6699 = vsel %vm2820, %v6443, 0.0
    %v6700 = vsel %vm2820, %v6444, 0.0
    %s6701 = scalar_lea.vmem [#allocation54], 6
    %v6702 = vld [vmem:[%s6701] ss:$8 sm:$0x3]
    %v6704 = vlaneseq
    %v6705 = vshrl.u32 %v6704, 7
    %v6706 = vsub.s32 0, %v6705
    %v6707 = vrot.slane %v6702, %v6706
    %v6708 = vlaneseq
    %v6709 = vshrl.u32 %v6708, 7
    %v6710 = vsub.s32 1, %v6709
    %v6711 = vrot.slane %v6702, %v6710
    %v6714 = vmul.f32 %v6693, %v6707
    %v6715 = vmul.f32 %v6694, %v6711
    %v6716 = vmul.f32 %v6695, %v6707
    %v6717 = vmul.f32 %v6696, %v6711
    %v6718 = vmul.f32 %v6697, %v6707
    %v6719 = vmul.f32 %v6698, %v6711
    %v6720 = vmul.f32 %v6699, %v6707
    %v6721 = vmul.f32 %v6700, %v6711
    %v6722 = vadd.f32 %v6685, %v6714
    %v6723 = vadd.f32 %v6686, %v6715
    %v6724 = vadd.f32 %v6687, %v6716
    %v6725 = vadd.f32 %v6688, %v6717
    %v6726 = vadd.f32 %v6689, %v6718
    %v6727 = vadd.f32 %v6690, %v6719
    %v6728 = vadd.f32 %v6691, %v6720
    %v6729 = vadd.f32 %v6692, %v6721
    %v6730 = vsel %vm2842, %v6493, 0.0
    %v6731 = vsel %vm2842, %v6494, 0.0
    %v6732 = vsel %vm2843, %v6491, 0.0
    %v6733 = vsel %vm2843, %v6492, 0.0
    %v6734 = vsel %vm2844, %v6489, 0.0
    %v6735 = vsel %vm2844, %v6490, 0.0
    %v6736 = vsel %vm2845, %v6495, 0.0
    %v6737 = vsel %vm2845, %v6496, 0.0
    %s6738 = scalar_lea.vmem [#allocation54], 7
    %v6739 = vld [vmem:[%s6738] ss:$8 sm:$0x3]
    %v6741 = vlaneseq
    %v6742 = vshrl.u32 %v6741, 7
    %v6743 = vsub.s32 0, %v6742
    %v6744 = vrot.slane %v6739, %v6743
    %v6745 = vlaneseq
    %v6746 = vshrl.u32 %v6745, 7
    %v6747 = vsub.s32 1, %v6746
    %v6748 = vrot.slane %v6739, %v6747
    %v6751 = vmul.f32 %v6730, %v6744
    %v6752 = vmul.f32 %v6731, %v6748
    %v6753 = vmul.f32 %v6732, %v6744
    %v6754 = vmul.f32 %v6733, %v6748
    %v6755 = vmul.f32 %v6734, %v6744
    %v6756 = vmul.f32 %v6735, %v6748
    %v6757 = vmul.f32 %v6736, %v6744
    %v6758 = vmul.f32 %v6737, %v6748
    %v6759 = vadd.f32 %v6722, %v6751
    %v6760 = vadd.f32 %v6723, %v6752
    %v6761 = vadd.f32 %v6724, %v6753
    %v6762 = vadd.f32 %v6725, %v6754
    %v6763 = vadd.f32 %v6726, %v6755
    %v6764 = vadd.f32 %v6727, %v6756
    %v6765 = vadd.f32 %v6728, %v6757
    %v6766 = vadd.f32 %v6729, %v6758
    %v6767 = vsel %vm2867, %v6546, 0.0
    %v6768 = vsel %vm2867, %v6547, 0.0
    %v6769 = vsel %vm2868, %v6544, 0.0
    %v6770 = vsel %vm2868, %v6545, 0.0
    %v6771 = vsel %vm2869, %v6542, 0.0
    %v6772 = vsel %vm2869, %v6543, 0.0
    %v6773 = vsel %vm2870, %v6548, 0.0
    %v6774 = vsel %vm2870, %v6549, 0.0
    %s6775 = scalar_lea.vmem [#allocation54], 16
    %v6776 = vld [vmem:[%s6775] ss:$8 sm:$0x3]
    %v6778 = vlaneseq
    %v6779 = vshrl.u32 %v6778, 7
    %v6780 = vsub.s32 0, %v6779
    %v6781 = vrot.slane %v6776, %v6780
    %v6782 = vlaneseq
    %v6783 = vshrl.u32 %v6782, 7
    %v6784 = vsub.s32 1, %v6783
    %v6785 = vrot.slane %v6776, %v6784
    %v6788 = vmul.f32 %v6767, %v6781
    %v6789 = vmul.f32 %v6768, %v6785
    %v6790 = vmul.f32 %v6769, %v6781
    %v6791 = vmul.f32 %v6770, %v6785
    %v6792 = vmul.f32 %v6771, %v6781
    %v6793 = vmul.f32 %v6772, %v6785
    %v6794 = vmul.f32 %v6773, %v6781
    %v6795 = vmul.f32 %v6774, %v6785
    %v6796 = vadd.f32 %v6759, %v6788
    %v6797 = vadd.f32 %v6760, %v6789
    %v6798 = vadd.f32 %v6761, %v6790
    %v6799 = vadd.f32 %v6762, %v6791
    %v6800 = vadd.f32 %v6763, %v6792
    %v6801 = vadd.f32 %v6764, %v6793
    %v6802 = vadd.f32 %v6765, %v6794
    %v6803 = vadd.f32 %v6766, %v6795
    %v6804 = vld [vmem:[#allocation55] sm:$0x3]
    %v6806 = vlaneseq
    %v6807 = vshrl.u32 %v6806, 7
    %v6808 = vsub.s32 0, %v6807
    %v6809 = vrot.slane %v6804, %v6808
    %v6810 = vlaneseq
    %v6811 = vshrl.u32 %v6810, 7
    %v6812 = vsub.s32 1, %v6811
    %v6813 = vrot.slane %v6804, %v6812
    %v6816 = vadd.f32 %v6796, %v6809
    %v6817 = vadd.f32 %v6797, %v6813
    %v6818 = vadd.f32 %v6798, %v6809
    %v6819 = vadd.f32 %v6799, %v6813
    %v6820 = vadd.f32 %v6800, %v6809
    %v6821 = vadd.f32 %v6801, %v6813
    %v6822 = vadd.f32 %v6802, %v6809
    %v6823 = vadd.f32 %v6803, %v6813
    %v6824 = vmax.f32 %v6816, 0.0
    %v6825 = vmax.f32 %v6817, 0.0
    %v6826 = vmax.f32 %v6818, 0.0
    %v6827 = vmax.f32 %v6819, 0.0
    %v6828 = vmax.f32 %v6820, 0.0
    %v6829 = vmax.f32 %v6821, 0.0
    %v6830 = vmax.f32 %v6822, 0.0
    %v6831 = vmax.f32 %v6823, 0.0
    %v6832 = vpack.c.bf16 %v6826, %v6824
    %v6833 = vpack.c.bf16 %v6827, %v6825
    %v6834 = vpack.c.bf16 %v6830, %v6828
    %v6835 = vpack.c.bf16 %v6831, %v6829
    %v6836 = vld [vmem:[#allocation7] sm:$0xf]
    %vm6837 = vcmask 261120
    %v6839 = vsel %vm6837, %v6836, 0
    %6841 = vmatprep.subr.bf16.mxu0 %v6833
    %6842 = vmatpush1.bf16.msra.mxu0 %v6832
    %6843 = vmatprep.subr.bf16.mxu0 %v6835
    %6844 = vmatpush1.bf16.msra.mxu0 %v6834
    %6845 = vmatprep.subr.bf16.mxu0 0
    %6846 = vmatpush1.bf16.msra.mxu0 0
    %6847 = vmatprep.subr.bf16.mxu0 0
    %6848 = vmatpush1.bf16.msra.mxu0 0
    %6849 = vmatprep.subr.bf16.mxu0 0
    %6850 = vmatpush1.bf16.msra.mxu0 0
    %6851 = vmatprep.subr.bf16.mxu0 0
    %6852 = vmatpush1.bf16.msra.mxu0 0
    %6853 = vmatprep.subr.bf16.mxu0 0
    %6854 = vmatpush1.bf16.msra.mxu0 0
    %6855 = vmatprep.subr.bf16.mxu0 0
    %6856 = vmatpush1.bf16.msra.mxu0 0
    %6857 = vmatprep.subr.bf16.mxu0 0
    %6858 = vmatpush1.bf16.msra.mxu0 0
    %6859 = vmatprep.subr.bf16.mxu0 0
    %6860 = vmatpush1.bf16.msra.mxu0 0
    %6861 = vmatprep.subr.bf16.mxu0 0
    %6862 = vmatpush1.bf16.msra.mxu0 0
    %6863 = vmatprep.subr.bf16.mxu0 0
    %6864 = vmatpush1.bf16.msra.mxu0 0
    %6865 = vmatprep.subr.bf16.mxu0 0
    %6866 = vmatpush1.bf16.msra.mxu0 0
    %6867 = vmatprep.subr.bf16.mxu0 0
    %6868 = vmatpush1.bf16.msra.mxu0 0
    %6869 = vmatprep.subr.bf16.mxu0 0
    %6870 = vmatpush1.bf16.msra.mxu0 0
    %6871 = vmatprep.subr.bf16.mxu0 0
    %6872 = vmatpush1.bf16.msra.mxu0 0
    %6873 = vmatprep.mubr.bf16.mxu0 0
    %6874 = vmatmul.mubr.bf16.gmra.mrb[0].mxu0 %v6839
    %v6875 = vpop.f32.mrb[0].mxu0
    %v6876 = vadd.f32 0.0, %v6875
    %v6877 = vpop.f32.mrb[0].mxu0
    %v6878 = vadd.f32 0.0, %v6877
    %v6879 = vpop.f32.mrb[0].mxu0
    %v6880 = vpop.f32.mrb[0].mxu0
    %6881 = vdwg.mxu0
    %v6882 = vpack.c.bf16 %v6876, %v6876
    %v6883 = vpack.c.bf16 %v6878, %v6878
    %v6884 = vld [vmem:[#allocation57] sm:$0xff]
    %v6885 = vld [vmem:[#allocation57 + $0x8] sm:$0xf]
    %v6886 = vld [vmem:[#allocation57 + $0xc] sm:$0xff]
    %v6887 = vld [vmem:[#allocation57 + $0x14] sm:$0xf]
    %v6888 = vld [vmem:[#allocation57 + $0x18] sm:$0xff]
    %v6889 = vld [vmem:[#allocation57 + $0x20] sm:$0xf]
    %v6890 = vld [vmem:[#allocation57 + $0x24] sm:$0xff]
    %v6891 = vld [vmem:[#allocation57 + $0x2c] sm:$0xf]
    %v6892 = vld [vmem:[#allocation57 + $0x30] sm:$0xff]
    %v6893 = vld [vmem:[#allocation57 + $0x38] sm:$0xf]
    %v6894 = vld [vmem:[#allocation57 + $0x3c] sm:$0xff]
    %v6895 = vld [vmem:[#allocation57 + $0x44] sm:$0xf]
    %v6896 = vld [vmem:[#allocation57 + $0x48] sm:$0xff]
    %v6897 = vld [vmem:[#allocation57 + $0x50] sm:$0xf]
    %v6898 = vld [vmem:[#allocation57 + $0x54] sm:$0xff]
    %v6899 = vld [vmem:[#allocation57 + $0x5c] sm:$0xf]
    %v6900 = vld [vmem:[#allocation57 + $0x60] sm:$0xff]
    %v6901 = vld [vmem:[#allocation57 + $0x68] sm:$0xf]
    %v6902 = vld [vmem:[#allocation57 + $0x6c] sm:$0xff]
    %v6903 = vld [vmem:[#allocation57 + $0x74] sm:$0xf]
    %v6904 = vld [vmem:[#allocation57 + $0x78] sm:$0xff]
    %v6905 = vld [vmem:[#allocation57 + $0x80] sm:$0xf]
    %v6906 = vld [vmem:[#allocation57 + $0x84] sm:$0xff]
    %v6907 = vld [vmem:[#allocation57 + $0x8c] sm:$0xf]
    %v6908 = vld [vmem:[#allocation57 + $0x90] sm:$0xff]
    %v6909 = vld [vmem:[#allocation57 + $0x98] sm:$0xf]
    %v6910 = vld [vmem:[#allocation57 + $0x9c] sm:$0xff]
    %v6911 = vld [vmem:[#allocation57 + $0xa4] sm:$0xf]
    %v6912 = vld [vmem:[#allocation57 + $0xa8] sm:$0xff]
    %v6913 = vld [vmem:[#allocation57 + $0xb0] sm:$0xf]
    %v6914 = vld [vmem:[#allocation57 + $0xb4] sm:$0xff]
    %v6915 = vld [vmem:[#allocation57 + $0xbc] sm:$0xf]
    %v6916 = vld [vmem:[#allocation57 + $0xc0] sm:$0xff]
    %v6917 = vld [vmem:[#allocation57 + $0xc8] sm:$0xf]
    %v6918 = vld [vmem:[#allocation57 + $0xcc] sm:$0xff]
    %v6919 = vld [vmem:[#allocation57 + $0xd4] sm:$0xf]
    %v6920 = vld [vmem:[#allocation57 + $0xd8] sm:$0xff]
    %v6921 = vld [vmem:[#allocation57 + $0xe0] sm:$0xf]
    %v6922 = vld [vmem:[#allocation57 + $0xe4] sm:$0xff]
    %v6923 = vld [vmem:[#allocation57 + $0xec] sm:$0xf]
    %v6924 = vld [vmem:[#allocation57 + $0xf0] sm:$0xff]
    %v6925 = vld [vmem:[#allocation57 + $0xf8] sm:$0xf]
    %v6926 = vld [vmem:[#allocation57 + $0xfc] sm:$0xff]
    %v6927 = vld [vmem:[#allocation57 + $0x104] sm:$0xf]
    %v6928 = vld [vmem:[#allocation57 + $0x108] sm:$0xff]
    %v6929 = vld [vmem:[#allocation57 + $0x110] sm:$0xf]
    %v6930 = vld [vmem:[#allocation57 + $0x114] sm:$0xff]
    %v6931 = vld [vmem:[#allocation57 + $0x11c] sm:$0xf]
    %v6932 = vld [vmem:[#allocation58] sm:$0x7]
    %v6934 = vlaneseq
    %v6935 = vshrl.u32 %v6934, 7
    %v6936 = vsub.s32 0, %v6935
    %v6937 = vrot.slane %v6932, %v6936
    %v6938 = vlaneseq
    %v6939 = vshrl.u32 %v6938, 7
    %v6940 = vsub.s32 1, %v6939
    %v6941 = vrot.slane %v6932, %v6940
    %v6942 = vlaneseq
    %v6943 = vshrl.u32 %v6942, 7
    %v6944 = vsub.s32 2, %v6943
    %v6945 = vrot.slane %v6932, %v6944
    %v6997 = vunpack.c.l.b16 %v6884
    %v6998 = vunpack.c.h.b16 %v6884
    %v6999 = vunpack.c.l.b16 %v6885
    %v7000 = vunpack.c.l.b16 %v6886
    %v7001 = vunpack.c.h.b16 %v6886
    %v7002 = vunpack.c.l.b16 %v6887
    %v7003 = vunpack.c.l.b16 %v6888
    %v7004 = vunpack.c.h.b16 %v6888
    %v7005 = vunpack.c.l.b16 %v6889
    %v7006 = vunpack.c.l.b16 %v6890
    %v7007 = vunpack.c.h.b16 %v6890
    %v7008 = vunpack.c.l.b16 %v6891
    %v7009 = vunpack.c.l.b16 %v6892
    %v7010 = vunpack.c.h.b16 %v6892
    %v7011 = vunpack.c.l.b16 %v6893
    %v7012 = vunpack.c.l.b16 %v6894
    %v7013 = vunpack.c.h.b16 %v6894
    %v7014 = vunpack.c.l.b16 %v6895
    %v7015 = vunpack.c.l.b16 %v6896
    %v7016 = vunpack.c.h.b16 %v6896
    %v7017 = vunpack.c.l.b16 %v6897
    %v7018 = vunpack.c.l.b16 %v6898
    %v7019 = vunpack.c.h.b16 %v6898
    %v7020 = vunpack.c.l.b16 %v6899
    %v7021 = vunpack.c.l.b16 %v6900
    %v7022 = vunpack.c.h.b16 %v6900
    %v7023 = vunpack.c.l.b16 %v6901
    %v7024 = vunpack.c.l.b16 %v6902
    %v7025 = vunpack.c.h.b16 %v6902
    %v7026 = vunpack.c.l.b16 %v6903
    %v7027 = vunpack.c.l.b16 %v6904
    %v7028 = vunpack.c.h.b16 %v6904
    %v7029 = vunpack.c.l.b16 %v6905
    %v7030 = vunpack.c.l.b16 %v6906
    %v7031 = vunpack.c.h.b16 %v6906
    %v7032 = vunpack.c.l.b16 %v6907
    %v7033 = vunpack.c.l.b16 %v6908
    %v7034 = vunpack.c.h.b16 %v6908
    %v7035 = vunpack.c.l.b16 %v6909
    %v7036 = vunpack.c.l.b16 %v6910
    %v7037 = vunpack.c.h.b16 %v6910
    %v7038 = vunpack.c.l.b16 %v6911
    %v7039 = vunpack.c.l.b16 %v6912
    %v7040 = vunpack.c.h.b16 %v6912
    %v7041 = vunpack.c.l.b16 %v6913
    %v7042 = vunpack.c.l.b16 %v6914
    %v7043 = vunpack.c.h.b16 %v6914
    %v7044 = vunpack.c.l.b16 %v6915
    %v7045 = vunpack.c.l.b16 %v6916
    %v7046 = vunpack.c.h.b16 %v6916
    %v7047 = vunpack.c.l.b16 %v6917
    %v7048 = vunpack.c.l.b16 %v6918
    %v7049 = vunpack.c.h.b16 %v6918
    %v7050 = vunpack.c.l.b16 %v6919
    %v7051 = vunpack.c.l.b16 %v6920
    %v7052 = vunpack.c.h.b16 %v6920
    %v7053 = vunpack.c.l.b16 %v6921
    %v7054 = vunpack.c.l.b16 %v6922
    %v7055 = vunpack.c.h.b16 %v6922
    %v7056 = vunpack.c.l.b16 %v6923
    %v7057 = vunpack.c.l.b16 %v6924
    %v7058 = vunpack.c.h.b16 %v6924
    %v7059 = vunpack.c.l.b16 %v6925
    %v7060 = vunpack.c.l.b16 %v6926
    %v7061 = vunpack.c.h.b16 %v6926
    %v7062 = vunpack.c.l.b16 %v6927
    %v7063 = vunpack.c.l.b16 %v6928
    %v7064 = vunpack.c.h.b16 %v6928
    %v7065 = vunpack.c.l.b16 %v6929
    %v7066 = vunpack.c.l.b16 %v6930
    %v7067 = vunpack.c.h.b16 %v6930
    %v7068 = vunpack.c.l.b16 %v6931
    %v7069 = vpack.c.b16 %v7000, %v6997
    %v7070 = vpack.c.b16 %v7001, %v6998
    %v7071 = vpack.c.b16 %v7002, %v6999
    %v7072 = vpack.c.b16 %v7006, %v7003
    %v7073 = vpack.c.b16 %v7007, %v7004
    %v7074 = vpack.c.b16 %v7008, %v7005
    %v7075 = vpack.c.b16 %v7012, %v7009
    %v7076 = vpack.c.b16 %v7013, %v7010
    %v7077 = vpack.c.b16 %v7014, %v7011
    %v7078 = vpack.c.b16 %v7018, %v7015
    %v7079 = vpack.c.b16 %v7019, %v7016
    %v7080 = vpack.c.b16 %v7020, %v7017
    %v7081 = vpack.c.b16 %v7024, %v7021
    %v7082 = vpack.c.b16 %v7025, %v7022
    %v7083 = vpack.c.b16 %v7026, %v7023
    %v7084 = vpack.c.b16 %v7030, %v7027
    %v7085 = vpack.c.b16 %v7031, %v7028
    %v7086 = vpack.c.b16 %v7032, %v7029
    %v7087 = vpack.c.b16 %v7036, %v7033
    %v7088 = vpack.c.b16 %v7037, %v7034
    %v7089 = vpack.c.b16 %v7038, %v7035
    %v7090 = vpack.c.b16 %v7042, %v7039
    %v7091 = vpack.c.b16 %v7043, %v7040
    %v7092 = vpack.c.b16 %v7044, %v7041
    %v7093 = vpack.c.b16 %v7048, %v7045
    %v7094 = vpack.c.b16 %v7049, %v7046
    %v7095 = vpack.c.b16 %v7050, %v7047
    %v7096 = vpack.c.b16 %v7054, %v7051
    %v7097 = vpack.c.b16 %v7055, %v7052
    %v7098 = vpack.c.b16 %v7056, %v7053
    %v7099 = vpack.c.b16 %v7060, %v7057
    %v7100 = vpack.c.b16 %v7061, %v7058
    %v7101 = vpack.c.b16 %v7062, %v7059
    %v7102 = vpack.c.b16 %v7066, %v7063
    %v7103 = vpack.c.b16 %v7067, %v7064
    %v7104 = vpack.c.b16 %v7068, %v7065
    %v7142 = vsel %vm3057, %v6883, 0
    %7144 = vmatprep.subr.bf16.mxu0 %v7070
    %7145 = vmatpush1.bf16.msra.mxu0 %v7069
    %7146 = vmatprep.subr.bf16.mxu0 %v7073
    %7147 = vmatpush1.bf16.msra.mxu0 %v7072
    %7148 = vmatprep.subr.bf16.mxu0 %v7076
    %7149 = vmatpush1.bf16.msra.mxu0 %v7075
    %7150 = vmatprep.subr.bf16.mxu0 %v7079
    %7151 = vmatpush1.bf16.msra.mxu0 %v7078
    %7152 = vmatprep.subr.bf16.mxu0 %v7082
    %7153 = vmatpush1.bf16.msra.mxu0 %v7081
    %7154 = vmatprep.subr.bf16.mxu0 %v7085
    %7155 = vmatpush1.bf16.msra.mxu0 %v7084
    %7156 = vmatprep.subr.bf16.mxu0 %v7088
    %7157 = vmatpush1.bf16.msra.mxu0 %v7087
    %7158 = vmatprep.subr.bf16.mxu0 %v7091
    %7159 = vmatpush1.bf16.msra.mxu0 %v7090
    %7160 = vmatprep.subr.bf16.mxu0 %v7094
    %7161 = vmatpush1.bf16.msra.mxu0 %v7093
    %7162 = vmatprep.subr.bf16.mxu0 %v7097
    %7163 = vmatpush1.bf16.msra.mxu0 %v7096
    %7164 = vmatprep.subr.bf16.mxu0 %v7100
    %7165 = vmatpush1.bf16.msra.mxu0 %v7099
    %7166 = vmatprep.subr.bf16.mxu0 %v7103
    %7167 = vmatpush1.bf16.msra.mxu0 %v7102
    %7168 = vmatprep.subr.bf16.mxu0 0
    %7169 = vmatpush1.bf16.msra.mxu0 0
    %7170 = vmatprep.subr.bf16.mxu0 0
    %7171 = vmatpush1.bf16.msra.mxu0 0
    %7172 = vmatprep.subr.bf16.mxu0 0
    %7173 = vmatpush1.bf16.msra.mxu0 0
    %7174 = vmatprep.subr.bf16.mxu0 0
    %7175 = vmatpush1.bf16.msra.mxu0 0
    %7176 = vmatprep.mubr.bf16.mxu0 %v7142
    %7177 = vmatmul.mubr.bf16.gmra.mrb[0].mxu0 %v6882
    %v7178 = vpop.f32.mrb[0].mxu0
    %v7179 = vadd.f32 %v6937, %v7178
    %v7180 = vpop.f32.mrb[0].mxu0
    %v7181 = vadd.f32 %v6941, %v7180
    %v7182 = vpop.f32.mrb[0].mxu0
    %v7183 = vpop.f32.mrb[0].mxu0
    %7184 = vdwg.mxu0
    %7185 = vmatprep.subr.bf16.mxu0 0
    %7186 = vmatpush1.bf16.msra.mxu0 %v7071
    %7187 = vmatprep.subr.bf16.mxu0 0
    %7188 = vmatpush1.bf16.msra.mxu0 %v7074
    %7189 = vmatprep.subr.bf16.mxu0 0
    %7190 = vmatpush1.bf16.msra.mxu0 %v7077
    %7191 = vmatprep.subr.bf16.mxu0 0
    %7192 = vmatpush1.bf16.msra.mxu0 %v7080
    %7193 = vmatprep.subr.bf16.mxu0 0
    %7194 = vmatpush1.bf16.msra.mxu0 %v7083
    %7195 = vmatprep.subr.bf16.mxu0 0
    %7196 = vmatpush1.bf16.msra.mxu0 %v7086
    %7197 = vmatprep.subr.bf16.mxu0 0
    %7198 = vmatpush1.bf16.msra.mxu0 %v7089
    %7199 = vmatprep.subr.bf16.mxu0 0
    %7200 = vmatpush1.bf16.msra.mxu0 %v7092
    %7201 = vmatprep.subr.bf16.mxu0 0
    %7202 = vmatpush1.bf16.msra.mxu0 %v7095
    %7203 = vmatprep.subr.bf16.mxu0 0
    %7204 = vmatpush1.bf16.msra.mxu0 %v7098
    %7205 = vmatprep.subr.bf16.mxu0 0
    %7206 = vmatpush1.bf16.msra.mxu0 %v7101
    %7207 = vmatprep.subr.bf16.mxu0 0
    %7208 = vmatpush1.bf16.msra.mxu0 %v7104
    %7209 = vmatprep.subr.bf16.mxu0 0
    %7210 = vmatpush1.bf16.msra.mxu0 0
    %7211 = vmatprep.subr.bf16.mxu0 0
    %7212 = vmatpush1.bf16.msra.mxu0 0
    %7213 = vmatprep.subr.bf16.mxu0 0
    %7214 = vmatpush1.bf16.msra.mxu0 0
    %7215 = vmatprep.subr.bf16.mxu0 0
    %7216 = vmatpush1.bf16.msra.mxu0 0
    %7217 = vmatprep.mubr.bf16.mxu0 %v7142
    %7218 = vmatmul.mubr.bf16.gmra.mrb[0].mxu0 %v6882
    %v7219 = vpop.f32.mrb[0].mxu0
    %v7220 = vadd.f32 %v6945, %v7219
    %v7221 = vpop.f32.mrb[0].mxu0
    %v7222 = vpop.f32.mrb[0].mxu0
    %v7223 = vpop.f32.mrb[0].mxu0
    %7224 = vdwg.mxu0
    %v7225 = vmax.f32 %v7179, 0.0
    %v7226 = vmax.f32 %v7181, 0.0
    %v7227 = vmax.f32 %v7220, 0.0
    %7228 = vst [vmem:[#allocation2] sm:$0xff] %v7225
    %7229 = vst [vmem:[#allocation2 + $0x8] sm:$0xff] %v7226
    %7230 = vst [vmem:[#allocation2 + $0x10] sm:$0xff] %v7227
    %v7231 = vld [vmem:[#allocation2] sm:$0xff]
    %v7232 = vld [vmem:[#allocation2 + $0x8] sm:$0xff]
    %v7233 = vld [vmem:[#allocation2 + $0x10] sm:$0xff]
    %v7234 = vand.u32 %v690, 3
    %v7235 = vand.u32 %v7234, 1
    %vm7236 = vcmp.ge.s32.totalorder %v7234, 2
    %vm7237 = vcmp.ge.s32.totalorder %v7235, 1
    %vm7238 = vmand %vm7236, %vm7237
    %vm7239 = vcmp.le.s32.totalorder %v7235, 0
    %vm7240 = vmand %vm7236, %vm7239
    %vm7241 = vcmp.lt.s32.totalorder %v7234, 2
    %vm7242 = vmand %vm7241, %vm7237
    %vm7243 = vmand %vm7241, %vm7239
    %s7244 = scalar_lea.vmem %s79, 4
    %v7245 = vld [vmem:[%s7244] ss:$8 sm:$0x7]
    %v7247 = vlaneseq
    %v7248 = vshrl.u32 %v7247, 7
    %v7249 = vsub.s32 0, %v7248
    %v7250 = vrot.slane %v7245, %v7249
    %v7251 = vlaneseq
    %v7252 = vshrl.u32 %v7251, 7
    %v7253 = vsub.s32 1, %v7252
    %v7254 = vrot.slane %v7245, %v7253
    %v7255 = vlaneseq
    %v7256 = vshrl.u32 %v7255, 7
    %v7257 = vsub.s32 2, %v7256
    %v7258 = vrot.slane %v7245, %v7257
    %v7262 = vmul.f32 %v7231, %v7250
    %v7263 = vmul.f32 %v7232, %v7254
    %v7264 = vmul.f32 %v7233, %v7258
    %v7265 = vrot.slane %v7231, 5
    %v7266 = vrot.slane %v7232, 5
    %v7267 = vrot.slane %v7233, 5
    %v7268 = vsel %vm7238, 1, 0
    %vm7269 = vcmp.eq.s32.totalorder %v7268, 1
    %v7270 = vsel %vm7269, %v7265, 0.0
    %v7271 = vsel %vm7269, %v7266, 0.0
    %v7272 = vsel %vm7269, %v7267, 0.0
    %v7273 = vld [vmem:[%s79] ss:$8 sm:$0x7]
    %v7275 = vlaneseq
    %v7276 = vshrl.u32 %v7275, 7
    %v7277 = vsub.s32 0, %v7276
    %v7278 = vrot.slane %v7273, %v7277
    %v7279 = vlaneseq
    %v7280 = vshrl.u32 %v7279, 7
    %v7281 = vsub.s32 1, %v7280
    %v7282 = vrot.slane %v7273, %v7281
    %v7283 = vlaneseq
    %v7284 = vshrl.u32 %v7283, 7
    %v7285 = vsub.s32 2, %v7284
    %v7286 = vrot.slane %v7273, %v7285
    %v7290 = vmul.f32 %v7270, %v7278
    %v7291 = vmul.f32 %v7271, %v7282
    %v7292 = vmul.f32 %v7272, %v7286
    %v7293 = vadd.f32 %v7262, %v7290
    %v7294 = vadd.f32 %v7263, %v7291
    %v7295 = vadd.f32 %v7264, %v7292
    %v7296 = vrot.slane %v7231, 6
    %v7297 = vrot.slane %v7232, 6
    %v7298 = vrot.slane %v7233, 6
    %v7299 = vsel %vm7236, 1, 0
    %vm7300 = vcmp.eq.s32.totalorder %v7299, 1
    %v7301 = vsel %vm7300, %v7296, 0.0
    %v7302 = vsel %vm7300, %v7297, 0.0
    %v7303 = vsel %vm7300, %v7298, 0.0
    %s7304 = scalar_lea.vmem %s79, 1
    %v7305 = vld [vmem:[%s7304] ss:$8 sm:$0x7]
    %v7307 = vlaneseq
    %v7308 = vshrl.u32 %v7307, 7
    %v7309 = vsub.s32 0, %v7308
    %v7310 = vrot.slane %v7305, %v7309
    %v7311 = vlaneseq
    %v7312 = vshrl.u32 %v7311, 7
    %v7313 = vsub.s32 1, %v7312
    %v7314 = vrot.slane %v7305, %v7313
    %v7315 = vlaneseq
    %v7316 = vshrl.u32 %v7315, 7
    %v7317 = vsub.s32 2, %v7316
    %v7318 = vrot.slane %v7305, %v7317
    %v7322 = vmul.f32 %v7301, %v7310
    %v7323 = vmul.f32 %v7302, %v7314
    %v7324 = vmul.f32 %v7303, %v7318
    %v7325 = vadd.f32 %v7293, %v7322
    %v7326 = vadd.f32 %v7294, %v7323
    %v7327 = vadd.f32 %v7295, %v7324
    %v7328 = vrot.slane %v7231, 7
    %v7329 = vrot.slane %v7232, 7
    %v7330 = vrot.slane %v7233, 7
    %v7331 = vsel %vm7240, 1, 0
    %vm7332 = vcmp.eq.s32.totalorder %v7331, 1
    %v7333 = vsel %vm7332, %v7328, 0.0
    %v7334 = vsel %vm7332, %v7329, 0.0
    %v7335 = vsel %vm7332, %v7330, 0.0
    %s7336 = scalar_lea.vmem %s79, 2
    %v7337 = vld [vmem:[%s7336] ss:$8 sm:$0x7]
    %v7339 = vlaneseq
    %v7340 = vshrl.u32 %v7339, 7
    %v7341 = vsub.s32 0, %v7340
    %v7342 = vrot.slane %v7337, %v7341
    %v7343 = vlaneseq
    %v7344 = vshrl.u32 %v7343, 7
    %v7345 = vsub.s32 1, %v7344
    %v7346 = vrot.slane %v7337, %v7345
    %v7347 = vlaneseq
    %v7348 = vshrl.u32 %v7347, 7
    %v7349 = vsub.s32 2, %v7348
    %v7350 = vrot.slane %v7337, %v7349
    %v7354 = vmul.f32 %v7333, %v7342
    %v7355 = vmul.f32 %v7334, %v7346
    %v7356 = vmul.f32 %v7335, %v7350
    %v7357 = vadd.f32 %v7325, %v7354
    %v7358 = vadd.f32 %v7326, %v7355
    %v7359 = vadd.f32 %v7327, %v7356
    %v7360 = vsel %vm7237, 1, 0
    %vm7361 = vcmp.eq.s32.totalorder %v7360, 1
    %v7362 = vsel %vm7361, %v7328, 0.0
    %v7363 = vsel %vm7361, %v7329, 0.0
    %v7364 = vsel %vm7361, %v7330, 0.0
    %s7365 = scalar_lea.vmem %s79, 3
    %v7366 = vld [vmem:[%s7365] ss:$8 sm:$0x7]
    %v7368 = vlaneseq
    %v7369 = vshrl.u32 %v7368, 7
    %v7370 = vsub.s32 0, %v7369
    %v7371 = vrot.slane %v7366, %v7370
    %v7372 = vlaneseq
    %v7373 = vshrl.u32 %v7372, 7
    %v7374 = vsub.s32 1, %v7373
    %v7375 = vrot.slane %v7366, %v7374
    %v7376 = vlaneseq
    %v7377 = vshrl.u32 %v7376, 7
    %v7378 = vsub.s32 2, %v7377
    %v7379 = vrot.slane %v7366, %v7378
    %v7383 = vmul.f32 %v7362, %v7371
    %v7384 = vmul.f32 %v7363, %v7375
    %v7385 = vmul.f32 %v7364, %v7379
    %v7386 = vadd.f32 %v7357, %v7383
    %v7387 = vadd.f32 %v7358, %v7384
    %v7388 = vadd.f32 %v7359, %v7385
    %v7389 = vrot.slane %v7231, 1
    %v7390 = vrot.slane %v7232, 1
    %v7391 = vrot.slane %v7233, 1
    %v7392 = vsel %vm7239, 1, 0
    %vm7393 = vcmp.eq.s32.totalorder %v7392, 1
    %v7394 = vsel %vm7393, %v7389, 0.0
    %v7395 = vsel %vm7393, %v7390, 0.0
    %v7396 = vsel %vm7393, %v7391, 0.0
    %s7397 = scalar_lea.vmem %s79, 5
    %v7398 = vld [vmem:[%s7397] ss:$8 sm:$0x7]
    %v7400 = vlaneseq
    %v7401 = vshrl.u32 %v7400, 7
    %v7402 = vsub.s32 0, %v7401
    %v7403 = vrot.slane %v7398, %v7402
    %v7404 = vlaneseq
    %v7405 = vshrl.u32 %v7404, 7
    %v7406 = vsub.s32 1, %v7405
    %v7407 = vrot.slane %v7398, %v7406
    %v7408 = vlaneseq
    %v7409 = vshrl.u32 %v7408, 7
    %v7410 = vsub.s32 2, %v7409
    %v7411 = vrot.slane %v7398, %v7410
    %v7415 = vmul.f32 %v7394, %v7403
    %v7416 = vmul.f32 %v7395, %v7407
    %v7417 = vmul.f32 %v7396, %v7411
    %v7418 = vadd.f32 %v7386, %v7415
    %v7419 = vadd.f32 %v7387, %v7416
    %v7420 = vadd.f32 %v7388, %v7417
    %v7421 = vsel %vm7242, 1, 0
    %vm7422 = vcmp.eq.s32.totalorder %v7421, 1
    %v7423 = vsel %vm7422, %v7389, 0.0
    %v7424 = vsel %vm7422, %v7390, 0.0
    %v7425 = vsel %vm7422, %v7391, 0.0
    %s7426 = scalar_lea.vmem %s79, 6
    %v7427 = vld [vmem:[%s7426] ss:$8 sm:$0x7]
    %v7429 = vlaneseq
    %v7430 = vshrl.u32 %v7429, 7
    %v7431 = vsub.s32 0, %v7430
    %v7432 = vrot.slane %v7427, %v7431
    %v7433 = vlaneseq
    %v7434 = vshrl.u32 %v7433, 7
    %v7435 = vsub.s32 1, %v7434
    %v7436 = vrot.slane %v7427, %v7435
    %v7437 = vlaneseq
    %v7438 = vshrl.u32 %v7437, 7
    %v7439 = vsub.s32 2, %v7438
    %v7440 = vrot.slane %v7427, %v7439
    %v7444 = vmul.f32 %v7423, %v7432
    %v7445 = vmul.f32 %v7424, %v7436
    %v7446 = vmul.f32 %v7425, %v7440
    %v7447 = vadd.f32 %v7418, %v7444
    %v7448 = vadd.f32 %v7419, %v7445
    %v7449 = vadd.f32 %v7420, %v7446
    %v7450 = vrot.slane %v7231, 2
    %v7451 = vrot.slane %v7232, 2
    %v7452 = vrot.slane %v7233, 2
    %v7453 = vsel %vm7241, 1, 0
    %vm7454 = vcmp.eq.s32.totalorder %v7453, 1
    %v7455 = vsel %vm7454, %v7450, 0.0
    %v7456 = vsel %vm7454, %v7451, 0.0
    %v7457 = vsel %vm7454, %v7452, 0.0
    %s7458 = scalar_lea.vmem %s79, 7
    %v7459 = vld [vmem:[%s7458] ss:$8 sm:$0x7]
    %v7461 = vlaneseq
    %v7462 = vshrl.u32 %v7461, 7
    %v7463 = vsub.s32 0, %v7462
    %v7464 = vrot.slane %v7459, %v7463
    %v7465 = vlaneseq
    %v7466 = vshrl.u32 %v7465, 7
    %v7467 = vsub.s32 1, %v7466
    %v7468 = vrot.slane %v7459, %v7467
    %v7469 = vlaneseq
    %v7470 = vshrl.u32 %v7469, 7
    %v7471 = vsub.s32 2, %v7470
    %v7472 = vrot.slane %v7459, %v7471
    %v7476 = vmul.f32 %v7455, %v7464
    %v7477 = vmul.f32 %v7456, %v7468
    %v7478 = vmul.f32 %v7457, %v7472
    %v7479 = vadd.f32 %v7447, %v7476
    %v7480 = vadd.f32 %v7448, %v7477
    %v7481 = vadd.f32 %v7449, %v7478
    %v7482 = vrot.slane %v7231, 3
    %v7483 = vrot.slane %v7232, 3
    %v7484 = vrot.slane %v7233, 3
    %v7485 = vsel %vm7243, 1, 0
    %vm7486 = vcmp.eq.s32.totalorder %v7485, 1
    %v7487 = vsel %vm7486, %v7482, 0.0
    %v7488 = vsel %vm7486, %v7483, 0.0
    %v7489 = vsel %vm7486, %v7484, 0.0
    %s7490 = scalar_lea.vmem %s79, 24
    %v7491 = vld [vmem:[%s7490] ss:$8 sm:$0x7]
    %v7493 = vlaneseq
    %v7494 = vshrl.u32 %v7493, 7
    %v7495 = vsub.s32 0, %v7494
    %v7496 = vrot.slane %v7491, %v7495
    %v7497 = vlaneseq
    %v7498 = vshrl.u32 %v7497, 7
    %v7499 = vsub.s32 1, %v7498
    %v7500 = vrot.slane %v7491, %v7499
    %v7501 = vlaneseq
    %v7502 = vshrl.u32 %v7501, 7
    %v7503 = vsub.s32 2, %v7502
    %v7504 = vrot.slane %v7491, %v7503
    %v7508 = vmul.f32 %v7487, %v7496
    %v7509 = vmul.f32 %v7488, %v7500
    %v7510 = vmul.f32 %v7489, %v7504
    %v7511 = vadd.f32 %v7479, %v7508
    %v7512 = vadd.f32 %v7480, %v7509
    %v7513 = vadd.f32 %v7481, %v7510
    %v7514 = vld [vmem:[#allocation60] sm:$0x7]
    %v7516 = vlaneseq
    %v7517 = vshrl.u32 %v7516, 7
    %v7518 = vsub.s32 0, %v7517
    %v7519 = vrot.slane %v7514, %v7518
    %v7520 = vlaneseq
    %v7521 = vshrl.u32 %v7520, 7
    %v7522 = vsub.s32 1, %v7521
    %v7523 = vrot.slane %v7514, %v7522
    %v7524 = vlaneseq
    %v7525 = vshrl.u32 %v7524, 7
    %v7526 = vsub.s32 2, %v7525
    %v7527 = vrot.slane %v7514, %v7526
    %v7531 = vadd.f32 %v7511, %v7519
    %v7532 = vadd.f32 %v7512, %v7523
    %v7533 = vadd.f32 %v7513, %v7527
    %v7534 = vmax.f32 %v7531, 0.0
    %v7535 = vmax.f32 %v7532, 0.0
    %v7536 = vmax.f32 %v7533, 0.0
    %v7537 = vpack.c.bf16 %v7534, %v7534
    %v7538 = vpack.c.bf16 %v7535, %v7535
    %v7539 = vpack.c.bf16 %v7536, %v7536
    %v7540 = vld [vmem:[%s83] sm:$0xff]
    %v7541 = vld [vmem:[%s83 + $0x8] sm:$0xff]
    %v7542 = vld [vmem:[%s83 + $0x10] sm:$0xff]
    %v7543 = vld [vmem:[%s83 + $0x18] sm:$0xff]
    %v7544 = vld [vmem:[%s83 + $0x20] sm:$0xff]
    %v7545 = vld [vmem:[%s83 + $0x28] sm:$0xff]
    %v7546 = vld [vmem:[%s83 + $0x30] sm:$0xff]
    %v7547 = vld [vmem:[%s83 + $0x38] sm:$0xff]
    %v7548 = vld [vmem:[%s83 + $0x40] sm:$0xff]
    %v7549 = vld [vmem:[%s83 + $0x48] sm:$0xff]
    %v7550 = vld [vmem:[%s83 + $0x50] sm:$0xff]
    %v7551 = vld [vmem:[%s83 + $0x58] sm:$0xff]
    %v7552 = vld [vmem:[%s83 + $0x60] sm:$0xff]
    %v7553 = vld [vmem:[%s83 + $0x68] sm:$0xff]
    %v7554 = vld [vmem:[%s83 + $0x70] sm:$0xff]
    %v7555 = vld [vmem:[%s83 + $0x78] sm:$0xff]
    %v7556 = vld [vmem:[%s83 + $0x80] sm:$0xff]
    %v7557 = vld [vmem:[%s83 + $0x88] sm:$0xff]
    %v7558 = vld [vmem:[%s83 + $0x90] sm:$0xff]
    %v7559 = vld [vmem:[%s83 + $0x98] sm:$0xff]
    %v7560 = vld [vmem:[%s83 + $0xa0] sm:$0xff]
    %v7561 = vld [vmem:[%s83 + $0xa8] sm:$0xff]
    %v7562 = vld [vmem:[%s83 + $0xb0] sm:$0xff]
    %v7563 = vld [vmem:[%s83 + $0xb8] sm:$0xff]
    %v7564 = vld [vmem:[%s83 + $0xc0] sm:$0xff]
    %v7565 = vld [vmem:[%s83 + $0xc8] sm:$0xff]
    %v7566 = vld [vmem:[%s83 + $0xd0] sm:$0xff]
    %v7567 = vld [vmem:[%s83 + $0xd8] sm:$0xff]
    %v7568 = vld [vmem:[%s83 + $0xe0] sm:$0xff]
    %v7569 = vld [vmem:[%s83 + $0xe8] sm:$0xff]
    %v7570 = vld [vmem:[%s83 + $0xf0] sm:$0xff]
    %v7571 = vld [vmem:[%s83 + $0xf8] sm:$0xff]
    %v7572 = vld [vmem:[%s83 + $0x100] sm:$0xff]
    %v7573 = vld [vmem:[%s83 + $0x108] sm:$0xff]
    %v7574 = vld [vmem:[%s83 + $0x110] sm:$0xff]
    %v7575 = vld [vmem:[%s83 + $0x118] sm:$0xff]
    %v7576 = vld [vmem:[%s83 + $0x120] sm:$0xff]
    %v7577 = vld [vmem:[%s83 + $0x128] sm:$0xff]
    %v7578 = vld [vmem:[%s83 + $0x130] sm:$0xff]
    %v7579 = vld [vmem:[%s83 + $0x138] sm:$0xff]
    %v7580 = vld [vmem:[%s83 + $0x140] sm:$0xff]
    %v7581 = vld [vmem:[%s83 + $0x148] sm:$0xff]
    %v7582 = vld [vmem:[%s83 + $0x150] sm:$0xff]
    %v7583 = vld [vmem:[%s83 + $0x158] sm:$0xff]
    %v7584 = vld [vmem:[%s83 + $0x160] sm:$0xff]
    %v7585 = vld [vmem:[%s83 + $0x168] sm:$0xff]
    %v7586 = vld [vmem:[%s83 + $0x170] sm:$0xff]
    %v7587 = vld [vmem:[%s83 + $0x178] sm:$0xff]
    %v7588 = vld [vmem:[%s83 + $0x180] sm:$0xff]
    %v7589 = vld [vmem:[%s83 + $0x188] sm:$0xff]
    %v7590 = vld [vmem:[%s83 + $0x190] sm:$0xff]
    %v7591 = vld [vmem:[%s83 + $0x198] sm:$0xff]
    %v7592 = vld [vmem:[%s83 + $0x1a0] sm:$0xff]
    %v7593 = vld [vmem:[%s83 + $0x1a8] sm:$0xff]
    %v7594 = vld [vmem:[%s83 + $0x1b0] sm:$0xff]
    %v7595 = vld [vmem:[%s83 + $0x1b8] sm:$0xff]
    %v7596 = vld [vmem:[%s83 + $0x1c0] sm:$0xff]
    %v7597 = vld [vmem:[%s83 + $0x1c8] sm:$0xff]
    %v7598 = vld [vmem:[%s83 + $0x1d0] sm:$0xff]
    %v7599 = vld [vmem:[%s83 + $0x1d8] sm:$0xff]
    %v7600 = vld [vmem:[%s83 + $0x1e0] sm:$0xff]
    %v7601 = vld [vmem:[%s83 + $0x1e8] sm:$0xff]
    %v7602 = vld [vmem:[%s83 + $0x1f0] sm:$0xff]
    %v7603 = vld [vmem:[%s83 + $0x1f8] sm:$0xff]
    %v7604 = vld [vmem:[%s83 + $0x200] sm:$0xff]
    %v7605 = vld [vmem:[%s83 + $0x208] sm:$0xff]
    %v7606 = vld [vmem:[%s83 + $0x210] sm:$0xff]
    %v7607 = vld [vmem:[%s83 + $0x218] sm:$0xff]
    %v7608 = vld [vmem:[%s83 + $0x220] sm:$0xff]
    %v7609 = vld [vmem:[%s83 + $0x228] sm:$0xff]
    %v7610 = vld [vmem:[%s83 + $0x230] sm:$0xff]
    %v7611 = vld [vmem:[%s83 + $0x238] sm:$0xff]
    %v7612 = vld [vmem:[%s83 + $0x240] sm:$0xff]
    %v7613 = vld [vmem:[%s83 + $0x248] sm:$0xff]
    %v7614 = vld [vmem:[%s83 + $0x250] sm:$0xff]
    %v7615 = vld [vmem:[%s83 + $0x258] sm:$0xff]
    %v7616 = vld [vmem:[%s83 + $0x260] sm:$0xff]
    %v7617 = vld [vmem:[%s83 + $0x268] sm:$0xff]
    %v7618 = vld [vmem:[%s83 + $0x270] sm:$0xff]
    %v7619 = vld [vmem:[%s83 + $0x278] sm:$0xff]
    %v7620 = vld [vmem:[%s83 + $0x280] sm:$0xff]
    %v7621 = vld [vmem:[%s83 + $0x288] sm:$0xff]
    %v7622 = vld [vmem:[%s83 + $0x290] sm:$0xff]
    %v7623 = vld [vmem:[%s83 + $0x298] sm:$0xff]
    %v7624 = vld [vmem:[%s83 + $0x2a0] sm:$0xff]
    %v7625 = vld [vmem:[%s83 + $0x2a8] sm:$0xff]
    %v7626 = vld [vmem:[%s83 + $0x2b0] sm:$0xff]
    %v7627 = vld [vmem:[%s83 + $0x2b8] sm:$0xff]
    %v7628 = vld [vmem:[%s83 + $0x2c0] sm:$0xff]
    %v7629 = vld [vmem:[%s83 + $0x2c8] sm:$0xff]
    %v7630 = vld [vmem:[%s83 + $0x2d0] sm:$0xff]
    %v7631 = vld [vmem:[%s83 + $0x2d8] sm:$0xff]
    %v7632 = vld [vmem:[%s83 + $0x2e0] sm:$0xff]
    %v7633 = vld [vmem:[%s83 + $0x2e8] sm:$0xff]
    %v7634 = vld [vmem:[%s83 + $0x2f0] sm:$0xff]
    %v7635 = vld [vmem:[%s83 + $0x2f8] sm:$0xff]
    %v7636 = vld [vmem:[%s83 + $0x300] sm:$0xff]
    %v7637 = vld [vmem:[%s83 + $0x308] sm:$0xff]
    %v7638 = vld [vmem:[%s83 + $0x310] sm:$0xff]
    %v7639 = vld [vmem:[%s83 + $0x318] sm:$0xff]
    %v7640 = vld [vmem:[%s83 + $0x320] sm:$0xff]
    %v7641 = vld [vmem:[%s83 + $0x328] sm:$0xff]
    %v7642 = vld [vmem:[%s83 + $0x330] sm:$0xff]
    %v7643 = vld [vmem:[%s83 + $0x338] sm:$0xff]
    %v7644 = vld [vmem:[%s83 + $0x340] sm:$0xff]
    %v7645 = vld [vmem:[%s83 + $0x348] sm:$0xff]
    %v7646 = vld [vmem:[%s83 + $0x350] sm:$0xff]
    %v7647 = vld [vmem:[%s83 + $0x358] sm:$0xff]
    %v7648 = vld [vmem:[%s83 + $0x360] sm:$0xff]
    %v7649 = vld [vmem:[%s83 + $0x368] sm:$0xff]
    %v7650 = vld [vmem:[%s83 + $0x370] sm:$0xff]
    %v7651 = vld [vmem:[%s83 + $0x378] sm:$0xff]
    %v7652 = vld [vmem:[%s83 + $0x380] sm:$0xff]
    %v7653 = vld [vmem:[%s83 + $0x388] sm:$0xff]
    %v7654 = vld [vmem:[%s83 + $0x390] sm:$0xff]
    %v7655 = vld [vmem:[%s83 + $0x398] sm:$0xff]
    %v7656 = vld [vmem:[%s83 + $0x3a0] sm:$0xff]
    %v7657 = vld [vmem:[%s83 + $0x3a8] sm:$0xff]
    %v7658 = vld [vmem:[%s83 + $0x3b0] sm:$0xff]
    %v7659 = vld [vmem:[%s83 + $0x3b8] sm:$0xff]
    %v7660 = vld [vmem:[%s83 + $0x3c0] sm:$0xff]
    %v7661 = vld [vmem:[%s83 + $0x3c8] sm:$0xff]
    %v7662 = vld [vmem:[%s83 + $0x3d0] sm:$0xff]
    %v7663 = vld [vmem:[%s83 + $0x3d8] sm:$0xff]
    %v7664 = vld [vmem:[%s83 + $0x3e0] sm:$0xff]
    %v7665 = vld [vmem:[%s83 + $0x3e8] sm:$0xff]
    %v7666 = vld [vmem:[%s83 + $0x3f0] sm:$0xff]
    %v7667 = vld [vmem:[%s83 + $0x3f8] sm:$0xff]
    %v7668 = vld [vmem:[%s83 + $0x400] sm:$0xff]
    %v7669 = vld [vmem:[%s83 + $0x408] sm:$0xff]
    %v7670 = vld [vmem:[%s83 + $0x410] sm:$0xff]
    %v7671 = vld [vmem:[%s83 + $0x418] sm:$0xff]
    %v7672 = vld [vmem:[%s83 + $0x420] sm:$0xff]
    %v7673 = vld [vmem:[%s83 + $0x428] sm:$0xff]
    %v7674 = vld [vmem:[%s83 + $0x430] sm:$0xff]
    %v7675 = vld [vmem:[%s83 + $0x438] sm:$0xff]
    %v7676 = vld [vmem:[%s83 + $0x440] sm:$0xff]
    %v7677 = vld [vmem:[%s83 + $0x448] sm:$0xff]
    %v7678 = vld [vmem:[%s83 + $0x450] sm:$0xff]
    %v7679 = vld [vmem:[%s83 + $0x458] sm:$0xff]
    %v7680 = vld [vmem:[%s83 + $0x460] sm:$0xff]
    %v7681 = vld [vmem:[%s83 + $0x468] sm:$0xff]
    %v7682 = vld [vmem:[%s83 + $0x470] sm:$0xff]
    %v7683 = vld [vmem:[%s83 + $0x478] sm:$0xff]
    %v7684 = vld [vmem:[#allocation61] sm:$0x3f]
    %v7686 = vlaneseq
    %v7687 = vshrl.u32 %v7686, 7
    %v7688 = vsub.s32 0, %v7687
    %v7689 = vrot.slane %v7684, %v7688
    %v7690 = vlaneseq
    %v7691 = vshrl.u32 %v7690, 7
    %v7692 = vsub.s32 1, %v7691
    %v7693 = vrot.slane %v7684, %v7692
    %v7694 = vlaneseq
    %v7695 = vshrl.u32 %v7694, 7
    %v7696 = vsub.s32 2, %v7695
    %v7697 = vrot.slane %v7684, %v7696
    %v7698 = vlaneseq
    %v7699 = vshrl.u32 %v7698, 7
    %v7700 = vsub.s32 3, %v7699
    %v7701 = vrot.slane %v7684, %v7700
    %v7702 = vlaneseq
    %v7703 = vshrl.u32 %v7702, 7
    %v7704 = vsub.s32 4, %v7703
    %v7705 = vrot.slane %v7684, %v7704
    %v7706 = vlaneseq
    %v7707 = vshrl.u32 %v7706, 7
    %v7708 = vsub.s32 5, %v7707
    %v7709 = vrot.slane %v7684, %v7708
    %v7860 = vunpack.c.l.b16 %v7540
    %v7861 = vunpack.c.h.b16 %v7540
    %v7862 = vunpack.c.l.b16 %v7541
    %v7863 = vunpack.c.h.b16 %v7541
    %v7864 = vunpack.c.l.b16 %v7542
    %v7865 = vunpack.c.h.b16 %v7542
    %v7866 = vunpack.c.l.b16 %v7543
    %v7867 = vunpack.c.h.b16 %v7543
    %v7868 = vunpack.c.l.b16 %v7544
    %v7869 = vunpack.c.h.b16 %v7544
    %v7870 = vunpack.c.l.b16 %v7545
    %v7871 = vunpack.c.h.b16 %v7545
    %v7872 = vunpack.c.l.b16 %v7546
    %v7873 = vunpack.c.h.b16 %v7546
    %v7874 = vunpack.c.l.b16 %v7547
    %v7875 = vunpack.c.h.b16 %v7547
    %v7876 = vunpack.c.l.b16 %v7548
    %v7877 = vunpack.c.h.b16 %v7548
    %v7878 = vunpack.c.l.b16 %v7549
    %v7879 = vunpack.c.h.b16 %v7549
    %v7880 = vunpack.c.l.b16 %v7550
    %v7881 = vunpack.c.h.b16 %v7550
    %v7882 = vunpack.c.l.b16 %v7551
    %v7883 = vunpack.c.h.b16 %v7551
    %v7884 = vunpack.c.l.b16 %v7552
    %v7885 = vunpack.c.h.b16 %v7552
    %v7886 = vunpack.c.l.b16 %v7553
    %v7887 = vunpack.c.h.b16 %v7553
    %v7888 = vunpack.c.l.b16 %v7554
    %v7889 = vunpack.c.h.b16 %v7554
    %v7890 = vunpack.c.l.b16 %v7555
    %v7891 = vunpack.c.h.b16 %v7555
    %v7892 = vunpack.c.l.b16 %v7556
    %v7893 = vunpack.c.h.b16 %v7556
    %v7894 = vunpack.c.l.b16 %v7557
    %v7895 = vunpack.c.h.b16 %v7557
    %v7896 = vunpack.c.l.b16 %v7558
    %v7897 = vunpack.c.h.b16 %v7558
    %v7898 = vunpack.c.l.b16 %v7559
    %v7899 = vunpack.c.h.b16 %v7559
    %v7900 = vunpack.c.l.b16 %v7560
    %v7901 = vunpack.c.h.b16 %v7560
    %v7902 = vunpack.c.l.b16 %v7561
    %v7903 = vunpack.c.h.b16 %v7561
    %v7904 = vunpack.c.l.b16 %v7562
    %v7905 = vunpack.c.h.b16 %v7562
    %v7906 = vunpack.c.l.b16 %v7563
    %v7907 = vunpack.c.h.b16 %v7563
    %v7908 = vunpack.c.l.b16 %v7564
    %v7909 = vunpack.c.h.b16 %v7564
    %v7910 = vunpack.c.l.b16 %v7565
    %v7911 = vunpack.c.h.b16 %v7565
    %v7912 = vunpack.c.l.b16 %v7566
    %v7913 = vunpack.c.h.b16 %v7566
    %v7914 = vunpack.c.l.b16 %v7567
    %v7915 = vunpack.c.h.b16 %v7567
    %v7916 = vunpack.c.l.b16 %v7568
    %v7917 = vunpack.c.h.b16 %v7568
    %v7918 = vunpack.c.l.b16 %v7569
    %v7919 = vunpack.c.h.b16 %v7569
    %v7920 = vunpack.c.l.b16 %v7570
    %v7921 = vunpack.c.h.b16 %v7570
    %v7922 = vunpack.c.l.b16 %v7571
    %v7923 = vunpack.c.h.b16 %v7571
    %v7924 = vunpack.c.l.b16 %v7572
    %v7925 = vunpack.c.h.b16 %v7572
    %v7926 = vunpack.c.l.b16 %v7573
    %v7927 = vunpack.c.h.b16 %v7573
    %v7928 = vunpack.c.l.b16 %v7574
    %v7929 = vunpack.c.h.b16 %v7574
    %v7930 = vunpack.c.l.b16 %v7575
    %v7931 = vunpack.c.h.b16 %v7575
    %v7932 = vunpack.c.l.b16 %v7576
    %v7933 = vunpack.c.h.b16 %v7576
    %v7934 = vunpack.c.l.b16 %v7577
    %v7935 = vunpack.c.h.b16 %v7577
    %v7936 = vunpack.c.l.b16 %v7578
    %v7937 = vunpack.c.h.b16 %v7578
    %v7938 = vunpack.c.l.b16 %v7579
    %v7939 = vunpack.c.h.b16 %v7579
    %v7940 = vunpack.c.l.b16 %v7580
    %v7941 = vunpack.c.h.b16 %v7580
    %v7942 = vunpack.c.l.b16 %v7581
    %v7943 = vunpack.c.h.b16 %v7581
    %v7944 = vunpack.c.l.b16 %v7582
    %v7945 = vunpack.c.h.b16 %v7582
    %v7946 = vunpack.c.l.b16 %v7583
    %v7947 = vunpack.c.h.b16 %v7583
    %v7948 = vunpack.c.l.b16 %v7584
    %v7949 = vunpack.c.h.b16 %v7584
    %v7950 = vunpack.c.l.b16 %v7585
    %v7951 = vunpack.c.h.b16 %v7585
    %v7952 = vunpack.c.l.b16 %v7586
    %v7953 = vunpack.c.h.b16 %v7586
    %v7954 = vunpack.c.l.b16 %v7587
    %v7955 = vunpack.c.h.b16 %v7587
    %v7956 = vunpack.c.l.b16 %v7588
    %v7957 = vunpack.c.h.b16 %v7588
    %v7958 = vunpack.c.l.b16 %v7589
    %v7959 = vunpack.c.h.b16 %v7589
    %v7960 = vunpack.c.l.b16 %v7590
    %v7961 = vunpack.c.h.b16 %v7590
    %v7962 = vunpack.c.l.b16 %v7591
    %v7963 = vunpack.c.h.b16 %v7591
    %v7964 = vunpack.c.l.b16 %v7592
    %v7965 = vunpack.c.h.b16 %v7592
    %v7966 = vunpack.c.l.b16 %v7593
    %v7967 = vunpack.c.h.b16 %v7593
    %v7968 = vunpack.c.l.b16 %v7594
    %v7969 = vunpack.c.h.b16 %v7594
    %v7970 = vunpack.c.l.b16 %v7595
    %v7971 = vunpack.c.h.b16 %v7595
    %v7972 = vunpack.c.l.b16 %v7596
    %v7973 = vunpack.c.h.b16 %v7596
    %v7974 = vunpack.c.l.b16 %v7597
    %v7975 = vunpack.c.h.b16 %v7597
    %v7976 = vunpack.c.l.b16 %v7598
    %v7977 = vunpack.c.h.b16 %v7598
    %v7978 = vunpack.c.l.b16 %v7599
    %v7979 = vunpack.c.h.b16 %v7599
    %v7980 = vunpack.c.l.b16 %v7600
    %v7981 = vunpack.c.h.b16 %v7600
    %v7982 = vunpack.c.l.b16 %v7601
    %v7983 = vunpack.c.h.b16 %v7601
    %v7984 = vunpack.c.l.b16 %v7602
    %v7985 = vunpack.c.h.b16 %v7602
    %v7986 = vunpack.c.l.b16 %v7603
    %v7987 = vunpack.c.h.b16 %v7603
    %v7988 = vunpack.c.l.b16 %v7604
    %v7989 = vunpack.c.h.b16 %v7604
    %v7990 = vunpack.c.l.b16 %v7605
    %v7991 = vunpack.c.h.b16 %v7605
    %v7992 = vunpack.c.l.b16 %v7606
    %v7993 = vunpack.c.h.b16 %v7606
    %v7994 = vunpack.c.l.b16 %v7607
    %v7995 = vunpack.c.h.b16 %v7607
    %v7996 = vunpack.c.l.b16 %v7608
    %v7997 = vunpack.c.h.b16 %v7608
    %v7998 = vunpack.c.l.b16 %v7609
    %v7999 = vunpack.c.h.b16 %v7609
    %v8000 = vunpack.c.l.b16 %v7610
    %v8001 = vunpack.c.h.b16 %v7610
    %v8002 = vunpack.c.l.b16 %v7611
    %v8003 = vunpack.c.h.b16 %v7611
    %v8004 = vunpack.c.l.b16 %v7612
    %v8005 = vunpack.c.h.b16 %v7612
    %v8006 = vunpack.c.l.b16 %v7613
    %v8007 = vunpack.c.h.b16 %v7613
    %v8008 = vunpack.c.l.b16 %v7614
    %v8009 = vunpack.c.h.b16 %v7614
    %v8010 = vunpack.c.l.b16 %v7615
    %v8011 = vunpack.c.h.b16 %v7615
    %v8012 = vunpack.c.l.b16 %v7616
    %v8013 = vunpack.c.h.b16 %v7616
    %v8014 = vunpack.c.l.b16 %v7617
    %v8015 = vunpack.c.h.b16 %v7617
    %v8016 = vunpack.c.l.b16 %v7618
    %v8017 = vunpack.c.h.b16 %v7618
    %v8018 = vunpack.c.l.b16 %v7619
    %v8019 = vunpack.c.h.b16 %v7619
    %v8020 = vunpack.c.l.b16 %v7620
    %v8021 = vunpack.c.h.b16 %v7620
    %v8022 = vunpack.c.l.b16 %v7621
    %v8023 = vunpack.c.h.b16 %v7621
    %v8024 = vunpack.c.l.b16 %v7622
    %v8025 = vunpack.c.h.b16 %v7622
    %v8026 = vunpack.c.l.b16 %v7623
    %v8027 = vunpack.c.h.b16 %v7623
    %v8028 = vunpack.c.l.b16 %v7624
    %v8029 = vunpack.c.h.b16 %v7624
    %v8030 = vunpack.c.l.b16 %v7625
    %v8031 = vunpack.c.h.b16 %v7625
    %v8032 = vunpack.c.l.b16 %v7626
    %v8033 = vunpack.c.h.b16 %v7626
    %v8034 = vunpack.c.l.b16 %v7627
    %v8035 = vunpack.c.h.b16 %v7627
    %v8036 = vunpack.c.l.b16 %v7628
    %v8037 = vunpack.c.h.b16 %v7628
    %v8038 = vunpack.c.l.b16 %v7629
    %v8039 = vunpack.c.h.b16 %v7629
    %v8040 = vunpack.c.l.b16 %v7630
    %v8041 = vunpack.c.h.b16 %v7630
    %v8042 = vunpack.c.l.b16 %v7631
    %v8043 = vunpack.c.h.b16 %v7631
    %v8044 = vunpack.c.l.b16 %v7632
    %v8045 = vunpack.c.h.b16 %v7632
    %v8046 = vunpack.c.l.b16 %v7633
    %v8047 = vunpack.c.h.b16 %v7633
    %v8048 = vunpack.c.l.b16 %v7634
    %v8049 = vunpack.c.h.b16 %v7634
    %v8050 = vunpack.c.l.b16 %v7635
    %v8051 = vunpack.c.h.b16 %v7635
    %v8052 = vunpack.c.l.b16 %v7636
    %v8053 = vunpack.c.h.b16 %v7636
    %v8054 = vunpack.c.l.b16 %v7637
    %v8055 = vunpack.c.h.b16 %v7637
    %v8056 = vunpack.c.l.b16 %v7638
    %v8057 = vunpack.c.h.b16 %v7638
    %v8058 = vunpack.c.l.b16 %v7639
    %v8059 = vunpack.c.h.b16 %v7639
    %v8060 = vunpack.c.l.b16 %v7640
    %v8061 = vunpack.c.h.b16 %v7640
    %v8062 = vunpack.c.l.b16 %v7641
    %v8063 = vunpack.c.h.b16 %v7641
    %v8064 = vunpack.c.l.b16 %v7642
    %v8065 = vunpack.c.h.b16 %v7642
    %v8066 = vunpack.c.l.b16 %v7643
    %v8067 = vunpack.c.h.b16 %v7643
    %v8068 = vunpack.c.l.b16 %v7644
    %v8069 = vunpack.c.h.b16 %v7644
    %v8070 = vunpack.c.l.b16 %v7645
    %v8071 = vunpack.c.h.b16 %v7645
    %v8072 = vunpack.c.l.b16 %v7646
    %v8073 = vunpack.c.h.b16 %v7646
    %v8074 = vunpack.c.l.b16 %v7647
    %v8075 = vunpack.c.h.b16 %v7647
    %v8076 = vunpack.c.l.b16 %v7648
    %v8077 = vunpack.c.h.b16 %v7648
    %v8078 = vunpack.c.l.b16 %v7649
    %v8079 = vunpack.c.h.b16 %v7649
    %v8080 = vunpack.c.l.b16 %v7650
    %v8081 = vunpack.c.h.b16 %v7650
    %v8082 = vunpack.c.l.b16 %v7651
    %v8083 = vunpack.c.h.b16 %v7651
    %v8084 = vunpack.c.l.b16 %v7652
    %v8085 = vunpack.c.h.b16 %v7652
    %v8086 = vunpack.c.l.b16 %v7653
    %v8087 = vunpack.c.h.b16 %v7653
    %v8088 = vunpack.c.l.b16 %v7654
    %v8089 = vunpack.c.h.b16 %v7654
    %v8090 = vunpack.c.l.b16 %v7655
    %v8091 = vunpack.c.h.b16 %v7655
    %v8092 = vunpack.c.l.b16 %v7656
    %v8093 = vunpack.c.h.b16 %v7656
    %v8094 = vunpack.c.l.b16 %v7657
    %v8095 = vunpack.c.h.b16 %v7657
    %v8096 = vunpack.c.l.b16 %v7658
    %v8097 = vunpack.c.h.b16 %v7658
    %v8098 = vunpack.c.l.b16 %v7659
    %v8099 = vunpack.c.h.b16 %v7659
    %v8100 = vunpack.c.l.b16 %v7660
    %v8101 = vunpack.c.h.b16 %v7660
    %v8102 = vunpack.c.l.b16 %v7661
    %v8103 = vunpack.c.h.b16 %v7661
    %v8104 = vunpack.c.l.b16 %v7662
    %v8105 = vunpack.c.h.b16 %v7662
    %v8106 = vunpack.c.l.b16 %v7663
    %v8107 = vunpack.c.h.b16 %v7663
    %v8108 = vunpack.c.l.b16 %v7664
    %v8109 = vunpack.c.h.b16 %v7664
    %v8110 = vunpack.c.l.b16 %v7665
    %v8111 = vunpack.c.h.b16 %v7665
    %v8112 = vunpack.c.l.b16 %v7666
    %v8113 = vunpack.c.h.b16 %v7666
    %v8114 = vunpack.c.l.b16 %v7667
    %v8115 = vunpack.c.h.b16 %v7667
    %v8116 = vunpack.c.l.b16 %v7668
    %v8117 = vunpack.c.h.b16 %v7668
    %v8118 = vunpack.c.l.b16 %v7669
    %v8119 = vunpack.c.h.b16 %v7669
    %v8120 = vunpack.c.l.b16 %v7670
    %v8121 = vunpack.c.h.b16 %v7670
    %v8122 = vunpack.c.l.b16 %v7671
    %v8123 = vunpack.c.h.b16 %v7671
    %v8124 = vunpack.c.l.b16 %v7672
    %v8125 = vunpack.c.h.b16 %v7672
    %v8126 = vunpack.c.l.b16 %v7673
    %v8127 = vunpack.c.h.b16 %v7673
    %v8128 = vunpack.c.l.b16 %v7674
    %v8129 = vunpack.c.h.b16 %v7674
    %v8130 = vunpack.c.l.b16 %v7675
    %v8131 = vunpack.c.h.b16 %v7675
    %v8132 = vunpack.c.l.b16 %v7676
    %v8133 = vunpack.c.h.b16 %v7676
    %v8134 = vunpack.c.l.b16 %v7677
    %v8135 = vunpack.c.h.b16 %v7677
    %v8136 = vunpack.c.l.b16 %v7678
    %v8137 = vunpack.c.h.b16 %v7678
    %v8138 = vunpack.c.l.b16 %v7679
    %v8139 = vunpack.c.h.b16 %v7679
    %v8140 = vunpack.c.l.b16 %v7680
    %v8141 = vunpack.c.h.b16 %v7680
    %v8142 = vunpack.c.l.b16 %v7681
    %v8143 = vunpack.c.h.b16 %v7681
    %v8144 = vunpack.c.l.b16 %v7682
    %v8145 = vunpack.c.h.b16 %v7682
    %v8146 = vunpack.c.l.b16 %v7683
    %v8147 = vunpack.c.h.b16 %v7683
    %v8148 = vpack.c.b16 %v7866, %v7860
    %v8149 = vpack.c.b16 %v7867, %v7861
    %v8150 = vpack.c.b16 %v7868, %v7862
    %v8151 = vpack.c.b16 %v7869, %v7863
    %v8152 = vpack.c.b16 %v7870, %v7864
    %v8153 = vpack.c.b16 %v7871, %v7865
    %v8154 = vpack.c.b16 %v7878, %v7872
    %v8155 = vpack.c.b16 %v7879, %v7873
    %v8156 = vpack.c.b16 %v7880, %v7874
    %v8157 = vpack.c.b16 %v7881, %v7875
    %v8158 = vpack.c.b16 %v7882, %v7876
    %v8159 = vpack.c.b16 %v7883, %v7877
    %v8160 = vpack.c.b16 %v7890, %v7884
    %v8161 = vpack.c.b16 %v7891, %v7885
    %v8162 = vpack.c.b16 %v7892, %v7886
    %v8163 = vpack.c.b16 %v7893, %v7887
    %v8164 = vpack.c.b16 %v7894, %v7888
    %v8165 = vpack.c.b16 %v7895, %v7889
    %v8166 = vpack.c.b16 %v7902, %v7896
    %v8167 = vpack.c.b16 %v7903, %v7897
    %v8168 = vpack.c.b16 %v7904, %v7898
    %v8169 = vpack.c.b16 %v7905, %v7899
    %v8170 = vpack.c.b16 %v7906, %v7900
    %v8171 = vpack.c.b16 %v7907, %v7901
    %v8172 = vpack.c.b16 %v7914, %v7908
    %v8173 = vpack.c.b16 %v7915, %v7909
    %v8174 = vpack.c.b16 %v7916, %v7910
    %v8175 = vpack.c.b16 %v7917, %v7911
    %v8176 = vpack.c.b16 %v7918, %v7912
    %v8177 = vpack.c.b16 %v7919, %v7913
    %v8178 = vpack.c.b16 %v7926, %v7920
    %v8179 = vpack.c.b16 %v7927, %v7921
    %v8180 = vpack.c.b16 %v7928, %v7922
    %v8181 = vpack.c.b16 %v7929, %v7923
    %v8182 = vpack.c.b16 %v7930, %v7924
    %v8183 = vpack.c.b16 %v7931, %v7925
    %v8184 = vpack.c.b16 %v7938, %v7932
    %v8185 = vpack.c.b16 %v7939, %v7933
    %v8186 = vpack.c.b16 %v7940, %v7934
    %v8187 = vpack.c.b16 %v7941, %v7935
    %v8188 = vpack.c.b16 %v7942, %v7936
    %v8189 = vpack.c.b16 %v7943, %v7937
    %v8190 = vpack.c.b16 %v7950, %v7944
    %v8191 = vpack.c.b16 %v7951, %v7945
    %v8192 = vpack.c.b16 %v7952, %v7946
    %v8193 = vpack.c.b16 %v7953, %v7947
    %v8194 = vpack.c.b16 %v7954, %v7948
    %v8195 = vpack.c.b16 %v7955, %v7949
    %v8196 = vpack.c.b16 %v7962, %v7956
    %v8197 = vpack.c.b16 %v7963, %v7957
    %v8198 = vpack.c.b16 %v7964, %v7958
    %v8199 = vpack.c.b16 %v7965, %v7959
    %v8200 = vpack.c.b16 %v7966, %v7960
    %v8201 = vpack.c.b16 %v7967, %v7961
    %v8202 = vpack.c.b16 %v7974, %v7968
    %v8203 = vpack.c.b16 %v7975, %v7969
    %v8204 = vpack.c.b16 %v7976, %v7970
    %v8205 = vpack.c.b16 %v7977, %v7971
    %v8206 = vpack.c.b16 %v7978, %v7972
    %v8207 = vpack.c.b16 %v7979, %v7973
    %v8208 = vpack.c.b16 %v7986, %v7980
    %v8209 = vpack.c.b16 %v7987, %v7981
    %v8210 = vpack.c.b16 %v7988, %v7982
    %v8211 = vpack.c.b16 %v7989, %v7983
    %v8212 = vpack.c.b16 %v7990, %v7984
    %v8213 = vpack.c.b16 %v7991, %v7985
    %v8214 = vpack.c.b16 %v7998, %v7992
    %v8215 = vpack.c.b16 %v7999, %v7993
    %v8216 = vpack.c.b16 %v8000, %v7994
    %v8217 = vpack.c.b16 %v8001, %v7995
    %v8218 = vpack.c.b16 %v8002, %v7996
    %v8219 = vpack.c.b16 %v8003, %v7997
    %v8220 = vpack.c.b16 %v8010, %v8004
    %v8221 = vpack.c.b16 %v8011, %v8005
    %v8222 = vpack.c.b16 %v8012, %v8006
    %v8223 = vpack.c.b16 %v8013, %v8007
    %v8224 = vpack.c.b16 %v8014, %v8008
    %v8225 = vpack.c.b16 %v8015, %v8009
    %v8226 = vpack.c.b16 %v8022, %v8016
    %v8227 = vpack.c.b16 %v8023, %v8017
    %v8228 = vpack.c.b16 %v8024, %v8018
    %v8229 = vpack.c.b16 %v8025, %v8019
    %v8230 = vpack.c.b16 %v8026, %v8020
    %v8231 = vpack.c.b16 %v8027, %v8021
    %v8232 = vpack.c.b16 %v8034, %v8028
    %v8233 = vpack.c.b16 %v8035, %v8029
    %v8234 = vpack.c.b16 %v8036, %v8030
    %v8235 = vpack.c.b16 %v8037, %v8031
    %v8236 = vpack.c.b16 %v8038, %v8032
    %v8237 = vpack.c.b16 %v8039, %v8033
    %v8238 = vpack.c.b16 %v8046, %v8040
    %v8239 = vpack.c.b16 %v8047, %v8041
    %v8240 = vpack.c.b16 %v8048, %v8042
    %v8241 = vpack.c.b16 %v8049, %v8043
    %v8242 = vpack.c.b16 %v8050, %v8044
    %v8243 = vpack.c.b16 %v8051, %v8045
    %v8244 = vpack.c.b16 %v8058, %v8052
    %v8245 = vpack.c.b16 %v8059, %v8053
    %v8246 = vpack.c.b16 %v8060, %v8054
    %v8247 = vpack.c.b16 %v8061, %v8055
    %v8248 = vpack.c.b16 %v8062, %v8056
    %v8249 = vpack.c.b16 %v8063, %v8057
    %v8250 = vpack.c.b16 %v8070, %v8064
    %v8251 = vpack.c.b16 %v8071, %v8065
    %v8252 = vpack.c.b16 %v8072, %v8066
    %v8253 = vpack.c.b16 %v8073, %v8067
    %v8254 = vpack.c.b16 %v8074, %v8068
    %v8255 = vpack.c.b16 %v8075, %v8069
    %v8256 = vpack.c.b16 %v8082, %v8076
    %v8257 = vpack.c.b16 %v8083, %v8077
    %v8258 = vpack.c.b16 %v8084, %v8078
    %v8259 = vpack.c.b16 %v8085, %v8079
    %v8260 = vpack.c.b16 %v8086, %v8080
    %v8261 = vpack.c.b16 %v8087, %v8081
    %v8262 = vpack.c.b16 %v8094, %v8088
    %v8263 = vpack.c.b16 %v8095, %v8089
    %v8264 = vpack.c.b16 %v8096, %v8090
    %v8265 = vpack.c.b16 %v8097, %v8091
    %v8266 = vpack.c.b16 %v8098, %v8092
    %v8267 = vpack.c.b16 %v8099, %v8093
    %v8268 = vpack.c.b16 %v8106, %v8100
    %v8269 = vpack.c.b16 %v8107, %v8101
    %v8270 = vpack.c.b16 %v8108, %v8102
    %v8271 = vpack.c.b16 %v8109, %v8103
    %v8272 = vpack.c.b16 %v8110, %v8104
    %v8273 = vpack.c.b16 %v8111, %v8105
    %v8274 = vpack.c.b16 %v8118, %v8112
    %v8275 = vpack.c.b16 %v8119, %v8113
    %v8276 = vpack.c.b16 %v8120, %v8114
    %v8277 = vpack.c.b16 %v8121, %v8115
    %v8278 = vpack.c.b16 %v8122, %v8116
    %v8279 = vpack.c.b16 %v8123, %v8117
    %v8280 = vpack.c.b16 %v8130, %v8124
    %v8281 = vpack.c.b16 %v8131, %v8125
    %v8282 = vpack.c.b16 %v8132, %v8126
    %v8283 = vpack.c.b16 %v8133, %v8127
    %v8284 = vpack.c.b16 %v8134, %v8128
    %v8285 = vpack.c.b16 %v8135, %v8129
    %v8286 = vpack.c.b16 %v8142, %v8136
    %v8287 = vpack.c.b16 %v8143, %v8137
    %v8288 = vpack.c.b16 %v8144, %v8138
    %v8289 = vpack.c.b16 %v8145, %v8139
    %v8290 = vpack.c.b16 %v8146, %v8140
    %v8291 = vpack.c.b16 %v8147, %v8141
    %8436 = vmatprep.subr.bf16.mxu0 %v8149
    %8437 = vmatpush1.bf16.msra.mxu0 %v8148
    %8438 = vmatprep.subr.bf16.mxu0 %v8155
    %8439 = vmatpush1.bf16.msra.mxu0 %v8154
    %8440 = vmatprep.subr.bf16.mxu0 %v8161
    %8441 = vmatpush1.bf16.msra.mxu0 %v8160
    %8442 = vmatprep.subr.bf16.mxu0 %v8167
    %8443 = vmatpush1.bf16.msra.mxu0 %v8166
    %8444 = vmatprep.subr.bf16.mxu0 %v8173
    %8445 = vmatpush1.bf16.msra.mxu0 %v8172
    %8446 = vmatprep.subr.bf16.mxu0 %v8179
    %8447 = vmatpush1.bf16.msra.mxu0 %v8178
    %8448 = vmatprep.subr.bf16.mxu0 %v8185
    %8449 = vmatpush1.bf16.msra.mxu0 %v8184
    %8450 = vmatprep.subr.bf16.mxu0 %v8191
    %8451 = vmatpush1.bf16.msra.mxu0 %v8190
    %8452 = vmatprep.subr.bf16.mxu0 %v8197
    %8453 = vmatpush1.bf16.msra.mxu0 %v8196
    %8454 = vmatprep.subr.bf16.mxu0 %v8203
    %8455 = vmatpush1.bf16.msra.mxu0 %v8202
    %8456 = vmatprep.subr.bf16.mxu0 %v8209
    %8457 = vmatpush1.bf16.msra.mxu0 %v8208
    %8458 = vmatprep.subr.bf16.mxu0 %v8215
    %8459 = vmatpush1.bf16.msra.mxu0 %v8214
    %8460 = vmatprep.subr.bf16.mxu0 %v8221
    %8461 = vmatpush1.bf16.msra.mxu0 %v8220
    %8462 = vmatprep.subr.bf16.mxu0 %v8227
    %8463 = vmatpush1.bf16.msra.mxu0 %v8226
    %8464 = vmatprep.subr.bf16.mxu0 %v8233
    %8465 = vmatpush1.bf16.msra.mxu0 %v8232
    %8466 = vmatprep.subr.bf16.mxu0 %v8239
    %8467 = vmatpush1.bf16.msra.mxu0 %v8238
    %8468 = vmatprep.mubr.bf16.mxu0 %v7538
    %8469 = vmatmul.mubr.bf16.gmra.mrb[0].mxu0 %v7537
    %v8470 = vpop.f32.mrb[0].mxu0
    %v8471 = vadd.f32 %v7689, %v8470
    %v8472 = vpop.f32.mrb[0].mxu0
    %v8473 = vadd.f32 %v7693, %v8472
    %v8474 = vpop.f32.mrb[0].mxu0
    %v8475 = vpop.f32.mrb[0].mxu0
    %8476 = vdwg.mxu0
    %8477 = vmatprep.subr.bf16.mxu0 %v8245
    %8478 = vmatpush1.bf16.msra.mxu0 %v8244
    %8479 = vmatprep.subr.bf16.mxu0 %v8251
    %8480 = vmatpush1.bf16.msra.mxu0 %v8250
    %8481 = vmatprep.subr.bf16.mxu0 %v8257
    %8482 = vmatpush1.bf16.msra.mxu0 %v8256
    %8483 = vmatprep.subr.bf16.mxu0 %v8263
    %8484 = vmatpush1.bf16.msra.mxu0 %v8262
    %8485 = vmatprep.subr.bf16.mxu0 %v8269
    %8486 = vmatpush1.bf16.msra.mxu0 %v8268
    %8487 = vmatprep.subr.bf16.mxu0 %v8275
    %8488 = vmatpush1.bf16.msra.mxu0 %v8274
    %8489 = vmatprep.subr.bf16.mxu0 %v8281
    %8490 = vmatpush1.bf16.msra.mxu0 %v8280
    %8491 = vmatprep.subr.bf16.mxu0 %v8287
    %8492 = vmatpush1.bf16.msra.mxu0 %v8286
    %8493 = vmatprep.subr.bf16.mxu0 0
    %8494 = vmatpush1.bf16.msra.mxu0 0
    %8495 = vmatprep.subr.bf16.mxu0 0
    %8496 = vmatpush1.bf16.msra.mxu0 0
    %8497 = vmatprep.subr.bf16.mxu0 0
    %8498 = vmatpush1.bf16.msra.mxu0 0
    %8499 = vmatprep.subr.bf16.mxu0 0
    %8500 = vmatpush1.bf16.msra.mxu0 0
    %8501 = vmatprep.subr.bf16.mxu0 0
    %8502 = vmatpush1.bf16.msra.mxu0 0
    %8503 = vmatprep.subr.bf16.mxu0 0
    %8504 = vmatpush1.bf16.msra.mxu0 0
    %8505 = vmatprep.subr.bf16.mxu0 0
    %8506 = vmatpush1.bf16.msra.mxu0 0
    %8507 = vmatprep.subr.bf16.mxu0 0
    %8508 = vmatpush1.bf16.msra.mxu0 0
    %8509 = vmatprep.mubr.bf16.mxu0 0
    %8510 = vmatmul.mubr.bf16.gmra.mrb[0].mxu0 %v7539
    %v8511 = vpop.f32.mrb[0].mxu0
    %v8512 = vadd.f32 %v8471, %v8511
    %v8513 = vpop.f32.mrb[0].mxu0
    %v8514 = vadd.f32 %v8473, %v8513
    %v8515 = vpop.f32.mrb[0].mxu0
    %v8516 = vpop.f32.mrb[0].mxu0
    %8517 = vdwg.mxu0
    %8518 = vmatprep.subr.bf16.mxu0 %v8151
    %8519 = vmatpush1.bf16.msra.mxu0 %v8150
    %8520 = vmatprep.subr.bf16.mxu0 %v8157
    %8521 = vmatpush1.bf16.msra.mxu0 %v8156
    %8522 = vmatprep.subr.bf16.mxu0 %v8163
    %8523 = vmatpush1.bf16.msra.mxu0 %v8162
    %8524 = vmatprep.subr.bf16.mxu0 %v8169
    %8525 = vmatpush1.bf16.msra.mxu0 %v8168
    %8526 = vmatprep.subr.bf16.mxu0 %v8175
    %8527 = vmatpush1.bf16.msra.mxu0 %v8174
    %8528 = vmatprep.subr.bf16.mxu0 %v8181
    %8529 = vmatpush1.bf16.msra.mxu0 %v8180
    %8530 = vmatprep.subr.bf16.mxu0 %v8187
    %8531 = vmatpush1.bf16.msra.mxu0 %v8186
    %8532 = vmatprep.subr.bf16.mxu0 %v8193
    %8533 = vmatpush1.bf16.msra.mxu0 %v8192
    %8534 = vmatprep.subr.bf16.mxu0 %v8199
    %8535 = vmatpush1.bf16.msra.mxu0 %v8198
    %8536 = vmatprep.subr.bf16.mxu0 %v8205
    %8537 = vmatpush1.bf16.msra.mxu0 %v8204
    %8538 = vmatprep.subr.bf16.mxu0 %v8211
    %8539 = vmatpush1.bf16.msra.mxu0 %v8210
    %8540 = vmatprep.subr.bf16.mxu0 %v8217
    %8541 = vmatpush1.bf16.msra.mxu0 %v8216
    %8542 = vmatprep.subr.bf16.mxu0 %v8223
    %8543 = vmatpush1.bf16.msra.mxu0 %v8222
    %8544 = vmatprep.subr.bf16.mxu0 %v8229
    %8545 = vmatpush1.bf16.msra.mxu0 %v8228
    %8546 = vmatprep.subr.bf16.mxu0 %v8235
    %8547 = vmatpush1.bf16.msra.mxu0 %v8234
    %8548 = vmatprep.subr.bf16.mxu0 %v8241
    %8549 = vmatpush1.bf16.msra.mxu0 %v8240
    %8550 = vmatprep.mubr.bf16.mxu0 %v7538
    %8551 = vmatmul.mubr.bf16.gmra.mrb[0].mxu0 %v7537
    %v8552 = vpop.f32.mrb[0].mxu0
    %v8553 = vadd.f32 %v7697, %v8552
    %v8554 = vpop.f32.mrb[0].mxu0
    %v8555 = vadd.f32 %v7701, %v8554
    %v8556 = vpop.f32.mrb[0].mxu0
    %v8557 = vpop.f32.mrb[0].mxu0
    %8558 = vdwg.mxu0
    %8559 = vmatprep.subr.bf16.mxu0 %v8247
    %8560 = vmatpush1.bf16.msra.mxu0 %v8246
    %8561 = vmatprep.subr.bf16.mxu0 %v8253
    %8562 = vmatpush1.bf16.msra.mxu0 %v8252
    %8563 = vmatprep.subr.bf16.mxu0 %v8259
    %8564 = vmatpush1.bf16.msra.mxu0 %v8258
    %8565 = vmatprep.subr.bf16.mxu0 %v8265
    %8566 = vmatpush1.bf16.msra.mxu0 %v8264
    %8567 = vmatprep.subr.bf16.mxu0 %v8271
    %8568 = vmatpush1.bf16.msra.mxu0 %v8270
    %8569 = vmatprep.subr.bf16.mxu0 %v8277
    %8570 = vmatpush1.bf16.msra.mxu0 %v8276
    %8571 = vmatprep.subr.bf16.mxu0 %v8283
    %8572 = vmatpush1.bf16.msra.mxu0 %v8282
    %8573 = vmatprep.subr.bf16.mxu0 %v8289
    %8574 = vmatpush1.bf16.msra.mxu0 %v8288
    %8575 = vmatprep.subr.bf16.mxu0 0
    %8576 = vmatpush1.bf16.msra.mxu0 0
    %8577 = vmatprep.subr.bf16.mxu0 0
    %8578 = vmatpush1.bf16.msra.mxu0 0
    %8579 = vmatprep.subr.bf16.mxu0 0
    %8580 = vmatpush1.bf16.msra.mxu0 0
    %8581 = vmatprep.subr.bf16.mxu0 0
    %8582 = vmatpush1.bf16.msra.mxu0 0
    %8583 = vmatprep.subr.bf16.mxu0 0
    %8584 = vmatpush1.bf16.msra.mxu0 0
    %8585 = vmatprep.subr.bf16.mxu0 0
    %8586 = vmatpush1.bf16.msra.mxu0 0
    %8587 = vmatprep.subr.bf16.mxu0 0
    %8588 = vmatpush1.bf16.msra.mxu0 0
    %8589 = vmatprep.subr.bf16.mxu0 0
    %8590 = vmatpush1.bf16.msra.mxu0 0
    %8591 = vmatprep.mubr.bf16.mxu0 0
    %8592 = vmatmul.mubr.bf16.gmra.mrb[0].mxu0 %v7539
    %v8593 = vpop.f32.mrb[0].mxu0
    %v8594 = vadd.f32 %v8553, %v8593
    %v8595 = vpop.f32.mrb[0].mxu0
    %v8596 = vadd.f32 %v8555, %v8595
    %v8597 = vpop.f32.mrb[0].mxu0
    %v8598 = vpop.f32.mrb[0].mxu0
    %8599 = vdwg.mxu0
    %8600 = vmatprep.subr.bf16.mxu0 %v8153
    %8601 = vmatpush1.bf16.msra.mxu0 %v8152
    %8602 = vmatprep.subr.bf16.mxu0 %v8159
    %8603 = vmatpush1.bf16.msra.mxu0 %v8158
    %8604 = vmatprep.subr.bf16.mxu0 %v8165
    %8605 = vmatpush1.bf16.msra.mxu0 %v8164
    %8606 = vmatprep.subr.bf16.mxu0 %v8171
    %8607 = vmatpush1.bf16.msra.mxu0 %v8170
    %8608 = vmatprep.subr.bf16.mxu0 %v8177
    %8609 = vmatpush1.bf16.msra.mxu0 %v8176
    %8610 = vmatprep.subr.bf16.mxu0 %v8183
    %8611 = vmatpush1.bf16.msra.mxu0 %v8182
    %8612 = vmatprep.subr.bf16.mxu0 %v8189
    %8613 = vmatpush1.bf16.msra.mxu0 %v8188
    %8614 = vmatprep.subr.bf16.mxu0 %v8195
    %8615 = vmatpush1.bf16.msra.mxu0 %v8194
    %8616 = vmatprep.subr.bf16.mxu0 %v8201
    %8617 = vmatpush1.bf16.msra.mxu0 %v8200
    %8618 = vmatprep.subr.bf16.mxu0 %v8207
    %8619 = vmatpush1.bf16.msra.mxu0 %v8206
    %8620 = vmatprep.subr.bf16.mxu0 %v8213
    %8621 = vmatpush1.bf16.msra.mxu0 %v8212
    %8622 = vmatprep.subr.bf16.mxu0 %v8219
    %8623 = vmatpush1.bf16.msra.mxu0 %v8218
    %8624 = vmatprep.subr.bf16.mxu0 %v8225
    %8625 = vmatpush1.bf16.msra.mxu0 %v8224
    %8626 = vmatprep.subr.bf16.mxu0 %v8231
    %8627 = vmatpush1.bf16.msra.mxu0 %v8230
    %8628 = vmatprep.subr.bf16.mxu0 %v8237
    %8629 = vmatpush1.bf16.msra.mxu0 %v8236
    %8630 = vmatprep.subr.bf16.mxu0 %v8243
    %8631 = vmatpush1.bf16.msra.mxu0 %v8242
    %8632 = vmatprep.mubr.bf16.mxu0 %v7538
    %8633 = vmatmul.mubr.bf16.gmra.mrb[0].mxu0 %v7537
    %v8634 = vpop.f32.mrb[0].mxu0
    %v8635 = vadd.f32 %v7705, %v8634
    %v8636 = vpop.f32.mrb[0].mxu0
    %v8637 = vadd.f32 %v7709, %v8636
    %v8638 = vpop.f32.mrb[0].mxu0
    %v8639 = vpop.f32.mrb[0].mxu0
    %8640 = vdwg.mxu0
    %8641 = vmatprep.subr.bf16.mxu0 %v8249
    %8642 = vmatpush1.bf16.msra.mxu0 %v8248
    %8643 = vmatprep.subr.bf16.mxu0 %v8255
    %8644 = vmatpush1.bf16.msra.mxu0 %v8254
    %8645 = vmatprep.subr.bf16.mxu0 %v8261
    %8646 = vmatpush1.bf16.msra.mxu0 %v8260
    %8647 = vmatprep.subr.bf16.mxu0 %v8267
    %8648 = vmatpush1.bf16.msra.mxu0 %v8266
    %8649 = vmatprep.subr.bf16.mxu0 %v8273
    %8650 = vmatpush1.bf16.msra.mxu0 %v8272
    %8651 = vmatprep.subr.bf16.mxu0 %v8279
    %8652 = vmatpush1.bf16.msra.mxu0 %v8278
    %8653 = vmatprep.subr.bf16.mxu0 %v8285
    %8654 = vmatpush1.bf16.msra.mxu0 %v8284
    %8655 = vmatprep.subr.bf16.mxu0 %v8291
    %8656 = vmatpush1.bf16.msra.mxu0 %v8290
    %8657 = vmatprep.subr.bf16.mxu0 0
    %8658 = vmatpush1.bf16.msra.mxu0 0
    %8659 = vmatprep.subr.bf16.mxu0 0
    %8660 = vmatpush1.bf16.msra.mxu0 0
    %8661 = vmatprep.subr.bf16.mxu0 0
    %8662 = vmatpush1.bf16.msra.mxu0 0
    %8663 = vmatprep.subr.bf16.mxu0 0
    %8664 = vmatpush1.bf16.msra.mxu0 0
    %8665 = vmatprep.subr.bf16.mxu0 0
    %8666 = vmatpush1.bf16.msra.mxu0 0
    %8667 = vmatprep.subr.bf16.mxu0 0
    %8668 = vmatpush1.bf16.msra.mxu0 0
    %8669 = vmatprep.subr.bf16.mxu0 0
    %8670 = vmatpush1.bf16.msra.mxu0 0
    %8671 = vmatprep.subr.bf16.mxu0 0
    %8672 = vmatpush1.bf16.msra.mxu0 0
    %8673 = vmatprep.mubr.bf16.mxu0 0
    %8674 = vmatmul.mubr.bf16.gmra.mrb[0].mxu0 %v7539
    %v8675 = vpop.f32.mrb[0].mxu0
    %v8676 = vadd.f32 %v8635, %v8675
    %v8677 = vpop.f32.mrb[0].mxu0
    %v8678 = vadd.f32 %v8637, %v8677
    %v8679 = vpop.f32.mrb[0].mxu0
    %v8680 = vpop.f32.mrb[0].mxu0
    %8681 = vdwg.mxu0
    %v8682 = vmax.f32 %v8512, 0.0
    %v8683 = vmax.f32 %v8514, 0.0
    %v8684 = vmax.f32 %v8594, 0.0
    %v8685 = vmax.f32 %v8596, 0.0
    %v8686 = vmax.f32 %v8676, 0.0
    %v8687 = vmax.f32 %v8678, 0.0
    %8688 = vst [vmem:[#allocation3] sm:$0xff] %v8682
    %8689 = vst [vmem:[#allocation3 + $0x8] sm:$0xff] %v8683
    %8690 = vst [vmem:[#allocation3 + $0x10] sm:$0xff] %v8684
    %8691 = vst [vmem:[#allocation3 + $0x18] sm:$0xff] %v8685
    %8692 = vst [vmem:[#allocation3 + $0x20] sm:$0xff] %v8686
    %8693 = vst [vmem:[#allocation3 + $0x28] sm:$0xff] %v8687
    %v8694 = vld [vmem:[#allocation3] sm:$0xf]
    %v8695 = vld [vmem:[#allocation3 + $0x8] sm:$0xf]
    %v8696 = vld [vmem:[#allocation3 + $0x10] sm:$0xf]
    %v8697 = vld [vmem:[#allocation3 + $0x18] sm:$0xf]
    %v8698 = vld [vmem:[#allocation3 + $0x20] sm:$0xf]
    %v8699 = vld [vmem:[#allocation3 + $0x28] sm:$0xf]
    %v8700 = vsel %vm1724, %v8694, 0.0
    %v8701 = vrot.slane %v8700, 4
    %v8702 = vadd.f32 %v8700, %v8701
    %v8703 = vrot.slane %v8702, 2
    %v8704 = vadd.f32 %v8702, %v8703
    %v8705 = vrot.slane %v8704, 1
    %v8706 = vadd.f32 %v8704, %v8705
    %v8707 = vsel %vm1724, %v8695, 0.0
    %v8708 = vrot.slane %v8707, 4
    %v8709 = vadd.f32 %v8707, %v8708
    %v8710 = vrot.slane %v8709, 2
    %v8711 = vadd.f32 %v8709, %v8710
    %v8712 = vrot.slane %v8711, 1
    %v8713 = vadd.f32 %v8711, %v8712
    %v8714 = vsel %vm1724, %v8696, 0.0
    %v8715 = vrot.slane %v8714, 4
    %v8716 = vadd.f32 %v8714, %v8715
    %v8717 = vrot.slane %v8716, 2
    %v8718 = vadd.f32 %v8716, %v8717
    %v8719 = vrot.slane %v8718, 1
    %v8720 = vadd.f32 %v8718, %v8719
    %v8721 = vsel %vm1724, %v8697, 0.0
    %v8722 = vrot.slane %v8721, 4
    %v8723 = vadd.f32 %v8721, %v8722
    %v8724 = vrot.slane %v8723, 2
    %v8725 = vadd.f32 %v8723, %v8724
    %v8726 = vrot.slane %v8725, 1
    %v8727 = vadd.f32 %v8725, %v8726
    %v8728 = vsel %vm1724, %v8698, 0.0
    %v8729 = vrot.slane %v8728, 4
    %v8730 = vadd.f32 %v8728, %v8729
    %v8731 = vrot.slane %v8730, 2
    %v8732 = vadd.f32 %v8730, %v8731
    %v8733 = vrot.slane %v8732, 1
    %v8734 = vadd.f32 %v8732, %v8733
    %v8735 = vsel %vm1724, %v8699, 0.0
    %v8736 = vrot.slane %v8735, 4
    %v8737 = vadd.f32 %v8735, %v8736
    %v8738 = vrot.slane %v8737, 2
    %v8739 = vadd.f32 %v8737, %v8738
    %v8740 = vrot.slane %v8739, 1
    %v8741 = vadd.f32 %v8739, %v8740
    %v8742 = vld [vmem:[#allocation3] sm:$0xf0]
    %v8743 = vld [vmem:[#allocation3 + $0x8] sm:$0xf0]
    %v8744 = vld [vmem:[#allocation3 + $0x10] sm:$0xf0]
    %v8745 = vld [vmem:[#allocation3 + $0x18] sm:$0xf0]
    %v8746 = vld [vmem:[#allocation3 + $0x20] sm:$0xf0]
    %v8747 = vld [vmem:[#allocation3 + $0x28] sm:$0xf0]
    %v8754 = vrot.slane %v8742, 4
    %v8755 = vrot.slane %v8743, 4
    %v8756 = vrot.slane %v8744, 4
    %v8757 = vrot.slane %v8745, 4
    %v8758 = vrot.slane %v8746, 4
    %v8759 = vrot.slane %v8747, 4
    %v8766 = vsel %vm1724, %v8754, 0.0
    %v8767 = vrot.slane %v8766, 4
    %v8768 = vadd.f32 %v8766, %v8767
    %v8769 = vrot.slane %v8768, 2
    %v8770 = vadd.f32 %v8768, %v8769
    %v8771 = vrot.slane %v8770, 1
    %v8772 = vadd.f32 %v8770, %v8771
    %v8773 = vsel %vm1724, %v8755, 0.0
    %v8774 = vrot.slane %v8773, 4
    %v8775 = vadd.f32 %v8773, %v8774
    %v8776 = vrot.slane %v8775, 2
    %v8777 = vadd.f32 %v8775, %v8776
    %v8778 = vrot.slane %v8777, 1
    %v8779 = vadd.f32 %v8777, %v8778
    %v8780 = vsel %vm1724, %v8756, 0.0
    %v8781 = vrot.slane %v8780, 4
    %v8782 = vadd.f32 %v8780, %v8781
    %v8783 = vrot.slane %v8782, 2
    %v8784 = vadd.f32 %v8782, %v8783
    %v8785 = vrot.slane %v8784, 1
    %v8786 = vadd.f32 %v8784, %v8785
    %v8787 = vsel %vm1724, %v8757, 0.0
    %v8788 = vrot.slane %v8787, 4
    %v8789 = vadd.f32 %v8787, %v8788
    %v8790 = vrot.slane %v8789, 2
    %v8791 = vadd.f32 %v8789, %v8790
    %v8792 = vrot.slane %v8791, 1
    %v8793 = vadd.f32 %v8791, %v8792
    %v8794 = vsel %vm1724, %v8758, 0.0
    %v8795 = vrot.slane %v8794, 4
    %v8796 = vadd.f32 %v8794, %v8795
    %v8797 = vrot.slane %v8796, 2
    %v8798 = vadd.f32 %v8796, %v8797
    %v8799 = vrot.slane %v8798, 1
    %v8800 = vadd.f32 %v8798, %v8799
    %v8801 = vsel %vm1724, %v8759, 0.0
    %v8802 = vrot.slane %v8801, 4
    %v8803 = vadd.f32 %v8801, %v8802
    %v8804 = vrot.slane %v8803, 2
    %v8805 = vadd.f32 %v8803, %v8804
    %v8806 = vrot.slane %v8805, 1
    %v8807 = vadd.f32 %v8805, %v8806
    %vm8808 = vcmask 1040384
    %v8809 = vsel %vm8808, %v8706, %v8772
    %v8810 = vsel %vm8808, %v8713, %v8779
    %v8811 = vsel %vm8808, %v8720, %v8786
    %v8812 = vsel %vm8808, %v8727, %v8793
    %v8813 = vsel %vm8808, %v8734, %v8800
    %v8814 = vsel %vm8808, %v8741, %v8807
    %v8815 = vpack.c.bf16 %v8809, %v8809
    %v8816 = vpack.c.bf16 %v8810, %v8810
    %v8817 = vpack.c.bf16 %v8811, %v8811
    %v8818 = vpack.c.bf16 %v8812, %v8812
    %v8819 = vpack.c.bf16 %v8813, %v8813
    %v8820 = vpack.c.bf16 %v8814, %v8814
    %v8821 = vld [vmem:[%s87] sm:$0xf]
    %v8822 = vld [vmem:[%s87 + $0x4] sm:$0xf]
    %v8823 = vld [vmem:[%s87 + $0x8] sm:$0xf]
    %v8824 = vld [vmem:[%s87 + $0xc] sm:$0xf]
    %v8825 = vld [vmem:[%s87 + $0x10] sm:$0xf]
    %v8826 = vld [vmem:[%s87 + $0x14] sm:$0xf]
    %v8827 = vld [vmem:[%s87 + $0x18] sm:$0xf]
    %v8828 = vld [vmem:[%s87 + $0x1c] sm:$0xf]
    %v8829 = vld [vmem:[%s87 + $0x20] sm:$0xf]
    %v8830 = vld [vmem:[%s87 + $0x24] sm:$0xf]
    %v8831 = vld [vmem:[%s87 + $0x28] sm:$0xf]
    %v8832 = vld [vmem:[%s87 + $0x2c] sm:$0xf]
    %v8833 = vld [vmem:[%s87 + $0x30] sm:$0xf]
    %v8834 = vld [vmem:[%s87 + $0x34] sm:$0xf]
    %v8835 = vld [vmem:[%s87 + $0x38] sm:$0xf]
    %v8836 = vld [vmem:[%s87 + $0x3c] sm:$0xf]
    %v8837 = vld [vmem:[%s87 + $0x40] sm:$0xf]
    %v8838 = vld [vmem:[%s87 + $0x44] sm:$0xf]
    %v8839 = vld [vmem:[%s87 + $0x48] sm:$0xf]
    %v8840 = vld [vmem:[%s87 + $0x4c] sm:$0xf]
    %v8841 = vld [vmem:[%s87 + $0x50] sm:$0xf]
    %v8842 = vld [vmem:[%s87 + $0x54] sm:$0xf]
    %v8843 = vld [vmem:[%s87 + $0x58] sm:$0xf]
    %v8844 = vld [vmem:[%s87 + $0x5c] sm:$0xf]
    %v8845 = vld [vmem:[%s87 + $0x60] sm:$0xf]
    %v8846 = vld [vmem:[%s87 + $0x64] sm:$0xf]
    %v8847 = vld [vmem:[%s87 + $0x68] sm:$0xf]
    %v8848 = vld [vmem:[%s87 + $0x6c] sm:$0xf]
    %v8849 = vld [vmem:[%s87 + $0x70] sm:$0xf]
    %v8850 = vld [vmem:[%s87 + $0x74] sm:$0xf]
    %v8851 = vld [vmem:[%s87 + $0x78] sm:$0xf]
    %v8852 = vld [vmem:[%s87 + $0x7c] sm:$0xf]
    %v8853 = vld [vmem:[%s87 + $0x80] sm:$0xf]
    %v8854 = vld [vmem:[%s87 + $0x84] sm:$0xf]
    %v8855 = vld [vmem:[%s87 + $0x88] sm:$0xf]
    %v8856 = vld [vmem:[%s87 + $0x8c] sm:$0xf]
    %v8857 = vld [vmem:[%s87 + $0x90] sm:$0xf]
    %v8858 = vld [vmem:[%s87 + $0x94] sm:$0xf]
    %v8859 = vld [vmem:[%s87 + $0x98] sm:$0xf]
    %v8860 = vld [vmem:[%s87 + $0x9c] sm:$0xf]
    %v8861 = vld [vmem:[%s87 + $0xa0] sm:$0xf]
    %v8862 = vld [vmem:[%s87 + $0xa4] sm:$0xf]
    %v8863 = vld [vmem:[%s87 + $0xa8] sm:$0xf]
    %v8864 = vld [vmem:[%s87 + $0xac] sm:$0xf]
    %v8865 = vld [vmem:[%s87 + $0xb0] sm:$0xf]
    %v8866 = vld [vmem:[%s87 + $0xb4] sm:$0xf]
    %v8867 = vld [vmem:[%s87 + $0xb8] sm:$0xf]
    %v8868 = vld [vmem:[%s87 + $0xbc] sm:$0xf]
    %v8869 = vld [vmem:[%s87 + $0xc0] sm:$0xf]
    %v8870 = vld [vmem:[%s87 + $0xc4] sm:$0xf]
    %v8871 = vld [vmem:[%s87 + $0xc8] sm:$0xf]
    %v8872 = vld [vmem:[%s87 + $0xcc] sm:$0xf]
    %v8873 = vld [vmem:[%s87 + $0xd0] sm:$0xf]
    %v8874 = vld [vmem:[%s87 + $0xd4] sm:$0xf]
    %v8875 = vld [vmem:[%s87 + $0xd8] sm:$0xf]
    %v8876 = vld [vmem:[%s87 + $0xdc] sm:$0xf]
    %v8877 = vld [vmem:[%s87 + $0xe0] sm:$0xf]
    %v8878 = vld [vmem:[%s87 + $0xe4] sm:$0xf]
    %v8879 = vld [vmem:[%s87 + $0xe8] sm:$0xf]
    %v8880 = vld [vmem:[%s87 + $0xec] sm:$0xf]
    %v8881 = vld [vmem:[%s87 + $0xf0] sm:$0xf]
    %v8882 = vld [vmem:[%s87 + $0xf4] sm:$0xf]
    %v8883 = vld [vmem:[%s87 + $0xf8] sm:$0xf]
    %v8884 = vld [vmem:[%s87 + $0xfc] sm:$0xf]
    %v8885 = vld [vmem:[%s87 + $0x100] sm:$0xf]
    %v8886 = vld [vmem:[%s87 + $0x104] sm:$0xf]
    %v8887 = vld [vmem:[%s87 + $0x108] sm:$0xf]
    %v8888 = vld [vmem:[%s87 + $0x10c] sm:$0xf]
    %v8889 = vld [vmem:[%s87 + $0x110] sm:$0xf]
    %v8890 = vld [vmem:[%s87 + $0x114] sm:$0xf]
    %v8891 = vld [vmem:[%s87 + $0x118] sm:$0xf]
    %v8892 = vld [vmem:[%s87 + $0x11c] sm:$0xf]
    %v8893 = vld [vmem:[%s87 + $0x120] sm:$0xf]
    %v8894 = vld [vmem:[%s87 + $0x124] sm:$0xf]
    %v8895 = vld [vmem:[%s87 + $0x128] sm:$0xf]
    %v8896 = vld [vmem:[%s87 + $0x12c] sm:$0xf]
    %v8897 = vld [vmem:[%s87 + $0x130] sm:$0xf]
    %v8898 = vld [vmem:[%s87 + $0x134] sm:$0xf]
    %v8899 = vld [vmem:[%s87 + $0x138] sm:$0xf]
    %v8900 = vld [vmem:[%s87 + $0x13c] sm:$0xf]
    %v8901 = vld [vmem:[%s87 + $0x140] sm:$0xf]
    %v8902 = vld [vmem:[%s87 + $0x144] sm:$0xf]
    %v8903 = vld [vmem:[%s87 + $0x148] sm:$0xf]
    %v8904 = vld [vmem:[%s87 + $0x14c] sm:$0xf]
    %v8905 = vld [vmem:[%s87 + $0x150] sm:$0xf]
    %v8906 = vld [vmem:[%s87 + $0x154] sm:$0xf]
    %v8907 = vld [vmem:[%s87 + $0x158] sm:$0xf]
    %v8908 = vld [vmem:[%s87 + $0x15c] sm:$0xf]
    %v8909 = vld [vmem:[%s87 + $0x160] sm:$0xf]
    %v8910 = vld [vmem:[%s87 + $0x164] sm:$0xf]
    %v8911 = vld [vmem:[%s87 + $0x168] sm:$0xf]
    %v8912 = vld [vmem:[%s87 + $0x16c] sm:$0xf]
    %v8913 = vld [vmem:[%s87 + $0x170] sm:$0xf]
    %v8914 = vld [vmem:[%s87 + $0x174] sm:$0xf]
    %v8915 = vld [vmem:[%s87 + $0x178] sm:$0xf]
    %v8916 = vld [vmem:[%s87 + $0x17c] sm:$0xf]
    %v8917 = vld [vmem:[#allocation63] sm:$0x1]
    %v8919 = vlaneseq
    %v8920 = vshrl.u32 %v8919, 7
    %v8921 = vsub.s32 0, %v8920
    %v8922 = vrot.slane %v8917, %v8921
    %v9020 = vunpack.c.l.b16 %v8821
    %v9021 = vunpack.c.l.b16 %v8822
    %v9022 = vunpack.c.l.b16 %v8823
    %v9023 = vunpack.c.l.b16 %v8824
    %v9024 = vunpack.c.l.b16 %v8825
    %v9025 = vunpack.c.l.b16 %v8826
    %v9026 = vunpack.c.l.b16 %v8827
    %v9027 = vunpack.c.l.b16 %v8828
    %v9028 = vunpack.c.l.b16 %v8829
    %v9029 = vunpack.c.l.b16 %v8830
    %v9030 = vunpack.c.l.b16 %v8831
    %v9031 = vunpack.c.l.b16 %v8832
    %v9032 = vunpack.c.l.b16 %v8833
    %v9033 = vunpack.c.l.b16 %v8834
    %v9034 = vunpack.c.l.b16 %v8835
    %v9035 = vunpack.c.l.b16 %v8836
    %v9036 = vunpack.c.l.b16 %v8837
    %v9037 = vunpack.c.l.b16 %v8838
    %v9038 = vunpack.c.l.b16 %v8839
    %v9039 = vunpack.c.l.b16 %v8840
    %v9040 = vunpack.c.l.b16 %v8841
    %v9041 = vunpack.c.l.b16 %v8842
    %v9042 = vunpack.c.l.b16 %v8843
    %v9043 = vunpack.c.l.b16 %v8844
    %v9044 = vunpack.c.l.b16 %v8845
    %v9045 = vunpack.c.l.b16 %v8846
    %v9046 = vunpack.c.l.b16 %v8847
    %v9047 = vunpack.c.l.b16 %v8848
    %v9048 = vunpack.c.l.b16 %v8849
    %v9049 = vunpack.c.l.b16 %v8850
    %v9050 = vunpack.c.l.b16 %v8851
    %v9051 = vunpack.c.l.b16 %v8852
    %v9052 = vunpack.c.l.b16 %v8853
    %v9053 = vunpack.c.l.b16 %v8854
    %v9054 = vunpack.c.l.b16 %v8855
    %v9055 = vunpack.c.l.b16 %v8856
    %v9056 = vunpack.c.l.b16 %v8857
    %v9057 = vunpack.c.l.b16 %v8858
    %v9058 = vunpack.c.l.b16 %v8859
    %v9059 = vunpack.c.l.b16 %v8860
    %v9060 = vunpack.c.l.b16 %v8861
    %v9061 = vunpack.c.l.b16 %v8862
    %v9062 = vunpack.c.l.b16 %v8863
    %v9063 = vunpack.c.l.b16 %v8864
    %v9064 = vunpack.c.l.b16 %v8865
    %v9065 = vunpack.c.l.b16 %v8866
    %v9066 = vunpack.c.l.b16 %v8867
    %v9067 = vunpack.c.l.b16 %v8868
    %v9068 = vunpack.c.l.b16 %v8869
    %v9069 = vunpack.c.l.b16 %v8870
    %v9070 = vunpack.c.l.b16 %v8871
    %v9071 = vunpack.c.l.b16 %v8872
    %v9072 = vunpack.c.l.b16 %v8873
    %v9073 = vunpack.c.l.b16 %v8874
    %v9074 = vunpack.c.l.b16 %v8875
    %v9075 = vunpack.c.l.b16 %v8876
    %v9076 = vunpack.c.l.b16 %v8877
    %v9077 = vunpack.c.l.b16 %v8878
    %v9078 = vunpack.c.l.b16 %v8879
    %v9079 = vunpack.c.l.b16 %v8880
    %v9080 = vunpack.c.l.b16 %v8881
    %v9081 = vunpack.c.l.b16 %v8882
    %v9082 = vunpack.c.l.b16 %v8883
    %v9083 = vunpack.c.l.b16 %v8884
    %v9084 = vunpack.c.l.b16 %v8885
    %v9085 = vunpack.c.l.b16 %v8886
    %v9086 = vunpack.c.l.b16 %v8887
    %v9087 = vunpack.c.l.b16 %v8888
    %v9088 = vunpack.c.l.b16 %v8889
    %v9089 = vunpack.c.l.b16 %v8890
    %v9090 = vunpack.c.l.b16 %v8891
    %v9091 = vunpack.c.l.b16 %v8892
    %v9092 = vunpack.c.l.b16 %v8893
    %v9093 = vunpack.c.l.b16 %v8894
    %v9094 = vunpack.c.l.b16 %v8895
    %v9095 = vunpack.c.l.b16 %v8896
    %v9096 = vunpack.c.l.b16 %v8897
    %v9097 = vunpack.c.l.b16 %v8898
    %v9098 = vunpack.c.l.b16 %v8899
    %v9099 = vunpack.c.l.b16 %v8900
    %v9100 = vunpack.c.l.b16 %v8901
    %v9101 = vunpack.c.l.b16 %v8902
    %v9102 = vunpack.c.l.b16 %v8903
    %v9103 = vunpack.c.l.b16 %v8904
    %v9104 = vunpack.c.l.b16 %v8905
    %v9105 = vunpack.c.l.b16 %v8906
    %v9106 = vunpack.c.l.b16 %v8907
    %v9107 = vunpack.c.l.b16 %v8908
    %v9108 = vunpack.c.l.b16 %v8909
    %v9109 = vunpack.c.l.b16 %v8910
    %v9110 = vunpack.c.l.b16 %v8911
    %v9111 = vunpack.c.l.b16 %v8912
    %v9112 = vunpack.c.l.b16 %v8913
    %v9113 = vunpack.c.l.b16 %v8914
    %v9114 = vunpack.c.l.b16 %v8915
    %v9115 = vunpack.c.l.b16 %v8916
    %v9116 = vpack.c.b16 %v9021, %v9020
    %v9117 = vpack.c.b16 %v9023, %v9022
    %v9118 = vpack.c.b16 %v9025, %v9024
    %v9119 = vpack.c.b16 %v9027, %v9026
    %v9120 = vpack.c.b16 %v9029, %v9028
    %v9121 = vpack.c.b16 %v9031, %v9030
    %v9122 = vpack.c.b16 %v9033, %v9032
    %v9123 = vpack.c.b16 %v9035, %v9034
    %v9124 = vpack.c.b16 %v9037, %v9036
    %v9125 = vpack.c.b16 %v9039, %v9038
    %v9126 = vpack.c.b16 %v9041, %v9040
    %v9127 = vpack.c.b16 %v9043, %v9042
    %v9128 = vpack.c.b16 %v9045, %v9044
    %v9129 = vpack.c.b16 %v9047, %v9046
    %v9130 = vpack.c.b16 %v9049, %v9048
    %v9131 = vpack.c.b16 %v9051, %v9050
    %v9132 = vpack.c.b16 %v9053, %v9052
    %v9133 = vpack.c.b16 %v9055, %v9054
    %v9134 = vpack.c.b16 %v9057, %v9056
    %v9135 = vpack.c.b16 %v9059, %v9058
    %v9136 = vpack.c.b16 %v9061, %v9060
    %v9137 = vpack.c.b16 %v9063, %v9062
    %v9138 = vpack.c.b16 %v9065, %v9064
    %v9139 = vpack.c.b16 %v9067, %v9066
    %v9140 = vpack.c.b16 %v9069, %v9068
    %v9141 = vpack.c.b16 %v9071, %v9070
    %v9142 = vpack.c.b16 %v9073, %v9072
    %v9143 = vpack.c.b16 %v9075, %v9074
    %v9144 = vpack.c.b16 %v9077, %v9076
    %v9145 = vpack.c.b16 %v9079, %v9078
    %v9146 = vpack.c.b16 %v9081, %v9080
    %v9147 = vpack.c.b16 %v9083, %v9082
    %v9148 = vpack.c.b16 %v9085, %v9084
    %v9149 = vpack.c.b16 %v9087, %v9086
    %v9150 = vpack.c.b16 %v9089, %v9088
    %v9151 = vpack.c.b16 %v9091, %v9090
    %v9152 = vpack.c.b16 %v9093, %v9092
    %v9153 = vpack.c.b16 %v9095, %v9094
    %v9154 = vpack.c.b16 %v9097, %v9096
    %v9155 = vpack.c.b16 %v9099, %v9098
    %v9156 = vpack.c.b16 %v9101, %v9100
    %v9157 = vpack.c.b16 %v9103, %v9102
    %v9158 = vpack.c.b16 %v9105, %v9104
    %v9159 = vpack.c.b16 %v9107, %v9106
    %v9160 = vpack.c.b16 %v9109, %v9108
    %v9161 = vpack.c.b16 %v9111, %v9110
    %v9162 = vpack.c.b16 %v9113, %v9112
    %v9163 = vpack.c.b16 %v9115, %v9114
    %9212 = vmatprep.subr.bf16.mxu0 0
    %9213 = vmatpush1.bf16.msra.mxu0 %v9116
    %9214 = vmatprep.subr.bf16.mxu0 0
    %9215 = vmatpush1.bf16.msra.mxu0 %v9117
    %9216 = vmatprep.subr.bf16.mxu0 0
    %9217 = vmatpush1.bf16.msra.mxu0 %v9118
    %9218 = vmatprep.subr.bf16.mxu0 0
    %9219 = vmatpush1.bf16.msra.mxu0 %v9119
    %9220 = vmatprep.subr.bf16.mxu0 0
    %9221 = vmatpush1.bf16.msra.mxu0 %v9120
    %9222 = vmatprep.subr.bf16.mxu0 0
    %9223 = vmatpush1.bf16.msra.mxu0 %v9121
    %9224 = vmatprep.subr.bf16.mxu0 0
    %9225 = vmatpush1.bf16.msra.mxu0 %v9122
    %9226 = vmatprep.subr.bf16.mxu0 0
    %9227 = vmatpush1.bf16.msra.mxu0 %v9123
    %9228 = vmatprep.subr.bf16.mxu0 0
    %9229 = vmatpush1.bf16.msra.mxu0 %v9124
    %9230 = vmatprep.subr.bf16.mxu0 0
    %9231 = vmatpush1.bf16.msra.mxu0 %v9125
    %9232 = vmatprep.subr.bf16.mxu0 0
    %9233 = vmatpush1.bf16.msra.mxu0 %v9126
    %9234 = vmatprep.subr.bf16.mxu0 0
    %9235 = vmatpush1.bf16.msra.mxu0 %v9127
    %9236 = vmatprep.subr.bf16.mxu0 0
    %9237 = vmatpush1.bf16.msra.mxu0 %v9128
    %9238 = vmatprep.subr.bf16.mxu0 0
    %9239 = vmatpush1.bf16.msra.mxu0 %v9129
    %9240 = vmatprep.subr.bf16.mxu0 0
    %9241 = vmatpush1.bf16.msra.mxu0 %v9130
    %9242 = vmatprep.subr.bf16.mxu0 0
    %9243 = vmatpush1.bf16.msra.mxu0 %v9131
    %9244 = vmatprep.mubr.bf16.mxu0 %v8816
    %9245 = vmatmul.mubr.bf16.gmra.mrb[0].mxu0 %v8815
    %v9246 = vpop.f32.mrb[0].mxu0
    %v9247 = vadd.f32 %v8922, %v9246
    %v9248 = vpop.f32.mrb[0].mxu0
    %v9249 = vpop.f32.mrb[0].mxu0
    %v9250 = vpop.f32.mrb[0].mxu0
    %9251 = vdwg.mxu0
    %9252 = vmatprep.subr.bf16.mxu0 0
    %9253 = vmatpush1.bf16.msra.mxu0 %v9132
    %9254 = vmatprep.subr.bf16.mxu0 0
    %9255 = vmatpush1.bf16.msra.mxu0 %v9133
    %9256 = vmatprep.subr.bf16.mxu0 0
    %9257 = vmatpush1.bf16.msra.mxu0 %v9134
    %9258 = vmatprep.subr.bf16.mxu0 0
    %9259 = vmatpush1.bf16.msra.mxu0 %v9135
    %9260 = vmatprep.subr.bf16.mxu0 0
    %9261 = vmatpush1.bf16.msra.mxu0 %v9136
    %9262 = vmatprep.subr.bf16.mxu0 0
    %9263 = vmatpush1.bf16.msra.mxu0 %v9137
    %9264 = vmatprep.subr.bf16.mxu0 0
    %9265 = vmatpush1.bf16.msra.mxu0 %v9138
    %9266 = vmatprep.subr.bf16.mxu0 0
    %9267 = vmatpush1.bf16.msra.mxu0 %v9139
    %9268 = vmatprep.subr.bf16.mxu0 0
    %9269 = vmatpush1.bf16.msra.mxu0 %v9140
    %9270 = vmatprep.subr.bf16.mxu0 0
    %9271 = vmatpush1.bf16.msra.mxu0 %v9141
    %9272 = vmatprep.subr.bf16.mxu0 0
    %9273 = vmatpush1.bf16.msra.mxu0 %v9142
    %9274 = vmatprep.subr.bf16.mxu0 0
    %9275 = vmatpush1.bf16.msra.mxu0 %v9143
    %9276 = vmatprep.subr.bf16.mxu0 0
    %9277 = vmatpush1.bf16.msra.mxu0 %v9144
    %9278 = vmatprep.subr.bf16.mxu0 0
    %9279 = vmatpush1.bf16.msra.mxu0 %v9145
    %9280 = vmatprep.subr.bf16.mxu0 0
    %9281 = vmatpush1.bf16.msra.mxu0 %v9146
    %9282 = vmatprep.subr.bf16.mxu0 0
    %9283 = vmatpush1.bf16.msra.mxu0 %v9147
    %9284 = vmatprep.mubr.bf16.mxu0 %v8818
    %9285 = vmatmul.mubr.bf16.gmra.mrb[0].mxu0 %v8817
    %v9286 = vpop.f32.mrb[0].mxu0
    %v9287 = vadd.f32 %v9247, %v9286
    %v9288 = vpop.f32.mrb[0].mxu0
    %v9289 = vpop.f32.mrb[0].mxu0
    %v9290 = vpop.f32.mrb[0].mxu0
    %9291 = vdwg.mxu0
    %9292 = vmatprep.subr.bf16.mxu0 0
    %9293 = vmatpush1.bf16.msra.mxu0 %v9148
    %9294 = vmatprep.subr.bf16.mxu0 0
    %9295 = vmatpush1.bf16.msra.mxu0 %v9149
    %9296 = vmatprep.subr.bf16.mxu0 0
    %9297 = vmatpush1.bf16.msra.mxu0 %v9150
    %9298 = vmatprep.subr.bf16.mxu0 0
    %9299 = vmatpush1.bf16.msra.mxu0 %v9151
    %9300 = vmatprep.subr.bf16.mxu0 0
    %9301 = vmatpush1.bf16.msra.mxu0 %v9152
    %9302 = vmatprep.subr.bf16.mxu0 0
    %9303 = vmatpush1.bf16.msra.mxu0 %v9153
    %9304 = vmatprep.subr.bf16.mxu0 0
    %9305 = vmatpush1.bf16.msra.mxu0 %v9154
    %9306 = vmatprep.subr.bf16.mxu0 0
    %9307 = vmatpush1.bf16.msra.mxu0 %v9155
    %9308 = vmatprep.subr.bf16.mxu0 0
    %9309 = vmatpush1.bf16.msra.mxu0 %v9156
    %9310 = vmatprep.subr.bf16.mxu0 0
    %9311 = vmatpush1.bf16.msra.mxu0 %v9157
    %9312 = vmatprep.subr.bf16.mxu0 0
    %9313 = vmatpush1.bf16.msra.mxu0 %v9158
    %9314 = vmatprep.subr.bf16.mxu0 0
    %9315 = vmatpush1.bf16.msra.mxu0 %v9159
    %9316 = vmatprep.subr.bf16.mxu0 0
    %9317 = vmatpush1.bf16.msra.mxu0 %v9160
    %9318 = vmatprep.subr.bf16.mxu0 0
    %9319 = vmatpush1.bf16.msra.mxu0 %v9161
    %9320 = vmatprep.subr.bf16.mxu0 0
    %9321 = vmatpush1.bf16.msra.mxu0 %v9162
    %9322 = vmatprep.subr.bf16.mxu0 0
    %9323 = vmatpush1.bf16.msra.mxu0 %v9163
    %9324 = vmatprep.mubr.bf16.mxu0 %v8820
    %9325 = vmatmul.mubr.bf16.gmra.mrb[0].mxu0 %v8819
    %v9326 = vpop.f32.mrb[0].mxu0
    %v9327 = vadd.f32 %v9287, %v9326
    %v9328 = vpop.f32.mrb[0].mxu0
    %v9329 = vpop.f32.mrb[0].mxu0
    %v9330 = vpop.f32.mrb[0].mxu0
    %9331 = vdwg.mxu0
    %vm9332 = vcmask 41984
    %9333 = vst.msk [vmem:[#allocation64] sm:$0x3] %vm9332, %v9327
    // Predicated region
    $region338: #{_forward_impl.1} parent=1 // pred_check
      _
    $region339: #{_forward_impl.1} parent=1 // pred_check_branch
      %9335 = sbr.rel (0) target = $region341
    $region340: #{_forward_impl.1} parent=1 // pred_region
      %s9337 = ssub.s32 32, 32
      %9338 = vsyncadd [#allocation6], %s9337
      %s9340 = sshll.u32 [#allocation64], 4
      %s9341 = int_to_ptr.vmem [resolvable:$true] %s9340
      %9343 = dma.vmem_to_hbm [thread:$0]  %s9341, 32, %s91, [#allocation6]
    $region341: #{_forward_impl.1} parent=1 // pred_fallthru
      _
    // Predicated region
    $region342: #{_forward_impl.1} parent=1 // pred_check
      _
    $region343: #{_forward_impl.1} parent=1 // pred_check_branch
      %9345 = sbr.rel (0) target = $region345
    $region344: #{_forward_impl.1} parent=1 // pred_region
      %9346 = dma.done [#allocation6], 32
    $region345: #{_forward_impl.1} parent=1 // pred_fallthru
      _
    %9347 = vsyncpa [#allocation5], 1
    %9348 = vsyncpa [#allocation8], 1
    %9349 = vsyncpa [#allocation11], 1
    %9350 = vsyncpa [#allocation14], 1
    %9351 = vsyncpa [#allocation17], 1
    %9352 = vsyncpa [#allocation20], 1
    %9353 = vsyncpa [#allocation23], 1
    %9354 = vsyncpa [#allocation26], 1
    %9355 = vsyncpa [#allocation29], 1
    %9356 = vsyncpa [#allocation32], 1
    %9357 = vsyncpa [#allocation35], 1
    %9358 = vsyncpa [#allocation38], 1
    %9359 = vsyncpa [#allocation41], 1
    %9360 = vsyncpa [#allocation44], 1
    %9361 = vsyncpa [#allocation47], 1
    %9362 = vsyncpa [#allocation50], 1
    %9363 = vsyncpa [#allocation53], 1
    %9364 = vsyncpa [#allocation56], 1
    %9365 = vsyncpa [#allocation59], 1
    %9366 = vsyncpa [#allocation62], 1
    %9367 = vsyncpa [#allocation6], 1

</llo_original>
